<compile_context>
chip_gen: v7x
topology: tpu7x:2x2x1
jax: 0.10.0
libtpu: 0.0.40
codegen_flags: <defaults>
</compile_context>

<pallas_src>
import math
from typing import NamedTuple

import jax
import jax.numpy as jnp
from jax import lax
from jax.experimental import pallas as pl
from jax.experimental.pallas import tpu as pltpu

# ---- hyperparameters mirroring TradingModel.__init__ -------------------------------
FEATURE_DIMENSION = 16          # d_model == input feature dim (nhead=8 -> head_dim=2)
NUM_HEADS = 8
DIM_FF = 256                    # dim_feedforward in the encoder layer
NUM_LAYERS = 4                  # num_layers of the TransformerEncoder
HIDDEN_SIZE = 128               # fc_proj hidden size (module default)
NUM_CLASSES = 3
OUT_DIM = NUM_CLASSES + 4       # 7
OUT_PAD = 128                   # lane-dense padded fc output (sliced to 7 in wrapper)
LN_EPS = 1e-5
MAX_BATCH_TILE = 64             # per-step batch tile (VMEM: ~1 MiB intermediates)


class TradeParams(NamedTuple):
    risk_frac: jax.Array
    sl_mult: jax.Array
    tp_mult: jax.Array
    attention: jax.Array


# ------------------------------------ kernel ----------------------------------------
def trading_model_kernel(
    x_ref, pe_ref, pool_ref, expand_ref,
    qw_ref, qb_ref, kw_ref, kb_ref, vw_ref, vb_ref,
    opw_ref, opb_ref,
    l1w_ref, l1b_ref, l2w_ref, l2b_ref,
    n1g_ref, n1b_ref, n2g_ref, n2b_ref,
    fpw_ref, fpb_ref, lng_ref, lnb_ref,
    fcw_ref, fcb_ref,
    out_ref, p_ref,
):
    # One batch tile per grid step: x_ref block is (Bt, S, D).
    Bt, S, D = x_ref.shape
    H = NUM_HEADS
    hd = D // H
    rows = Bt * S
    scale = 1.0 / math.sqrt(hd)
    f32, bf16 = jnp.float32, jnp.bfloat16

    def layer_norm(v, g, b):
        mu = jnp.mean(v, axis=-1, keepdims=True)
        var = jnp.mean(jnp.square(v - mu), axis=-1, keepdims=True)
        return (v - mu) * lax.rsqrt(var + LN_EPS) * g + b

    def dense(a, w, b):
        # bf16 MXU matmul, fp32 accumulate, fp32 bias add.
        return jnp.dot(a.astype(bf16), w.astype(bf16),
                       preferred_element_type=f32) + b

    # Constant head-membership matrices, passed in as resident bf16 inputs:
    #   pool[d, h]   = 1 iff feature d belongs to head h     (D, H)
    #   expand[h, d] = pool[d, h] transposed                  (H, D)
    pool = pool_ref[...]
    expand = expand_ref[...]

    # PositionalEncoding, then flatten to (Bt*S, D) rows for the dense/FFN path.
    x3 = x_ref[...].astype(f32) + pe_ref[...][None, :, :]         # (Bt, S, D)
    x2 = x3.reshape(rows, D)                                      # (rows, D)

    for l in range(NUM_LAYERS):
        # ---- multi-head self-attention, vectorized over heads and the batch tile ----
        q = dense(x2, qw_ref[l], qb_ref[l]) * scale               # (rows, D)
        k = dense(x2, kw_ref[l], kb_ref[l])
        v = dense(x2, vw_ref[l], vb_ref[l])
        q3 = q.reshape(Bt, S, D)
        k3 = k.reshape(Bt, S, D)
        v3 = v.reshape(Bt, S, D)

        # s[b,i,j,h] = sum_{d in head h} q[b,i,d] * k[b,j,d]  (pool matmul on MXU)
        qk = q3[:, :, None, :] * k3[:, None, :, :]                # (Bt, S, S, D)
        s = jnp.dot(qk.reshape(Bt * S * S, D).astype(bf16), pool,
                    preferred_element_type=f32).reshape(Bt, S, S, H)

        # exact softmax over keys j (fp32) -- parity with torch.softmax
        s = s - jnp.max(s, axis=2, keepdims=True)
        e = jnp.exp(s)
        p = e / jnp.sum(e, axis=2, keepdims=True)

        if l == 0:
            # layer-0 attention probs: head-mean in-kernel, summed over this batch
            # tile; grid-sum + /B in the wrapper == attn_weights.mean(dim=(0,1)).
            p_ref[...] = jnp.sum(jnp.mean(p, axis=-1), axis=0)[None, :, :]

        # o[b,i,d] = sum_j p[b,i,j,head(d)] * v[b,j,d]
        p_exp = jnp.dot(p.reshape(Bt * S * S, H).astype(bf16), expand,
                        preferred_element_type=f32).reshape(Bt, S, S, D)
        o = jnp.sum(p_exp * v3[:, None, :, :], axis=2)            # (Bt, S, D)

        attn = dense(o.reshape(rows, D), opw_ref[l], opb_ref[l])
        x2 = layer_norm(x2 + attn, n1g_ref[l], n1b_ref[l])        # residual + norm1

        # ---- feed-forward (relu) ----
        h1 = jnp.maximum(dense(x2, l1w_ref[l], l1b_ref[l]), 0.0)  # (rows, FF)
        h2 = dense(h1, l2w_ref[l], l2b_ref[l])                    # (rows, D)
        x2 = layer_norm(x2 + h2, n2g_ref[l], n2b_ref[l])          # residual + norm2

    # ---- head: mean over seq -> fc_proj -> LayerNorm -> (dropout=id) -> fc ----
    xm = jnp.mean(x2.reshape(Bt, S, D), axis=1)                   # (Bt, D)
    hp = layer_norm(dense(xm, fpw_ref[...], fpb_ref[...]),
                    lng_ref[...], lnb_ref[...])                   # (Bt, HIDDEN)
    out = dense(hp, fcw_ref[...], fcb_ref[...])                   # (Bt, OUT_PAD)
    out_ref[...] = out[:, None, :]                                # (Bt, 1, OUT_PAD)


# ------------------------------------ wrapper ---------------------------------------
def build_pe(seq_len: int, d_model: int) -> jax.Array:
    pos = jnp.arange(seq_len, dtype=jnp.float32)[:, None]
    div = jnp.exp(jnp.arange(0, d_model, 2, dtype=jnp.float32)
                  * (-jnp.log(10000.0) / d_model))
    pe = jnp.zeros((seq_len, d_model), jnp.float32)
    pe = pe.at[:, 0::2].set(jnp.sin(pos * div))
    pe = pe.at[:, 1::2].set(jnp.cos(pos * div))
    return pe


_PARAM_ORDER = ("qw", "qb", "kw", "kb", "vw", "vb", "opw", "opb",
                "l1w", "l1b", "l2w", "l2b", "n1g", "n1b", "n2g", "n2b",
                "fpw", "fpb", "lng", "lnb", "fcw", "fcb")


def init_params(key) -> dict:
    D, FF, L, HID = FEATURE_DIMENSION, DIM_FF, NUM_LAYERS, HIDDEN_SIZE
    keys = iter(jax.random.split(key, 24))
    f32, bf16 = jnp.float32, jnp.bfloat16

    def w(shape, fan_in, dtype=bf16):
        return (jax.random.normal(next(keys), shape, f32)
                / jnp.sqrt(jnp.float32(fan_in))).astype(dtype)

    # Weight matrices are (in_features, out_features), stored bf16 for the MXU.
    # QKV is pre-split so the kernel never slices a packed 3*D-wide result.
    return dict(
        qw=w((L, D, D), D),  qb=w((L, 1, D), D, f32),
        kw=w((L, D, D), D),  kb=w((L, 1, D), D, f32),
        vw=w((L, D, D), D),  vb=w((L, 1, D), D, f32),
        opw=w((L, D, D), D), opb=w((L, 1, D), D, f32),
        l1w=w((L, D, FF), D),  l1b=w((L, 1, FF), D, f32),
        l2w=w((L, FF, D), FF), l2b=w((L, 1, D), FF, f32),
        n1g=jnp.ones((L, 1, D), f32), n1b=jnp.zeros((L, 1, D), f32),
        n2g=jnp.ones((L, 1, D), f32), n2b=jnp.zeros((L, 1, D), f32),
        fpw=w((D, HID), D),        fpb=jnp.zeros((1, HID), f32),
        lng=jnp.ones((1, HID), f32), lnb=jnp.zeros((1, HID), f32),
        fcw=w((HID, OUT_DIM), HID), fcb=jnp.zeros((1, OUT_DIM), f32),
    )


def _choose_batch_tile(B: int, max_bt: int = MAX_BATCH_TILE) -> int:
    """Largest divisor of B <= max_bt, preferring >= 2 grid steps (v7x megacore)."""
    divisors = [d for d in range(1, min(B, max_bt) + 1) if B % d == 0]
    multi = [d for d in divisors if B // d >= 2]
    return max(multi) if multi else max(divisors)


def trading_model_forward(x: jax.Array, params: dict):
    B, S, D = x.shape
    if D != FEATURE_DIMENSION:
        raise ValueError("Feature dimension mismatch")
    H, hd = NUM_HEADS, FEATURE_DIMENSION // NUM_HEADS

    Bt = _choose_batch_tile(B)
    G = B // Bt                                               # grid length

    pe = build_pe(S, D)
    # Constant head-membership matrices (hoisted out of the kernel body).
    pool = (jnp.arange(D)[:, None] // hd
            == jnp.arange(H)[None, :]).astype(jnp.bfloat16)  # (D, H)
    expand = pool.T                                           # (H, D)

    # Lane-dense fc output: zero-pad (HID, 7) -> (HID, 128); slice back after the call.
    fcw_pad = jnp.zeros((HIDDEN_SIZE, OUT_PAD),
                        params["fcw"].dtype).at[:, :OUT_DIM].set(params["fcw"])
    fcb_pad = jnp.zeros((1, OUT_PAD),
                        params["fcb"].dtype).at[:, :OUT_DIM].set(params["fcb"])
    padded = dict(params, fcw=fcw_pad, fcb=fcb_pad)
    weights = [padded[k] for k in _PARAM_ORDER]

    def resident(arr):
        # Full-array block, constant index -> stays resident in VMEM across the grid.
        zeros = (0,) * arr.ndim
        return pl.BlockSpec(arr.shape, lambda g: zeros)

    in_specs = ([pl.BlockSpec((Bt, S, D), lambda g: (g, 0, 0)),
                 resident(pe), resident(pool), resident(expand)]
                + [resident(w) for w in weights])
    out_specs = (pl.BlockSpec((Bt, 1, OUT_PAD), lambda g: (g, 0, 0)),
                 pl.BlockSpec((1, S, S), lambda g: (g, 0, 0)))

    out3, p_steps = pl.pallas_call(
        trading_model_kernel,
        grid=(G,),
        in_specs=in_specs,
        out_specs=out_specs,
        out_shape=(jax.ShapeDtypeStruct((B, 1, OUT_PAD), jnp.float32),
                   jax.ShapeDtypeStruct((G, S, S), jnp.float32)),
        compiler_params=pltpu.CompilerParams(
            dimension_semantics=("parallel",)),   # megacore split over batch on v7x
    )(x.astype(jnp.float32), pe, pool, expand, *weights)

    out_all = out3[:, 0, :OUT_DIM]                    # (B, 7)
    # heads averaged + tile-summed in-kernel; finish the batch mean here
    p = jnp.sum(p_steps, axis=0) / B                  # (S, S) == attn.mean(dim=(0,1))

    # ---- glue / post-processing identical to the PyTorch tail ----
    logits = jnp.clip(jnp.nan_to_num(out_all[:, :3]), -10.0, 10.0)
    risk_frac = 0.001 + 0.499 * jax.nn.sigmoid(out_all[:, 3])
    sl_mult = 0.5 + 9.5 * jax.nn.sigmoid(out_all[:, 4])
    tp_mult = 0.5 + 9.5 * jax.nn.sigmoid(out_all[:, 5])
    pred_reward = 0.1 * jnp.nan_to_num(out_all[:, 6])
    w = jnp.nan_to_num(p)[None]                       # (1, S, S)
    # TODO(synk): logger / G.global_* attention-history side effects (entropy,
    # max_prob appends) are host-side bookkeeping and intentionally omitted.
    return logits, TradeParams(risk_frac, sl_mult, tp_mult, w), pred_reward


if __name__ == "__main__":
    key = jax.random.PRNGKey(0)
    kx, kp = jax.random.split(key)
    B, S = 2, 8
    x = jax.random.normal(kx, (B, S, FEATURE_DIMENSION), jnp.float32)
    params = init_params(kp)

    logits, tp, pred_reward = trading_model_forward(x, params)
    jax.block_until_ready((logits, tp, pred_reward))

    assert logits.shape == (B, NUM_CLASSES)
    assert tp.risk_frac.shape == (B,)
    assert tp.sl_mult.shape == (B,) and tp.tp_mult.shape == (B,)
    assert tp.attention.shape == (1, S, S)
    assert pred_reward.shape == (B,)
    # exact-softmax path: returned attention rows must sum to ~1
    row_sums = jnp.sum(tp.attention[0], axis=-1)
    assert bool(jnp.all(jnp.abs(row_sums - 1.0) < 1e-3))
    print("KERNEL_OK")
</pallas_src>

<mosaic_0001>
module attributes {stable_mosaic.version = 11 : i64} {
  func.func @trading_model_kernel(%arg0: i32, %arg1: memref<1x8x16xf32, #tpu.memory_space<vmem>>, %arg2: memref<8x16xf32, #tpu.memory_space<vmem>>, %arg3: memref<16x8xbf16, #tpu.memory_space<vmem>>, %arg4: memref<8x16xbf16, #tpu.memory_space<vmem>>, %arg5: memref<4x16x16xbf16, #tpu.memory_space<vmem>>, %arg6: memref<4x1x16xf32, #tpu.memory_space<vmem>>, %arg7: memref<4x16x16xbf16, #tpu.memory_space<vmem>>, %arg8: memref<4x1x16xf32, #tpu.memory_space<vmem>>, %arg9: memref<4x16x16xbf16, #tpu.memory_space<vmem>>, %arg10: memref<4x1x16xf32, #tpu.memory_space<vmem>>, %arg11: memref<4x16x16xbf16, #tpu.memory_space<vmem>>, %arg12: memref<4x1x16xf32, #tpu.memory_space<vmem>>, %arg13: memref<4x16x256xbf16, #tpu.memory_space<vmem>>, %arg14: memref<4x1x256xf32, #tpu.memory_space<vmem>>, %arg15: memref<4x256x16xbf16, #tpu.memory_space<vmem>>, %arg16: memref<4x1x16xf32, #tpu.memory_space<vmem>>, %arg17: memref<4x1x16xf32, #tpu.memory_space<vmem>>, %arg18: memref<4x1x16xf32, #tpu.memory_space<vmem>>, %arg19: memref<4x1x16xf32, #tpu.memory_space<vmem>>, %arg20: memref<4x1x16xf32, #tpu.memory_space<vmem>>, %arg21: memref<16x128xbf16, #tpu.memory_space<vmem>>, %arg22: memref<1x128xf32, #tpu.memory_space<vmem>>, %arg23: memref<1x128xf32, #tpu.memory_space<vmem>>, %arg24: memref<1x128xf32, #tpu.memory_space<vmem>>, %arg25: memref<128x128xbf16, #tpu.memory_space<vmem>>, %arg26: memref<1x128xf32, #tpu.memory_space<vmem>>, %arg27: memref<1x1x128xf32, #tpu.memory_space<vmem>>, %arg28: memref<1x8x8xf32, #tpu.memory_space<vmem>>) attributes {dimension_semantics = [#tpu.dimension_semantics<parallel>], iteration_bounds = array<i64: 2>, scalar_prefetch = 0 : i64, scratch_operands = 0 : i64, tpu.core_type = #tpu.core_type<tc>, window_params = [{transform_indices = @transform_0, window_bounds = array<i64: 1, 8, 16>}, {pipeline_mode = #tpu.pipeline_mode<synchronous>, transform_indices = @transform_1, window_bounds = array<i64: 8, 16>}, {pipeline_mode = #tpu.pipeline_mode<synchronous>, transform_indices = @transform_2, window_bounds = array<i64: 16, 8>}, {pipeline_mode = #tpu.pipeline_mode<synchronous>, transform_indices = @transform_3, window_bounds = array<i64: 8, 16>}, {pipeline_mode = #tpu.pipeline_mode<synchronous>, transform_indices = @transform_4, window_bounds = array<i64: 4, 16, 16>}, {pipeline_mode = #tpu.pipeline_mode<synchronous>, transform_indices = @transform_5, window_bounds = array<i64: 4, 1, 16>}, {pipeline_mode = #tpu.pipeline_mode<synchronous>, transform_indices = @transform_6, window_bounds = array<i64: 4, 16, 16>}, {pipeline_mode = #tpu.pipeline_mode<synchronous>, transform_indices = @transform_7, window_bounds = array<i64: 4, 1, 16>}, {pipeline_mode = #tpu.pipeline_mode<synchronous>, transform_indices = @transform_8, window_bounds = array<i64: 4, 16, 16>}, {pipeline_mode = #tpu.pipeline_mode<synchronous>, transform_indices = @transform_9, window_bounds = array<i64: 4, 1, 16>}, {pipeline_mode = #tpu.pipeline_mode<synchronous>, transform_indices = @transform_10, window_bounds = array<i64: 4, 16, 16>}, {pipeline_mode = #tpu.pipeline_mode<synchronous>, transform_indices = @transform_11, window_bounds = array<i64: 4, 1, 16>}, {pipeline_mode = #tpu.pipeline_mode<synchronous>, transform_indices = @transform_12, window_bounds = array<i64: 4, 16, 256>}, {pipeline_mode = #tpu.pipeline_mode<synchronous>, transform_indices = @transform_13, window_bounds = array<i64: 4, 1, 256>}, {pipeline_mode = #tpu.pipeline_mode<synchronous>, transform_indices = @transform_14, window_bounds = array<i64: 4, 256, 16>}, {pipeline_mode = #tpu.pipeline_mode<synchronous>, transform_indices = @transform_15, window_bounds = array<i64: 4, 1, 16>}, {pipeline_mode = #tpu.pipeline_mode<synchronous>, transform_indices = @transform_16, window_bounds = array<i64: 4, 1, 16>}, {pipeline_mode = #tpu.pipeline_mode<synchronous>, transform_indices = @transform_17, window_bounds = array<i64: 4, 1, 16>}, {pipeline_mode = #tpu.pipeline_mode<synchronous>, transform_indices = @transform_18, window_bounds = array<i64: 4, 1, 16>}, {pipeline_mode = #tpu.pipeline_mode<synchronous>, transform_indices = @transform_19, window_bounds = array<i64: 4, 1, 16>}, {pipeline_mode = #tpu.pipeline_mode<synchronous>, transform_indices = @transform_20, window_bounds = array<i64: 16, 128>}, {pipeline_mode = #tpu.pipeline_mode<synchronous>, transform_indices = @transform_21, window_bounds = array<i64: 1, 128>}, {pipeline_mode = #tpu.pipeline_mode<synchronous>, transform_indices = @transform_22, window_bounds = array<i64: 1, 128>}, {pipeline_mode = #tpu.pipeline_mode<synchronous>, transform_indices = @transform_23, window_bounds = array<i64: 1, 128>}, {pipeline_mode = #tpu.pipeline_mode<synchronous>, transform_indices = @transform_24, window_bounds = array<i64: 128, 128>}, {pipeline_mode = #tpu.pipeline_mode<synchronous>, transform_indices = @transform_25, window_bounds = array<i64: 1, 128>}, {transform_indices = @transform_26, window_bounds = array<i64: 1, 1, 128>}, {transform_indices = @transform_27, window_bounds = array<i64: 1, 8, 8>}]} {
    %c0 = arith.constant 0 : index
    %c0_0 = arith.constant 0 : index
    %0 = vector.load %arg3[%c0, %c0_0] : memref<16x8xbf16, #tpu.memory_space<vmem>>, vector<16x8xbf16>
    %c0_1 = arith.constant 0 : index
    %c0_2 = arith.constant 0 : index
    %1 = vector.load %arg4[%c0_1, %c0_2] : memref<8x16xbf16, #tpu.memory_space<vmem>>, vector<8x16xbf16>
    %c0_3 = arith.constant 0 : index
    %c0_4 = arith.constant 0 : index
    %c0_5 = arith.constant 0 : index
    %2 = vector.load %arg1[%c0_3, %c0_4, %c0_5] : memref<1x8x16xf32, #tpu.memory_space<vmem>>, vector<1x8x16xf32>
    %c0_6 = arith.constant 0 : index
    %c0_7 = arith.constant 0 : index
    %3 = vector.load %arg2[%c0_6, %c0_7] : memref<8x16xf32, #tpu.memory_space<vmem>>, vector<8x16xf32>
    %4 = vector.shape_cast %3 : vector<8x16xf32> to vector<1x8x16xf32>
    %5 = arith.addf %2, %4 : vector<1x8x16xf32>
    %6 = vector.shape_cast %5 : vector<1x8x16xf32> to vector<8x16xf32>
    %c0_8 = arith.constant 0 : index
    %c0_9 = arith.constant 0 : index
    %c0_10 = arith.constant 0 : index
    %7 = vector.load %arg5[%c0_8, %c0_9, %c0_10] : memref<4x16x16xbf16, #tpu.memory_space<vmem>>, vector<1x16x16xbf16>
    %8 = vector.shape_cast %7 : vector<1x16x16xbf16> to vector<16x16xbf16>
    %c0_11 = arith.constant 0 : index
    %c0_12 = arith.constant 0 : index
    %c0_13 = arith.constant 0 : index
    %9 = vector.load %arg6[%c0_11, %c0_12, %c0_13] : memref<4x1x16xf32, #tpu.memory_space<vmem>>, vector<1x1x16xf32>
    %10 = vector.shape_cast %9 : vector<1x1x16xf32> to vector<1x16xf32>
    %11 = arith.truncf %6 : vector<8x16xf32> to vector<8x16xbf16>
    %cst = arith.constant dense<0.000000e+00> : vector<8x16xf32>
    %12 = tpu.matmul %11, %8, %cst {dimension_numbers = #tpu.dot_dimension_numbers<[1], [0], [0], [1], [0, 0, 1, 1], [], []>} : vector<8x16xbf16>, vector<16x16xbf16>, vector<8x16xf32> -> vector<8x16xf32>
    %13 = vector.broadcast %10 : vector<1x16xf32> to vector<8x16xf32>
    %14 = arith.addf %12, %13 : vector<8x16xf32>
    %cst_14 = arith.constant 0.707106769 : f32
    %15 = vector.broadcast %cst_14 : f32 to vector<8x16xf32>
    %16 = arith.mulf %14, %15 : vector<8x16xf32>
    %c0_15 = arith.constant 0 : index
    %c0_16 = arith.constant 0 : index
    %c0_17 = arith.constant 0 : index
    %17 = vector.load %arg7[%c0_15, %c0_16, %c0_17] : memref<4x16x16xbf16, #tpu.memory_space<vmem>>, vector<1x16x16xbf16>
    %18 = vector.shape_cast %17 : vector<1x16x16xbf16> to vector<16x16xbf16>
    %c0_18 = arith.constant 0 : index
    %c0_19 = arith.constant 0 : index
    %c0_20 = arith.constant 0 : index
    %19 = vector.load %arg8[%c0_18, %c0_19, %c0_20] : memref<4x1x16xf32, #tpu.memory_space<vmem>>, vector<1x1x16xf32>
    %20 = vector.shape_cast %19 : vector<1x1x16xf32> to vector<1x16xf32>
    %21 = arith.truncf %6 : vector<8x16xf32> to vector<8x16xbf16>
    %cst_21 = arith.constant dense<0.000000e+00> : vector<8x16xf32>
    %22 = tpu.matmul %21, %18, %cst_21 {dimension_numbers = #tpu.dot_dimension_numbers<[1], [0], [0], [1], [0, 0, 1, 1], [], []>} : vector<8x16xbf16>, vector<16x16xbf16>, vector<8x16xf32> -> vector<8x16xf32>
    %23 = vector.broadcast %20 : vector<1x16xf32> to vector<8x16xf32>
    %24 = arith.addf %22, %23 : vector<8x16xf32>
    %c0_22 = arith.constant 0 : index
    %c0_23 = arith.constant 0 : index
    %c0_24 = arith.constant 0 : index
    %25 = vector.load %arg9[%c0_22, %c0_23, %c0_24] : memref<4x16x16xbf16, #tpu.memory_space<vmem>>, vector<1x16x16xbf16>
    %26 = vector.shape_cast %25 : vector<1x16x16xbf16> to vector<16x16xbf16>
    %c0_25 = arith.constant 0 : index
    %c0_26 = arith.constant 0 : index
    %c0_27 = arith.constant 0 : index
    %27 = vector.load %arg10[%c0_25, %c0_26, %c0_27] : memref<4x1x16xf32, #tpu.memory_space<vmem>>, vector<1x1x16xf32>
    %28 = vector.shape_cast %27 : vector<1x1x16xf32> to vector<1x16xf32>
    %29 = arith.truncf %6 : vector<8x16xf32> to vector<8x16xbf16>
    %cst_28 = arith.constant dense<0.000000e+00> : vector<8x16xf32>
    %30 = tpu.matmul %29, %26, %cst_28 {dimension_numbers = #tpu.dot_dimension_numbers<[1], [0], [0], [1], [0, 0, 1, 1], [], []>} : vector<8x16xbf16>, vector<16x16xbf16>, vector<8x16xf32> -> vector<8x16xf32>
    %31 = vector.broadcast %28 : vector<1x16xf32> to vector<8x16xf32>
    %32 = arith.addf %30, %31 : vector<8x16xf32>
    %33 = vector.shape_cast %16 : vector<8x16xf32> to vector<1x8x16xf32>
    %34 = vector.shape_cast %24 : vector<8x16xf32> to vector<1x8x16xf32>
    %35 = vector.shape_cast %32 : vector<8x16xf32> to vector<1x8x16xf32>
    %36 = vector.shape_cast %33 : vector<1x8x16xf32> to vector<1x8x1x16xf32>
    %37 = vector.shape_cast %34 : vector<1x8x16xf32> to vector<1x1x8x16xf32>
    %38 = vector.broadcast %36 : vector<1x8x1x16xf32> to vector<1x8x8x16xf32>
    %39 = vector.broadcast %37 : vector<1x1x8x16xf32> to vector<1x8x8x16xf32>
    %40 = arith.mulf %38, %39 : vector<1x8x8x16xf32>
    %41 = vector.shape_cast %40 : vector<1x8x8x16xf32> to vector<64x16xf32>
    %42 = arith.truncf %41 : vector<64x16xf32> to vector<64x16xbf16>
    %cst_29 = arith.constant dense<0.000000e+00> : vector<64x8xf32>
    %43 = tpu.matmul %42, %0, %cst_29 {dimension_numbers = #tpu.dot_dimension_numbers<[1], [0], [0], [1], [0, 0, 1, 1], [], []>} : vector<64x16xbf16>, vector<16x8xbf16>, vector<64x8xf32> -> vector<64x8xf32>
    %44 = vector.shape_cast %43 : vector<64x8xf32> to vector<1x8x8x8xf32>
    %cst_30 = arith.constant dense<0xFF800000> : vector<1x8x8xf32>
    %45 = vector.multi_reduction <maximumf>, %44, %cst_30 [2] : vector<1x8x8x8xf32> to vector<1x8x8xf32>
    %46 = vector.shape_cast %45 : vector<1x8x8xf32> to vector<1x8x1x8xf32>
    %47 = vector.broadcast %46 : vector<1x8x1x8xf32> to vector<1x8x8x8xf32>
    %48 = arith.subf %44, %47 : vector<1x8x8x8xf32>
    %49 = math.exp %48 : vector<1x8x8x8xf32>
    %cst_31 = arith.constant dense<0.000000e+00> : vector<1x8x8xf32>
    %50 = vector.multi_reduction <add>, %49, %cst_31 [2] : vector<1x8x8x8xf32> to vector<1x8x8xf32>
    %51 = vector.shape_cast %50 : vector<1x8x8xf32> to vector<1x8x1x8xf32>
    %52 = vector.broadcast %51 : vector<1x8x1x8xf32> to vector<1x8x8x8xf32>
    %53 = arith.divf %49, %52 : vector<1x8x8x8xf32>
    %cst_32 = arith.constant dense<0.000000e+00> : vector<1x8x8xf32>
    %54 = vector.multi_reduction <add>, %53, %cst_32 [3] : vector<1x8x8x8xf32> to vector<1x8x8xf32>
    %cst_33 = arith.constant 8.000000e+00 : f32
    %55 = vector.broadcast %cst_33 : f32 to vector<1x8x8xf32>
    %56 = arith.divf %54, %55 : vector<1x8x8xf32>
    %cst_34 = arith.constant dense<0.000000e+00> : vector<8x8xf32>
    %57 = vector.multi_reduction <add>, %56, %cst_34 [0] : vector<1x8x8xf32> to vector<8x8xf32>
    %58 = vector.shape_cast %57 : vector<8x8xf32> to vector<1x8x8xf32>
    %c0_35 = arith.constant 0 : index
    %c0_36 = arith.constant 0 : index
    %c0_37 = arith.constant 0 : index
    %59 = vector.load %arg28[%c0_35, %c0_36, %c0_37] : memref<1x8x8xf32, #tpu.memory_space<vmem>>, vector<1x8x8xf32>
    tpu.vector_store %arg28[%c0_35, %c0_36, %c0_37], %58 {strides = array<i32>} : memref<1x8x8xf32, #tpu.memory_space<vmem>>, vector<1x8x8xf32>,
    %60 = vector.shape_cast %53 : vector<1x8x8x8xf32> to vector<64x8xf32>
    %61 = arith.truncf %60 : vector<64x8xf32> to vector<64x8xbf16>
    %cst_38 = arith.constant dense<0.000000e+00> : vector<64x16xf32>
    %62 = tpu.matmul %61, %1, %cst_38 {dimension_numbers = #tpu.dot_dimension_numbers<[1], [0], [0], [1], [0, 0, 1, 1], [], []>} : vector<64x8xbf16>, vector<8x16xbf16>, vector<64x16xf32> -> vector<64x16xf32>
    %63 = vector.shape_cast %62 : vector<64x16xf32> to vector<1x8x8x16xf32>
    %64 = vector.shape_cast %35 : vector<1x8x16xf32> to vector<1x1x8x16xf32>
    %65 = vector.broadcast %64 : vector<1x1x8x16xf32> to vector<1x8x8x16xf32>
    %66 = arith.mulf %63, %65 : vector<1x8x8x16xf32>
    %cst_39 = arith.constant dense<0.000000e+00> : vector<1x8x16xf32>
    %67 = vector.multi_reduction <add>, %66, %cst_39 [2] : vector<1x8x8x16xf32> to vector<1x8x16xf32>
    %68 = vector.shape_cast %67 : vector<1x8x16xf32> to vector<8x16xf32>
    %c0_40 = arith.constant 0 : index
    %c0_41 = arith.constant 0 : index
    %c0_42 = arith.constant 0 : index
    %69 = vector.load %arg11[%c0_40, %c0_41, %c0_42] : memref<4x16x16xbf16, #tpu.memory_space<vmem>>, vector<1x16x16xbf16>
    %70 = vector.shape_cast %69 : vector<1x16x16xbf16> to vector<16x16xbf16>
    %c0_43 = arith.constant 0 : index
    %c0_44 = arith.constant 0 : index
    %c0_45 = arith.constant 0 : index
    %71 = vector.load %arg12[%c0_43, %c0_44, %c0_45] : memref<4x1x16xf32, #tpu.memory_space<vmem>>, vector<1x1x16xf32>
    %72 = vector.shape_cast %71 : vector<1x1x16xf32> to vector<1x16xf32>
    %73 = arith.truncf %68 : vector<8x16xf32> to vector<8x16xbf16>
    %cst_46 = arith.constant dense<0.000000e+00> : vector<8x16xf32>
    %74 = tpu.matmul %73, %70, %cst_46 {dimension_numbers = #tpu.dot_dimension_numbers<[1], [0], [0], [1], [0, 0, 1, 1], [], []>} : vector<8x16xbf16>, vector<16x16xbf16>, vector<8x16xf32> -> vector<8x16xf32>
    %75 = vector.broadcast %72 : vector<1x16xf32> to vector<8x16xf32>
    %76 = arith.addf %74, %75 : vector<8x16xf32>
    %77 = arith.addf %6, %76 : vector<8x16xf32>
    %c0_47 = arith.constant 0 : index
    %c0_48 = arith.constant 0 : index
    %c0_49 = arith.constant 0 : index
    %78 = vector.load %arg17[%c0_47, %c0_48, %c0_49] : memref<4x1x16xf32, #tpu.memory_space<vmem>>, vector<1x1x16xf32>
    %79 = vector.shape_cast %78 : vector<1x1x16xf32> to vector<1x16xf32>
    %c0_50 = arith.constant 0 : index
    %c0_51 = arith.constant 0 : index
    %c0_52 = arith.constant 0 : index
    %80 = vector.load %arg18[%c0_50, %c0_51, %c0_52] : memref<4x1x16xf32, #tpu.memory_space<vmem>>, vector<1x1x16xf32>
    %81 = vector.shape_cast %80 : vector<1x1x16xf32> to vector<1x16xf32>
    %cst_53 = arith.constant dense<0.000000e+00> : vector<8xf32>
    %82 = vector.multi_reduction <add>, %77, %cst_53 [1] : vector<8x16xf32> to vector<8xf32>
    %83 = vector.shape_cast %82 : vector<8xf32> to vector<8x1xf32>
    %cst_54 = arith.constant 1.600000e+01 : f32
    %84 = vector.broadcast %cst_54 : f32 to vector<8x1xf32>
    %85 = arith.divf %83, %84 : vector<8x1xf32>
    %86 = vector.broadcast %85 : vector<8x1xf32> to vector<8x16xf32>
    %87 = arith.subf %77, %86 : vector<8x16xf32>
    %88 = arith.mulf %87, %87 : vector<8x16xf32>
    %cst_55 = arith.constant dense<0.000000e+00> : vector<8xf32>
    %89 = vector.multi_reduction <add>, %88, %cst_55 [1] : vector<8x16xf32> to vector<8xf32>
    %90 = vector.shape_cast %89 : vector<8xf32> to vector<8x1xf32>
    %cst_56 = arith.constant 1.600000e+01 : f32
    %91 = vector.broadcast %cst_56 : f32 to vector<8x1xf32>
    %92 = arith.divf %90, %91 : vector<8x1xf32>
    %93 = vector.broadcast %85 : vector<8x1xf32> to vector<8x16xf32>
    %94 = arith.subf %77, %93 : vector<8x16xf32>
    %cst_57 = arith.constant 9.99999974E-6 : f32
    %95 = vector.broadcast %cst_57 : f32 to vector<8x1xf32>
    %96 = arith.addf %92, %95 : vector<8x1xf32>
    %97 = math.rsqrt %96 : vector<8x1xf32>
    %98 = vector.broadcast %97 : vector<8x1xf32> to vector<8x16xf32>
    %99 = arith.mulf %94, %98 : vector<8x16xf32>
    %100 = vector.broadcast %79 : vector<1x16xf32> to vector<8x16xf32>
    %101 = arith.mulf %99, %100 : vector<8x16xf32>
    %102 = vector.broadcast %81 : vector<1x16xf32> to vector<8x16xf32>
    %103 = arith.addf %101, %102 : vector<8x16xf32>
    %c0_58 = arith.constant 0 : index
    %c0_59 = arith.constant 0 : index
    %c0_60 = arith.constant 0 : index
    %104 = vector.load %arg13[%c0_58, %c0_59, %c0_60] : memref<4x16x256xbf16, #tpu.memory_space<vmem>>, vector<1x16x256xbf16>
    %105 = vector.shape_cast %104 : vector<1x16x256xbf16> to vector<16x256xbf16>
    %c0_61 = arith.constant 0 : index
    %c0_62 = arith.constant 0 : index
    %c0_63 = arith.constant 0 : index
    %106 = vector.load %arg14[%c0_61, %c0_62, %c0_63] : memref<4x1x256xf32, #tpu.memory_space<vmem>>, vector<1x1x256xf32>
    %107 = vector.shape_cast %106 : vector<1x1x256xf32> to vector<1x256xf32>
    %108 = arith.truncf %103 : vector<8x16xf32> to vector<8x16xbf16>
    %cst_64 = arith.constant dense<0.000000e+00> : vector<8x256xf32>
    %109 = tpu.matmul %108, %105, %cst_64 {dimension_numbers = #tpu.dot_dimension_numbers<[1], [0], [0], [1], [0, 0, 1, 1], [], []>} : vector<8x16xbf16>, vector<16x256xbf16>, vector<8x256xf32> -> vector<8x256xf32>
    %110 = vector.broadcast %107 : vector<1x256xf32> to vector<8x256xf32>
    %111 = arith.addf %109, %110 : vector<8x256xf32>
    %cst_65 = arith.constant 0.000000e+00 : f32
    %112 = vector.broadcast %cst_65 : f32 to vector<8x256xf32>
    %113 = arith.maximumf %111, %112 : vector<8x256xf32>
    %c0_66 = arith.constant 0 : index
    %c0_67 = arith.constant 0 : index
    %c0_68 = arith.constant 0 : index
    %114 = vector.load %arg15[%c0_66, %c0_67, %c0_68] : memref<4x256x16xbf16, #tpu.memory_space<vmem>>, vector<1x256x16xbf16>
    %115 = vector.shape_cast %114 : vector<1x256x16xbf16> to vector<256x16xbf16>
    %c0_69 = arith.constant 0 : index
    %c0_70 = arith.constant 0 : index
    %c0_71 = arith.constant 0 : index
    %116 = vector.load %arg16[%c0_69, %c0_70, %c0_71] : memref<4x1x16xf32, #tpu.memory_space<vmem>>, vector<1x1x16xf32>
    %117 = vector.shape_cast %116 : vector<1x1x16xf32> to vector<1x16xf32>
    %118 = arith.truncf %113 : vector<8x256xf32> to vector<8x256xbf16>
    %cst_72 = arith.constant dense<0.000000e+00> : vector<8x16xf32>
    %119 = tpu.matmul %118, %115, %cst_72 {dimension_numbers = #tpu.dot_dimension_numbers<[1], [0], [0], [1], [0, 0, 1, 1], [], []>} : vector<8x256xbf16>, vector<256x16xbf16>, vector<8x16xf32> -> vector<8x16xf32>
    %120 = vector.broadcast %117 : vector<1x16xf32> to vector<8x16xf32>
    %121 = arith.addf %119, %120 : vector<8x16xf32>
    %122 = arith.addf %103, %121 : vector<8x16xf32>
    %c0_73 = arith.constant 0 : index
    %c0_74 = arith.constant 0 : index
    %c0_75 = arith.constant 0 : index
    %123 = vector.load %arg19[%c0_73, %c0_74, %c0_75] : memref<4x1x16xf32, #tpu.memory_space<vmem>>, vector<1x1x16xf32>
    %124 = vector.shape_cast %123 : vector<1x1x16xf32> to vector<1x16xf32>
    %c0_76 = arith.constant 0 : index
    %c0_77 = arith.constant 0 : index
    %c0_78 = arith.constant 0 : index
    %125 = vector.load %arg20[%c0_76, %c0_77, %c0_78] : memref<4x1x16xf32, #tpu.memory_space<vmem>>, vector<1x1x16xf32>
    %126 = vector.shape_cast %125 : vector<1x1x16xf32> to vector<1x16xf32>
    %cst_79 = arith.constant dense<0.000000e+00> : vector<8xf32>
    %127 = vector.multi_reduction <add>, %122, %cst_79 [1] : vector<8x16xf32> to vector<8xf32>
    %128 = vector.shape_cast %127 : vector<8xf32> to vector<8x1xf32>
    %cst_80 = arith.constant 1.600000e+01 : f32
    %129 = vector.broadcast %cst_80 : f32 to vector<8x1xf32>
    %130 = arith.divf %128, %129 : vector<8x1xf32>
    %131 = vector.broadcast %130 : vector<8x1xf32> to vector<8x16xf32>
    %132 = arith.subf %122, %131 : vector<8x16xf32>
    %133 = arith.mulf %132, %132 : vector<8x16xf32>
    %cst_81 = arith.constant dense<0.000000e+00> : vector<8xf32>
    %134 = vector.multi_reduction <add>, %133, %cst_81 [1] : vector<8x16xf32> to vector<8xf32>
    %135 = vector.shape_cast %134 : vector<8xf32> to vector<8x1xf32>
    %cst_82 = arith.constant 1.600000e+01 : f32
    %136 = vector.broadcast %cst_82 : f32 to vector<8x1xf32>
    %137 = arith.divf %135, %136 : vector<8x1xf32>
    %138 = vector.broadcast %130 : vector<8x1xf32> to vector<8x16xf32>
    %139 = arith.subf %122, %138 : vector<8x16xf32>
    %cst_83 = arith.constant 9.99999974E-6 : f32
    %140 = vector.broadcast %cst_83 : f32 to vector<8x1xf32>
    %141 = arith.addf %137, %140 : vector<8x1xf32>
    %142 = math.rsqrt %141 : vector<8x1xf32>
    %143 = vector.broadcast %142 : vector<8x1xf32> to vector<8x16xf32>
    %144 = arith.mulf %139, %143 : vector<8x16xf32>
    %145 = vector.broadcast %124 : vector<1x16xf32> to vector<8x16xf32>
    %146 = arith.mulf %144, %145 : vector<8x16xf32>
    %147 = vector.broadcast %126 : vector<1x16xf32> to vector<8x16xf32>
    %148 = arith.addf %146, %147 : vector<8x16xf32>
    %c1 = arith.constant 1 : index
    %c0_84 = arith.constant 0 : index
    %c0_85 = arith.constant 0 : index
    %149 = vector.load %arg5[%c1, %c0_84, %c0_85] : memref<4x16x16xbf16, #tpu.memory_space<vmem>>, vector<1x16x16xbf16>
    %150 = vector.shape_cast %149 : vector<1x16x16xbf16> to vector<16x16xbf16>
    %c1_86 = arith.constant 1 : index
    %c0_87 = arith.constant 0 : index
    %c0_88 = arith.constant 0 : index
    %151 = vector.load %arg6[%c1_86, %c0_87, %c0_88] : memref<4x1x16xf32, #tpu.memory_space<vmem>>, vector<1x1x16xf32>
    %152 = vector.shape_cast %151 : vector<1x1x16xf32> to vector<1x16xf32>
    %153 = arith.truncf %148 : vector<8x16xf32> to vector<8x16xbf16>
    %cst_89 = arith.constant dense<0.000000e+00> : vector<8x16xf32>
    %154 = tpu.matmul %153, %150, %cst_89 {dimension_numbers = #tpu.dot_dimension_numbers<[1], [0], [0], [1], [0, 0, 1, 1], [], []>} : vector<8x16xbf16>, vector<16x16xbf16>, vector<8x16xf32> -> vector<8x16xf32>
    %155 = vector.broadcast %152 : vector<1x16xf32> to vector<8x16xf32>
    %156 = arith.addf %154, %155 : vector<8x16xf32>
    %cst_90 = arith.constant 0.707106769 : f32
    %157 = vector.broadcast %cst_90 : f32 to vector<8x16xf32>
    %158 = arith.mulf %156, %157 : vector<8x16xf32>
    %c1_91 = arith.constant 1 : index
    %c0_92 = arith.constant 0 : index
    %c0_93 = arith.constant 0 : index
    %159 = vector.load %arg7[%c1_91, %c0_92, %c0_93] : memref<4x16x16xbf16, #tpu.memory_space<vmem>>, vector<1x16x16xbf16>
    %160 = vector.shape_cast %159 : vector<1x16x16xbf16> to vector<16x16xbf16>
    %c1_94 = arith.constant 1 : index
    %c0_95 = arith.constant 0 : index
    %c0_96 = arith.constant 0 : index
    %161 = vector.load %arg8[%c1_94, %c0_95, %c0_96] : memref<4x1x16xf32, #tpu.memory_space<vmem>>, vector<1x1x16xf32>
    %162 = vector.shape_cast %161 : vector<1x1x16xf32> to vector<1x16xf32>
    %163 = arith.truncf %148 : vector<8x16xf32> to vector<8x16xbf16>
    %cst_97 = arith.constant dense<0.000000e+00> : vector<8x16xf32>
    %164 = tpu.matmul %163, %160, %cst_97 {dimension_numbers = #tpu.dot_dimension_numbers<[1], [0], [0], [1], [0, 0, 1, 1], [], []>} : vector<8x16xbf16>, vector<16x16xbf16>, vector<8x16xf32> -> vector<8x16xf32>
    %165 = vector.broadcast %162 : vector<1x16xf32> to vector<8x16xf32>
    %166 = arith.addf %164, %165 : vector<8x16xf32>
    %c1_98 = arith.constant 1 : index
    %c0_99 = arith.constant 0 : index
    %c0_100 = arith.constant 0 : index
    %167 = vector.load %arg9[%c1_98, %c0_99, %c0_100] : memref<4x16x16xbf16, #tpu.memory_space<vmem>>, vector<1x16x16xbf16>
    %168 = vector.shape_cast %167 : vector<1x16x16xbf16> to vector<16x16xbf16>
    %c1_101 = arith.constant 1 : index
    %c0_102 = arith.constant 0 : index
    %c0_103 = arith.constant 0 : index
    %169 = vector.load %arg10[%c1_101, %c0_102, %c0_103] : memref<4x1x16xf32, #tpu.memory_space<vmem>>, vector<1x1x16xf32>
    %170 = vector.shape_cast %169 : vector<1x1x16xf32> to vector<1x16xf32>
    %171 = arith.truncf %148 : vector<8x16xf32> to vector<8x16xbf16>
    %cst_104 = arith.constant dense<0.000000e+00> : vector<8x16xf32>
    %172 = tpu.matmul %171, %168, %cst_104 {dimension_numbers = #tpu.dot_dimension_numbers<[1], [0], [0], [1], [0, 0, 1, 1], [], []>} : vector<8x16xbf16>, vector<16x16xbf16>, vector<8x16xf32> -> vector<8x16xf32>
    %173 = vector.broadcast %170 : vector<1x16xf32> to vector<8x16xf32>
    %174 = arith.addf %172, %173 : vector<8x16xf32>
    %175 = vector.shape_cast %158 : vector<8x16xf32> to vector<1x8x16xf32>
    %176 = vector.shape_cast %166 : vector<8x16xf32> to vector<1x8x16xf32>
    %177 = vector.shape_cast %174 : vector<8x16xf32> to vector<1x8x16xf32>
    %178 = vector.shape_cast %175 : vector<1x8x16xf32> to vector<1x8x1x16xf32>
    %179 = vector.shape_cast %176 : vector<1x8x16xf32> to vector<1x1x8x16xf32>
    %180 = vector.broadcast %178 : vector<1x8x1x16xf32> to vector<1x8x8x16xf32>
    %181 = vector.broadcast %179 : vector<1x1x8x16xf32> to vector<1x8x8x16xf32>
    %182 = arith.mulf %180, %181 : vector<1x8x8x16xf32>
    %183 = vector.shape_cast %182 : vector<1x8x8x16xf32> to vector<64x16xf32>
    %184 = arith.truncf %183 : vector<64x16xf32> to vector<64x16xbf16>
    %cst_105 = arith.constant dense<0.000000e+00> : vector<64x8xf32>
    %185 = tpu.matmul %184, %0, %cst_105 {dimension_numbers = #tpu.dot_dimension_numbers<[1], [0], [0], [1], [0, 0, 1, 1], [], []>} : vector<64x16xbf16>, vector<16x8xbf16>, vector<64x8xf32> -> vector<64x8xf32>
    %186 = vector.shape_cast %185 : vector<64x8xf32> to vector<1x8x8x8xf32>
    %cst_106 = arith.constant dense<0xFF800000> : vector<1x8x8xf32>
    %187 = vector.multi_reduction <maximumf>, %186, %cst_106 [2] : vector<1x8x8x8xf32> to vector<1x8x8xf32>
    %188 = vector.shape_cast %187 : vector<1x8x8xf32> to vector<1x8x1x8xf32>
    %189 = vector.broadcast %188 : vector<1x8x1x8xf32> to vector<1x8x8x8xf32>
    %190 = arith.subf %186, %189 : vector<1x8x8x8xf32>
    %191 = math.exp %190 : vector<1x8x8x8xf32>
    %cst_107 = arith.constant dense<0.000000e+00> : vector<1x8x8xf32>
    %192 = vector.multi_reduction <add>, %191, %cst_107 [2] : vector<1x8x8x8xf32> to vector<1x8x8xf32>
    %193 = vector.shape_cast %192 : vector<1x8x8xf32> to vector<1x8x1x8xf32>
    %194 = vector.broadcast %193 : vector<1x8x1x8xf32> to vector<1x8x8x8xf32>
    %195 = arith.divf %191, %194 : vector<1x8x8x8xf32>
    %196 = vector.shape_cast %195 : vector<1x8x8x8xf32> to vector<64x8xf32>
    %197 = arith.truncf %196 : vector<64x8xf32> to vector<64x8xbf16>
    %cst_108 = arith.constant dense<0.000000e+00> : vector<64x16xf32>
    %198 = tpu.matmul %197, %1, %cst_108 {dimension_numbers = #tpu.dot_dimension_numbers<[1], [0], [0], [1], [0, 0, 1, 1], [], []>} : vector<64x8xbf16>, vector<8x16xbf16>, vector<64x16xf32> -> vector<64x16xf32>
    %199 = vector.shape_cast %198 : vector<64x16xf32> to vector<1x8x8x16xf32>
    %200 = vector.shape_cast %177 : vector<1x8x16xf32> to vector<1x1x8x16xf32>
    %201 = vector.broadcast %200 : vector<1x1x8x16xf32> to vector<1x8x8x16xf32>
    %202 = arith.mulf %199, %201 : vector<1x8x8x16xf32>
    %cst_109 = arith.constant dense<0.000000e+00> : vector<1x8x16xf32>
    %203 = vector.multi_reduction <add>, %202, %cst_109 [2] : vector<1x8x8x16xf32> to vector<1x8x16xf32>
    %204 = vector.shape_cast %203 : vector<1x8x16xf32> to vector<8x16xf32>
    %c1_110 = arith.constant 1 : index
    %c0_111 = arith.constant 0 : index
    %c0_112 = arith.constant 0 : index
    %205 = vector.load %arg11[%c1_110, %c0_111, %c0_112] : memref<4x16x16xbf16, #tpu.memory_space<vmem>>, vector<1x16x16xbf16>
    %206 = vector.shape_cast %205 : vector<1x16x16xbf16> to vector<16x16xbf16>
    %c1_113 = arith.constant 1 : index
    %c0_114 = arith.constant 0 : index
    %c0_115 = arith.constant 0 : index
    %207 = vector.load %arg12[%c1_113, %c0_114, %c0_115] : memref<4x1x16xf32, #tpu.memory_space<vmem>>, vector<1x1x16xf32>
    %208 = vector.shape_cast %207 : vector<1x1x16xf32> to vector<1x16xf32>
    %209 = arith.truncf %204 : vector<8x16xf32> to vector<8x16xbf16>
    %cst_116 = arith.constant dense<0.000000e+00> : vector<8x16xf32>
    %210 = tpu.matmul %209, %206, %cst_116 {dimension_numbers = #tpu.dot_dimension_numbers<[1], [0], [0], [1], [0, 0, 1, 1], [], []>} : vector<8x16xbf16>, vector<16x16xbf16>, vector<8x16xf32> -> vector<8x16xf32>
    %211 = vector.broadcast %208 : vector<1x16xf32> to vector<8x16xf32>
    %212 = arith.addf %210, %211 : vector<8x16xf32>
    %213 = arith.addf %148, %212 : vector<8x16xf32>
    %c1_117 = arith.constant 1 : index
    %c0_118 = arith.constant 0 : index
    %c0_119 = arith.constant 0 : index
    %214 = vector.load %arg17[%c1_117, %c0_118, %c0_119] : memref<4x1x16xf32, #tpu.memory_space<vmem>>, vector<1x1x16xf32>
    %215 = vector.shape_cast %214 : vector<1x1x16xf32> to vector<1x16xf32>
    %c1_120 = arith.constant 1 : index
    %c0_121 = arith.constant 0 : index
    %c0_122 = arith.constant 0 : index
    %216 = vector.load %arg18[%c1_120, %c0_121, %c0_122] : memref<4x1x16xf32, #tpu.memory_space<vmem>>, vector<1x1x16xf32>
    %217 = vector.shape_cast %216 : vector<1x1x16xf32> to vector<1x16xf32>
    %cst_123 = arith.constant dense<0.000000e+00> : vector<8xf32>
    %218 = vector.multi_reduction <add>, %213, %cst_123 [1] : vector<8x16xf32> to vector<8xf32>
    %219 = vector.shape_cast %218 : vector<8xf32> to vector<8x1xf32>
    %cst_124 = arith.constant 1.600000e+01 : f32
    %220 = vector.broadcast %cst_124 : f32 to vector<8x1xf32>
    %221 = arith.divf %219, %220 : vector<8x1xf32>
    %222 = vector.broadcast %221 : vector<8x1xf32> to vector<8x16xf32>
    %223 = arith.subf %213, %222 : vector<8x16xf32>
    %224 = arith.mulf %223, %223 : vector<8x16xf32>
    %cst_125 = arith.constant dense<0.000000e+00> : vector<8xf32>
    %225 = vector.multi_reduction <add>, %224, %cst_125 [1] : vector<8x16xf32> to vector<8xf32>
    %226 = vector.shape_cast %225 : vector<8xf32> to vector<8x1xf32>
    %cst_126 = arith.constant 1.600000e+01 : f32
    %227 = vector.broadcast %cst_126 : f32 to vector<8x1xf32>
    %228 = arith.divf %226, %227 : vector<8x1xf32>
    %229 = vector.broadcast %221 : vector<8x1xf32> to vector<8x16xf32>
    %230 = arith.subf %213, %229 : vector<8x16xf32>
    %cst_127 = arith.constant 9.99999974E-6 : f32
    %231 = vector.broadcast %cst_127 : f32 to vector<8x1xf32>
    %232 = arith.addf %228, %231 : vector<8x1xf32>
    %233 = math.rsqrt %232 : vector<8x1xf32>
    %234 = vector.broadcast %233 : vector<8x1xf32> to vector<8x16xf32>
    %235 = arith.mulf %230, %234 : vector<8x16xf32>
    %236 = vector.broadcast %215 : vector<1x16xf32> to vector<8x16xf32>
    %237 = arith.mulf %235, %236 : vector<8x16xf32>
    %238 = vector.broadcast %217 : vector<1x16xf32> to vector<8x16xf32>
    %239 = arith.addf %237, %238 : vector<8x16xf32>
    %c1_128 = arith.constant 1 : index
    %c0_129 = arith.constant 0 : index
    %c0_130 = arith.constant 0 : index
    %240 = vector.load %arg13[%c1_128, %c0_129, %c0_130] : memref<4x16x256xbf16, #tpu.memory_space<vmem>>, vector<1x16x256xbf16>
    %241 = vector.shape_cast %240 : vector<1x16x256xbf16> to vector<16x256xbf16>
    %c1_131 = arith.constant 1 : index
    %c0_132 = arith.constant 0 : index
    %c0_133 = arith.constant 0 : index
    %242 = vector.load %arg14[%c1_131, %c0_132, %c0_133] : memref<4x1x256xf32, #tpu.memory_space<vmem>>, vector<1x1x256xf32>
    %243 = vector.shape_cast %242 : vector<1x1x256xf32> to vector<1x256xf32>
    %244 = arith.truncf %239 : vector<8x16xf32> to vector<8x16xbf16>
    %cst_134 = arith.constant dense<0.000000e+00> : vector<8x256xf32>
    %245 = tpu.matmul %244, %241, %cst_134 {dimension_numbers = #tpu.dot_dimension_numbers<[1], [0], [0], [1], [0, 0, 1, 1], [], []>} : vector<8x16xbf16>, vector<16x256xbf16>, vector<8x256xf32> -> vector<8x256xf32>
    %246 = vector.broadcast %243 : vector<1x256xf32> to vector<8x256xf32>
    %247 = arith.addf %245, %246 : vector<8x256xf32>
    %cst_135 = arith.constant 0.000000e+00 : f32
    %248 = vector.broadcast %cst_135 : f32 to vector<8x256xf32>
    %249 = arith.maximumf %247, %248 : vector<8x256xf32>
    %c1_136 = arith.constant 1 : index
    %c0_137 = arith.constant 0 : index
    %c0_138 = arith.constant 0 : index
    %250 = vector.load %arg15[%c1_136, %c0_137, %c0_138] : memref<4x256x16xbf16, #tpu.memory_space<vmem>>, vector<1x256x16xbf16>
    %251 = vector.shape_cast %250 : vector<1x256x16xbf16> to vector<256x16xbf16>
    %c1_139 = arith.constant 1 : index
    %c0_140 = arith.constant 0 : index
    %c0_141 = arith.constant 0 : index
    %252 = vector.load %arg16[%c1_139, %c0_140, %c0_141] : memref<4x1x16xf32, #tpu.memory_space<vmem>>, vector<1x1x16xf32>
    %253 = vector.shape_cast %252 : vector<1x1x16xf32> to vector<1x16xf32>
    %254 = arith.truncf %249 : vector<8x256xf32> to vector<8x256xbf16>
    %cst_142 = arith.constant dense<0.000000e+00> : vector<8x16xf32>
    %255 = tpu.matmul %254, %251, %cst_142 {dimension_numbers = #tpu.dot_dimension_numbers<[1], [0], [0], [1], [0, 0, 1, 1], [], []>} : vector<8x256xbf16>, vector<256x16xbf16>, vector<8x16xf32> -> vector<8x16xf32>
    %256 = vector.broadcast %253 : vector<1x16xf32> to vector<8x16xf32>
    %257 = arith.addf %255, %256 : vector<8x16xf32>
    %258 = arith.addf %239, %257 : vector<8x16xf32>
    %c1_143 = arith.constant 1 : index
    %c0_144 = arith.constant 0 : index
    %c0_145 = arith.constant 0 : index
    %259 = vector.load %arg19[%c1_143, %c0_144, %c0_145] : memref<4x1x16xf32, #tpu.memory_space<vmem>>, vector<1x1x16xf32>
    %260 = vector.shape_cast %259 : vector<1x1x16xf32> to vector<1x16xf32>
    %c1_146 = arith.constant 1 : index
    %c0_147 = arith.constant 0 : index
    %c0_148 = arith.constant 0 : index
    %261 = vector.load %arg20[%c1_146, %c0_147, %c0_148] : memref<4x1x16xf32, #tpu.memory_space<vmem>>, vector<1x1x16xf32>
    %262 = vector.shape_cast %261 : vector<1x1x16xf32> to vector<1x16xf32>
    %cst_149 = arith.constant dense<0.000000e+00> : vector<8xf32>
    %263 = vector.multi_reduction <add>, %258, %cst_149 [1] : vector<8x16xf32> to vector<8xf32>
    %264 = vector.shape_cast %263 : vector<8xf32> to vector<8x1xf32>
    %cst_150 = arith.constant 1.600000e+01 : f32
    %265 = vector.broadcast %cst_150 : f32 to vector<8x1xf32>
    %266 = arith.divf %264, %265 : vector<8x1xf32>
    %267 = vector.broadcast %266 : vector<8x1xf32> to vector<8x16xf32>
    %268 = arith.subf %258, %267 : vector<8x16xf32>
    %269 = arith.mulf %268, %268 : vector<8x16xf32>
    %cst_151 = arith.constant dense<0.000000e+00> : vector<8xf32>
    %270 = vector.multi_reduction <add>, %269, %cst_151 [1] : vector<8x16xf32> to vector<8xf32>
    %271 = vector.shape_cast %270 : vector<8xf32> to vector<8x1xf32>
    %cst_152 = arith.constant 1.600000e+01 : f32
    %272 = vector.broadcast %cst_152 : f32 to vector<8x1xf32>
    %273 = arith.divf %271, %272 : vector<8x1xf32>
    %274 = vector.broadcast %266 : vector<8x1xf32> to vector<8x16xf32>
    %275 = arith.subf %258, %274 : vector<8x16xf32>
    %cst_153 = arith.constant 9.99999974E-6 : f32
    %276 = vector.broadcast %cst_153 : f32 to vector<8x1xf32>
    %277 = arith.addf %273, %276 : vector<8x1xf32>
    %278 = math.rsqrt %277 : vector<8x1xf32>
    %279 = vector.broadcast %278 : vector<8x1xf32> to vector<8x16xf32>
    %280 = arith.mulf %275, %279 : vector<8x16xf32>
    %281 = vector.broadcast %260 : vector<1x16xf32> to vector<8x16xf32>
    %282 = arith.mulf %280, %281 : vector<8x16xf32>
    %283 = vector.broadcast %262 : vector<1x16xf32> to vector<8x16xf32>
    %284 = arith.addf %282, %283 : vector<8x16xf32>
    %c2 = arith.constant 2 : index
    %c0_154 = arith.constant 0 : index
    %c0_155 = arith.constant 0 : index
    %285 = vector.load %arg5[%c2, %c0_154, %c0_155] : memref<4x16x16xbf16, #tpu.memory_space<vmem>>, vector<1x16x16xbf16>
    %286 = vector.shape_cast %285 : vector<1x16x16xbf16> to vector<16x16xbf16>
    %c2_156 = arith.constant 2 : index
    %c0_157 = arith.constant 0 : index
    %c0_158 = arith.constant 0 : index
    %287 = vector.load %arg6[%c2_156, %c0_157, %c0_158] : memref<4x1x16xf32, #tpu.memory_space<vmem>>, vector<1x1x16xf32>
    %288 = vector.shape_cast %287 : vector<1x1x16xf32> to vector<1x16xf32>
    %289 = arith.truncf %284 : vector<8x16xf32> to vector<8x16xbf16>
    %cst_159 = arith.constant dense<0.000000e+00> : vector<8x16xf32>
    %290 = tpu.matmul %289, %286, %cst_159 {dimension_numbers = #tpu.dot_dimension_numbers<[1], [0], [0], [1], [0, 0, 1, 1], [], []>} : vector<8x16xbf16>, vector<16x16xbf16>, vector<8x16xf32> -> vector<8x16xf32>
    %291 = vector.broadcast %288 : vector<1x16xf32> to vector<8x16xf32>
    %292 = arith.addf %290, %291 : vector<8x16xf32>
    %cst_160 = arith.constant 0.707106769 : f32
    %293 = vector.broadcast %cst_160 : f32 to vector<8x16xf32>
    %294 = arith.mulf %292, %293 : vector<8x16xf32>
    %c2_161 = arith.constant 2 : index
    %c0_162 = arith.constant 0 : index
    %c0_163 = arith.constant 0 : index
    %295 = vector.load %arg7[%c2_161, %c0_162, %c0_163] : memref<4x16x16xbf16, #tpu.memory_space<vmem>>, vector<1x16x16xbf16>
    %296 = vector.shape_cast %295 : vector<1x16x16xbf16> to vector<16x16xbf16>
    %c2_164 = arith.constant 2 : index
    %c0_165 = arith.constant 0 : index
    %c0_166 = arith.constant 0 : index
    %297 = vector.load %arg8[%c2_164, %c0_165, %c0_166] : memref<4x1x16xf32, #tpu.memory_space<vmem>>, vector<1x1x16xf32>
    %298 = vector.shape_cast %297 : vector<1x1x16xf32> to vector<1x16xf32>
    %299 = arith.truncf %284 : vector<8x16xf32> to vector<8x16xbf16>
    %cst_167 = arith.constant dense<0.000000e+00> : vector<8x16xf32>
    %300 = tpu.matmul %299, %296, %cst_167 {dimension_numbers = #tpu.dot_dimension_numbers<[1], [0], [0], [1], [0, 0, 1, 1], [], []>} : vector<8x16xbf16>, vector<16x16xbf16>, vector<8x16xf32> -> vector<8x16xf32>
    %301 = vector.broadcast %298 : vector<1x16xf32> to vector<8x16xf32>
    %302 = arith.addf %300, %301 : vector<8x16xf32>
    %c2_168 = arith.constant 2 : index
    %c0_169 = arith.constant 0 : index
    %c0_170 = arith.constant 0 : index
    %303 = vector.load %arg9[%c2_168, %c0_169, %c0_170] : memref<4x16x16xbf16, #tpu.memory_space<vmem>>, vector<1x16x16xbf16>
    %304 = vector.shape_cast %303 : vector<1x16x16xbf16> to vector<16x16xbf16>
    %c2_171 = arith.constant 2 : index
    %c0_172 = arith.constant 0 : index
    %c0_173 = arith.constant 0 : index
    %305 = vector.load %arg10[%c2_171, %c0_172, %c0_173] : memref<4x1x16xf32, #tpu.memory_space<vmem>>, vector<1x1x16xf32>
    %306 = vector.shape_cast %305 : vector<1x1x16xf32> to vector<1x16xf32>
    %307 = arith.truncf %284 : vector<8x16xf32> to vector<8x16xbf16>
    %cst_174 = arith.constant dense<0.000000e+00> : vector<8x16xf32>
    %308 = tpu.matmul %307, %304, %cst_174 {dimension_numbers = #tpu.dot_dimension_numbers<[1], [0], [0], [1], [0, 0, 1, 1], [], []>} : vector<8x16xbf16>, vector<16x16xbf16>, vector<8x16xf32> -> vector<8x16xf32>
    %309 = vector.broadcast %306 : vector<1x16xf32> to vector<8x16xf32>
    %310 = arith.addf %308, %309 : vector<8x16xf32>
    %311 = vector.shape_cast %294 : vector<8x16xf32> to vector<1x8x16xf32>
    %312 = vector.shape_cast %302 : vector<8x16xf32> to vector<1x8x16xf32>
    %313 = vector.shape_cast %310 : vector<8x16xf32> to vector<1x8x16xf32>
    %314 = vector.shape_cast %311 : vector<1x8x16xf32> to vector<1x8x1x16xf32>
    %315 = vector.shape_cast %312 : vector<1x8x16xf32> to vector<1x1x8x16xf32>
    %316 = vector.broadcast %314 : vector<1x8x1x16xf32> to vector<1x8x8x16xf32>
    %317 = vector.broadcast %315 : vector<1x1x8x16xf32> to vector<1x8x8x16xf32>
    %318 = arith.mulf %316, %317 : vector<1x8x8x16xf32>
    %319 = vector.shape_cast %318 : vector<1x8x8x16xf32> to vector<64x16xf32>
    %320 = arith.truncf %319 : vector<64x16xf32> to vector<64x16xbf16>
    %cst_175 = arith.constant dense<0.000000e+00> : vector<64x8xf32>
    %321 = tpu.matmul %320, %0, %cst_175 {dimension_numbers = #tpu.dot_dimension_numbers<[1], [0], [0], [1], [0, 0, 1, 1], [], []>} : vector<64x16xbf16>, vector<16x8xbf16>, vector<64x8xf32> -> vector<64x8xf32>
    %322 = vector.shape_cast %321 : vector<64x8xf32> to vector<1x8x8x8xf32>
    %cst_176 = arith.constant dense<0xFF800000> : vector<1x8x8xf32>
    %323 = vector.multi_reduction <maximumf>, %322, %cst_176 [2] : vector<1x8x8x8xf32> to vector<1x8x8xf32>
    %324 = vector.shape_cast %323 : vector<1x8x8xf32> to vector<1x8x1x8xf32>
    %325 = vector.broadcast %324 : vector<1x8x1x8xf32> to vector<1x8x8x8xf32>
    %326 = arith.subf %322, %325 : vector<1x8x8x8xf32>
    %327 = math.exp %326 : vector<1x8x8x8xf32>
    %cst_177 = arith.constant dense<0.000000e+00> : vector<1x8x8xf32>
    %328 = vector.multi_reduction <add>, %327, %cst_177 [2] : vector<1x8x8x8xf32> to vector<1x8x8xf32>
    %329 = vector.shape_cast %328 : vector<1x8x8xf32> to vector<1x8x1x8xf32>
    %330 = vector.broadcast %329 : vector<1x8x1x8xf32> to vector<1x8x8x8xf32>
    %331 = arith.divf %327, %330 : vector<1x8x8x8xf32>
    %332 = vector.shape_cast %331 : vector<1x8x8x8xf32> to vector<64x8xf32>
    %333 = arith.truncf %332 : vector<64x8xf32> to vector<64x8xbf16>
    %cst_178 = arith.constant dense<0.000000e+00> : vector<64x16xf32>
    %334 = tpu.matmul %333, %1, %cst_178 {dimension_numbers = #tpu.dot_dimension_numbers<[1], [0], [0], [1], [0, 0, 1, 1], [], []>} : vector<64x8xbf16>, vector<8x16xbf16>, vector<64x16xf32> -> vector<64x16xf32>
    %335 = vector.shape_cast %334 : vector<64x16xf32> to vector<1x8x8x16xf32>
    %336 = vector.shape_cast %313 : vector<1x8x16xf32> to vector<1x1x8x16xf32>
    %337 = vector.broadcast %336 : vector<1x1x8x16xf32> to vector<1x8x8x16xf32>
    %338 = arith.mulf %335, %337 : vector<1x8x8x16xf32>
    %cst_179 = arith.constant dense<0.000000e+00> : vector<1x8x16xf32>
    %339 = vector.multi_reduction <add>, %338, %cst_179 [2] : vector<1x8x8x16xf32> to vector<1x8x16xf32>
    %340 = vector.shape_cast %339 : vector<1x8x16xf32> to vector<8x16xf32>
    %c2_180 = arith.constant 2 : index
    %c0_181 = arith.constant 0 : index
    %c0_182 = arith.constant 0 : index
    %341 = vector.load %arg11[%c2_180, %c0_181, %c0_182] : memref<4x16x16xbf16, #tpu.memory_space<vmem>>, vector<1x16x16xbf16>
    %342 = vector.shape_cast %341 : vector<1x16x16xbf16> to vector<16x16xbf16>
    %c2_183 = arith.constant 2 : index
    %c0_184 = arith.constant 0 : index
    %c0_185 = arith.constant 0 : index
    %343 = vector.load %arg12[%c2_183, %c0_184, %c0_185] : memref<4x1x16xf32, #tpu.memory_space<vmem>>, vector<1x1x16xf32>
    %344 = vector.shape_cast %343 : vector<1x1x16xf32> to vector<1x16xf32>
    %345 = arith.truncf %340 : vector<8x16xf32> to vector<8x16xbf16>
    %cst_186 = arith.constant dense<0.000000e+00> : vector<8x16xf32>
    %346 = tpu.matmul %345, %342, %cst_186 {dimension_numbers = #tpu.dot_dimension_numbers<[1], [0], [0], [1], [0, 0, 1, 1], [], []>} : vector<8x16xbf16>, vector<16x16xbf16>, vector<8x16xf32> -> vector<8x16xf32>
    %347 = vector.broadcast %344 : vector<1x16xf32> to vector<8x16xf32>
    %348 = arith.addf %346, %347 : vector<8x16xf32>
    %349 = arith.addf %284, %348 : vector<8x16xf32>
    %c2_187 = arith.constant 2 : index
    %c0_188 = arith.constant 0 : index
    %c0_189 = arith.constant 0 : index
    %350 = vector.load %arg17[%c2_187, %c0_188, %c0_189] : memref<4x1x16xf32, #tpu.memory_space<vmem>>, vector<1x1x16xf32>
    %351 = vector.shape_cast %350 : vector<1x1x16xf32> to vector<1x16xf32>
    %c2_190 = arith.constant 2 : index
    %c0_191 = arith.constant 0 : index
    %c0_192 = arith.constant 0 : index
    %352 = vector.load %arg18[%c2_190, %c0_191, %c0_192] : memref<4x1x16xf32, #tpu.memory_space<vmem>>, vector<1x1x16xf32>
    %353 = vector.shape_cast %352 : vector<1x1x16xf32> to vector<1x16xf32>
    %cst_193 = arith.constant dense<0.000000e+00> : vector<8xf32>
    %354 = vector.multi_reduction <add>, %349, %cst_193 [1] : vector<8x16xf32> to vector<8xf32>
    %355 = vector.shape_cast %354 : vector<8xf32> to vector<8x1xf32>
    %cst_194 = arith.constant 1.600000e+01 : f32
    %356 = vector.broadcast %cst_194 : f32 to vector<8x1xf32>
    %357 = arith.divf %355, %356 : vector<8x1xf32>
    %358 = vector.broadcast %357 : vector<8x1xf32> to vector<8x16xf32>
    %359 = arith.subf %349, %358 : vector<8x16xf32>
    %360 = arith.mulf %359, %359 : vector<8x16xf32>
    %cst_195 = arith.constant dense<0.000000e+00> : vector<8xf32>
    %361 = vector.multi_reduction <add>, %360, %cst_195 [1] : vector<8x16xf32> to vector<8xf32>
    %362 = vector.shape_cast %361 : vector<8xf32> to vector<8x1xf32>
    %cst_196 = arith.constant 1.600000e+01 : f32
    %363 = vector.broadcast %cst_196 : f32 to vector<8x1xf32>
    %364 = arith.divf %362, %363 : vector<8x1xf32>
    %365 = vector.broadcast %357 : vector<8x1xf32> to vector<8x16xf32>
    %366 = arith.subf %349, %365 : vector<8x16xf32>
    %cst_197 = arith.constant 9.99999974E-6 : f32
    %367 = vector.broadcast %cst_197 : f32 to vector<8x1xf32>
    %368 = arith.addf %364, %367 : vector<8x1xf32>
    %369 = math.rsqrt %368 : vector<8x1xf32>
    %370 = vector.broadcast %369 : vector<8x1xf32> to vector<8x16xf32>
    %371 = arith.mulf %366, %370 : vector<8x16xf32>
    %372 = vector.broadcast %351 : vector<1x16xf32> to vector<8x16xf32>
    %373 = arith.mulf %371, %372 : vector<8x16xf32>
    %374 = vector.broadcast %353 : vector<1x16xf32> to vector<8x16xf32>
    %375 = arith.addf %373, %374 : vector<8x16xf32>
    %c2_198 = arith.constant 2 : index
    %c0_199 = arith.constant 0 : index
    %c0_200 = arith.constant 0 : index
    %376 = vector.load %arg13[%c2_198, %c0_199, %c0_200] : memref<4x16x256xbf16, #tpu.memory_space<vmem>>, vector<1x16x256xbf16>
    %377 = vector.shape_cast %376 : vector<1x16x256xbf16> to vector<16x256xbf16>
    %c2_201 = arith.constant 2 : index
    %c0_202 = arith.constant 0 : index
    %c0_203 = arith.constant 0 : index
    %378 = vector.load %arg14[%c2_201, %c0_202, %c0_203] : memref<4x1x256xf32, #tpu.memory_space<vmem>>, vector<1x1x256xf32>
    %379 = vector.shape_cast %378 : vector<1x1x256xf32> to vector<1x256xf32>
    %380 = arith.truncf %375 : vector<8x16xf32> to vector<8x16xbf16>
    %cst_204 = arith.constant dense<0.000000e+00> : vector<8x256xf32>
    %381 = tpu.matmul %380, %377, %cst_204 {dimension_numbers = #tpu.dot_dimension_numbers<[1], [0], [0], [1], [0, 0, 1, 1], [], []>} : vector<8x16xbf16>, vector<16x256xbf16>, vector<8x256xf32> -> vector<8x256xf32>
    %382 = vector.broadcast %379 : vector<1x256xf32> to vector<8x256xf32>
    %383 = arith.addf %381, %382 : vector<8x256xf32>
    %cst_205 = arith.constant 0.000000e+00 : f32
    %384 = vector.broadcast %cst_205 : f32 to vector<8x256xf32>
    %385 = arith.maximumf %383, %384 : vector<8x256xf32>
    %c2_206 = arith.constant 2 : index
    %c0_207 = arith.constant 0 : index
    %c0_208 = arith.constant 0 : index
    %386 = vector.load %arg15[%c2_206, %c0_207, %c0_208] : memref<4x256x16xbf16, #tpu.memory_space<vmem>>, vector<1x256x16xbf16>
    %387 = vector.shape_cast %386 : vector<1x256x16xbf16> to vector<256x16xbf16>
    %c2_209 = arith.constant 2 : index
    %c0_210 = arith.constant 0 : index
    %c0_211 = arith.constant 0 : index
    %388 = vector.load %arg16[%c2_209, %c0_210, %c0_211] : memref<4x1x16xf32, #tpu.memory_space<vmem>>, vector<1x1x16xf32>
    %389 = vector.shape_cast %388 : vector<1x1x16xf32> to vector<1x16xf32>
    %390 = arith.truncf %385 : vector<8x256xf32> to vector<8x256xbf16>
    %cst_212 = arith.constant dense<0.000000e+00> : vector<8x16xf32>
    %391 = tpu.matmul %390, %387, %cst_212 {dimension_numbers = #tpu.dot_dimension_numbers<[1], [0], [0], [1], [0, 0, 1, 1], [], []>} : vector<8x256xbf16>, vector<256x16xbf16>, vector<8x16xf32> -> vector<8x16xf32>
    %392 = vector.broadcast %389 : vector<1x16xf32> to vector<8x16xf32>
    %393 = arith.addf %391, %392 : vector<8x16xf32>
    %394 = arith.addf %375, %393 : vector<8x16xf32>
    %c2_213 = arith.constant 2 : index
    %c0_214 = arith.constant 0 : index
    %c0_215 = arith.constant 0 : index
    %395 = vector.load %arg19[%c2_213, %c0_214, %c0_215] : memref<4x1x16xf32, #tpu.memory_space<vmem>>, vector<1x1x16xf32>
    %396 = vector.shape_cast %395 : vector<1x1x16xf32> to vector<1x16xf32>
    %c2_216 = arith.constant 2 : index
    %c0_217 = arith.constant 0 : index
    %c0_218 = arith.constant 0 : index
    %397 = vector.load %arg20[%c2_216, %c0_217, %c0_218] : memref<4x1x16xf32, #tpu.memory_space<vmem>>, vector<1x1x16xf32>
    %398 = vector.shape_cast %397 : vector<1x1x16xf32> to vector<1x16xf32>
    %cst_219 = arith.constant dense<0.000000e+00> : vector<8xf32>
    %399 = vector.multi_reduction <add>, %394, %cst_219 [1] : vector<8x16xf32> to vector<8xf32>
    %400 = vector.shape_cast %399 : vector<8xf32> to vector<8x1xf32>
    %cst_220 = arith.constant 1.600000e+01 : f32
    %401 = vector.broadcast %cst_220 : f32 to vector<8x1xf32>
    %402 = arith.divf %400, %401 : vector<8x1xf32>
    %403 = vector.broadcast %402 : vector<8x1xf32> to vector<8x16xf32>
    %404 = arith.subf %394, %403 : vector<8x16xf32>
    %405 = arith.mulf %404, %404 : vector<8x16xf32>
    %cst_221 = arith.constant dense<0.000000e+00> : vector<8xf32>
    %406 = vector.multi_reduction <add>, %405, %cst_221 [1] : vector<8x16xf32> to vector<8xf32>
    %407 = vector.shape_cast %406 : vector<8xf32> to vector<8x1xf32>
    %cst_222 = arith.constant 1.600000e+01 : f32
    %408 = vector.broadcast %cst_222 : f32 to vector<8x1xf32>
    %409 = arith.divf %407, %408 : vector<8x1xf32>
    %410 = vector.broadcast %402 : vector<8x1xf32> to vector<8x16xf32>
    %411 = arith.subf %394, %410 : vector<8x16xf32>
    %cst_223 = arith.constant 9.99999974E-6 : f32
    %412 = vector.broadcast %cst_223 : f32 to vector<8x1xf32>
    %413 = arith.addf %409, %412 : vector<8x1xf32>
    %414 = math.rsqrt %413 : vector<8x1xf32>
    %415 = vector.broadcast %414 : vector<8x1xf32> to vector<8x16xf32>
    %416 = arith.mulf %411, %415 : vector<8x16xf32>
    %417 = vector.broadcast %396 : vector<1x16xf32> to vector<8x16xf32>
    %418 = arith.mulf %416, %417 : vector<8x16xf32>
    %419 = vector.broadcast %398 : vector<1x16xf32> to vector<8x16xf32>
    %420 = arith.addf %418, %419 : vector<8x16xf32>
    %c3 = arith.constant 3 : index
    %c0_224 = arith.constant 0 : index
    %c0_225 = arith.constant 0 : index
    %421 = vector.load %arg5[%c3, %c0_224, %c0_225] : memref<4x16x16xbf16, #tpu.memory_space<vmem>>, vector<1x16x16xbf16>
    %422 = vector.shape_cast %421 : vector<1x16x16xbf16> to vector<16x16xbf16>
    %c3_226 = arith.constant 3 : index
    %c0_227 = arith.constant 0 : index
    %c0_228 = arith.constant 0 : index
    %423 = vector.load %arg6[%c3_226, %c0_227, %c0_228] : memref<4x1x16xf32, #tpu.memory_space<vmem>>, vector<1x1x16xf32>
    %424 = vector.shape_cast %423 : vector<1x1x16xf32> to vector<1x16xf32>
    %425 = arith.truncf %420 : vector<8x16xf32> to vector<8x16xbf16>
    %cst_229 = arith.constant dense<0.000000e+00> : vector<8x16xf32>
    %426 = tpu.matmul %425, %422, %cst_229 {dimension_numbers = #tpu.dot_dimension_numbers<[1], [0], [0], [1], [0, 0, 1, 1], [], []>} : vector<8x16xbf16>, vector<16x16xbf16>, vector<8x16xf32> -> vector<8x16xf32>
    %427 = vector.broadcast %424 : vector<1x16xf32> to vector<8x16xf32>
    %428 = arith.addf %426, %427 : vector<8x16xf32>
    %cst_230 = arith.constant 0.707106769 : f32
    %429 = vector.broadcast %cst_230 : f32 to vector<8x16xf32>
    %430 = arith.mulf %428, %429 : vector<8x16xf32>
    %c3_231 = arith.constant 3 : index
    %c0_232 = arith.constant 0 : index
    %c0_233 = arith.constant 0 : index
    %431 = vector.load %arg7[%c3_231, %c0_232, %c0_233] : memref<4x16x16xbf16, #tpu.memory_space<vmem>>, vector<1x16x16xbf16>
    %432 = vector.shape_cast %431 : vector<1x16x16xbf16> to vector<16x16xbf16>
    %c3_234 = arith.constant 3 : index
    %c0_235 = arith.constant 0 : index
    %c0_236 = arith.constant 0 : index
    %433 = vector.load %arg8[%c3_234, %c0_235, %c0_236] : memref<4x1x16xf32, #tpu.memory_space<vmem>>, vector<1x1x16xf32>
    %434 = vector.shape_cast %433 : vector<1x1x16xf32> to vector<1x16xf32>
    %435 = arith.truncf %420 : vector<8x16xf32> to vector<8x16xbf16>
    %cst_237 = arith.constant dense<0.000000e+00> : vector<8x16xf32>
    %436 = tpu.matmul %435, %432, %cst_237 {dimension_numbers = #tpu.dot_dimension_numbers<[1], [0], [0], [1], [0, 0, 1, 1], [], []>} : vector<8x16xbf16>, vector<16x16xbf16>, vector<8x16xf32> -> vector<8x16xf32>
    %437 = vector.broadcast %434 : vector<1x16xf32> to vector<8x16xf32>
    %438 = arith.addf %436, %437 : vector<8x16xf32>
    %c3_238 = arith.constant 3 : index
    %c0_239 = arith.constant 0 : index
    %c0_240 = arith.constant 0 : index
    %439 = vector.load %arg9[%c3_238, %c0_239, %c0_240] : memref<4x16x16xbf16, #tpu.memory_space<vmem>>, vector<1x16x16xbf16>
    %440 = vector.shape_cast %439 : vector<1x16x16xbf16> to vector<16x16xbf16>
    %c3_241 = arith.constant 3 : index
    %c0_242 = arith.constant 0 : index
    %c0_243 = arith.constant 0 : index
    %441 = vector.load %arg10[%c3_241, %c0_242, %c0_243] : memref<4x1x16xf32, #tpu.memory_space<vmem>>, vector<1x1x16xf32>
    %442 = vector.shape_cast %441 : vector<1x1x16xf32> to vector<1x16xf32>
    %443 = arith.truncf %420 : vector<8x16xf32> to vector<8x16xbf16>
    %cst_244 = arith.constant dense<0.000000e+00> : vector<8x16xf32>
    %444 = tpu.matmul %443, %440, %cst_244 {dimension_numbers = #tpu.dot_dimension_numbers<[1], [0], [0], [1], [0, 0, 1, 1], [], []>} : vector<8x16xbf16>, vector<16x16xbf16>, vector<8x16xf32> -> vector<8x16xf32>
    %445 = vector.broadcast %442 : vector<1x16xf32> to vector<8x16xf32>
    %446 = arith.addf %444, %445 : vector<8x16xf32>
    %447 = vector.shape_cast %430 : vector<8x16xf32> to vector<1x8x16xf32>
    %448 = vector.shape_cast %438 : vector<8x16xf32> to vector<1x8x16xf32>
    %449 = vector.shape_cast %446 : vector<8x16xf32> to vector<1x8x16xf32>
    %450 = vector.shape_cast %447 : vector<1x8x16xf32> to vector<1x8x1x16xf32>
    %451 = vector.shape_cast %448 : vector<1x8x16xf32> to vector<1x1x8x16xf32>
    %452 = vector.broadcast %450 : vector<1x8x1x16xf32> to vector<1x8x8x16xf32>
    %453 = vector.broadcast %451 : vector<1x1x8x16xf32> to vector<1x8x8x16xf32>
    %454 = arith.mulf %452, %453 : vector<1x8x8x16xf32>
    %455 = vector.shape_cast %454 : vector<1x8x8x16xf32> to vector<64x16xf32>
    %456 = arith.truncf %455 : vector<64x16xf32> to vector<64x16xbf16>
    %cst_245 = arith.constant dense<0.000000e+00> : vector<64x8xf32>
    %457 = tpu.matmul %456, %0, %cst_245 {dimension_numbers = #tpu.dot_dimension_numbers<[1], [0], [0], [1], [0, 0, 1, 1], [], []>} : vector<64x16xbf16>, vector<16x8xbf16>, vector<64x8xf32> -> vector<64x8xf32>
    %458 = vector.shape_cast %457 : vector<64x8xf32> to vector<1x8x8x8xf32>
    %cst_246 = arith.constant dense<0xFF800000> : vector<1x8x8xf32>
    %459 = vector.multi_reduction <maximumf>, %458, %cst_246 [2] : vector<1x8x8x8xf32> to vector<1x8x8xf32>
    %460 = vector.shape_cast %459 : vector<1x8x8xf32> to vector<1x8x1x8xf32>
    %461 = vector.broadcast %460 : vector<1x8x1x8xf32> to vector<1x8x8x8xf32>
    %462 = arith.subf %458, %461 : vector<1x8x8x8xf32>
    %463 = math.exp %462 : vector<1x8x8x8xf32>
    %cst_247 = arith.constant dense<0.000000e+00> : vector<1x8x8xf32>
    %464 = vector.multi_reduction <add>, %463, %cst_247 [2] : vector<1x8x8x8xf32> to vector<1x8x8xf32>
    %465 = vector.shape_cast %464 : vector<1x8x8xf32> to vector<1x8x1x8xf32>
    %466 = vector.broadcast %465 : vector<1x8x1x8xf32> to vector<1x8x8x8xf32>
    %467 = arith.divf %463, %466 : vector<1x8x8x8xf32>
    %468 = vector.shape_cast %467 : vector<1x8x8x8xf32> to vector<64x8xf32>
    %469 = arith.truncf %468 : vector<64x8xf32> to vector<64x8xbf16>
    %cst_248 = arith.constant dense<0.000000e+00> : vector<64x16xf32>
    %470 = tpu.matmul %469, %1, %cst_248 {dimension_numbers = #tpu.dot_dimension_numbers<[1], [0], [0], [1], [0, 0, 1, 1], [], []>} : vector<64x8xbf16>, vector<8x16xbf16>, vector<64x16xf32> -> vector<64x16xf32>
    %471 = vector.shape_cast %470 : vector<64x16xf32> to vector<1x8x8x16xf32>
    %472 = vector.shape_cast %449 : vector<1x8x16xf32> to vector<1x1x8x16xf32>
    %473 = vector.broadcast %472 : vector<1x1x8x16xf32> to vector<1x8x8x16xf32>
    %474 = arith.mulf %471, %473 : vector<1x8x8x16xf32>
    %cst_249 = arith.constant dense<0.000000e+00> : vector<1x8x16xf32>
    %475 = vector.multi_reduction <add>, %474, %cst_249 [2] : vector<1x8x8x16xf32> to vector<1x8x16xf32>
    %476 = vector.shape_cast %475 : vector<1x8x16xf32> to vector<8x16xf32>
    %c3_250 = arith.constant 3 : index
    %c0_251 = arith.constant 0 : index
    %c0_252 = arith.constant 0 : index
    %477 = vector.load %arg11[%c3_250, %c0_251, %c0_252] : memref<4x16x16xbf16, #tpu.memory_space<vmem>>, vector<1x16x16xbf16>
    %478 = vector.shape_cast %477 : vector<1x16x16xbf16> to vector<16x16xbf16>
    %c3_253 = arith.constant 3 : index
    %c0_254 = arith.constant 0 : index
    %c0_255 = arith.constant 0 : index
    %479 = vector.load %arg12[%c3_253, %c0_254, %c0_255] : memref<4x1x16xf32, #tpu.memory_space<vmem>>, vector<1x1x16xf32>
    %480 = vector.shape_cast %479 : vector<1x1x16xf32> to vector<1x16xf32>
    %481 = arith.truncf %476 : vector<8x16xf32> to vector<8x16xbf16>
    %cst_256 = arith.constant dense<0.000000e+00> : vector<8x16xf32>
    %482 = tpu.matmul %481, %478, %cst_256 {dimension_numbers = #tpu.dot_dimension_numbers<[1], [0], [0], [1], [0, 0, 1, 1], [], []>} : vector<8x16xbf16>, vector<16x16xbf16>, vector<8x16xf32> -> vector<8x16xf32>
    %483 = vector.broadcast %480 : vector<1x16xf32> to vector<8x16xf32>
    %484 = arith.addf %482, %483 : vector<8x16xf32>
    %485 = arith.addf %420, %484 : vector<8x16xf32>
    %c3_257 = arith.constant 3 : index
    %c0_258 = arith.constant 0 : index
    %c0_259 = arith.constant 0 : index
    %486 = vector.load %arg17[%c3_257, %c0_258, %c0_259] : memref<4x1x16xf32, #tpu.memory_space<vmem>>, vector<1x1x16xf32>
    %487 = vector.shape_cast %486 : vector<1x1x16xf32> to vector<1x16xf32>
    %c3_260 = arith.constant 3 : index
    %c0_261 = arith.constant 0 : index
    %c0_262 = arith.constant 0 : index
    %488 = vector.load %arg18[%c3_260, %c0_261, %c0_262] : memref<4x1x16xf32, #tpu.memory_space<vmem>>, vector<1x1x16xf32>
    %489 = vector.shape_cast %488 : vector<1x1x16xf32> to vector<1x16xf32>
    %cst_263 = arith.constant dense<0.000000e+00> : vector<8xf32>
    %490 = vector.multi_reduction <add>, %485, %cst_263 [1] : vector<8x16xf32> to vector<8xf32>
    %491 = vector.shape_cast %490 : vector<8xf32> to vector<8x1xf32>
    %cst_264 = arith.constant 1.600000e+01 : f32
    %492 = vector.broadcast %cst_264 : f32 to vector<8x1xf32>
    %493 = arith.divf %491, %492 : vector<8x1xf32>
    %494 = vector.broadcast %493 : vector<8x1xf32> to vector<8x16xf32>
    %495 = arith.subf %485, %494 : vector<8x16xf32>
    %496 = arith.mulf %495, %495 : vector<8x16xf32>
    %cst_265 = arith.constant dense<0.000000e+00> : vector<8xf32>
    %497 = vector.multi_reduction <add>, %496, %cst_265 [1] : vector<8x16xf32> to vector<8xf32>
    %498 = vector.shape_cast %497 : vector<8xf32> to vector<8x1xf32>
    %cst_266 = arith.constant 1.600000e+01 : f32
    %499 = vector.broadcast %cst_266 : f32 to vector<8x1xf32>
    %500 = arith.divf %498, %499 : vector<8x1xf32>
    %501 = vector.broadcast %493 : vector<8x1xf32> to vector<8x16xf32>
    %502 = arith.subf %485, %501 : vector<8x16xf32>
    %cst_267 = arith.constant 9.99999974E-6 : f32
    %503 = vector.broadcast %cst_267 : f32 to vector<8x1xf32>
    %504 = arith.addf %500, %503 : vector<8x1xf32>
    %505 = math.rsqrt %504 : vector<8x1xf32>
    %506 = vector.broadcast %505 : vector<8x1xf32> to vector<8x16xf32>
    %507 = arith.mulf %502, %506 : vector<8x16xf32>
    %508 = vector.broadcast %487 : vector<1x16xf32> to vector<8x16xf32>
    %509 = arith.mulf %507, %508 : vector<8x16xf32>
    %510 = vector.broadcast %489 : vector<1x16xf32> to vector<8x16xf32>
    %511 = arith.addf %509, %510 : vector<8x16xf32>
    %c3_268 = arith.constant 3 : index
    %c0_269 = arith.constant 0 : index
    %c0_270 = arith.constant 0 : index
    %512 = vector.load %arg13[%c3_268, %c0_269, %c0_270] : memref<4x16x256xbf16, #tpu.memory_space<vmem>>, vector<1x16x256xbf16>
    %513 = vector.shape_cast %512 : vector<1x16x256xbf16> to vector<16x256xbf16>
    %c3_271 = arith.constant 3 : index
    %c0_272 = arith.constant 0 : index
    %c0_273 = arith.constant 0 : index
    %514 = vector.load %arg14[%c3_271, %c0_272, %c0_273] : memref<4x1x256xf32, #tpu.memory_space<vmem>>, vector<1x1x256xf32>
    %515 = vector.shape_cast %514 : vector<1x1x256xf32> to vector<1x256xf32>
    %516 = arith.truncf %511 : vector<8x16xf32> to vector<8x16xbf16>
    %cst_274 = arith.constant dense<0.000000e+00> : vector<8x256xf32>
    %517 = tpu.matmul %516, %513, %cst_274 {dimension_numbers = #tpu.dot_dimension_numbers<[1], [0], [0], [1], [0, 0, 1, 1], [], []>} : vector<8x16xbf16>, vector<16x256xbf16>, vector<8x256xf32> -> vector<8x256xf32>
    %518 = vector.broadcast %515 : vector<1x256xf32> to vector<8x256xf32>
    %519 = arith.addf %517, %518 : vector<8x256xf32>
    %cst_275 = arith.constant 0.000000e+00 : f32
    %520 = vector.broadcast %cst_275 : f32 to vector<8x256xf32>
    %521 = arith.maximumf %519, %520 : vector<8x256xf32>
    %c3_276 = arith.constant 3 : index
    %c0_277 = arith.constant 0 : index
    %c0_278 = arith.constant 0 : index
    %522 = vector.load %arg15[%c3_276, %c0_277, %c0_278] : memref<4x256x16xbf16, #tpu.memory_space<vmem>>, vector<1x256x16xbf16>
    %523 = vector.shape_cast %522 : vector<1x256x16xbf16> to vector<256x16xbf16>
    %c3_279 = arith.constant 3 : index
    %c0_280 = arith.constant 0 : index
    %c0_281 = arith.constant 0 : index
    %524 = vector.load %arg16[%c3_279, %c0_280, %c0_281] : memref<4x1x16xf32, #tpu.memory_space<vmem>>, vector<1x1x16xf32>
    %525 = vector.shape_cast %524 : vector<1x1x16xf32> to vector<1x16xf32>
    %526 = arith.truncf %521 : vector<8x256xf32> to vector<8x256xbf16>
    %cst_282 = arith.constant dense<0.000000e+00> : vector<8x16xf32>
    %527 = tpu.matmul %526, %523, %cst_282 {dimension_numbers = #tpu.dot_dimension_numbers<[1], [0], [0], [1], [0, 0, 1, 1], [], []>} : vector<8x256xbf16>, vector<256x16xbf16>, vector<8x16xf32> -> vector<8x16xf32>
    %528 = vector.broadcast %525 : vector<1x16xf32> to vector<8x16xf32>
    %529 = arith.addf %527, %528 : vector<8x16xf32>
    %530 = arith.addf %511, %529 : vector<8x16xf32>
    %c3_283 = arith.constant 3 : index
    %c0_284 = arith.constant 0 : index
    %c0_285 = arith.constant 0 : index
    %531 = vector.load %arg19[%c3_283, %c0_284, %c0_285] : memref<4x1x16xf32, #tpu.memory_space<vmem>>, vector<1x1x16xf32>
    %532 = vector.shape_cast %531 : vector<1x1x16xf32> to vector<1x16xf32>
    %c3_286 = arith.constant 3 : index
    %c0_287 = arith.constant 0 : index
    %c0_288 = arith.constant 0 : index
    %533 = vector.load %arg20[%c3_286, %c0_287, %c0_288] : memref<4x1x16xf32, #tpu.memory_space<vmem>>, vector<1x1x16xf32>
    %534 = vector.shape_cast %533 : vector<1x1x16xf32> to vector<1x16xf32>
    %cst_289 = arith.constant dense<0.000000e+00> : vector<8xf32>
    %535 = vector.multi_reduction <add>, %530, %cst_289 [1] : vector<8x16xf32> to vector<8xf32>
    %536 = vector.shape_cast %535 : vector<8xf32> to vector<8x1xf32>
    %cst_290 = arith.constant 1.600000e+01 : f32
    %537 = vector.broadcast %cst_290 : f32 to vector<8x1xf32>
    %538 = arith.divf %536, %537 : vector<8x1xf32>
    %539 = vector.broadcast %538 : vector<8x1xf32> to vector<8x16xf32>
    %540 = arith.subf %530, %539 : vector<8x16xf32>
    %541 = arith.mulf %540, %540 : vector<8x16xf32>
    %cst_291 = arith.constant dense<0.000000e+00> : vector<8xf32>
    %542 = vector.multi_reduction <add>, %541, %cst_291 [1] : vector<8x16xf32> to vector<8xf32>
    %543 = vector.shape_cast %542 : vector<8xf32> to vector<8x1xf32>
    %cst_292 = arith.constant 1.600000e+01 : f32
    %544 = vector.broadcast %cst_292 : f32 to vector<8x1xf32>
    %545 = arith.divf %543, %544 : vector<8x1xf32>
    %546 = vector.broadcast %538 : vector<8x1xf32> to vector<8x16xf32>
    %547 = arith.subf %530, %546 : vector<8x16xf32>
    %cst_293 = arith.constant 9.99999974E-6 : f32
    %548 = vector.broadcast %cst_293 : f32 to vector<8x1xf32>
    %549 = arith.addf %545, %548 : vector<8x1xf32>
    %550 = math.rsqrt %549 : vector<8x1xf32>
    %551 = vector.broadcast %550 : vector<8x1xf32> to vector<8x16xf32>
    %552 = arith.mulf %547, %551 : vector<8x16xf32>
    %553 = vector.broadcast %532 : vector<1x16xf32> to vector<8x16xf32>
    %554 = arith.mulf %552, %553 : vector<8x16xf32>
    %555 = vector.broadcast %534 : vector<1x16xf32> to vector<8x16xf32>
    %556 = arith.addf %554, %555 : vector<8x16xf32>
    %557 = vector.shape_cast %556 : vector<8x16xf32> to vector<1x8x16xf32>
    %cst_294 = arith.constant dense<0.000000e+00> : vector<1x16xf32>
    %558 = vector.multi_reduction <add>, %557, %cst_294 [1] : vector<1x8x16xf32> to vector<1x16xf32>
    %cst_295 = arith.constant 8.000000e+00 : f32
    %559 = vector.broadcast %cst_295 : f32 to vector<1x16xf32>
    %560 = arith.divf %558, %559 : vector<1x16xf32>
    %c0_296 = arith.constant 0 : index
    %c0_297 = arith.constant 0 : index
    %561 = vector.load %arg21[%c0_296, %c0_297] : memref<16x128xbf16, #tpu.memory_space<vmem>>, vector<16x128xbf16>
    %c0_298 = arith.constant 0 : index
    %c0_299 = arith.constant 0 : index
    %562 = vector.load %arg22[%c0_298, %c0_299] : memref<1x128xf32, #tpu.memory_space<vmem>>, vector<1x128xf32>
    %563 = arith.truncf %560 : vector<1x16xf32> to vector<1x16xbf16>
    %cst_300 = arith.constant dense<0.000000e+00> : vector<1x128xf32>
    %564 = tpu.matmul %563, %561, %cst_300 {dimension_numbers = #tpu.dot_dimension_numbers<[1], [0], [0], [1], [0, 0, 1, 1], [], []>} : vector<1x16xbf16>, vector<16x128xbf16>, vector<1x128xf32> -> vector<1x128xf32>
    %565 = arith.addf %564, %562 : vector<1x128xf32>
    %c0_301 = arith.constant 0 : index
    %c0_302 = arith.constant 0 : index
    %566 = vector.load %arg23[%c0_301, %c0_302] : memref<1x128xf32, #tpu.memory_space<vmem>>, vector<1x128xf32>
    %c0_303 = arith.constant 0 : index
    %c0_304 = arith.constant 0 : index
    %567 = vector.load %arg24[%c0_303, %c0_304] : memref<1x128xf32, #tpu.memory_space<vmem>>, vector<1x128xf32>
    %cst_305 = arith.constant dense<0.000000e+00> : vector<1xf32>
    %568 = vector.multi_reduction <add>, %565, %cst_305 [1] : vector<1x128xf32> to vector<1xf32>
    %569 = vector.shape_cast %568 : vector<1xf32> to vector<1x1xf32>
    %cst_306 = arith.constant 1.280000e+02 : f32
    %570 = vector.broadcast %cst_306 : f32 to vector<1x1xf32>
    %571 = arith.divf %569, %570 : vector<1x1xf32>
    %572 = vector.broadcast %571 : vector<1x1xf32> to vector<1x128xf32>
    %573 = arith.subf %565, %572 : vector<1x128xf32>
    %574 = arith.mulf %573, %573 : vector<1x128xf32>
    %cst_307 = arith.constant dense<0.000000e+00> : vector<1xf32>
    %575 = vector.multi_reduction <add>, %574, %cst_307 [1] : vector<1x128xf32> to vector<1xf32>
    %576 = vector.shape_cast %575 : vector<1xf32> to vector<1x1xf32>
    %cst_308 = arith.constant 1.280000e+02 : f32
    %577 = vector.broadcast %cst_308 : f32 to vector<1x1xf32>
    %578 = arith.divf %576, %577 : vector<1x1xf32>
    %579 = vector.broadcast %571 : vector<1x1xf32> to vector<1x128xf32>
    %580 = arith.subf %565, %579 : vector<1x128xf32>
    %cst_309 = arith.constant 9.99999974E-6 : f32
    %581 = vector.broadcast %cst_309 : f32 to vector<1x1xf32>
    %582 = arith.addf %578, %581 : vector<1x1xf32>
    %583 = math.rsqrt %582 : vector<1x1xf32>
    %584 = vector.broadcast %583 : vector<1x1xf32> to vector<1x128xf32>
    %585 = arith.mulf %580, %584 : vector<1x128xf32>
    %586 = arith.mulf %585, %566 : vector<1x128xf32>
    %587 = arith.addf %586, %567 : vector<1x128xf32>
    %c0_310 = arith.constant 0 : index
    %c0_311 = arith.constant 0 : index
    %588 = vector.load %arg25[%c0_310, %c0_311] : memref<128x128xbf16, #tpu.memory_space<vmem>>, vector<128x128xbf16>
    %c0_312 = arith.constant 0 : index
    %c0_313 = arith.constant 0 : index
    %589 = vector.load %arg26[%c0_312, %c0_313] : memref<1x128xf32, #tpu.memory_space<vmem>>, vector<1x128xf32>
    %590 = arith.truncf %587 : vector<1x128xf32> to vector<1x128xbf16>
    %cst_314 = arith.constant dense<0.000000e+00> : vector<1x128xf32>
    %591 = tpu.matmul %590, %588, %cst_314 {dimension_numbers = #tpu.dot_dimension_numbers<[1], [0], [0], [1], [0, 0, 1, 1], [], []>} : vector<1x128xbf16>, vector<128x128xbf16>, vector<1x128xf32> -> vector<1x128xf32>
    %592 = arith.addf %591, %589 : vector<1x128xf32>
    %593 = vector.shape_cast %592 : vector<1x128xf32> to vector<1x1x128xf32>
    %c0_315 = arith.constant 0 : index
    %c0_316 = arith.constant 0 : index
    %c0_317 = arith.constant 0 : index
    %594 = vector.load %arg27[%c0_315, %c0_316, %c0_317] : memref<1x1x128xf32, #tpu.memory_space<vmem>>, vector<1x1x128xf32>
    tpu.vector_store %arg27[%c0_315, %c0_316, %c0_317], %593 {strides = array<i32>} : memref<1x1x128xf32, #tpu.memory_space<vmem>>, vector<1x1x128xf32>,
    return
  }
  func.func @transform_0(%arg0: i32) -> (i32, i32, i32) {
    %c0_i32 = arith.constant 0 : i32
    %c0_i32_0 = arith.constant 0 : i32
    %c0_i32_1 = arith.constant 0 : i32
    return %arg0, %c0_i32, %c0_i32_0 : i32, i32, i32
  }
  func.func @transform_1(%arg0: i32) -> (i32, i32) {
    %c0_i32 = arith.constant 0 : i32
    %c0_i32_0 = arith.constant 0 : i32
    %c0_i32_1 = arith.constant 0 : i32
    return %c0_i32, %c0_i32_0 : i32, i32
  }
  func.func @transform_2(%arg0: i32) -> (i32, i32) {
    %c0_i32 = arith.constant 0 : i32
    %c0_i32_0 = arith.constant 0 : i32
    %c0_i32_1 = arith.constant 0 : i32
    return %c0_i32, %c0_i32_0 : i32, i32
  }
  func.func @transform_3(%arg0: i32) -> (i32, i32) {
    %c0_i32 = arith.constant 0 : i32
    %c0_i32_0 = arith.constant 0 : i32
    %c0_i32_1 = arith.constant 0 : i32
    return %c0_i32, %c0_i32_0 : i32, i32
  }
  func.func @transform_4(%arg0: i32) -> (i32, i32, i32) {
    %c0_i32 = arith.constant 0 : i32
    %c0_i32_0 = arith.constant 0 : i32
    %c0_i32_1 = arith.constant 0 : i32
    %c0_i32_2 = arith.constant 0 : i32
    return %c0_i32, %c0_i32_0, %c0_i32_1 : i32, i32, i32
  }
  func.func @transform_5(%arg0: i32) -> (i32, i32, i32) {
    %c0_i32 = arith.constant 0 : i32
    %c0_i32_0 = arith.constant 0 : i32
    %c0_i32_1 = arith.constant 0 : i32
    %c0_i32_2 = arith.constant 0 : i32
    return %c0_i32, %c0_i32_0, %c0_i32_1 : i32, i32, i32
  }
  func.func @transform_6(%arg0: i32) -> (i32, i32, i32) {
    %c0_i32 = arith.constant 0 : i32
    %c0_i32_0 = arith.constant 0 : i32
    %c0_i32_1 = arith.constant 0 : i32
    %c0_i32_2 = arith.constant 0 : i32
    return %c0_i32, %c0_i32_0, %c0_i32_1 : i32, i32, i32
  }
  func.func @transform_7(%arg0: i32) -> (i32, i32, i32) {
    %c0_i32 = arith.constant 0 : i32
    %c0_i32_0 = arith.constant 0 : i32
    %c0_i32_1 = arith.constant 0 : i32
    %c0_i32_2 = arith.constant 0 : i32
    return %c0_i32, %c0_i32_0, %c0_i32_1 : i32, i32, i32
  }
  func.func @transform_8(%arg0: i32) -> (i32, i32, i32) {
    %c0_i32 = arith.constant 0 : i32
    %c0_i32_0 = arith.constant 0 : i32
    %c0_i32_1 = arith.constant 0 : i32
    %c0_i32_2 = arith.constant 0 : i32
    return %c0_i32, %c0_i32_0, %c0_i32_1 : i32, i32, i32
  }
  func.func @transform_9(%arg0: i32) -> (i32, i32, i32) {
    %c0_i32 = arith.constant 0 : i32
    %c0_i32_0 = arith.constant 0 : i32
    %c0_i32_1 = arith.constant 0 : i32
    %c0_i32_2 = arith.constant 0 : i32
    return %c0_i32, %c0_i32_0, %c0_i32_1 : i32, i32, i32
  }
  func.func @transform_10(%arg0: i32) -> (i32, i32, i32) {
    %c0_i32 = arith.constant 0 : i32
    %c0_i32_0 = arith.constant 0 : i32
    %c0_i32_1 = arith.constant 0 : i32
    %c0_i32_2 = arith.constant 0 : i32
    return %c0_i32, %c0_i32_0, %c0_i32_1 : i32, i32, i32
  }
  func.func @transform_11(%arg0: i32) -> (i32, i32, i32) {
    %c0_i32 = arith.constant 0 : i32
    %c0_i32_0 = arith.constant 0 : i32
    %c0_i32_1 = arith.constant 0 : i32
    %c0_i32_2 = arith.constant 0 : i32
    return %c0_i32, %c0_i32_0, %c0_i32_1 : i32, i32, i32
  }
  func.func @transform_12(%arg0: i32) -> (i32, i32, i32) {
    %c0_i32 = arith.constant 0 : i32
    %c0_i32_0 = arith.constant 0 : i32
    %c0_i32_1 = arith.constant 0 : i32
    %c0_i32_2 = arith.constant 0 : i32
    return %c0_i32, %c0_i32_0, %c0_i32_1 : i32, i32, i32
  }
  func.func @transform_13(%arg0: i32) -> (i32, i32, i32) {
    %c0_i32 = arith.constant 0 : i32
    %c0_i32_0 = arith.constant 0 : i32
    %c0_i32_1 = arith.constant 0 : i32
    %c0_i32_2 = arith.constant 0 : i32
    return %c0_i32, %c0_i32_0, %c0_i32_1 : i32, i32, i32
  }
  func.func @transform_14(%arg0: i32) -> (i32, i32, i32) {
    %c0_i32 = arith.constant 0 : i32
    %c0_i32_0 = arith.constant 0 : i32
    %c0_i32_1 = arith.constant 0 : i32
    %c0_i32_2 = arith.constant 0 : i32
    return %c0_i32, %c0_i32_0, %c0_i32_1 : i32, i32, i32
  }
  func.func @transform_15(%arg0: i32) -> (i32, i32, i32) {
    %c0_i32 = arith.constant 0 : i32
    %c0_i32_0 = arith.constant 0 : i32
    %c0_i32_1 = arith.constant 0 : i32
    %c0_i32_2 = arith.constant 0 : i32
    return %c0_i32, %c0_i32_0, %c0_i32_1 : i32, i32, i32
  }
  func.func @transform_16(%arg0: i32) -> (i32, i32, i32) {
    %c0_i32 = arith.constant 0 : i32
    %c0_i32_0 = arith.constant 0 : i32
    %c0_i32_1 = arith.constant 0 : i32
    %c0_i32_2 = arith.constant 0 : i32
    return %c0_i32, %c0_i32_0, %c0_i32_1 : i32, i32, i32
  }
  func.func @transform_17(%arg0: i32) -> (i32, i32, i32) {
    %c0_i32 = arith.constant 0 : i32
    %c0_i32_0 = arith.constant 0 : i32
    %c0_i32_1 = arith.constant 0 : i32
    %c0_i32_2 = arith.constant 0 : i32
    return %c0_i32, %c0_i32_0, %c0_i32_1 : i32, i32, i32
  }
  func.func @transform_18(%arg0: i32) -> (i32, i32, i32) {
    %c0_i32 = arith.constant 0 : i32
    %c0_i32_0 = arith.constant 0 : i32
    %c0_i32_1 = arith.constant 0 : i32
    %c0_i32_2 = arith.constant 0 : i32
    return %c0_i32, %c0_i32_0, %c0_i32_1 : i32, i32, i32
  }
  func.func @transform_19(%arg0: i32) -> (i32, i32, i32) {
    %c0_i32 = arith.constant 0 : i32
    %c0_i32_0 = arith.constant 0 : i32
    %c0_i32_1 = arith.constant 0 : i32
    %c0_i32_2 = arith.constant 0 : i32
    return %c0_i32, %c0_i32_0, %c0_i32_1 : i32, i32, i32
  }
  func.func @transform_20(%arg0: i32) -> (i32, i32) {
    %c0_i32 = arith.constant 0 : i32
    %c0_i32_0 = arith.constant 0 : i32
    %c0_i32_1 = arith.constant 0 : i32
    return %c0_i32, %c0_i32_0 : i32, i32
  }
  func.func @transform_21(%arg0: i32) -> (i32, i32) {
    %c0_i32 = arith.constant 0 : i32
    %c0_i32_0 = arith.constant 0 : i32
    %c0_i32_1 = arith.constant 0 : i32
    return %c0_i32, %c0_i32_0 : i32, i32
  }
  func.func @transform_22(%arg0: i32) -> (i32, i32) {
    %c0_i32 = arith.constant 0 : i32
    %c0_i32_0 = arith.constant 0 : i32
    %c0_i32_1 = arith.constant 0 : i32
    return %c0_i32, %c0_i32_0 : i32, i32
  }
  func.func @transform_23(%arg0: i32) -> (i32, i32) {
    %c0_i32 = arith.constant 0 : i32
    %c0_i32_0 = arith.constant 0 : i32
    %c0_i32_1 = arith.constant 0 : i32
    return %c0_i32, %c0_i32_0 : i32, i32
  }
  func.func @transform_24(%arg0: i32) -> (i32, i32) {
    %c0_i32 = arith.constant 0 : i32
    %c0_i32_0 = arith.constant 0 : i32
    %c0_i32_1 = arith.constant 0 : i32
    return %c0_i32, %c0_i32_0 : i32, i32
  }
  func.func @transform_25(%arg0: i32) -> (i32, i32) {
    %c0_i32 = arith.constant 0 : i32
    %c0_i32_0 = arith.constant 0 : i32
    %c0_i32_1 = arith.constant 0 : i32
    return %c0_i32, %c0_i32_0 : i32, i32
  }
  func.func @transform_26(%arg0: i32) -> (i32, i32, i32) {
    %c0_i32 = arith.constant 0 : i32
    %c0_i32_0 = arith.constant 0 : i32
    %c0_i32_1 = arith.constant 0 : i32
    return %arg0, %c0_i32, %c0_i32_0 : i32, i32, i32
  }
  func.func @transform_27(%arg0: i32) -> (i32, i32, i32) {
    %c0_i32 = arith.constant 0 : i32
    %c0_i32_0 = arith.constant 0 : i32
    %c0_i32_1 = arith.constant 0 : i32
    return %arg0, %c0_i32, %c0_i32_0 : i32, i32, i32
  }
}

</mosaic_0001>

<llo_original>
// kernel: tpu_custom_call.1
$region0: #{tpu_custom_call.1}
  #allocation0 [shape = 'u32[]', space=smem, size = 0x4, offset = 0x4, fixed_abs, tag = 'smem constant byte address 0x4 - core index']
  #allocation1 [shape = 'u32[144,128]{1,0:T(1,128)}', space=vmem, size = 0x12000, scoped, tag = 'internal scratch']
  %s0 = inlined_call_operand.vmem [shape: f32[2,8,16], index: 0, kind: input, shape index: {}]
  %s1 = inlined_call_operand.vmem [shape: f32[8,16], index: 1, kind: input, shape index: {}]
  %s2 = inlined_call_operand.vmem [shape: bf16[16,8], index: 2, kind: input, shape index: {}]
  %s3 = inlined_call_operand.vmem [shape: bf16[8,16], index: 3, kind: input, shape index: {}]
  %s4 = inlined_call_operand.vmem [shape: bf16[4,16,16], index: 4, kind: input, shape index: {}]
  %s5 = inlined_call_operand.vmem [shape: f32[4,1,16], index: 5, kind: input, shape index: {}]
  %s6 = inlined_call_operand.vmem [shape: bf16[4,16,16], index: 6, kind: input, shape index: {}]
  %s7 = inlined_call_operand.vmem [shape: f32[4,1,16], index: 7, kind: input, shape index: {}]
  %s8 = inlined_call_operand.vmem [shape: bf16[4,16,16], index: 8, kind: input, shape index: {}]
  %s9 = inlined_call_operand.vmem [shape: f32[4,1,16], index: 9, kind: input, shape index: {}]
  %s10 = inlined_call_operand.vmem [shape: bf16[4,16,16], index: 10, kind: input, shape index: {}]
  %s11 = inlined_call_operand.vmem [shape: f32[4,1,16], index: 11, kind: input, shape index: {}]
  %s12 = inlined_call_operand.vmem [shape: bf16[4,16,256], index: 12, kind: input, shape index: {}]
  %s13 = inlined_call_operand.vmem [shape: f32[4,1,256], index: 13, kind: input, shape index: {}]
  %s14 = inlined_call_operand.vmem [shape: bf16[4,256,16], index: 14, kind: input, shape index: {}]
  %s15 = inlined_call_operand.vmem [shape: f32[4,1,16], index: 15, kind: input, shape index: {}]
  %s16 = inlined_call_operand.vmem [shape: f32[4,1,16], index: 16, kind: input, shape index: {}]
  %s17 = inlined_call_operand.vmem [shape: f32[4,1,16], index: 17, kind: input, shape index: {}]
  %s18 = inlined_call_operand.vmem [shape: f32[4,1,16], index: 18, kind: input, shape index: {}]
  %s19 = inlined_call_operand.vmem [shape: f32[4,1,16], index: 19, kind: input, shape index: {}]
  %s20 = inlined_call_operand.vmem [shape: bf16[16,128], index: 20, kind: input, shape index: {}]
  %s21 = inlined_call_operand.vmem [shape: f32[1,128], index: 21, kind: input, shape index: {}]
  %s22 = inlined_call_operand.vmem [shape: f32[1,128], index: 22, kind: input, shape index: {}]
  %s23 = inlined_call_operand.vmem [shape: f32[1,128], index: 23, kind: input, shape index: {}]
  %s24 = inlined_call_operand.vmem [shape: bf16[128,128], index: 24, kind: input, shape index: {}]
  %s25 = inlined_call_operand.vmem [shape: f32[1,128], index: 25, kind: input, shape index: {}]
  %s26 = inlined_call_operand.hbm [shape: f32[2,1,128], index: 26, kind: output, shape index: {0}]
  %s27 = inlined_call_operand.hbm [shape: f32[2,8,8], index: 27, kind: output, shape index: {1}]
  %28 = xla_tuple %s26, %s27
  %s29 = sld [smem:[#allocation0]]
  $region145: #{tpu_custom_call.1} parent=0
    _
  %s31 = ssub.s32 1, %s29
  %s32 = scalar_select 0, %s31, %s29
  $region1: #{tpu_custom_call.1} parent=0
    #allocation2 [shape = 'u8[1024]{0}', space=vmem, size = 0x400, scoped, tag = 'output window, operand 0']
    #allocation3 [shape = 's32[2]{0}', space=sflag, size = 0x8, scoped, tag = 'scoped memory for tpu_custom_call.1']
    #allocation4 [shape = 'u8[8192]{0}', space=vmem, size = 0x2000, scoped, tag = 'output window, operand 1']
    #allocation5 [shape = 's32[2]{0}', space=sflag, size = 0x8, scoped, tag = 'scoped memory for tpu_custom_call.1']
    %33 = vsyncpa [#allocation3], 0
    %s34 = scalar_lea.sflag [#allocation3], 1
    %35 = vsyncpa %s34, 0
    %36 = vsyncpa [#allocation5], 0
    %s37 = scalar_lea.sflag [#allocation5], 1
    %38 = vsyncpa %s37, 0
    loop: start=0, step=1, limit=4
    $region2: #{tpu_custom_call.1} parent=1 // loop_pre_header
      _
    $region3: #{tpu_custom_call.1} parent=1 // loop_header
      %s40 = sphi 0, %s44
      %p41 = scmp.ge.s32.totalorder %s40, 4
      %s50 = sphi 0, %s52
      %s53 = sphi 0, %s50
      %s54 = sphi 0, %s53
      %s70 = sphi 0, %s54
      %s74 = sphi 0, %s74
      %s76 = sphi 0, %s74
      %s77 = sphi 0, %s76
      %s91 = sphi 0, %s77
      %s95 = sphi 0, %s95
      %s97 = sphi 0, %s95
      %s98 = sphi 0, %s97
      %s112 = sphi 0, %s98
      %s116 = sphi 0, %s116
      %s118 = sphi 0, %s116
      %s119 = sphi 0, %s118
      %s133 = sphi 0, %s119
      %s137 = sphi 0, %s137
      %s139 = sphi 0, %s137
      %s140 = sphi 0, %s139
      %s154 = sphi 0, %s140
      %s158 = sphi 0, %s158
      %s160 = sphi 0, %s158
      %s161 = sphi 0, %s160
      %s175 = sphi 0, %s161
      %s179 = sphi 0, %s179
      %s181 = sphi 0, %s179
      %s182 = sphi 0, %s181
      %s196 = sphi 0, %s182
      %s200 = sphi 0, %s200
      %s202 = sphi 0, %s200
      %s203 = sphi 0, %s202
      %s217 = sphi 0, %s203
      %s221 = sphi 0, %s221
      %s223 = sphi 0, %s221
      %s224 = sphi 0, %s223
      %s238 = sphi 0, %s224
      %s242 = sphi 0, %s242
      %s244 = sphi 0, %s242
      %s245 = sphi 0, %s244
      %s259 = sphi 0, %s245
      %s263 = sphi 0, %s263
      %s265 = sphi 0, %s263
      %s266 = sphi 0, %s265
      %s280 = sphi 0, %s266
      %s284 = sphi 0, %s284
      %s286 = sphi 0, %s284
      %s287 = sphi 0, %s286
      %s301 = sphi 0, %s287
      %s305 = sphi 0, %s305
      %s307 = sphi 0, %s305
      %s308 = sphi 0, %s307
      %s322 = sphi 0, %s308
      %s326 = sphi 0, %s326
      %s328 = sphi 0, %s326
      %s329 = sphi 0, %s328
      %s343 = sphi 0, %s329
      %s347 = sphi 0, %s347
      %s349 = sphi 0, %s347
      %s350 = sphi 0, %s349
      %s364 = sphi 0, %s350
      %s368 = sphi 0, %s368
      %s370 = sphi 0, %s368
      %s371 = sphi 0, %s370
      %s385 = sphi 0, %s371
      %s389 = sphi 0, %s389
      %s391 = sphi 0, %s389
      %s392 = sphi 0, %s391
      %s406 = sphi 0, %s392
      %s410 = sphi 0, %s410
      %s412 = sphi 0, %s410
      %s413 = sphi 0, %s412
      %s427 = sphi 0, %s413
      %s431 = sphi 0, %s431
      %s433 = sphi 0, %s431
      %s434 = sphi 0, %s433
      %s448 = sphi 0, %s434
      %s452 = sphi 0, %s452
      %s454 = sphi 0, %s452
      %s455 = sphi 0, %s454
      %s469 = sphi 0, %s455
      %s473 = sphi 0, %s473
      %s475 = sphi 0, %s473
      %s476 = sphi 0, %s475
      %s490 = sphi 0, %s476
      %s494 = sphi 0, %s494
      %s496 = sphi 0, %s494
      %s497 = sphi 0, %s496
      %s511 = sphi 0, %s497
      %s515 = sphi 0, %s515
      %s517 = sphi 0, %s515
      %s518 = sphi 0, %s517
      %s532 = sphi 0, %s518
      %s536 = sphi 0, %s536
      %s538 = sphi 0, %s536
      %s539 = sphi 0, %s538
      %s553 = sphi 0, %s539
      %s557 = sphi 0, %s557
      %s559 = sphi 0, %s557
      %s560 = sphi 0, %s559
      %s574 = sphi 0, %s560
      %s578 = sphi 0, %s578
      %s580 = sphi 0, %s578
      %s581 = sphi 0, %s580
      %s595 = sphi 0, %s581
      %s601 = sphi 0, %s603
      %s604 = sphi 0, %s601
      %s605 = sphi 0, %s604
      %s621 = sphi 0, %s605
      %s627 = sphi 0, %s629
      %s630 = sphi 0, %s627
      %s631 = sphi 0, %s630
      %s647 = sphi 0, %s631
    $region4: #{tpu_custom_call.1} parent=1 // loop_header_branch
      %43 = sbr.rel (%p41) target = $region8
    $region5: #{tpu_custom_call.1} parent=1 // loop_body
      %s45 = ssub.s32 %s40, 1
      %s46 = ssub.s32 %s40, 2
      %s47 = sadd.s32 %s40, 1
      %s48 = ssub.s32 %s40, %s47
      %p49 = scmp.eq.s32.totalorder %s48, 0
      %s51 = sadd.s32 %s50, 1
      %s52 = scalar_select %p49, %s50, %s51
      %p55 = pneg %p49
      %p56 = scmp.eq.s32.totalorder %s40, 1
      %p57 = por %p55, %p56
      %p58 = scmp.ne.s32.totalorder %s50, %s53
      %p59 = scmp.eq.s32.totalorder %s40, 0
      %p60 = por %p58, %p59
      %p61 = scmp.ne.s32.totalorder %s50, %s53
      %p62 = scmp.eq.s32.totalorder %s45, 1
      %p63 = por %p61, %p62
      %p64 = scmp.ne.s32.totalorder %s53, %s54
      %p65 = scmp.eq.s32.totalorder %s45, 0
      %p66 = por %p64, %p65
      %p67 = scmp.ne.s32.totalorder %s53, %s54
      %p68 = scmp.eq.s32.totalorder %s46, 1
      %p69 = por %p67, %p68
      %p71 = scmp.ne.s32.totalorder %s54, %s70
      %p72 = scmp.eq.s32.totalorder %s46, 0
      %p73 = por %p71, %p72
      %s75 = sadd.s32 %s74, 1
      %p78 = scmp.eq.s32.totalorder %s40, 1
      %p79 = scmp.ne.s32.totalorder %s74, %s76
      %p80 = scmp.eq.s32.totalorder %s40, 0
      %p81 = por %p79, %p80
      %p82 = scmp.ne.s32.totalorder %s74, %s76
      %p83 = scmp.eq.s32.totalorder %s45, 1
      %p84 = por %p82, %p83
      %p85 = scmp.ne.s32.totalorder %s76, %s77
      %p86 = scmp.eq.s32.totalorder %s45, 0
      %p87 = por %p85, %p86
      %p88 = scmp.ne.s32.totalorder %s76, %s77
      %p89 = scmp.eq.s32.totalorder %s46, 1
      %p90 = por %p88, %p89
      %p92 = scmp.ne.s32.totalorder %s77, %s91
      %p93 = scmp.eq.s32.totalorder %s46, 0
      %p94 = por %p92, %p93
      %s96 = sadd.s32 %s95, 1
      %p99 = scmp.eq.s32.totalorder %s40, 1
      %p100 = scmp.ne.s32.totalorder %s95, %s97
      %p101 = scmp.eq.s32.totalorder %s40, 0
      %p102 = por %p100, %p101
      %p103 = scmp.ne.s32.totalorder %s95, %s97
      %p104 = scmp.eq.s32.totalorder %s45, 1
      %p105 = por %p103, %p104
      %p106 = scmp.ne.s32.totalorder %s97, %s98
      %p107 = scmp.eq.s32.totalorder %s45, 0
      %p108 = por %p106, %p107
      %p109 = scmp.ne.s32.totalorder %s97, %s98
      %p110 = scmp.eq.s32.totalorder %s46, 1
      %p111 = por %p109, %p110
      %p113 = scmp.ne.s32.totalorder %s98, %s112
      %p114 = scmp.eq.s32.totalorder %s46, 0
      %p115 = por %p113, %p114
      %s117 = sadd.s32 %s116, 1
      %p120 = scmp.eq.s32.totalorder %s40, 1
      %p121 = scmp.ne.s32.totalorder %s116, %s118
      %p122 = scmp.eq.s32.totalorder %s40, 0
      %p123 = por %p121, %p122
      %p124 = scmp.ne.s32.totalorder %s116, %s118
      %p125 = scmp.eq.s32.totalorder %s45, 1
      %p126 = por %p124, %p125
      %p127 = scmp.ne.s32.totalorder %s118, %s119
      %p128 = scmp.eq.s32.totalorder %s45, 0
      %p129 = por %p127, %p128
      %p130 = scmp.ne.s32.totalorder %s118, %s119
      %p131 = scmp.eq.s32.totalorder %s46, 1
      %p132 = por %p130, %p131
      %p134 = scmp.ne.s32.totalorder %s119, %s133
      %p135 = scmp.eq.s32.totalorder %s46, 0
      %p136 = por %p134, %p135
      %s138 = sadd.s32 %s137, 1
      %p141 = scmp.eq.s32.totalorder %s40, 1
      %p142 = scmp.ne.s32.totalorder %s137, %s139
      %p143 = scmp.eq.s32.totalorder %s40, 0
      %p144 = por %p142, %p143
      %p145 = scmp.ne.s32.totalorder %s137, %s139
      %p146 = scmp.eq.s32.totalorder %s45, 1
      %p147 = por %p145, %p146
      %p148 = scmp.ne.s32.totalorder %s139, %s140
      %p149 = scmp.eq.s32.totalorder %s45, 0
      %p150 = por %p148, %p149
      %p151 = scmp.ne.s32.totalorder %s139, %s140
      %p152 = scmp.eq.s32.totalorder %s46, 1
      %p153 = por %p151, %p152
      %p155 = scmp.ne.s32.totalorder %s140, %s154
      %p156 = scmp.eq.s32.totalorder %s46, 0
      %p157 = por %p155, %p156
      %s159 = sadd.s32 %s158, 1
      %p162 = scmp.eq.s32.totalorder %s40, 1
      %p163 = scmp.ne.s32.totalorder %s158, %s160
      %p164 = scmp.eq.s32.totalorder %s40, 0
      %p165 = por %p163, %p164
      %p166 = scmp.ne.s32.totalorder %s158, %s160
      %p167 = scmp.eq.s32.totalorder %s45, 1
      %p168 = por %p166, %p167
      %p169 = scmp.ne.s32.totalorder %s160, %s161
      %p170 = scmp.eq.s32.totalorder %s45, 0
      %p171 = por %p169, %p170
      %p172 = scmp.ne.s32.totalorder %s160, %s161
      %p173 = scmp.eq.s32.totalorder %s46, 1
      %p174 = por %p172, %p173
      %p176 = scmp.ne.s32.totalorder %s161, %s175
      %p177 = scmp.eq.s32.totalorder %s46, 0
      %p178 = por %p176, %p177
      %s180 = sadd.s32 %s179, 1
      %p183 = scmp.eq.s32.totalorder %s40, 1
      %p184 = scmp.ne.s32.totalorder %s179, %s181
      %p185 = scmp.eq.s32.totalorder %s40, 0
      %p186 = por %p184, %p185
      %p187 = scmp.ne.s32.totalorder %s179, %s181
      %p188 = scmp.eq.s32.totalorder %s45, 1
      %p189 = por %p187, %p188
      %p190 = scmp.ne.s32.totalorder %s181, %s182
      %p191 = scmp.eq.s32.totalorder %s45, 0
      %p192 = por %p190, %p191
      %p193 = scmp.ne.s32.totalorder %s181, %s182
      %p194 = scmp.eq.s32.totalorder %s46, 1
      %p195 = por %p193, %p194
      %p197 = scmp.ne.s32.totalorder %s182, %s196
      %p198 = scmp.eq.s32.totalorder %s46, 0
      %p199 = por %p197, %p198
      %s201 = sadd.s32 %s200, 1
      %p204 = scmp.eq.s32.totalorder %s40, 1
      %p205 = scmp.ne.s32.totalorder %s200, %s202
      %p206 = scmp.eq.s32.totalorder %s40, 0
      %p207 = por %p205, %p206
      %p208 = scmp.ne.s32.totalorder %s200, %s202
      %p209 = scmp.eq.s32.totalorder %s45, 1
      %p210 = por %p208, %p209
      %p211 = scmp.ne.s32.totalorder %s202, %s203
      %p212 = scmp.eq.s32.totalorder %s45, 0
      %p213 = por %p211, %p212
      %p214 = scmp.ne.s32.totalorder %s202, %s203
      %p215 = scmp.eq.s32.totalorder %s46, 1
      %p216 = por %p214, %p215
      %p218 = scmp.ne.s32.totalorder %s203, %s217
      %p219 = scmp.eq.s32.totalorder %s46, 0
      %p220 = por %p218, %p219
      %s222 = sadd.s32 %s221, 1
      %p225 = scmp.eq.s32.totalorder %s40, 1
      %p226 = scmp.ne.s32.totalorder %s221, %s223
      %p227 = scmp.eq.s32.totalorder %s40, 0
      %p228 = por %p226, %p227
      %p229 = scmp.ne.s32.totalorder %s221, %s223
      %p230 = scmp.eq.s32.totalorder %s45, 1
      %p231 = por %p229, %p230
      %p232 = scmp.ne.s32.totalorder %s223, %s224
      %p233 = scmp.eq.s32.totalorder %s45, 0
      %p234 = por %p232, %p233
      %p235 = scmp.ne.s32.totalorder %s223, %s224
      %p236 = scmp.eq.s32.totalorder %s46, 1
      %p237 = por %p235, %p236
      %p239 = scmp.ne.s32.totalorder %s224, %s238
      %p240 = scmp.eq.s32.totalorder %s46, 0
      %p241 = por %p239, %p240
      %s243 = sadd.s32 %s242, 1
      %p246 = scmp.eq.s32.totalorder %s40, 1
      %p247 = scmp.ne.s32.totalorder %s242, %s244
      %p248 = scmp.eq.s32.totalorder %s40, 0
      %p249 = por %p247, %p248
      %p250 = scmp.ne.s32.totalorder %s242, %s244
      %p251 = scmp.eq.s32.totalorder %s45, 1
      %p252 = por %p250, %p251
      %p253 = scmp.ne.s32.totalorder %s244, %s245
      %p254 = scmp.eq.s32.totalorder %s45, 0
      %p255 = por %p253, %p254
      %p256 = scmp.ne.s32.totalorder %s244, %s245
      %p257 = scmp.eq.s32.totalorder %s46, 1
      %p258 = por %p256, %p257
      %p260 = scmp.ne.s32.totalorder %s245, %s259
      %p261 = scmp.eq.s32.totalorder %s46, 0
      %p262 = por %p260, %p261
      %s264 = sadd.s32 %s263, 1
      %p267 = scmp.eq.s32.totalorder %s40, 1
      %p268 = scmp.ne.s32.totalorder %s263, %s265
      %p269 = scmp.eq.s32.totalorder %s40, 0
      %p270 = por %p268, %p269
      %p271 = scmp.ne.s32.totalorder %s263, %s265
      %p272 = scmp.eq.s32.totalorder %s45, 1
      %p273 = por %p271, %p272
      %p274 = scmp.ne.s32.totalorder %s265, %s266
      %p275 = scmp.eq.s32.totalorder %s45, 0
      %p276 = por %p274, %p275
      %p277 = scmp.ne.s32.totalorder %s265, %s266
      %p278 = scmp.eq.s32.totalorder %s46, 1
      %p279 = por %p277, %p278
      %p281 = scmp.ne.s32.totalorder %s266, %s280
      %p282 = scmp.eq.s32.totalorder %s46, 0
      %p283 = por %p281, %p282
      %s285 = sadd.s32 %s284, 1
      %p288 = scmp.eq.s32.totalorder %s40, 1
      %p289 = scmp.ne.s32.totalorder %s284, %s286
      %p290 = scmp.eq.s32.totalorder %s40, 0
      %p291 = por %p289, %p290
      %p292 = scmp.ne.s32.totalorder %s284, %s286
      %p293 = scmp.eq.s32.totalorder %s45, 1
      %p294 = por %p292, %p293
      %p295 = scmp.ne.s32.totalorder %s286, %s287
      %p296 = scmp.eq.s32.totalorder %s45, 0
      %p297 = por %p295, %p296
      %p298 = scmp.ne.s32.totalorder %s286, %s287
      %p299 = scmp.eq.s32.totalorder %s46, 1
      %p300 = por %p298, %p299
      %p302 = scmp.ne.s32.totalorder %s287, %s301
      %p303 = scmp.eq.s32.totalorder %s46, 0
      %p304 = por %p302, %p303
      %s306 = sadd.s32 %s305, 1
      %p309 = scmp.eq.s32.totalorder %s40, 1
      %p310 = scmp.ne.s32.totalorder %s305, %s307
      %p311 = scmp.eq.s32.totalorder %s40, 0
      %p312 = por %p310, %p311
      %p313 = scmp.ne.s32.totalorder %s305, %s307
      %p314 = scmp.eq.s32.totalorder %s45, 1
      %p315 = por %p313, %p314
      %p316 = scmp.ne.s32.totalorder %s307, %s308
      %p317 = scmp.eq.s32.totalorder %s45, 0
      %p318 = por %p316, %p317
      %p319 = scmp.ne.s32.totalorder %s307, %s308
      %p320 = scmp.eq.s32.totalorder %s46, 1
      %p321 = por %p319, %p320
      %p323 = scmp.ne.s32.totalorder %s308, %s322
      %p324 = scmp.eq.s32.totalorder %s46, 0
      %p325 = por %p323, %p324
      %s327 = sadd.s32 %s326, 1
      %p330 = scmp.eq.s32.totalorder %s40, 1
      %p331 = scmp.ne.s32.totalorder %s326, %s328
      %p332 = scmp.eq.s32.totalorder %s40, 0
      %p333 = por %p331, %p332
      %p334 = scmp.ne.s32.totalorder %s326, %s328
      %p335 = scmp.eq.s32.totalorder %s45, 1
      %p336 = por %p334, %p335
      %p337 = scmp.ne.s32.totalorder %s328, %s329
      %p338 = scmp.eq.s32.totalorder %s45, 0
      %p339 = por %p337, %p338
      %p340 = scmp.ne.s32.totalorder %s328, %s329
      %p341 = scmp.eq.s32.totalorder %s46, 1
      %p342 = por %p340, %p341
      %p344 = scmp.ne.s32.totalorder %s329, %s343
      %p345 = scmp.eq.s32.totalorder %s46, 0
      %p346 = por %p344, %p345
      %s348 = sadd.s32 %s347, 1
      %p351 = scmp.eq.s32.totalorder %s40, 1
      %p352 = scmp.ne.s32.totalorder %s347, %s349
      %p353 = scmp.eq.s32.totalorder %s40, 0
      %p354 = por %p352, %p353
      %p355 = scmp.ne.s32.totalorder %s347, %s349
      %p356 = scmp.eq.s32.totalorder %s45, 1
      %p357 = por %p355, %p356
      %p358 = scmp.ne.s32.totalorder %s349, %s350
      %p359 = scmp.eq.s32.totalorder %s45, 0
      %p360 = por %p358, %p359
      %p361 = scmp.ne.s32.totalorder %s349, %s350
      %p362 = scmp.eq.s32.totalorder %s46, 1
      %p363 = por %p361, %p362
      %p365 = scmp.ne.s32.totalorder %s350, %s364
      %p366 = scmp.eq.s32.totalorder %s46, 0
      %p367 = por %p365, %p366
      %s369 = sadd.s32 %s368, 1
      %p372 = scmp.eq.s32.totalorder %s40, 1
      %p373 = scmp.ne.s32.totalorder %s368, %s370
      %p374 = scmp.eq.s32.totalorder %s40, 0
      %p375 = por %p373, %p374
      %p376 = scmp.ne.s32.totalorder %s368, %s370
      %p377 = scmp.eq.s32.totalorder %s45, 1
      %p378 = por %p376, %p377
      %p379 = scmp.ne.s32.totalorder %s370, %s371
      %p380 = scmp.eq.s32.totalorder %s45, 0
      %p381 = por %p379, %p380
      %p382 = scmp.ne.s32.totalorder %s370, %s371
      %p383 = scmp.eq.s32.totalorder %s46, 1
      %p384 = por %p382, %p383
      %p386 = scmp.ne.s32.totalorder %s371, %s385
      %p387 = scmp.eq.s32.totalorder %s46, 0
      %p388 = por %p386, %p387
      %s390 = sadd.s32 %s389, 1
      %p393 = scmp.eq.s32.totalorder %s40, 1
      %p394 = scmp.ne.s32.totalorder %s389, %s391
      %p395 = scmp.eq.s32.totalorder %s40, 0
      %p396 = por %p394, %p395
      %p397 = scmp.ne.s32.totalorder %s389, %s391
      %p398 = scmp.eq.s32.totalorder %s45, 1
      %p399 = por %p397, %p398
      %p400 = scmp.ne.s32.totalorder %s391, %s392
      %p401 = scmp.eq.s32.totalorder %s45, 0
      %p402 = por %p400, %p401
      %p403 = scmp.ne.s32.totalorder %s391, %s392
      %p404 = scmp.eq.s32.totalorder %s46, 1
      %p405 = por %p403, %p404
      %p407 = scmp.ne.s32.totalorder %s392, %s406
      %p408 = scmp.eq.s32.totalorder %s46, 0
      %p409 = por %p407, %p408
      %s411 = sadd.s32 %s410, 1
      %p414 = scmp.eq.s32.totalorder %s40, 1
      %p415 = scmp.ne.s32.totalorder %s410, %s412
      %p416 = scmp.eq.s32.totalorder %s40, 0
      %p417 = por %p415, %p416
      %p418 = scmp.ne.s32.totalorder %s410, %s412
      %p419 = scmp.eq.s32.totalorder %s45, 1
      %p420 = por %p418, %p419
      %p421 = scmp.ne.s32.totalorder %s412, %s413
      %p422 = scmp.eq.s32.totalorder %s45, 0
      %p423 = por %p421, %p422
      %p424 = scmp.ne.s32.totalorder %s412, %s413
      %p425 = scmp.eq.s32.totalorder %s46, 1
      %p426 = por %p424, %p425
      %p428 = scmp.ne.s32.totalorder %s413, %s427
      %p429 = scmp.eq.s32.totalorder %s46, 0
      %p430 = por %p428, %p429
      %s432 = sadd.s32 %s431, 1
      %p435 = scmp.eq.s32.totalorder %s40, 1
      %p436 = scmp.ne.s32.totalorder %s431, %s433
      %p437 = scmp.eq.s32.totalorder %s40, 0
      %p438 = por %p436, %p437
      %p439 = scmp.ne.s32.totalorder %s431, %s433
      %p440 = scmp.eq.s32.totalorder %s45, 1
      %p441 = por %p439, %p440
      %p442 = scmp.ne.s32.totalorder %s433, %s434
      %p443 = scmp.eq.s32.totalorder %s45, 0
      %p444 = por %p442, %p443
      %p445 = scmp.ne.s32.totalorder %s433, %s434
      %p446 = scmp.eq.s32.totalorder %s46, 1
      %p447 = por %p445, %p446
      %p449 = scmp.ne.s32.totalorder %s434, %s448
      %p450 = scmp.eq.s32.totalorder %s46, 0
      %p451 = por %p449, %p450
      %s453 = sadd.s32 %s452, 1
      %p456 = scmp.eq.s32.totalorder %s40, 1
      %p457 = scmp.ne.s32.totalorder %s452, %s454
      %p458 = scmp.eq.s32.totalorder %s40, 0
      %p459 = por %p457, %p458
      %p460 = scmp.ne.s32.totalorder %s452, %s454
      %p461 = scmp.eq.s32.totalorder %s45, 1
      %p462 = por %p460, %p461
      %p463 = scmp.ne.s32.totalorder %s454, %s455
      %p464 = scmp.eq.s32.totalorder %s45, 0
      %p465 = por %p463, %p464
      %p466 = scmp.ne.s32.totalorder %s454, %s455
      %p467 = scmp.eq.s32.totalorder %s46, 1
      %p468 = por %p466, %p467
      %p470 = scmp.ne.s32.totalorder %s455, %s469
      %p471 = scmp.eq.s32.totalorder %s46, 0
      %p472 = por %p470, %p471
      %s474 = sadd.s32 %s473, 1
      %p477 = scmp.eq.s32.totalorder %s40, 1
      %p478 = scmp.ne.s32.totalorder %s473, %s475
      %p479 = scmp.eq.s32.totalorder %s40, 0
      %p480 = por %p478, %p479
      %p481 = scmp.ne.s32.totalorder %s473, %s475
      %p482 = scmp.eq.s32.totalorder %s45, 1
      %p483 = por %p481, %p482
      %p484 = scmp.ne.s32.totalorder %s475, %s476
      %p485 = scmp.eq.s32.totalorder %s45, 0
      %p486 = por %p484, %p485
      %p487 = scmp.ne.s32.totalorder %s475, %s476
      %p488 = scmp.eq.s32.totalorder %s46, 1
      %p489 = por %p487, %p488
      %p491 = scmp.ne.s32.totalorder %s476, %s490
      %p492 = scmp.eq.s32.totalorder %s46, 0
      %p493 = por %p491, %p492
      %s495 = sadd.s32 %s494, 1
      %p498 = scmp.eq.s32.totalorder %s40, 1
      %p499 = scmp.ne.s32.totalorder %s494, %s496
      %p500 = scmp.eq.s32.totalorder %s40, 0
      %p501 = por %p499, %p500
      %p502 = scmp.ne.s32.totalorder %s494, %s496
      %p503 = scmp.eq.s32.totalorder %s45, 1
      %p504 = por %p502, %p503
      %p505 = scmp.ne.s32.totalorder %s496, %s497
      %p506 = scmp.eq.s32.totalorder %s45, 0
      %p507 = por %p505, %p506
      %p508 = scmp.ne.s32.totalorder %s496, %s497
      %p509 = scmp.eq.s32.totalorder %s46, 1
      %p510 = por %p508, %p509
      %p512 = scmp.ne.s32.totalorder %s497, %s511
      %p513 = scmp.eq.s32.totalorder %s46, 0
      %p514 = por %p512, %p513
      %s516 = sadd.s32 %s515, 1
      %p519 = scmp.eq.s32.totalorder %s40, 1
      %p520 = scmp.ne.s32.totalorder %s515, %s517
      %p521 = scmp.eq.s32.totalorder %s40, 0
      %p522 = por %p520, %p521
      %p523 = scmp.ne.s32.totalorder %s515, %s517
      %p524 = scmp.eq.s32.totalorder %s45, 1
      %p525 = por %p523, %p524
      %p526 = scmp.ne.s32.totalorder %s517, %s518
      %p527 = scmp.eq.s32.totalorder %s45, 0
      %p528 = por %p526, %p527
      %p529 = scmp.ne.s32.totalorder %s517, %s518
      %p530 = scmp.eq.s32.totalorder %s46, 1
      %p531 = por %p529, %p530
      %p533 = scmp.ne.s32.totalorder %s518, %s532
      %p534 = scmp.eq.s32.totalorder %s46, 0
      %p535 = por %p533, %p534
      %s537 = sadd.s32 %s536, 1
      %p540 = scmp.eq.s32.totalorder %s40, 1
      %p541 = scmp.ne.s32.totalorder %s536, %s538
      %p542 = scmp.eq.s32.totalorder %s40, 0
      %p543 = por %p541, %p542
      %p544 = scmp.ne.s32.totalorder %s536, %s538
      %p545 = scmp.eq.s32.totalorder %s45, 1
      %p546 = por %p544, %p545
      %p547 = scmp.ne.s32.totalorder %s538, %s539
      %p548 = scmp.eq.s32.totalorder %s45, 0
      %p549 = por %p547, %p548
      %p550 = scmp.ne.s32.totalorder %s538, %s539
      %p551 = scmp.eq.s32.totalorder %s46, 1
      %p552 = por %p550, %p551
      %p554 = scmp.ne.s32.totalorder %s539, %s553
      %p555 = scmp.eq.s32.totalorder %s46, 0
      %p556 = por %p554, %p555
      %s558 = sadd.s32 %s557, 1
      %p561 = scmp.eq.s32.totalorder %s40, 1
      %p562 = scmp.ne.s32.totalorder %s557, %s559
      %p563 = scmp.eq.s32.totalorder %s40, 0
      %p564 = por %p562, %p563
      %p565 = scmp.ne.s32.totalorder %s557, %s559
      %p566 = scmp.eq.s32.totalorder %s45, 1
      %p567 = por %p565, %p566
      %p568 = scmp.ne.s32.totalorder %s559, %s560
      %p569 = scmp.eq.s32.totalorder %s45, 0
      %p570 = por %p568, %p569
      %p571 = scmp.ne.s32.totalorder %s559, %s560
      %p572 = scmp.eq.s32.totalorder %s46, 1
      %p573 = por %p571, %p572
      %p575 = scmp.ne.s32.totalorder %s560, %s574
      %p576 = scmp.eq.s32.totalorder %s46, 0
      %p577 = por %p575, %p576
      %s579 = sadd.s32 %s578, 1
      %p582 = scmp.eq.s32.totalorder %s40, 1
      %p583 = scmp.ne.s32.totalorder %s578, %s580
      %p584 = scmp.eq.s32.totalorder %s40, 0
      %p585 = por %p583, %p584
      %p586 = scmp.ne.s32.totalorder %s578, %s580
      %p587 = scmp.eq.s32.totalorder %s45, 1
      %p588 = por %p586, %p587
      %p589 = scmp.ne.s32.totalorder %s580, %s581
      %p590 = scmp.eq.s32.totalorder %s45, 0
      %p591 = por %p589, %p590
      %p592 = scmp.ne.s32.totalorder %s580, %s581
      %p593 = scmp.eq.s32.totalorder %s46, 1
      %p594 = por %p592, %p593
      %p596 = scmp.ne.s32.totalorder %s581, %s595
      %p597 = scmp.eq.s32.totalorder %s46, 0
      %p598 = por %p596, %p597
      %s599 = ssub.s32 %s40, %s47
      %p600 = scmp.eq.s32.totalorder %s599, 0
      %s602 = sadd.s32 %s601, 1
      %s603 = scalar_select %p600, %s601, %s602
      %p606 = pneg %p600
      %p607 = scmp.eq.s32.totalorder %s40, 1
      %p608 = por %p606, %p607
      %p609 = scmp.ne.s32.totalorder %s601, %s604
      %p610 = scmp.eq.s32.totalorder %s40, 0
      %p611 = por %p609, %p610
      %p612 = scmp.ne.s32.totalorder %s601, %s604
      %p613 = scmp.eq.s32.totalorder %s45, 1
      %p614 = por %p612, %p613
      %p615 = scmp.ne.s32.totalorder %s604, %s605
      %p616 = scmp.eq.s32.totalorder %s45, 0
      %p617 = por %p615, %p616
      %p618 = scmp.ne.s32.totalorder %s604, %s605
      %p619 = scmp.eq.s32.totalorder %s46, 1
      %p620 = por %p618, %p619
      %p622 = scmp.ne.s32.totalorder %s605, %s621
      %p623 = scmp.eq.s32.totalorder %s46, 0
      %p624 = por %p622, %p623
      %s625 = ssub.s32 %s40, %s47
      %p626 = scmp.eq.s32.totalorder %s625, 0
      %s628 = sadd.s32 %s627, 1
      %s629 = scalar_select %p626, %s627, %s628
      %p632 = pneg %p626
      %p633 = scmp.eq.s32.totalorder %s40, 1
      %p634 = por %p632, %p633
      %p635 = scmp.ne.s32.totalorder %s627, %s630
      %p636 = scmp.eq.s32.totalorder %s40, 0
      %p637 = por %p635, %p636
      %p638 = scmp.ne.s32.totalorder %s627, %s630
      %p639 = scmp.eq.s32.totalorder %s45, 1
      %p640 = por %p638, %p639
      %p641 = scmp.ne.s32.totalorder %s630, %s631
      %p642 = scmp.eq.s32.totalorder %s45, 0
      %p643 = por %p641, %p642
      %p644 = scmp.ne.s32.totalorder %s630, %s631
      %p645 = scmp.eq.s32.totalorder %s46, 1
      %p646 = por %p644, %p645
      %p648 = scmp.ne.s32.totalorder %s631, %s647
      %p649 = scmp.eq.s32.totalorder %s46, 0
      %p650 = por %p648, %p649
      %p651 = scmp.le.s32.totalorder 1, %s40
      %p652 = scmp.lt.s32.totalorder %s40, 3
      %p653 = pnand %p651, %p652
      %p654 = pneg %p653
      // Predicated region
      $region9: #{tpu_custom_call.1} parent=5 // pred_check
        _
      $region10: #{tpu_custom_call.1} parent=5 // pred_check_branch
        %656 = sbr.rel (%p653) target = $region12
      $region11: #{tpu_custom_call.1} parent=5 // pred_region
        %s657 = ssub.s32 %s40, 1
        // Predicated region
        $region13: #{tpu_custom_call.1} parent=11 // pred_check
          %p658 = pneg %p87
        $region14: #{tpu_custom_call.1} parent=11 // pred_check_branch
          %660 = sbr.rel (%p658) target = $region16
        $region15: #{tpu_custom_call.1} parent=11 // pred_region
          _
        $region16: #{tpu_custom_call.1} parent=11 // pred_fallthru
          _
        // Predicated region
        $region17: #{tpu_custom_call.1} parent=11 // pred_check
          %p661 = pneg %p108
        $region18: #{tpu_custom_call.1} parent=11 // pred_check_branch
          %663 = sbr.rel (%p661) target = $region20
        $region19: #{tpu_custom_call.1} parent=11 // pred_region
          _
        $region20: #{tpu_custom_call.1} parent=11 // pred_fallthru
          _
        // Predicated region
        $region21: #{tpu_custom_call.1} parent=11 // pred_check
          %p664 = pneg %p129
        $region22: #{tpu_custom_call.1} parent=11 // pred_check_branch
          %666 = sbr.rel (%p664) target = $region24
        $region23: #{tpu_custom_call.1} parent=11 // pred_region
          _
        $region24: #{tpu_custom_call.1} parent=11 // pred_fallthru
          _
        // Predicated region
        $region25: #{tpu_custom_call.1} parent=11 // pred_check
          %p667 = pneg %p150
        $region26: #{tpu_custom_call.1} parent=11 // pred_check_branch
          %669 = sbr.rel (%p667) target = $region28
        $region27: #{tpu_custom_call.1} parent=11 // pred_region
          _
        $region28: #{tpu_custom_call.1} parent=11 // pred_fallthru
          _
        // Predicated region
        $region29: #{tpu_custom_call.1} parent=11 // pred_check
          %p670 = pneg %p171
        $region30: #{tpu_custom_call.1} parent=11 // pred_check_branch
          %672 = sbr.rel (%p670) target = $region32
        $region31: #{tpu_custom_call.1} parent=11 // pred_region
          _
        $region32: #{tpu_custom_call.1} parent=11 // pred_fallthru
          _
        // Predicated region
        $region33: #{tpu_custom_call.1} parent=11 // pred_check
          %p673 = pneg %p192
        $region34: #{tpu_custom_call.1} parent=11 // pred_check_branch
          %675 = sbr.rel (%p673) target = $region36
        $region35: #{tpu_custom_call.1} parent=11 // pred_region
          _
        $region36: #{tpu_custom_call.1} parent=11 // pred_fallthru
          _
        // Predicated region
        $region37: #{tpu_custom_call.1} parent=11 // pred_check
          %p676 = pneg %p213
        $region38: #{tpu_custom_call.1} parent=11 // pred_check_branch
          %678 = sbr.rel (%p676) target = $region40
        $region39: #{tpu_custom_call.1} parent=11 // pred_region
          _
        $region40: #{tpu_custom_call.1} parent=11 // pred_fallthru
          _
        // Predicated region
        $region41: #{tpu_custom_call.1} parent=11 // pred_check
          %p679 = pneg %p234
        $region42: #{tpu_custom_call.1} parent=11 // pred_check_branch
          %681 = sbr.rel (%p679) target = $region44
        $region43: #{tpu_custom_call.1} parent=11 // pred_region
          _
        $region44: #{tpu_custom_call.1} parent=11 // pred_fallthru
          _
        // Predicated region
        $region45: #{tpu_custom_call.1} parent=11 // pred_check
          %p682 = pneg %p255
        $region46: #{tpu_custom_call.1} parent=11 // pred_check_branch
          %684 = sbr.rel (%p682) target = $region48
        $region47: #{tpu_custom_call.1} parent=11 // pred_region
          _
        $region48: #{tpu_custom_call.1} parent=11 // pred_fallthru
          _
        // Predicated region
        $region49: #{tpu_custom_call.1} parent=11 // pred_check
          %p685 = pneg %p276
        $region50: #{tpu_custom_call.1} parent=11 // pred_check_branch
          %687 = sbr.rel (%p685) target = $region52
        $region51: #{tpu_custom_call.1} parent=11 // pred_region
          _
        $region52: #{tpu_custom_call.1} parent=11 // pred_fallthru
          _
        // Predicated region
        $region53: #{tpu_custom_call.1} parent=11 // pred_check
          %p688 = pneg %p297
        $region54: #{tpu_custom_call.1} parent=11 // pred_check_branch
          %690 = sbr.rel (%p688) target = $region56
        $region55: #{tpu_custom_call.1} parent=11 // pred_region
          _
        $region56: #{tpu_custom_call.1} parent=11 // pred_fallthru
          _
        // Predicated region
        $region57: #{tpu_custom_call.1} parent=11 // pred_check
          %p691 = pneg %p318
        $region58: #{tpu_custom_call.1} parent=11 // pred_check_branch
          %693 = sbr.rel (%p691) target = $region60
        $region59: #{tpu_custom_call.1} parent=11 // pred_region
          _
        $region60: #{tpu_custom_call.1} parent=11 // pred_fallthru
          _
        // Predicated region
        $region61: #{tpu_custom_call.1} parent=11 // pred_check
          %p694 = pneg %p339
        $region62: #{tpu_custom_call.1} parent=11 // pred_check_branch
          %696 = sbr.rel (%p694) target = $region64
        $region63: #{tpu_custom_call.1} parent=11 // pred_region
          _
        $region64: #{tpu_custom_call.1} parent=11 // pred_fallthru
          _
        // Predicated region
        $region65: #{tpu_custom_call.1} parent=11 // pred_check
          %p697 = pneg %p360
        $region66: #{tpu_custom_call.1} parent=11 // pred_check_branch
          %699 = sbr.rel (%p697) target = $region68
        $region67: #{tpu_custom_call.1} parent=11 // pred_region
          _
        $region68: #{tpu_custom_call.1} parent=11 // pred_fallthru
          _
        // Predicated region
        $region69: #{tpu_custom_call.1} parent=11 // pred_check
          %p700 = pneg %p381
        $region70: #{tpu_custom_call.1} parent=11 // pred_check_branch
          %702 = sbr.rel (%p700) target = $region72
        $region71: #{tpu_custom_call.1} parent=11 // pred_region
          _
        $region72: #{tpu_custom_call.1} parent=11 // pred_fallthru
          _
        // Predicated region
        $region73: #{tpu_custom_call.1} parent=11 // pred_check
          %p703 = pneg %p402
        $region74: #{tpu_custom_call.1} parent=11 // pred_check_branch
          %705 = sbr.rel (%p703) target = $region76
        $region75: #{tpu_custom_call.1} parent=11 // pred_region
          _
        $region76: #{tpu_custom_call.1} parent=11 // pred_fallthru
          _
        // Predicated region
        $region77: #{tpu_custom_call.1} parent=11 // pred_check
          %p706 = pneg %p423
        $region78: #{tpu_custom_call.1} parent=11 // pred_check_branch
          %708 = sbr.rel (%p706) target = $region80
        $region79: #{tpu_custom_call.1} parent=11 // pred_region
          _
        $region80: #{tpu_custom_call.1} parent=11 // pred_fallthru
          _
        // Predicated region
        $region81: #{tpu_custom_call.1} parent=11 // pred_check
          %p709 = pneg %p444
        $region82: #{tpu_custom_call.1} parent=11 // pred_check_branch
          %711 = sbr.rel (%p709) target = $region84
        $region83: #{tpu_custom_call.1} parent=11 // pred_region
          _
        $region84: #{tpu_custom_call.1} parent=11 // pred_fallthru
          _
        // Predicated region
        $region85: #{tpu_custom_call.1} parent=11 // pred_check
          %p712 = pneg %p465
        $region86: #{tpu_custom_call.1} parent=11 // pred_check_branch
          %714 = sbr.rel (%p712) target = $region88
        $region87: #{tpu_custom_call.1} parent=11 // pred_region
          _
        $region88: #{tpu_custom_call.1} parent=11 // pred_fallthru
          _
        // Predicated region
        $region89: #{tpu_custom_call.1} parent=11 // pred_check
          %p715 = pneg %p486
        $region90: #{tpu_custom_call.1} parent=11 // pred_check_branch
          %717 = sbr.rel (%p715) target = $region92
        $region91: #{tpu_custom_call.1} parent=11 // pred_region
          _
        $region92: #{tpu_custom_call.1} parent=11 // pred_fallthru
          _
        // Predicated region
        $region93: #{tpu_custom_call.1} parent=11 // pred_check
          %p718 = pneg %p507
        $region94: #{tpu_custom_call.1} parent=11 // pred_check_branch
          %720 = sbr.rel (%p718) target = $region96
        $region95: #{tpu_custom_call.1} parent=11 // pred_region
          _
        $region96: #{tpu_custom_call.1} parent=11 // pred_fallthru
          _
        // Predicated region
        $region97: #{tpu_custom_call.1} parent=11 // pred_check
          %p721 = pneg %p528
        $region98: #{tpu_custom_call.1} parent=11 // pred_check_branch
          %723 = sbr.rel (%p721) target = $region100
        $region99: #{tpu_custom_call.1} parent=11 // pred_region
          _
        $region100: #{tpu_custom_call.1} parent=11 // pred_fallthru
          _
        // Predicated region
        $region101: #{tpu_custom_call.1} parent=11 // pred_check
          %p724 = pneg %p549
        $region102: #{tpu_custom_call.1} parent=11 // pred_check_branch
          %726 = sbr.rel (%p724) target = $region104
        $region103: #{tpu_custom_call.1} parent=11 // pred_region
          _
        $region104: #{tpu_custom_call.1} parent=11 // pred_fallthru
          _
        // Predicated region
        $region105: #{tpu_custom_call.1} parent=11 // pred_check
          %p727 = pneg %p570
        $region106: #{tpu_custom_call.1} parent=11 // pred_check_branch
          %729 = sbr.rel (%p727) target = $region108
        $region107: #{tpu_custom_call.1} parent=11 // pred_region
          _
        $region108: #{tpu_custom_call.1} parent=11 // pred_fallthru
          _
        // Predicated region
        $region109: #{tpu_custom_call.1} parent=11 // pred_check
          %p730 = pneg %p591
        $region110: #{tpu_custom_call.1} parent=11 // pred_check_branch
          %732 = sbr.rel (%p730) target = $region112
        $region111: #{tpu_custom_call.1} parent=11 // pred_region
          _
        $region112: #{tpu_custom_call.1} parent=11 // pred_fallthru
          _
      $region12: #{tpu_custom_call.1} parent=5 // pred_fallthru
        _
      %p733 = scmp.lt.s32.totalorder %s40, 2
      // Predicated region
      $region113: #{tpu_custom_call.1} parent=5 // pred_check
        %p734 = pneg %p733
      $region114: #{tpu_custom_call.1} parent=5 // pred_check_branch
        %736 = sbr.rel (%p734) target = $region116
      $region115: #{tpu_custom_call.1} parent=5 // pred_region
        // Predicated region
        $region117: #{tpu_custom_call.1} parent=115 // pred_check
          %p737 = pneg %p60
        $region118: #{tpu_custom_call.1} parent=115 // pred_check_branch
          %739 = sbr.rel (%p737) target = $region120
        $region119: #{tpu_custom_call.1} parent=115 // pred_region
          %p740 = scmp.lt.s32.totalorder %s40, 1
          %s741 = scalar_select %p740, %s40, 1
          %s742 = smul.addr %s741, 8
          %s743 = scalar_lea.vmem %s0, %s742
        $region120: #{tpu_custom_call.1} parent=115 // pred_fallthru
          _
      $region116: #{tpu_custom_call.1} parent=5 // pred_fallthru
        _
      %p744 = scmp.le.s32.totalorder 1, %s40
      %p745 = scmp.lt.s32.totalorder %s40, 3
      %p746 = pnand %p744, %p745
      %p747 = pneg %p746
      // Predicated region
      $region121: #{tpu_custom_call.1} parent=5 // pred_check
        _
      $region122: #{tpu_custom_call.1} parent=5 // pred_check_branch
        %749 = sbr.rel (%p746) target = $region124
      $region123: #{tpu_custom_call.1} parent=5 // pred_region
        %s750 = ssub.s32 %s40, 1
        %p751 = scmp.lt.s32.totalorder %s45, 1
        %s752 = scalar_select %p751, %s45, 1
        %s753 = smul.addr %s752, 8
        %s754 = scalar_lea.vmem %s0, %s753
        %p755 = pneg %p66
        %p756 = pneg %p63
        %p757 = pneg %p87
        %p758 = pneg %p84
        %p759 = pneg %p108
        %p760 = pneg %p105
        %p761 = pneg %p129
        %p762 = pneg %p126
        %p763 = pneg %p150
        %p764 = pneg %p147
        %p765 = pneg %p171
        %p766 = pneg %p168
        %p767 = pneg %p192
        %p768 = pneg %p189
        %p769 = pneg %p213
        %p770 = pneg %p210
        %p771 = pneg %p234
        %p772 = pneg %p231
        %p773 = pneg %p255
        %p774 = pneg %p252
        %p775 = pneg %p276
        %p776 = pneg %p273
        %p777 = pneg %p297
        %p778 = pneg %p294
        %p779 = pneg %p318
        %p780 = pneg %p315
        %p781 = pneg %p339
        %p782 = pneg %p336
        %p783 = pneg %p360
        %p784 = pneg %p357
        %p785 = pneg %p381
        %p786 = pneg %p378
        %p787 = pneg %p402
        %p788 = pneg %p399
        %p789 = pneg %p423
        %p790 = pneg %p420
        %p791 = pneg %p444
        %p792 = pneg %p441
        %p793 = pneg %p465
        %p794 = pneg %p462
        %p795 = pneg %p486
        %p796 = pneg %p483
        %p797 = pneg %p507
        %p798 = pneg %p504
        %p799 = pneg %p528
        %p800 = pneg %p525
        %p801 = pneg %p549
        %p802 = pneg %p546
        %p803 = pneg %p570
        %p804 = pneg %p567
        %p805 = pneg %p591
        %p806 = pneg %p588
        %p807 = pneg %p617
        %p808 = pneg %p614
        %s809 = sand.u32 %s604, 1
        %s810 = scalar_lea.sflag [#allocation3], %s809
        %s811 = sand.u32 %s604, 1
        %s812 = scalar_lea.vmem [#allocation2], %s811
        %p813 = pneg %p643
        %p814 = pneg %p640
        %s815 = sand.u32 %s630, 1
        %s816 = scalar_lea.sflag [#allocation5], %s815
        %s817 = sand.u32 %s630, 1
        %s818 = smul.addr %s817, 8
        %s819 = scalar_lea.vmem [#allocation4], %s818
        %p820 = scmp.lt.s32.totalorder %s45, 1
        %s821 = scalar_select %p820, %s45, 1
        %s822 = smul.addr %s821, 8
        %s823 = scalar_lea.vmem %s0, %s822
        %v825 = vld [vmem:[%s2] sm:$0xf]
        %v826 = vld [vmem:[%s2 + $0x4] sm:$0xf]
        %v827 = vld [vmem:[%s3] sm:$0xf]
        %v828 = vld [vmem:[%s823] sm:$0xff]
        %v829 = vld [vmem:[%s1] sm:$0xff]
        %v830 = vadd.f32 %v828, %v829
        %v831 = vld [vmem:[%s4] sm:$0xf]
        %v832 = vld [vmem:[%s4 + $0x4] sm:$0xf]
        %v833 = vld [vmem:[%s5] sm:$0x1]
        %v834 = vpack.c.bf16 %v830, %v830
        %v836 = vlaneseq
        %v837 = vshrl.u32 %v836, 7
        %v838 = vsub.s32 0, %v837
        %v839 = vrot.slane %v833, %v838
        %v843 = vunpack.c.l.b16 %v831
        %v844 = vunpack.c.l.b16 %v832
        %v845 = vpack.c.b16 %v844, %v843
        %vm847 = vcmask 130048
        %v849 = vsel %vm847, %v834, 0
        %851 = vmatprep.subr.bf16.mxu0 0
        %852 = vmatpush1.bf16.msra.mxu0 %v845
        %853 = vmatprep.subr.bf16.mxu0 0
        %854 = vmatpush1.bf16.msra.mxu0 0
        %855 = vmatprep.subr.bf16.mxu0 0
        %856 = vmatpush1.bf16.msra.mxu0 0
        %857 = vmatprep.subr.bf16.mxu0 0
        %858 = vmatpush1.bf16.msra.mxu0 0
        %859 = vmatprep.subr.bf16.mxu0 0
        %860 = vmatpush1.bf16.msra.mxu0 0
        %861 = vmatprep.subr.bf16.mxu0 0
        %862 = vmatpush1.bf16.msra.mxu0 0
        %863 = vmatprep.subr.bf16.mxu0 0
        %864 = vmatpush1.bf16.msra.mxu0 0
        %865 = vmatprep.subr.bf16.mxu0 0
        %866 = vmatpush1.bf16.msra.mxu0 0
        %867 = vmatprep.subr.bf16.mxu0 0
        %868 = vmatpush1.bf16.msra.mxu0 0
        %869 = vmatprep.subr.bf16.mxu0 0
        %870 = vmatpush1.bf16.msra.mxu0 0
        %871 = vmatprep.subr.bf16.mxu0 0
        %872 = vmatpush1.bf16.msra.mxu0 0
        %873 = vmatprep.subr.bf16.mxu0 0
        %874 = vmatpush1.bf16.msra.mxu0 0
        %875 = vmatprep.subr.bf16.mxu0 0
        %876 = vmatpush1.bf16.msra.mxu0 0
        %877 = vmatprep.subr.bf16.mxu0 0
        %878 = vmatpush1.bf16.msra.mxu0 0
        %879 = vmatprep.subr.bf16.mxu0 0
        %880 = vmatpush1.bf16.msra.mxu0 0
        %881 = vmatprep.subr.bf16.mxu0 0
        %882 = vmatpush1.bf16.msra.mxu0 0
        %883 = vmatprep.mubr.bf16.mxu0 0
        %884 = vmatmul.mubr.bf16.gmra.mrb[0].mxu0 %v849
        %v885 = vpop.f32.mrb[0].mxu0
        %v886 = vadd.f32 %v839, %v885
        %v887 = vpop.f32.mrb[0].mxu0
        %v888 = vpop.f32.mrb[0].mxu0
        %v889 = vpop.f32.mrb[0].mxu0
        %890 = vdwg.mxu0
        %v891 = vmul.f32 %v886, 0.70710677
        %v892 = vld [vmem:[%s6] sm:$0xf]
        %v893 = vld [vmem:[%s6 + $0x4] sm:$0xf]
        %v894 = vld [vmem:[%s7] sm:$0x1]
        %v896 = vlaneseq
        %v897 = vshrl.u32 %v896, 7
        %v898 = vsub.s32 0, %v897
        %v899 = vrot.slane %v894, %v898
        %v903 = vunpack.c.l.b16 %v892
        %v904 = vunpack.c.l.b16 %v893
        %v905 = vpack.c.b16 %v904, %v903
        %907 = vmatprep.subr.bf16.mxu0 0
        %908 = vmatpush1.bf16.msra.mxu0 %v905
        %909 = vmatprep.subr.bf16.mxu0 0
        %910 = vmatpush1.bf16.msra.mxu0 0
        %911 = vmatprep.subr.bf16.mxu0 0
        %912 = vmatpush1.bf16.msra.mxu0 0
        %913 = vmatprep.subr.bf16.mxu0 0
        %914 = vmatpush1.bf16.msra.mxu0 0
        %915 = vmatprep.subr.bf16.mxu0 0
        %916 = vmatpush1.bf16.msra.mxu0 0
        %917 = vmatprep.subr.bf16.mxu0 0
        %918 = vmatpush1.bf16.msra.mxu0 0
        %919 = vmatprep.subr.bf16.mxu0 0
        %920 = vmatpush1.bf16.msra.mxu0 0
        %921 = vmatprep.subr.bf16.mxu0 0
        %922 = vmatpush1.bf16.msra.mxu0 0
        %923 = vmatprep.subr.bf16.mxu0 0
        %924 = vmatpush1.bf16.msra.mxu0 0
        %925 = vmatprep.subr.bf16.mxu0 0
        %926 = vmatpush1.bf16.msra.mxu0 0
        %927 = vmatprep.subr.bf16.mxu0 0
        %928 = vmatpush1.bf16.msra.mxu0 0
        %929 = vmatprep.subr.bf16.mxu0 0
        %930 = vmatpush1.bf16.msra.mxu0 0
        %931 = vmatprep.subr.bf16.mxu0 0
        %932 = vmatpush1.bf16.msra.mxu0 0
        %933 = vmatprep.subr.bf16.mxu0 0
        %934 = vmatpush1.bf16.msra.mxu0 0
        %935 = vmatprep.subr.bf16.mxu0 0
        %936 = vmatpush1.bf16.msra.mxu0 0
        %937 = vmatprep.subr.bf16.mxu0 0
        %938 = vmatpush1.bf16.msra.mxu0 0
        %939 = vmatprep.mubr.bf16.mxu0 0
        %940 = vmatmul.mubr.bf16.gmra.mrb[0].mxu0 %v849
        %v941 = vpop.f32.mrb[0].mxu0
        %v942 = vadd.f32 %v899, %v941
        %v943 = vpop.f32.mrb[0].mxu0
        %v944 = vpop.f32.mrb[0].mxu0
        %v945 = vpop.f32.mrb[0].mxu0
        %946 = vdwg.mxu0
        %v947 = vld [vmem:[%s8] sm:$0xf]
        %v948 = vld [vmem:[%s8 + $0x4] sm:$0xf]
        %v949 = vld [vmem:[%s9] sm:$0x1]
        %v951 = vlaneseq
        %v952 = vshrl.u32 %v951, 7
        %v953 = vsub.s32 0, %v952
        %v954 = vrot.slane %v949, %v953
        %v958 = vunpack.c.l.b16 %v947
        %v959 = vunpack.c.l.b16 %v948
        %v960 = vpack.c.b16 %v959, %v958
        %962 = vmatprep.subr.bf16.mxu0 0
        %963 = vmatpush1.bf16.msra.mxu0 %v960
        %964 = vmatprep.subr.bf16.mxu0 0
        %965 = vmatpush1.bf16.msra.mxu0 0
        %966 = vmatprep.subr.bf16.mxu0 0
        %967 = vmatpush1.bf16.msra.mxu0 0
        %968 = vmatprep.subr.bf16.mxu0 0
        %969 = vmatpush1.bf16.msra.mxu0 0
        %970 = vmatprep.subr.bf16.mxu0 0
        %971 = vmatpush1.bf16.msra.mxu0 0
        %972 = vmatprep.subr.bf16.mxu0 0
        %973 = vmatpush1.bf16.msra.mxu0 0
        %974 = vmatprep.subr.bf16.mxu0 0
        %975 = vmatpush1.bf16.msra.mxu0 0
        %976 = vmatprep.subr.bf16.mxu0 0
        %977 = vmatpush1.bf16.msra.mxu0 0
        %978 = vmatprep.subr.bf16.mxu0 0
        %979 = vmatpush1.bf16.msra.mxu0 0
        %980 = vmatprep.subr.bf16.mxu0 0
        %981 = vmatpush1.bf16.msra.mxu0 0
        %982 = vmatprep.subr.bf16.mxu0 0
        %983 = vmatpush1.bf16.msra.mxu0 0
        %984 = vmatprep.subr.bf16.mxu0 0
        %985 = vmatpush1.bf16.msra.mxu0 0
        %986 = vmatprep.subr.bf16.mxu0 0
        %987 = vmatpush1.bf16.msra.mxu0 0
        %988 = vmatprep.subr.bf16.mxu0 0
        %989 = vmatpush1.bf16.msra.mxu0 0
        %990 = vmatprep.subr.bf16.mxu0 0
        %991 = vmatpush1.bf16.msra.mxu0 0
        %992 = vmatprep.subr.bf16.mxu0 0
        %993 = vmatpush1.bf16.msra.mxu0 0
        %994 = vmatprep.mubr.bf16.mxu0 0
        %995 = vmatmul.mubr.bf16.gmra.mrb[0].mxu0 %v849
        %v996 = vpop.f32.mrb[0].mxu0
        %v997 = vadd.f32 %v954, %v996
        %v998 = vpop.f32.mrb[0].mxu0
        %v999 = vpop.f32.mrb[0].mxu0
        %v1000 = vpop.f32.mrb[0].mxu0
        %1001 = vdwg.mxu0
        %v1003 = vcombine.high %v891, %v891
        %v1005 = vunpack.c.l.s4 1966171168
        %v1006 = vunpack.c.0.s8 %v1005
        %v1007 = vlaneseq
        %v1008 = vshrl.u32 %v1007, 7
        %v1009 = vsub.s32 %v1006, %v1008
        %v1010 = vrot.slane %v891, %v1009
        %v1012 = vunpack.c.l.s4 1966171168
        %v1013 = vunpack.c.0.s8 %v1012
        %v1014 = vlaneseq
        %v1015 = vshrl.u32 %v1014, 7
        %v1016 = vsub.s32 %v1013, %v1015
        %v1017 = vrot.slane %v1003, %v1016
        %v1018 = vcombine.high %v1010, %v1010
        %v1019 = vcombine.high %v1017, %v1017
        %v1021 = vunpack.c.l.s4 1966171168
        %v1022 = vunpack.c.0.s8 %v1021
        %v1023 = vlaneseq
        %v1024 = vshrl.u32 %v1023, 7
        %v1025 = vsub.s32 %v1022, %v1024
        %v1026 = vrot.slane %v1010, %v1025
        %v1028 = vunpack.c.l.s4 1966171168
        %v1029 = vunpack.c.0.s8 %v1028
        %v1030 = vlaneseq
        %v1031 = vshrl.u32 %v1030, 7
        %v1032 = vsub.s32 %v1029, %v1031
        %v1033 = vrot.slane %v1017, %v1032
        %v1035 = vunpack.c.l.s4 1966171168
        %v1036 = vunpack.c.0.s8 %v1035
        %v1037 = vlaneseq
        %v1038 = vshrl.u32 %v1037, 7
        %v1039 = vsub.s32 %v1036, %v1038
        %v1040 = vrot.slane %v1018, %v1039
        %v1042 = vunpack.c.l.s4 1966171168
        %v1043 = vunpack.c.0.s8 %v1042
        %v1044 = vlaneseq
        %v1045 = vshrl.u32 %v1044, 7
        %v1046 = vsub.s32 %v1043, %v1045
        %v1047 = vrot.slane %v1019, %v1046
        %v1048 = vcombine.high %v1026, %v1026
        %v1049 = vcombine.high %v1033, %v1033
        %v1050 = vcombine.high %v1040, %v1040
        %v1051 = vcombine.high %v1047, %v1047
        %v1052 = vlaneseq
        %v1053 = vshrl.u32 %v1052, 7
        %v1054 = vsub.s32 0, %v1053
        %v1055 = vrot.slane %v1026, %v1054
        %v1056 = vlaneseq
        %v1057 = vshrl.u32 %v1056, 7
        %v1058 = vsub.s32 0, %v1057
        %v1059 = vrot.slane %v1040, %v1058
        %v1060 = vlaneseq
        %v1061 = vshrl.u32 %v1060, 7
        %v1062 = vsub.s32 0, %v1061
        %v1063 = vrot.slane %v1048, %v1062
        %v1064 = vlaneseq
        %v1065 = vshrl.u32 %v1064, 7
        %v1066 = vsub.s32 0, %v1065
        %v1067 = vrot.slane %v1050, %v1066
        %v1068 = vlaneseq
        %v1069 = vshrl.u32 %v1068, 7
        %v1070 = vsub.s32 0, %v1069
        %v1071 = vrot.slane %v1033, %v1070
        %v1072 = vlaneseq
        %v1073 = vshrl.u32 %v1072, 7
        %v1074 = vsub.s32 0, %v1073
        %v1075 = vrot.slane %v1047, %v1074
        %v1076 = vlaneseq
        %v1077 = vshrl.u32 %v1076, 7
        %v1078 = vsub.s32 0, %v1077
        %v1079 = vrot.slane %v1049, %v1078
        %v1080 = vlaneseq
        %v1081 = vshrl.u32 %v1080, 7
        %v1082 = vsub.s32 0, %v1081
        %v1083 = vrot.slane %v1051, %v1082
        %v1092 = vmul.f32 %v1055, %v942
        %v1093 = vmul.f32 %v1059, %v942
        %v1094 = vmul.f32 %v1063, %v942
        %v1095 = vmul.f32 %v1067, %v942
        %v1096 = vmul.f32 %v1071, %v942
        %v1097 = vmul.f32 %v1075, %v942
        %v1098 = vmul.f32 %v1079, %v942
        %v1099 = vmul.f32 %v1083, %v942
        %v1100 = vpack.c.bf16 %v1093, %v1092
        %v1101 = vpack.c.bf16 %v1095, %v1094
        %v1102 = vpack.c.bf16 %v1097, %v1096
        %v1103 = vpack.c.bf16 %v1099, %v1098
        %v1106 = vunpack.c.l.b16 %v825
        %v1107 = vunpack.c.l.b16 %v826
        %v1108 = vpack.c.b16 %v1107, %v1106
        %v1111 = vsel %vm847, %v1100, 0
        %v1114 = vsel %vm847, %v1101, 0
        %v1117 = vsel %vm847, %v1102, 0
        %v1120 = vsel %vm847, %v1103, 0
        %1122 = vmatprep.subr.bf16.mxu0 0
        %1123 = vmatpush1.bf16.msra.mxu0 %v1108
        %1124 = vmatprep.subr.bf16.mxu0 0
        %1125 = vmatpush1.bf16.msra.mxu0 0
        %1126 = vmatprep.subr.bf16.mxu0 0
        %1127 = vmatpush1.bf16.msra.mxu0 0
        %1128 = vmatprep.subr.bf16.mxu0 0
        %1129 = vmatpush1.bf16.msra.mxu0 0
        %1130 = vmatprep.subr.bf16.mxu0 0
        %1131 = vmatpush1.bf16.msra.mxu0 0
        %1132 = vmatprep.subr.bf16.mxu0 0
        %1133 = vmatpush1.bf16.msra.mxu0 0
        %1134 = vmatprep.subr.bf16.mxu0 0
        %1135 = vmatpush1.bf16.msra.mxu0 0
        %1136 = vmatprep.subr.bf16.mxu0 0
        %1137 = vmatpush1.bf16.msra.mxu0 0
        %1138 = vmatprep.subr.bf16.mxu0 0
        %1139 = vmatpush1.bf16.msra.mxu0 0
        %1140 = vmatprep.subr.bf16.mxu0 0
        %1141 = vmatpush1.bf16.msra.mxu0 0
        %1142 = vmatprep.subr.bf16.mxu0 0
        %1143 = vmatpush1.bf16.msra.mxu0 0
        %1144 = vmatprep.subr.bf16.mxu0 0
        %1145 = vmatpush1.bf16.msra.mxu0 0
        %1146 = vmatprep.subr.bf16.mxu0 0
        %1147 = vmatpush1.bf16.msra.mxu0 0
        %1148 = vmatprep.subr.bf16.mxu0 0
        %1149 = vmatpush1.bf16.msra.mxu0 0
        %1150 = vmatprep.subr.bf16.mxu0 0
        %1151 = vmatpush1.bf16.msra.mxu0 0
        %1152 = vmatprep.subr.bf16.mxu0 0
        %1153 = vmatpush1.bf16.msra.mxu0 0
        %1154 = vmatprep.mubr.bf16.mxu0 0
        %1155 = vmatmul.mubr.bf16.gmra.mrb[0].mxu0 %v1111
        %v1156 = vpop.f32.mrb[0].mxu0
        %v1157 = vadd.f32 0.0, %v1156
        %v1158 = vpop.f32.mrb[0].mxu0
        %v1159 = vpop.f32.mrb[0].mxu0
        %v1160 = vadd.f32 0.0, %v1159
        %v1161 = vpop.f32.mrb[0].mxu0
        %1162 = vmatprep.mubr.bf16.mxu0 0
        %1163 = vmatmul.mubr.bf16.gmra.mrb[0].mxu0 %v1114
        %v1164 = vpop.f32.mrb[0].mxu0
        %v1165 = vadd.f32 0.0, %v1164
        %v1166 = vpop.f32.mrb[0].mxu0
        %v1167 = vpop.f32.mrb[0].mxu0
        %v1168 = vadd.f32 0.0, %v1167
        %v1169 = vpop.f32.mrb[0].mxu0
        %1170 = vmatprep.mubr.bf16.mxu0 0
        %1171 = vmatmul.mubr.bf16.gmra.mrb[0].mxu0 %v1117
        %v1172 = vpop.f32.mrb[0].mxu0
        %v1173 = vadd.f32 0.0, %v1172
        %v1174 = vpop.f32.mrb[0].mxu0
        %v1175 = vpop.f32.mrb[0].mxu0
        %v1176 = vadd.f32 0.0, %v1175
        %v1177 = vpop.f32.mrb[0].mxu0
        %1178 = vmatprep.mubr.bf16.mxu0 0
        %1179 = vmatmul.mubr.bf16.gmra.mrb[0].mxu0 %v1120
        %v1180 = vpop.f32.mrb[0].mxu0
        %v1181 = vadd.f32 0.0, %v1180
        %v1182 = vpop.f32.mrb[0].mxu0
        %v1183 = vpop.f32.mrb[0].mxu0
        %v1184 = vadd.f32 0.0, %v1183
        %v1185 = vpop.f32.mrb[0].mxu0
        %1186 = vdwg.mxu0
        %vm1187 = vcmask 64512
        %v1188 = vsel %vm1187, %v1157, -inf
        %v1189 = vrot.slane %v1188, 4
        %v1190 = vmax.f32 %v1188, %v1189
        %v1191 = vrot.slane %v1190, 2
        %v1192 = vmax.f32 %v1190, %v1191
        %v1193 = vrot.slane %v1192, 1
        %v1194 = vmax.f32 %v1192, %v1193
        %v1195 = vsel %vm1187, %v1160, -inf
        %v1196 = vrot.slane %v1195, 4
        %v1197 = vmax.f32 %v1195, %v1196
        %v1198 = vrot.slane %v1197, 2
        %v1199 = vmax.f32 %v1197, %v1198
        %v1200 = vrot.slane %v1199, 1
        %v1201 = vmax.f32 %v1199, %v1200
        %v1202 = vsel %vm1187, %v1165, -inf
        %v1203 = vrot.slane %v1202, 4
        %v1204 = vmax.f32 %v1202, %v1203
        %v1205 = vrot.slane %v1204, 2
        %v1206 = vmax.f32 %v1204, %v1205
        %v1207 = vrot.slane %v1206, 1
        %v1208 = vmax.f32 %v1206, %v1207
        %v1209 = vsel %vm1187, %v1168, -inf
        %v1210 = vrot.slane %v1209, 4
        %v1211 = vmax.f32 %v1209, %v1210
        %v1212 = vrot.slane %v1211, 2
        %v1213 = vmax.f32 %v1211, %v1212
        %v1214 = vrot.slane %v1213, 1
        %v1215 = vmax.f32 %v1213, %v1214
        %v1216 = vsel %vm1187, %v1173, -inf
        %v1217 = vrot.slane %v1216, 4
        %v1218 = vmax.f32 %v1216, %v1217
        %v1219 = vrot.slane %v1218, 2
        %v1220 = vmax.f32 %v1218, %v1219
        %v1221 = vrot.slane %v1220, 1
        %v1222 = vmax.f32 %v1220, %v1221
        %v1223 = vsel %vm1187, %v1176, -inf
        %v1224 = vrot.slane %v1223, 4
        %v1225 = vmax.f32 %v1223, %v1224
        %v1226 = vrot.slane %v1225, 2
        %v1227 = vmax.f32 %v1225, %v1226
        %v1228 = vrot.slane %v1227, 1
        %v1229 = vmax.f32 %v1227, %v1228
        %v1230 = vsel %vm1187, %v1181, -inf
        %v1231 = vrot.slane %v1230, 4
        %v1232 = vmax.f32 %v1230, %v1231
        %v1233 = vrot.slane %v1232, 2
        %v1234 = vmax.f32 %v1232, %v1233
        %v1235 = vrot.slane %v1234, 1
        %v1236 = vmax.f32 %v1234, %v1235
        %v1237 = vsel %vm1187, %v1184, -inf
        %v1238 = vrot.slane %v1237, 4
        %v1239 = vmax.f32 %v1237, %v1238
        %v1240 = vrot.slane %v1239, 2
        %v1241 = vmax.f32 %v1239, %v1240
        %v1242 = vrot.slane %v1241, 1
        %v1243 = vmax.f32 %v1241, %v1242
        %v1244 = vsub.f32 %v1157, %v1194
        %v1245 = vsub.f32 %v1160, %v1201
        %v1246 = vsub.f32 %v1165, %v1208
        %v1247 = vsub.f32 %v1168, %v1215
        %v1248 = vsub.f32 %v1173, %v1222
        %v1249 = vsub.f32 %v1176, %v1229
        %v1250 = vsub.f32 %v1181, %v1236
        %v1251 = vsub.f32 %v1184, %v1243
        %v1252 = vmul.f32 %v1244, 1.442695
        %v1253 = vpow.pop %v1252
        %v1254 = vmul.f32 %v1245, 1.442695
        %v1255 = vpow.pop %v1254
        %v1256 = vmul.f32 %v1246, 1.442695
        %v1257 = vpow.pop %v1256
        %v1258 = vmul.f32 %v1247, 1.442695
        %v1259 = vpow.pop %v1258
        %v1260 = vmul.f32 %v1248, 1.442695
        %v1261 = vpow.pop %v1260
        %v1262 = vmul.f32 %v1249, 1.442695
        %v1263 = vpow.pop %v1262
        %v1264 = vmul.f32 %v1250, 1.442695
        %v1265 = vpow.pop %v1264
        %v1266 = vmul.f32 %v1251, 1.442695
        %v1267 = vpow.pop %v1266
        %v1268 = vsel %vm1187, %v1253, 0.0
        %v1269 = vrot.slane %v1268, 4
        %v1270 = vadd.f32 %v1268, %v1269
        %v1271 = vrot.slane %v1270, 2
        %v1272 = vadd.f32 %v1270, %v1271
        %v1273 = vrot.slane %v1272, 1
        %v1274 = vadd.f32 %v1272, %v1273
        %v1275 = vsel %vm1187, %v1255, 0.0
        %v1276 = vrot.slane %v1275, 4
        %v1277 = vadd.f32 %v1275, %v1276
        %v1278 = vrot.slane %v1277, 2
        %v1279 = vadd.f32 %v1277, %v1278
        %v1280 = vrot.slane %v1279, 1
        %v1281 = vadd.f32 %v1279, %v1280
        %v1282 = vsel %vm1187, %v1257, 0.0
        %v1283 = vrot.slane %v1282, 4
        %v1284 = vadd.f32 %v1282, %v1283
        %v1285 = vrot.slane %v1284, 2
        %v1286 = vadd.f32 %v1284, %v1285
        %v1287 = vrot.slane %v1286, 1
        %v1288 = vadd.f32 %v1286, %v1287
        %v1289 = vsel %vm1187, %v1259, 0.0
        %v1290 = vrot.slane %v1289, 4
        %v1291 = vadd.f32 %v1289, %v1290
        %v1292 = vrot.slane %v1291, 2
        %v1293 = vadd.f32 %v1291, %v1292
        %v1294 = vrot.slane %v1293, 1
        %v1295 = vadd.f32 %v1293, %v1294
        %v1296 = vsel %vm1187, %v1261, 0.0
        %v1297 = vrot.slane %v1296, 4
        %v1298 = vadd.f32 %v1296, %v1297
        %v1299 = vrot.slane %v1298, 2
        %v1300 = vadd.f32 %v1298, %v1299
        %v1301 = vrot.slane %v1300, 1
        %v1302 = vadd.f32 %v1300, %v1301
        %v1303 = vsel %vm1187, %v1263, 0.0
        %v1304 = vrot.slane %v1303, 4
        %v1305 = vadd.f32 %v1303, %v1304
        %v1306 = vrot.slane %v1305, 2
        %v1307 = vadd.f32 %v1305, %v1306
        %v1308 = vrot.slane %v1307, 1
        %v1309 = vadd.f32 %v1307, %v1308
        %v1310 = vsel %vm1187, %v1265, 0.0
        %v1311 = vrot.slane %v1310, 4
        %v1312 = vadd.f32 %v1310, %v1311
        %v1313 = vrot.slane %v1312, 2
        %v1314 = vadd.f32 %v1312, %v1313
        %v1315 = vrot.slane %v1314, 1
        %v1316 = vadd.f32 %v1314, %v1315
        %v1317 = vsel %vm1187, %v1267, 0.0
        %v1318 = vrot.slane %v1317, 4
        %v1319 = vadd.f32 %v1317, %v1318
        %v1320 = vrot.slane %v1319, 2
        %v1321 = vadd.f32 %v1319, %v1320
        %v1322 = vrot.slane %v1321, 1
        %v1323 = vadd.f32 %v1321, %v1322
        %v1324 = vrcp.pop %v1274
        %v1325 = vmul.f32 %v1253, %v1324
        %v1326 = vrcp.pop %v1281
        %v1327 = vmul.f32 %v1255, %v1326
        %v1328 = vrcp.pop %v1288
        %v1329 = vmul.f32 %v1257, %v1328
        %v1330 = vrcp.pop %v1295
        %v1331 = vmul.f32 %v1259, %v1330
        %v1332 = vrcp.pop %v1302
        %v1333 = vmul.f32 %v1261, %v1332
        %v1334 = vrcp.pop %v1309
        %v1335 = vmul.f32 %v1263, %v1334
        %v1336 = vrcp.pop %v1316
        %v1337 = vmul.f32 %v1265, %v1336
        %v1338 = vrcp.pop %v1323
        %v1339 = vmul.f32 %v1267, %v1338
        %v1340 = vsel %vm1187, %v1325, 0.0
        %1341 = vadd.xlane.f32.xlu0 %v1340
        %v1342 = vpop.xlane.xlu0 %1341
        %v1343 = vsel %vm1187, %v1327, 0.0
        %1344 = vadd.xlane.f32.xlu0 %v1343
        %v1345 = vpop.xlane.xlu0 %1344
        %v1346 = vsel %vm1187, %v1329, 0.0
        %1347 = vadd.xlane.f32.xlu0 %v1346
        %v1348 = vpop.xlane.xlu0 %1347
        %v1349 = vsel %vm1187, %v1331, 0.0
        %1350 = vadd.xlane.f32.xlu0 %v1349
        %v1351 = vpop.xlane.xlu0 %1350
        %v1352 = vsel %vm1187, %v1333, 0.0
        %1353 = vadd.xlane.f32.xlu0 %v1352
        %v1354 = vpop.xlane.xlu0 %1353
        %v1355 = vsel %vm1187, %v1335, 0.0
        %1356 = vadd.xlane.f32.xlu0 %v1355
        %v1357 = vpop.xlane.xlu0 %1356
        %v1358 = vsel %vm1187, %v1337, 0.0
        %1359 = vadd.xlane.f32.xlu0 %v1358
        %v1360 = vpop.xlane.xlu0 %1359
        %v1361 = vsel %vm1187, %v1339, 0.0
        %1362 = vadd.xlane.f32.xlu0 %v1361
        %v1363 = vpop.xlane.xlu0 %1362
        %v1364 = vrcp.pop 8.0
        %v1365 = vmul.f32 %v1342, %v1364
        %v1366 = vmul.f32 %v1345, %v1364
        %v1367 = vmul.f32 %v1348, %v1364
        %v1368 = vmul.f32 %v1351, %v1364
        %v1369 = vmul.f32 %v1354, %v1364
        %v1370 = vmul.f32 %v1357, %v1364
        %v1371 = vmul.f32 %v1360, %v1364
        %v1372 = vmul.f32 %v1363, %v1364
        %v1373 = vadd.f32 %v1365, 0.0
        %v1374 = vadd.f32 %v1366, 0.0
        %v1375 = vadd.f32 %v1367, 0.0
        %v1376 = vadd.f32 %v1368, 0.0
        %v1377 = vadd.f32 %v1369, 0.0
        %v1378 = vadd.f32 %v1370, 0.0
        %v1379 = vadd.f32 %v1371, 0.0
        %v1380 = vadd.f32 %v1372, 0.0
        %v1389 = vlaneseq
        %v1390 = vand.u32 %v1389, 127
        %v1391 = vlaneseq
        %v1392 = vshrl.u32 %v1391, 7
        %v1393 = vsub.s32 %v1390, %v1392
        %v1394 = vrot.slane %v1373, %v1393
        %v1395 = vlaneseq
        %v1396 = vshrl.u32 %v1395, 7
        %v1397 = vsub.s32 %v1390, %v1396
        %v1398 = vrot.slane %v1374, %v1397
        %v1399 = vlaneseq
        %v1400 = vshrl.u32 %v1399, 7
        %v1401 = vsub.s32 %v1390, %v1400
        %v1402 = vrot.slane %v1375, %v1401
        %v1403 = vlaneseq
        %v1404 = vshrl.u32 %v1403, 7
        %v1405 = vsub.s32 %v1390, %v1404
        %v1406 = vrot.slane %v1376, %v1405
        %v1407 = vlaneseq
        %v1408 = vshrl.u32 %v1407, 7
        %v1409 = vsub.s32 %v1390, %v1408
        %v1410 = vrot.slane %v1377, %v1409
        %v1411 = vlaneseq
        %v1412 = vshrl.u32 %v1411, 7
        %v1413 = vsub.s32 %v1390, %v1412
        %v1414 = vrot.slane %v1378, %v1413
        %v1415 = vlaneseq
        %v1416 = vshrl.u32 %v1415, 7
        %v1417 = vsub.s32 %v1390, %v1416
        %v1418 = vrot.slane %v1379, %v1417
        %v1419 = vlaneseq
        %v1420 = vshrl.u32 %v1419, 7
        %v1421 = vsub.s32 %v1390, %v1420
        %v1422 = vrot.slane %v1380, %v1421
        %vm1423 = vcmask 1041409
        %v1424 = vsel %vm1423, %v1398, %v1394
        %vm1425 = vcmask 1042434
        %v1426 = vsel %vm1425, %v1402, %v1424
        %vm1427 = vcmask 1043459
        %v1428 = vsel %vm1427, %v1406, %v1426
        %vm1429 = vcmask 1044484
        %v1430 = vsel %vm1429, %v1410, %v1428
        %vm1431 = vcmask 1045509
        %v1432 = vsel %vm1431, %v1414, %v1430
        %vm1433 = vcmask 1046534
        %v1434 = vsel %vm1433, %v1418, %v1432
        %vm1435 = vcmask 1047559
        %v1436 = vsel %vm1435, %v1422, %v1434
        %1438 = vst.msk [vmem:[%s819] sm:$0xff] %vm1187, %v1436
        %v1439 = vpack.c.bf16 %v1327, %v1325
        %v1440 = vpack.c.bf16 %v1331, %v1329
        %v1441 = vpack.c.bf16 %v1335, %v1333
        %v1442 = vpack.c.bf16 %v1339, %v1337
        %v1444 = vsel %vm1187, %v1439, 0
        %v1447 = vsel %vm1187, %v1440, 0
        %v1450 = vsel %vm1187, %v1441, 0
        %v1453 = vsel %vm1187, %v1442, 0
        %vm1455 = vcmask 1043456
        %v1457 = vsel %vm1455, %v827, 0
        %1459 = vmatprep.subr.bf16.mxu0 0
        %1460 = vmatpush1.bf16.msra.mxu0 %v1457
        %1461 = vmatprep.subr.bf16.mxu0 0
        %1462 = vmatpush1.bf16.msra.mxu0 0
        %1463 = vmatprep.subr.bf16.mxu0 0
        %1464 = vmatpush1.bf16.msra.mxu0 0
        %1465 = vmatprep.subr.bf16.mxu0 0
        %1466 = vmatpush1.bf16.msra.mxu0 0
        %1467 = vmatprep.subr.bf16.mxu0 0
        %1468 = vmatpush1.bf16.msra.mxu0 0
        %1469 = vmatprep.subr.bf16.mxu0 0
        %1470 = vmatpush1.bf16.msra.mxu0 0
        %1471 = vmatprep.subr.bf16.mxu0 0
        %1472 = vmatpush1.bf16.msra.mxu0 0
        %1473 = vmatprep.subr.bf16.mxu0 0
        %1474 = vmatpush1.bf16.msra.mxu0 0
        %1475 = vmatprep.subr.bf16.mxu0 0
        %1476 = vmatpush1.bf16.msra.mxu0 0
        %1477 = vmatprep.subr.bf16.mxu0 0
        %1478 = vmatpush1.bf16.msra.mxu0 0
        %1479 = vmatprep.subr.bf16.mxu0 0
        %1480 = vmatpush1.bf16.msra.mxu0 0
        %1481 = vmatprep.subr.bf16.mxu0 0
        %1482 = vmatpush1.bf16.msra.mxu0 0
        %1483 = vmatprep.subr.bf16.mxu0 0
        %1484 = vmatpush1.bf16.msra.mxu0 0
        %1485 = vmatprep.subr.bf16.mxu0 0
        %1486 = vmatpush1.bf16.msra.mxu0 0
        %1487 = vmatprep.subr.bf16.mxu0 0
        %1488 = vmatpush1.bf16.msra.mxu0 0
        %1489 = vmatprep.subr.bf16.mxu0 0
        %1490 = vmatpush1.bf16.msra.mxu0 0
        %1491 = vmatprep.mubr.bf16.mxu0 0
        %1492 = vmatmul.mubr.bf16.gmra.mrb[0].mxu0 %v1444
        %v1493 = vpop.f32.mrb[0].mxu0
        %v1494 = vadd.f32 0.0, %v1493
        %v1495 = vpop.f32.mrb[0].mxu0
        %v1496 = vpop.f32.mrb[0].mxu0
        %v1497 = vadd.f32 0.0, %v1496
        %v1498 = vpop.f32.mrb[0].mxu0
        %1499 = vmatprep.mubr.bf16.mxu0 0
        %1500 = vmatmul.mubr.bf16.gmra.mrb[0].mxu0 %v1447
        %v1501 = vpop.f32.mrb[0].mxu0
        %v1502 = vadd.f32 0.0, %v1501
        %v1503 = vpop.f32.mrb[0].mxu0
        %v1504 = vpop.f32.mrb[0].mxu0
        %v1505 = vadd.f32 0.0, %v1504
        %v1506 = vpop.f32.mrb[0].mxu0
        %1507 = vmatprep.mubr.bf16.mxu0 0
        %1508 = vmatmul.mubr.bf16.gmra.mrb[0].mxu0 %v1450
        %v1509 = vpop.f32.mrb[0].mxu0
        %v1510 = vadd.f32 0.0, %v1509
        %v1511 = vpop.f32.mrb[0].mxu0
        %v1512 = vpop.f32.mrb[0].mxu0
        %v1513 = vadd.f32 0.0, %v1512
        %v1514 = vpop.f32.mrb[0].mxu0
        %1515 = vmatprep.mubr.bf16.mxu0 0
        %1516 = vmatmul.mubr.bf16.gmra.mrb[0].mxu0 %v1453
        %v1517 = vpop.f32.mrb[0].mxu0
        %v1518 = vadd.f32 0.0, %v1517
        %v1519 = vpop.f32.mrb[0].mxu0
        %v1520 = vpop.f32.mrb[0].mxu0
        %v1521 = vadd.f32 0.0, %v1520
        %v1522 = vpop.f32.mrb[0].mxu0
        %1523 = vdwg.mxu0
        %v1524 = vmul.f32 %v1494, %v997
        %v1525 = vmul.f32 %v1497, %v997
        %v1526 = vmul.f32 %v1502, %v997
        %v1527 = vmul.f32 %v1505, %v997
        %v1528 = vmul.f32 %v1510, %v997
        %v1529 = vmul.f32 %v1513, %v997
        %v1530 = vmul.f32 %v1518, %v997
        %v1531 = vmul.f32 %v1521, %v997
        %v1532 = vsel %vm847, %v1524, 0.0
        %v1533 = vrot.slane %v1532, 4
        %v1534 = vadd.f32 %v1532, %v1533
        %v1535 = vrot.slane %v1534, 2
        %v1536 = vadd.f32 %v1534, %v1535
        %v1537 = vrot.slane %v1536, 1
        %v1538 = vadd.f32 %v1536, %v1537
        %v1539 = vsel %vm847, %v1525, 0.0
        %v1540 = vrot.slane %v1539, 4
        %v1541 = vadd.f32 %v1539, %v1540
        %v1542 = vrot.slane %v1541, 2
        %v1543 = vadd.f32 %v1541, %v1542
        %v1544 = vrot.slane %v1543, 1
        %v1545 = vadd.f32 %v1543, %v1544
        %v1546 = vsel %vm847, %v1526, 0.0
        %v1547 = vrot.slane %v1546, 4
        %v1548 = vadd.f32 %v1546, %v1547
        %v1549 = vrot.slane %v1548, 2
        %v1550 = vadd.f32 %v1548, %v1549
        %v1551 = vrot.slane %v1550, 1
        %v1552 = vadd.f32 %v1550, %v1551
        %v1553 = vsel %vm847, %v1527, 0.0
        %v1554 = vrot.slane %v1553, 4
        %v1555 = vadd.f32 %v1553, %v1554
        %v1556 = vrot.slane %v1555, 2
        %v1557 = vadd.f32 %v1555, %v1556
        %v1558 = vrot.slane %v1557, 1
        %v1559 = vadd.f32 %v1557, %v1558
        %v1560 = vsel %vm847, %v1528, 0.0
        %v1561 = vrot.slane %v1560, 4
        %v1562 = vadd.f32 %v1560, %v1561
        %v1563 = vrot.slane %v1562, 2
        %v1564 = vadd.f32 %v1562, %v1563
        %v1565 = vrot.slane %v1564, 1
        %v1566 = vadd.f32 %v1564, %v1565
        %v1567 = vsel %vm847, %v1529, 0.0
        %v1568 = vrot.slane %v1567, 4
        %v1569 = vadd.f32 %v1567, %v1568
        %v1570 = vrot.slane %v1569, 2
        %v1571 = vadd.f32 %v1569, %v1570
        %v1572 = vrot.slane %v1571, 1
        %v1573 = vadd.f32 %v1571, %v1572
        %v1574 = vsel %vm847, %v1530, 0.0
        %v1575 = vrot.slane %v1574, 4
        %v1576 = vadd.f32 %v1574, %v1575
        %v1577 = vrot.slane %v1576, 2
        %v1578 = vadd.f32 %v1576, %v1577
        %v1579 = vrot.slane %v1578, 1
        %v1580 = vadd.f32 %v1578, %v1579
        %v1581 = vsel %vm847, %v1531, 0.0
        %v1582 = vrot.slane %v1581, 4
        %v1583 = vadd.f32 %v1581, %v1582
        %v1584 = vrot.slane %v1583, 2
        %v1585 = vadd.f32 %v1583, %v1584
        %v1586 = vrot.slane %v1585, 1
        %v1587 = vadd.f32 %v1585, %v1586
        %v1588 = vld [vmem:[%s10] sm:$0xf]
        %v1589 = vld [vmem:[%s10 + $0x4] sm:$0xf]
        %v1590 = vld [vmem:[%s11] sm:$0x1]
        %v1591 = vpack.c.bf16 %v1538, %v1538
        %v1592 = vpack.c.bf16 %v1545, %v1545
        %v1593 = vpack.c.bf16 %v1552, %v1552
        %v1594 = vpack.c.bf16 %v1559, %v1559
        %v1595 = vpack.c.bf16 %v1566, %v1566
        %v1596 = vpack.c.bf16 %v1573, %v1573
        %v1597 = vpack.c.bf16 %v1580, %v1580
        %v1598 = vpack.c.bf16 %v1587, %v1587
        %v1600 = vlaneseq
        %v1601 = vshrl.u32 %v1600, 7
        %v1602 = vsub.s32 0, %v1601
        %v1603 = vrot.slane %v1590, %v1602
        %v1613 = vunpack.c.l.b16 %v1591
        %v1614 = vunpack.c.l.b16 %v1592
        %v1615 = vunpack.c.l.b16 %v1593
        %v1616 = vunpack.c.l.b16 %v1594
        %v1617 = vunpack.c.l.b16 %v1595
        %v1618 = vunpack.c.l.b16 %v1596
        %v1619 = vunpack.c.l.b16 %v1597
        %v1620 = vunpack.c.l.b16 %v1598
        %v1621 = vsel %vm1423, %v1614, %v1613
        %v1622 = vsel %vm1425, %v1615, %v1621
        %v1623 = vsel %vm1427, %v1616, %v1622
        %v1624 = vsel %vm1429, %v1617, %v1623
        %v1625 = vsel %vm1431, %v1618, %v1624
        %v1626 = vsel %vm1433, %v1619, %v1625
        %v1627 = vsel %vm1435, %v1620, %v1626
        %v1628 = vpack.c.b16 %v1627, %v1627
        %v1631 = vunpack.c.l.b16 %v1588
        %v1632 = vunpack.c.l.b16 %v1589
        %v1633 = vpack.c.b16 %v1632, %v1631
        %v1636 = vsel %vm847, %v1628, 0
        %1638 = vmatprep.subr.bf16.mxu0 0
        %1639 = vmatpush1.bf16.msra.mxu0 %v1633
        %1640 = vmatprep.subr.bf16.mxu0 0
        %1641 = vmatpush1.bf16.msra.mxu0 0
        %1642 = vmatprep.subr.bf16.mxu0 0
        %1643 = vmatpush1.bf16.msra.mxu0 0
        %1644 = vmatprep.subr.bf16.mxu0 0
        %1645 = vmatpush1.bf16.msra.mxu0 0
        %1646 = vmatprep.subr.bf16.mxu0 0
        %1647 = vmatpush1.bf16.msra.mxu0 0
        %1648 = vmatprep.subr.bf16.mxu0 0
        %1649 = vmatpush1.bf16.msra.mxu0 0
        %1650 = vmatprep.subr.bf16.mxu0 0
        %1651 = vmatpush1.bf16.msra.mxu0 0
        %1652 = vmatprep.subr.bf16.mxu0 0
        %1653 = vmatpush1.bf16.msra.mxu0 0
        %1654 = vmatprep.subr.bf16.mxu0 0
        %1655 = vmatpush1.bf16.msra.mxu0 0
        %1656 = vmatprep.subr.bf16.mxu0 0
        %1657 = vmatpush1.bf16.msra.mxu0 0
        %1658 = vmatprep.subr.bf16.mxu0 0
        %1659 = vmatpush1.bf16.msra.mxu0 0
        %1660 = vmatprep.subr.bf16.mxu0 0
        %1661 = vmatpush1.bf16.msra.mxu0 0
        %1662 = vmatprep.subr.bf16.mxu0 0
        %1663 = vmatpush1.bf16.msra.mxu0 0
        %1664 = vmatprep.subr.bf16.mxu0 0
        %1665 = vmatpush1.bf16.msra.mxu0 0
        %1666 = vmatprep.subr.bf16.mxu0 0
        %1667 = vmatpush1.bf16.msra.mxu0 0
        %1668 = vmatprep.subr.bf16.mxu0 0
        %1669 = vmatpush1.bf16.msra.mxu0 0
        %1670 = vmatprep.mubr.bf16.mxu0 0
        %1671 = vmatmul.mubr.bf16.gmra.mrb[0].mxu0 %v1636
        %v1672 = vpop.f32.mrb[0].mxu0
        %v1673 = vadd.f32 %v1603, %v1672
        %v1674 = vpop.f32.mrb[0].mxu0
        %v1675 = vpop.f32.mrb[0].mxu0
        %v1676 = vpop.f32.mrb[0].mxu0
        %1677 = vdwg.mxu0
        %v1678 = vadd.f32 %v830, %v1673
        %v1679 = vld [vmem:[%s16] sm:$0x1]
        %v1680 = vld [vmem:[%s17] sm:$0x1]
        %v1681 = vsel %vm847, %v1678, 0.0
        %1682 = vadd.xlane.f32.xlu0 %v1681
        %v1683 = vpop.xlane.xlu0 %1682
        %v1684 = vrcp.pop 16.0
        %v1685 = vmul.f32 %v1683, %v1684
        %v1686 = vsub.f32 %v1678, %v1685
        %v1687 = vmul.f32 %v1686, %v1686
        %v1688 = vsel %vm847, %v1687, 0.0
        %1689 = vadd.xlane.f32.xlu0 %v1688
        %v1690 = vpop.xlane.xlu0 %1689
        %v1691 = vmul.f32 %v1690, %v1684
        %v1692 = vadd.f32 %v1691, 1e-05
        %v1693 = vrsqrt.pop %v1692
        %v1694 = vmul.f32 %v1686, %v1693
        %v1696 = vlaneseq
        %v1697 = vshrl.u32 %v1696, 7
        %v1698 = vsub.s32 0, %v1697
        %v1699 = vrot.slane %v1679, %v1698
        %v1701 = vmul.f32 %v1694, %v1699
        %v1703 = vlaneseq
        %v1704 = vshrl.u32 %v1703, 7
        %v1705 = vsub.s32 0, %v1704
        %v1706 = vrot.slane %v1680, %v1705
        %v1708 = vadd.f32 %v1701, %v1706
        %v1709 = vld [vmem:[%s12] sm:$0xff]
        %v1710 = vld [vmem:[%s12 + $0x8] sm:$0xff]
        %v1711 = vld [vmem:[%s13] sm:$0x3]
        %v1712 = vpack.c.bf16 %v1708, %v1708
        %v1714 = vlaneseq
        %v1715 = vshrl.u32 %v1714, 7
        %v1716 = vsub.s32 0, %v1715
        %v1717 = vrot.slane %v1711, %v1716
        %v1718 = vlaneseq
        %v1719 = vshrl.u32 %v1718, 7
        %v1720 = vsub.s32 1, %v1719
        %v1721 = vrot.slane %v1711, %v1720
        %v1726 = vunpack.c.l.b16 %v1709
        %v1727 = vunpack.c.h.b16 %v1709
        %v1728 = vunpack.c.l.b16 %v1710
        %v1729 = vunpack.c.h.b16 %v1710
        %v1730 = vpack.c.b16 %v1728, %v1726
        %v1731 = vpack.c.b16 %v1729, %v1727
        %v1735 = vsel %vm847, %v1712, 0
        %1737 = vmatprep.subr.bf16.mxu0 %v1731
        %1738 = vmatpush1.bf16.msra.mxu0 %v1730
        %1739 = vmatprep.subr.bf16.mxu0 0
        %1740 = vmatpush1.bf16.msra.mxu0 0
        %1741 = vmatprep.subr.bf16.mxu0 0
        %1742 = vmatpush1.bf16.msra.mxu0 0
        %1743 = vmatprep.subr.bf16.mxu0 0
        %1744 = vmatpush1.bf16.msra.mxu0 0
        %1745 = vmatprep.subr.bf16.mxu0 0
        %1746 = vmatpush1.bf16.msra.mxu0 0
        %1747 = vmatprep.subr.bf16.mxu0 0
        %1748 = vmatpush1.bf16.msra.mxu0 0
        %1749 = vmatprep.subr.bf16.mxu0 0
        %1750 = vmatpush1.bf16.msra.mxu0 0
        %1751 = vmatprep.subr.bf16.mxu0 0
        %1752 = vmatpush1.bf16.msra.mxu0 0
        %1753 = vmatprep.subr.bf16.mxu0 0
        %1754 = vmatpush1.bf16.msra.mxu0 0
        %1755 = vmatprep.subr.bf16.mxu0 0
        %1756 = vmatpush1.bf16.msra.mxu0 0
        %1757 = vmatprep.subr.bf16.mxu0 0
        %1758 = vmatpush1.bf16.msra.mxu0 0
        %1759 = vmatprep.subr.bf16.mxu0 0
        %1760 = vmatpush1.bf16.msra.mxu0 0
        %1761 = vmatprep.subr.bf16.mxu0 0
        %1762 = vmatpush1.bf16.msra.mxu0 0
        %1763 = vmatprep.subr.bf16.mxu0 0
        %1764 = vmatpush1.bf16.msra.mxu0 0
        %1765 = vmatprep.subr.bf16.mxu0 0
        %1766 = vmatpush1.bf16.msra.mxu0 0
        %1767 = vmatprep.subr.bf16.mxu0 0
        %1768 = vmatpush1.bf16.msra.mxu0 0
        %1769 = vmatprep.mubr.bf16.mxu0 0
        %1770 = vmatmul.mubr.bf16.gmra.mrb[0].mxu0 %v1735
        %v1771 = vpop.f32.mrb[0].mxu0
        %v1772 = vadd.f32 %v1717, %v1771
        %v1773 = vpop.f32.mrb[0].mxu0
        %v1774 = vadd.f32 %v1721, %v1773
        %v1775 = vpop.f32.mrb[0].mxu0
        %v1776 = vpop.f32.mrb[0].mxu0
        %1777 = vdwg.mxu0
        %v1778 = vmax.f32 %v1772, 0.0
        %v1779 = vmax.f32 %v1774, 0.0
        %v1780 = vld [vmem:[%s14] sm:$0xf]
        %v1781 = vld [vmem:[%s14 + $0x4] sm:$0xf]
        %v1782 = vld [vmem:[%s14 + $0x8] sm:$0xf]
        %v1783 = vld [vmem:[%s14 + $0xc] sm:$0xf]
        %v1784 = vld [vmem:[%s14 + $0x10] sm:$0xf]
        %v1785 = vld [vmem:[%s14 + $0x14] sm:$0xf]
        %v1786 = vld [vmem:[%s14 + $0x18] sm:$0xf]
        %v1787 = vld [vmem:[%s14 + $0x1c] sm:$0xf]
        %v1788 = vld [vmem:[%s14 + $0x20] sm:$0xf]
        %v1789 = vld [vmem:[%s14 + $0x24] sm:$0xf]
        %v1790 = vld [vmem:[%s14 + $0x28] sm:$0xf]
        %v1791 = vld [vmem:[%s14 + $0x2c] sm:$0xf]
        %v1792 = vld [vmem:[%s14 + $0x30] sm:$0xf]
        %v1793 = vld [vmem:[%s14 + $0x34] sm:$0xf]
        %v1794 = vld [vmem:[%s14 + $0x38] sm:$0xf]
        %v1795 = vld [vmem:[%s14 + $0x3c] sm:$0xf]
        %v1796 = vld [vmem:[%s14 + $0x40] sm:$0xf]
        %v1797 = vld [vmem:[%s14 + $0x44] sm:$0xf]
        %v1798 = vld [vmem:[%s14 + $0x48] sm:$0xf]
        %v1799 = vld [vmem:[%s14 + $0x4c] sm:$0xf]
        %v1800 = vld [vmem:[%s14 + $0x50] sm:$0xf]
        %v1801 = vld [vmem:[%s14 + $0x54] sm:$0xf]
        %v1802 = vld [vmem:[%s14 + $0x58] sm:$0xf]
        %v1803 = vld [vmem:[%s14 + $0x5c] sm:$0xf]
        %v1804 = vld [vmem:[%s14 + $0x60] sm:$0xf]
        %v1805 = vld [vmem:[%s14 + $0x64] sm:$0xf]
        %v1806 = vld [vmem:[%s14 + $0x68] sm:$0xf]
        %v1807 = vld [vmem:[%s14 + $0x6c] sm:$0xf]
        %v1808 = vld [vmem:[%s14 + $0x70] sm:$0xf]
        %v1809 = vld [vmem:[%s14 + $0x74] sm:$0xf]
        %v1810 = vld [vmem:[%s14 + $0x78] sm:$0xf]
        %v1811 = vld [vmem:[%s14 + $0x7c] sm:$0xf]
        %v1812 = vld [vmem:[%s15] sm:$0x1]
        %v1813 = vpack.c.bf16 %v1778, %v1778
        %v1814 = vpack.c.bf16 %v1779, %v1779
        %v1816 = vlaneseq
        %v1817 = vshrl.u32 %v1816, 7
        %v1818 = vsub.s32 0, %v1817
        %v1819 = vrot.slane %v1812, %v1818
        %v1853 = vunpack.c.l.b16 %v1780
        %v1854 = vunpack.c.l.b16 %v1781
        %v1855 = vunpack.c.l.b16 %v1782
        %v1856 = vunpack.c.l.b16 %v1783
        %v1857 = vunpack.c.l.b16 %v1784
        %v1858 = vunpack.c.l.b16 %v1785
        %v1859 = vunpack.c.l.b16 %v1786
        %v1860 = vunpack.c.l.b16 %v1787
        %v1861 = vunpack.c.l.b16 %v1788
        %v1862 = vunpack.c.l.b16 %v1789
        %v1863 = vunpack.c.l.b16 %v1790
        %v1864 = vunpack.c.l.b16 %v1791
        %v1865 = vunpack.c.l.b16 %v1792
        %v1866 = vunpack.c.l.b16 %v1793
        %v1867 = vunpack.c.l.b16 %v1794
        %v1868 = vunpack.c.l.b16 %v1795
        %v1869 = vunpack.c.l.b16 %v1796
        %v1870 = vunpack.c.l.b16 %v1797
        %v1871 = vunpack.c.l.b16 %v1798
        %v1872 = vunpack.c.l.b16 %v1799
        %v1873 = vunpack.c.l.b16 %v1800
        %v1874 = vunpack.c.l.b16 %v1801
        %v1875 = vunpack.c.l.b16 %v1802
        %v1876 = vunpack.c.l.b16 %v1803
        %v1877 = vunpack.c.l.b16 %v1804
        %v1878 = vunpack.c.l.b16 %v1805
        %v1879 = vunpack.c.l.b16 %v1806
        %v1880 = vunpack.c.l.b16 %v1807
        %v1881 = vunpack.c.l.b16 %v1808
        %v1882 = vunpack.c.l.b16 %v1809
        %v1883 = vunpack.c.l.b16 %v1810
        %v1884 = vunpack.c.l.b16 %v1811
        %v1885 = vpack.c.b16 %v1854, %v1853
        %v1886 = vpack.c.b16 %v1856, %v1855
        %v1887 = vpack.c.b16 %v1858, %v1857
        %v1888 = vpack.c.b16 %v1860, %v1859
        %v1889 = vpack.c.b16 %v1862, %v1861
        %v1890 = vpack.c.b16 %v1864, %v1863
        %v1891 = vpack.c.b16 %v1866, %v1865
        %v1892 = vpack.c.b16 %v1868, %v1867
        %v1893 = vpack.c.b16 %v1870, %v1869
        %v1894 = vpack.c.b16 %v1872, %v1871
        %v1895 = vpack.c.b16 %v1874, %v1873
        %v1896 = vpack.c.b16 %v1876, %v1875
        %v1897 = vpack.c.b16 %v1878, %v1877
        %v1898 = vpack.c.b16 %v1880, %v1879
        %v1899 = vpack.c.b16 %v1882, %v1881
        %v1900 = vpack.c.b16 %v1884, %v1883
        %1917 = vmatprep.subr.bf16.mxu0 0
        %1918 = vmatpush1.bf16.msra.mxu0 %v1885
        %1919 = vmatprep.subr.bf16.mxu0 0
        %1920 = vmatpush1.bf16.msra.mxu0 %v1886
        %1921 = vmatprep.subr.bf16.mxu0 0
        %1922 = vmatpush1.bf16.msra.mxu0 %v1887
        %1923 = vmatprep.subr.bf16.mxu0 0
        %1924 = vmatpush1.bf16.msra.mxu0 %v1888
        %1925 = vmatprep.subr.bf16.mxu0 0
        %1926 = vmatpush1.bf16.msra.mxu0 %v1889
        %1927 = vmatprep.subr.bf16.mxu0 0
        %1928 = vmatpush1.bf16.msra.mxu0 %v1890
        %1929 = vmatprep.subr.bf16.mxu0 0
        %1930 = vmatpush1.bf16.msra.mxu0 %v1891
        %1931 = vmatprep.subr.bf16.mxu0 0
        %1932 = vmatpush1.bf16.msra.mxu0 %v1892
        %1933 = vmatprep.subr.bf16.mxu0 0
        %1934 = vmatpush1.bf16.msra.mxu0 %v1893
        %1935 = vmatprep.subr.bf16.mxu0 0
        %1936 = vmatpush1.bf16.msra.mxu0 %v1894
        %1937 = vmatprep.subr.bf16.mxu0 0
        %1938 = vmatpush1.bf16.msra.mxu0 %v1895
        %1939 = vmatprep.subr.bf16.mxu0 0
        %1940 = vmatpush1.bf16.msra.mxu0 %v1896
        %1941 = vmatprep.subr.bf16.mxu0 0
        %1942 = vmatpush1.bf16.msra.mxu0 %v1897
        %1943 = vmatprep.subr.bf16.mxu0 0
        %1944 = vmatpush1.bf16.msra.mxu0 %v1898
        %1945 = vmatprep.subr.bf16.mxu0 0
        %1946 = vmatpush1.bf16.msra.mxu0 %v1899
        %1947 = vmatprep.subr.bf16.mxu0 0
        %1948 = vmatpush1.bf16.msra.mxu0 %v1900
        %1949 = vmatprep.mubr.bf16.mxu0 %v1814
        %1950 = vmatmul.mubr.bf16.gmra.mrb[0].mxu0 %v1813
        %v1951 = vpop.f32.mrb[0].mxu0
        %v1952 = vadd.f32 %v1819, %v1951
        %v1953 = vpop.f32.mrb[0].mxu0
        %v1954 = vpop.f32.mrb[0].mxu0
        %v1955 = vpop.f32.mrb[0].mxu0
        %1956 = vdwg.mxu0
        %v1957 = vadd.f32 %v1708, %v1952
        %v1958 = vld [vmem:[%s18] sm:$0x1]
        %v1959 = vld [vmem:[%s19] sm:$0x1]
        %v1960 = vsel %vm847, %v1957, 0.0
        %1961 = vadd.xlane.f32.xlu0 %v1960
        %v1962 = vpop.xlane.xlu0 %1961
        %v1963 = vmul.f32 %v1962, %v1684
        %v1964 = vsub.f32 %v1957, %v1963
        %v1965 = vmul.f32 %v1964, %v1964
        %v1966 = vsel %vm847, %v1965, 0.0
        %1967 = vadd.xlane.f32.xlu0 %v1966
        %v1968 = vpop.xlane.xlu0 %1967
        %v1969 = vmul.f32 %v1968, %v1684
        %v1970 = vadd.f32 %v1969, 1e-05
        %v1971 = vrsqrt.pop %v1970
        %v1972 = vmul.f32 %v1964, %v1971
        %v1974 = vlaneseq
        %v1975 = vshrl.u32 %v1974, 7
        %v1976 = vsub.s32 0, %v1975
        %v1977 = vrot.slane %v1958, %v1976
        %v1979 = vmul.f32 %v1972, %v1977
        %v1981 = vlaneseq
        %v1982 = vshrl.u32 %v1981, 7
        %v1983 = vsub.s32 0, %v1982
        %v1984 = vrot.slane %v1959, %v1983
        %v1986 = vadd.f32 %v1979, %v1984
        %s1987 = scalar_lea.vmem %s4, 8
        %v1988 = vld [vmem:[%s1987] sm:$0xf]
        %v1989 = vld [vmem:[%s1987 + $0x4] sm:$0xf]
        %s1990 = scalar_lea.vmem %s5, 1
        %v1991 = vld [vmem:[%s1990] sm:$0x1]
        %v1992 = vpack.c.bf16 %v1986, %v1986
        %v1994 = vlaneseq
        %v1995 = vshrl.u32 %v1994, 7
        %v1996 = vsub.s32 0, %v1995
        %v1997 = vrot.slane %v1991, %v1996
        %v2001 = vunpack.c.l.b16 %v1988
        %v2002 = vunpack.c.l.b16 %v1989
        %v2003 = vpack.c.b16 %v2002, %v2001
        %v2006 = vsel %vm847, %v1992, 0
        %2008 = vmatprep.subr.bf16.mxu0 0
        %2009 = vmatpush1.bf16.msra.mxu0 %v2003
        %2010 = vmatprep.subr.bf16.mxu0 0
        %2011 = vmatpush1.bf16.msra.mxu0 0
        %2012 = vmatprep.subr.bf16.mxu0 0
        %2013 = vmatpush1.bf16.msra.mxu0 0
        %2014 = vmatprep.subr.bf16.mxu0 0
        %2015 = vmatpush1.bf16.msra.mxu0 0
        %2016 = vmatprep.subr.bf16.mxu0 0
        %2017 = vmatpush1.bf16.msra.mxu0 0
        %2018 = vmatprep.subr.bf16.mxu0 0
        %2019 = vmatpush1.bf16.msra.mxu0 0
        %2020 = vmatprep.subr.bf16.mxu0 0
        %2021 = vmatpush1.bf16.msra.mxu0 0
        %2022 = vmatprep.subr.bf16.mxu0 0
        %2023 = vmatpush1.bf16.msra.mxu0 0
        %2024 = vmatprep.subr.bf16.mxu0 0
        %2025 = vmatpush1.bf16.msra.mxu0 0
        %2026 = vmatprep.subr.bf16.mxu0 0
        %2027 = vmatpush1.bf16.msra.mxu0 0
        %2028 = vmatprep.subr.bf16.mxu0 0
        %2029 = vmatpush1.bf16.msra.mxu0 0
        %2030 = vmatprep.subr.bf16.mxu0 0
        %2031 = vmatpush1.bf16.msra.mxu0 0
        %2032 = vmatprep.subr.bf16.mxu0 0
        %2033 = vmatpush1.bf16.msra.mxu0 0
        %2034 = vmatprep.subr.bf16.mxu0 0
        %2035 = vmatpush1.bf16.msra.mxu0 0
        %2036 = vmatprep.subr.bf16.mxu0 0
        %2037 = vmatpush1.bf16.msra.mxu0 0
        %2038 = vmatprep.subr.bf16.mxu0 0
        %2039 = vmatpush1.bf16.msra.mxu0 0
        %2040 = vmatprep.mubr.bf16.mxu0 0
        %2041 = vmatmul.mubr.bf16.gmra.mrb[0].mxu0 %v2006
        %v2042 = vpop.f32.mrb[0].mxu0
        %v2043 = vadd.f32 %v1997, %v2042
        %v2044 = vpop.f32.mrb[0].mxu0
        %v2045 = vpop.f32.mrb[0].mxu0
        %v2046 = vpop.f32.mrb[0].mxu0
        %2047 = vdwg.mxu0
        %v2048 = vmul.f32 %v2043, 0.70710677
        %s2049 = scalar_lea.vmem %s6, 8
        %v2050 = vld [vmem:[%s2049] sm:$0xf]
        %v2051 = vld [vmem:[%s2049 + $0x4] sm:$0xf]
        %s2052 = scalar_lea.vmem %s7, 1
        %v2053 = vld [vmem:[%s2052] sm:$0x1]
        %v2055 = vlaneseq
        %v2056 = vshrl.u32 %v2055, 7
        %v2057 = vsub.s32 0, %v2056
        %v2058 = vrot.slane %v2053, %v2057
        %v2062 = vunpack.c.l.b16 %v2050
        %v2063 = vunpack.c.l.b16 %v2051
        %v2064 = vpack.c.b16 %v2063, %v2062
        %2066 = vmatprep.subr.bf16.mxu0 0
        %2067 = vmatpush1.bf16.msra.mxu0 %v2064
        %2068 = vmatprep.subr.bf16.mxu0 0
        %2069 = vmatpush1.bf16.msra.mxu0 0
        %2070 = vmatprep.subr.bf16.mxu0 0
        %2071 = vmatpush1.bf16.msra.mxu0 0
        %2072 = vmatprep.subr.bf16.mxu0 0
        %2073 = vmatpush1.bf16.msra.mxu0 0
        %2074 = vmatprep.subr.bf16.mxu0 0
        %2075 = vmatpush1.bf16.msra.mxu0 0
        %2076 = vmatprep.subr.bf16.mxu0 0
        %2077 = vmatpush1.bf16.msra.mxu0 0
        %2078 = vmatprep.subr.bf16.mxu0 0
        %2079 = vmatpush1.bf16.msra.mxu0 0
        %2080 = vmatprep.subr.bf16.mxu0 0
        %2081 = vmatpush1.bf16.msra.mxu0 0
        %2082 = vmatprep.subr.bf16.mxu0 0
        %2083 = vmatpush1.bf16.msra.mxu0 0
        %2084 = vmatprep.subr.bf16.mxu0 0
        %2085 = vmatpush1.bf16.msra.mxu0 0
        %2086 = vmatprep.subr.bf16.mxu0 0
        %2087 = vmatpush1.bf16.msra.mxu0 0
        %2088 = vmatprep.subr.bf16.mxu0 0
        %2089 = vmatpush1.bf16.msra.mxu0 0
        %2090 = vmatprep.subr.bf16.mxu0 0
        %2091 = vmatpush1.bf16.msra.mxu0 0
        %2092 = vmatprep.subr.bf16.mxu0 0
        %2093 = vmatpush1.bf16.msra.mxu0 0
        %2094 = vmatprep.subr.bf16.mxu0 0
        %2095 = vmatpush1.bf16.msra.mxu0 0
        %2096 = vmatprep.subr.bf16.mxu0 0
        %2097 = vmatpush1.bf16.msra.mxu0 0
        %2098 = vmatprep.mubr.bf16.mxu0 0
        %2099 = vmatmul.mubr.bf16.gmra.mrb[0].mxu0 %v2006
        %v2100 = vpop.f32.mrb[0].mxu0
        %v2101 = vadd.f32 %v2058, %v2100
        %v2102 = vpop.f32.mrb[0].mxu0
        %v2103 = vpop.f32.mrb[0].mxu0
        %v2104 = vpop.f32.mrb[0].mxu0
        %2105 = vdwg.mxu0
        %s2106 = scalar_lea.vmem %s8, 8
        %v2107 = vld [vmem:[%s2106] sm:$0xf]
        %v2108 = vld [vmem:[%s2106 + $0x4] sm:$0xf]
        %s2109 = scalar_lea.vmem %s9, 1
        %v2110 = vld [vmem:[%s2109] sm:$0x1]
        %v2112 = vlaneseq
        %v2113 = vshrl.u32 %v2112, 7
        %v2114 = vsub.s32 0, %v2113
        %v2115 = vrot.slane %v2110, %v2114
        %v2119 = vunpack.c.l.b16 %v2107
        %v2120 = vunpack.c.l.b16 %v2108
        %v2121 = vpack.c.b16 %v2120, %v2119
        %2123 = vmatprep.subr.bf16.mxu0 0
        %2124 = vmatpush1.bf16.msra.mxu0 %v2121
        %2125 = vmatprep.subr.bf16.mxu0 0
        %2126 = vmatpush1.bf16.msra.mxu0 0
        %2127 = vmatprep.subr.bf16.mxu0 0
        %2128 = vmatpush1.bf16.msra.mxu0 0
        %2129 = vmatprep.subr.bf16.mxu0 0
        %2130 = vmatpush1.bf16.msra.mxu0 0
        %2131 = vmatprep.subr.bf16.mxu0 0
        %2132 = vmatpush1.bf16.msra.mxu0 0
        %2133 = vmatprep.subr.bf16.mxu0 0
        %2134 = vmatpush1.bf16.msra.mxu0 0
        %2135 = vmatprep.subr.bf16.mxu0 0
        %2136 = vmatpush1.bf16.msra.mxu0 0
        %2137 = vmatprep.subr.bf16.mxu0 0
        %2138 = vmatpush1.bf16.msra.mxu0 0
        %2139 = vmatprep.subr.bf16.mxu0 0
        %2140 = vmatpush1.bf16.msra.mxu0 0
        %2141 = vmatprep.subr.bf16.mxu0 0
        %2142 = vmatpush1.bf16.msra.mxu0 0
        %2143 = vmatprep.subr.bf16.mxu0 0
        %2144 = vmatpush1.bf16.msra.mxu0 0
        %2145 = vmatprep.subr.bf16.mxu0 0
        %2146 = vmatpush1.bf16.msra.mxu0 0
        %2147 = vmatprep.subr.bf16.mxu0 0
        %2148 = vmatpush1.bf16.msra.mxu0 0
        %2149 = vmatprep.subr.bf16.mxu0 0
        %2150 = vmatpush1.bf16.msra.mxu0 0
        %2151 = vmatprep.subr.bf16.mxu0 0
        %2152 = vmatpush1.bf16.msra.mxu0 0
        %2153 = vmatprep.subr.bf16.mxu0 0
        %2154 = vmatpush1.bf16.msra.mxu0 0
        %2155 = vmatprep.mubr.bf16.mxu0 0
        %2156 = vmatmul.mubr.bf16.gmra.mrb[0].mxu0 %v2006
        %v2157 = vpop.f32.mrb[0].mxu0
        %v2158 = vadd.f32 %v2115, %v2157
        %v2159 = vpop.f32.mrb[0].mxu0
        %v2160 = vpop.f32.mrb[0].mxu0
        %v2161 = vpop.f32.mrb[0].mxu0
        %2162 = vdwg.mxu0
        %v2164 = vcombine.high %v2048, %v2048
        %v2166 = vunpack.c.l.s4 1966171168
        %v2167 = vunpack.c.0.s8 %v2166
        %v2168 = vlaneseq
        %v2169 = vshrl.u32 %v2168, 7
        %v2170 = vsub.s32 %v2167, %v2169
        %v2171 = vrot.slane %v2048, %v2170
        %v2173 = vunpack.c.l.s4 1966171168
        %v2174 = vunpack.c.0.s8 %v2173
        %v2175 = vlaneseq
        %v2176 = vshrl.u32 %v2175, 7
        %v2177 = vsub.s32 %v2174, %v2176
        %v2178 = vrot.slane %v2164, %v2177
        %v2179 = vcombine.high %v2171, %v2171
        %v2180 = vcombine.high %v2178, %v2178
        %v2182 = vunpack.c.l.s4 1966171168
        %v2183 = vunpack.c.0.s8 %v2182
        %v2184 = vlaneseq
        %v2185 = vshrl.u32 %v2184, 7
        %v2186 = vsub.s32 %v2183, %v2185
        %v2187 = vrot.slane %v2171, %v2186
        %v2189 = vunpack.c.l.s4 1966171168
        %v2190 = vunpack.c.0.s8 %v2189
        %v2191 = vlaneseq
        %v2192 = vshrl.u32 %v2191, 7
        %v2193 = vsub.s32 %v2190, %v2192
        %v2194 = vrot.slane %v2178, %v2193
        %v2196 = vunpack.c.l.s4 1966171168
        %v2197 = vunpack.c.0.s8 %v2196
        %v2198 = vlaneseq
        %v2199 = vshrl.u32 %v2198, 7
        %v2200 = vsub.s32 %v2197, %v2199
        %v2201 = vrot.slane %v2179, %v2200
        %v2203 = vunpack.c.l.s4 1966171168
        %v2204 = vunpack.c.0.s8 %v2203
        %v2205 = vlaneseq
        %v2206 = vshrl.u32 %v2205, 7
        %v2207 = vsub.s32 %v2204, %v2206
        %v2208 = vrot.slane %v2180, %v2207
        %v2209 = vcombine.high %v2187, %v2187
        %v2210 = vcombine.high %v2194, %v2194
        %v2211 = vcombine.high %v2201, %v2201
        %v2212 = vcombine.high %v2208, %v2208
        %v2213 = vlaneseq
        %v2214 = vshrl.u32 %v2213, 7
        %v2215 = vsub.s32 0, %v2214
        %v2216 = vrot.slane %v2187, %v2215
        %v2217 = vlaneseq
        %v2218 = vshrl.u32 %v2217, 7
        %v2219 = vsub.s32 0, %v2218
        %v2220 = vrot.slane %v2201, %v2219
        %v2221 = vlaneseq
        %v2222 = vshrl.u32 %v2221, 7
        %v2223 = vsub.s32 0, %v2222
        %v2224 = vrot.slane %v2209, %v2223
        %v2225 = vlaneseq
        %v2226 = vshrl.u32 %v2225, 7
        %v2227 = vsub.s32 0, %v2226
        %v2228 = vrot.slane %v2211, %v2227
        %v2229 = vlaneseq
        %v2230 = vshrl.u32 %v2229, 7
        %v2231 = vsub.s32 0, %v2230
        %v2232 = vrot.slane %v2194, %v2231
        %v2233 = vlaneseq
        %v2234 = vshrl.u32 %v2233, 7
        %v2235 = vsub.s32 0, %v2234
        %v2236 = vrot.slane %v2208, %v2235
        %v2237 = vlaneseq
        %v2238 = vshrl.u32 %v2237, 7
        %v2239 = vsub.s32 0, %v2238
        %v2240 = vrot.slane %v2210, %v2239
        %v2241 = vlaneseq
        %v2242 = vshrl.u32 %v2241, 7
        %v2243 = vsub.s32 0, %v2242
        %v2244 = vrot.slane %v2212, %v2243
        %v2253 = vmul.f32 %v2216, %v2101
        %v2254 = vmul.f32 %v2220, %v2101
        %v2255 = vmul.f32 %v2224, %v2101
        %v2256 = vmul.f32 %v2228, %v2101
        %v2257 = vmul.f32 %v2232, %v2101
        %v2258 = vmul.f32 %v2236, %v2101
        %v2259 = vmul.f32 %v2240, %v2101
        %v2260 = vmul.f32 %v2244, %v2101
        %v2261 = vpack.c.bf16 %v2254, %v2253
        %v2262 = vpack.c.bf16 %v2256, %v2255
        %v2263 = vpack.c.bf16 %v2258, %v2257
        %v2264 = vpack.c.bf16 %v2260, %v2259
        %v2266 = vsel %vm847, %v2261, 0
        %v2269 = vsel %vm847, %v2262, 0
        %v2272 = vsel %vm847, %v2263, 0
        %v2275 = vsel %vm847, %v2264, 0
        %2277 = vmatprep.subr.bf16.mxu0 0
        %2278 = vmatpush1.bf16.msra.mxu0 %v1108
        %2279 = vmatprep.subr.bf16.mxu0 0
        %2280 = vmatpush1.bf16.msra.mxu0 0
        %2281 = vmatprep.subr.bf16.mxu0 0
        %2282 = vmatpush1.bf16.msra.mxu0 0
        %2283 = vmatprep.subr.bf16.mxu0 0
        %2284 = vmatpush1.bf16.msra.mxu0 0
        %2285 = vmatprep.subr.bf16.mxu0 0
        %2286 = vmatpush1.bf16.msra.mxu0 0
        %2287 = vmatprep.subr.bf16.mxu0 0
        %2288 = vmatpush1.bf16.msra.mxu0 0
        %2289 = vmatprep.subr.bf16.mxu0 0
        %2290 = vmatpush1.bf16.msra.mxu0 0
        %2291 = vmatprep.subr.bf16.mxu0 0
        %2292 = vmatpush1.bf16.msra.mxu0 0
        %2293 = vmatprep.subr.bf16.mxu0 0
        %2294 = vmatpush1.bf16.msra.mxu0 0
        %2295 = vmatprep.subr.bf16.mxu0 0
        %2296 = vmatpush1.bf16.msra.mxu0 0
        %2297 = vmatprep.subr.bf16.mxu0 0
        %2298 = vmatpush1.bf16.msra.mxu0 0
        %2299 = vmatprep.subr.bf16.mxu0 0
        %2300 = vmatpush1.bf16.msra.mxu0 0
        %2301 = vmatprep.subr.bf16.mxu0 0
        %2302 = vmatpush1.bf16.msra.mxu0 0
        %2303 = vmatprep.subr.bf16.mxu0 0
        %2304 = vmatpush1.bf16.msra.mxu0 0
        %2305 = vmatprep.subr.bf16.mxu0 0
        %2306 = vmatpush1.bf16.msra.mxu0 0
        %2307 = vmatprep.subr.bf16.mxu0 0
        %2308 = vmatpush1.bf16.msra.mxu0 0
        %2309 = vmatprep.mubr.bf16.mxu0 0
        %2310 = vmatmul.mubr.bf16.gmra.mrb[0].mxu0 %v2266
        %v2311 = vpop.f32.mrb[0].mxu0
        %v2312 = vadd.f32 0.0, %v2311
        %v2313 = vpop.f32.mrb[0].mxu0
        %v2314 = vpop.f32.mrb[0].mxu0
        %v2315 = vadd.f32 0.0, %v2314
        %v2316 = vpop.f32.mrb[0].mxu0
        %2317 = vmatprep.mubr.bf16.mxu0 0
        %2318 = vmatmul.mubr.bf16.gmra.mrb[0].mxu0 %v2269
        %v2319 = vpop.f32.mrb[0].mxu0
        %v2320 = vadd.f32 0.0, %v2319
        %v2321 = vpop.f32.mrb[0].mxu0
        %v2322 = vpop.f32.mrb[0].mxu0
        %v2323 = vadd.f32 0.0, %v2322
        %v2324 = vpop.f32.mrb[0].mxu0
        %2325 = vmatprep.mubr.bf16.mxu0 0
        %2326 = vmatmul.mubr.bf16.gmra.mrb[0].mxu0 %v2272
        %v2327 = vpop.f32.mrb[0].mxu0
        %v2328 = vadd.f32 0.0, %v2327
        %v2329 = vpop.f32.mrb[0].mxu0
        %v2330 = vpop.f32.mrb[0].mxu0
        %v2331 = vadd.f32 0.0, %v2330
        %v2332 = vpop.f32.mrb[0].mxu0
        %2333 = vmatprep.mubr.bf16.mxu0 0
        %2334 = vmatmul.mubr.bf16.gmra.mrb[0].mxu0 %v2275
        %v2335 = vpop.f32.mrb[0].mxu0
        %v2336 = vadd.f32 0.0, %v2335
        %v2337 = vpop.f32.mrb[0].mxu0
        %v2338 = vpop.f32.mrb[0].mxu0
        %v2339 = vadd.f32 0.0, %v2338
        %v2340 = vpop.f32.mrb[0].mxu0
        %2341 = vdwg.mxu0
        %v2342 = vsel %vm1187, %v2312, -inf
        %v2343 = vrot.slane %v2342, 4
        %v2344 = vmax.f32 %v2342, %v2343
        %v2345 = vrot.slane %v2344, 2
        %v2346 = vmax.f32 %v2344, %v2345
        %v2347 = vrot.slane %v2346, 1
        %v2348 = vmax.f32 %v2346, %v2347
        %v2349 = vsel %vm1187, %v2315, -inf
        %v2350 = vrot.slane %v2349, 4
        %v2351 = vmax.f32 %v2349, %v2350
        %v2352 = vrot.slane %v2351, 2
        %v2353 = vmax.f32 %v2351, %v2352
        %v2354 = vrot.slane %v2353, 1
        %v2355 = vmax.f32 %v2353, %v2354
        %v2356 = vsel %vm1187, %v2320, -inf
        %v2357 = vrot.slane %v2356, 4
        %v2358 = vmax.f32 %v2356, %v2357
        %v2359 = vrot.slane %v2358, 2
        %v2360 = vmax.f32 %v2358, %v2359
        %v2361 = vrot.slane %v2360, 1
        %v2362 = vmax.f32 %v2360, %v2361
        %v2363 = vsel %vm1187, %v2323, -inf
        %v2364 = vrot.slane %v2363, 4
        %v2365 = vmax.f32 %v2363, %v2364
        %v2366 = vrot.slane %v2365, 2
        %v2367 = vmax.f32 %v2365, %v2366
        %v2368 = vrot.slane %v2367, 1
        %v2369 = vmax.f32 %v2367, %v2368
        %v2370 = vsel %vm1187, %v2328, -inf
        %v2371 = vrot.slane %v2370, 4
        %v2372 = vmax.f32 %v2370, %v2371
        %v2373 = vrot.slane %v2372, 2
        %v2374 = vmax.f32 %v2372, %v2373
        %v2375 = vrot.slane %v2374, 1
        %v2376 = vmax.f32 %v2374, %v2375
        %v2377 = vsel %vm1187, %v2331, -inf
        %v2378 = vrot.slane %v2377, 4
        %v2379 = vmax.f32 %v2377, %v2378
        %v2380 = vrot.slane %v2379, 2
        %v2381 = vmax.f32 %v2379, %v2380
        %v2382 = vrot.slane %v2381, 1
        %v2383 = vmax.f32 %v2381, %v2382
        %v2384 = vsel %vm1187, %v2336, -inf
        %v2385 = vrot.slane %v2384, 4
        %v2386 = vmax.f32 %v2384, %v2385
        %v2387 = vrot.slane %v2386, 2
        %v2388 = vmax.f32 %v2386, %v2387
        %v2389 = vrot.slane %v2388, 1
        %v2390 = vmax.f32 %v2388, %v2389
        %v2391 = vsel %vm1187, %v2339, -inf
        %v2392 = vrot.slane %v2391, 4
        %v2393 = vmax.f32 %v2391, %v2392
        %v2394 = vrot.slane %v2393, 2
        %v2395 = vmax.f32 %v2393, %v2394
        %v2396 = vrot.slane %v2395, 1
        %v2397 = vmax.f32 %v2395, %v2396
        %v2398 = vsub.f32 %v2312, %v2348
        %v2399 = vsub.f32 %v2315, %v2355
        %v2400 = vsub.f32 %v2320, %v2362
        %v2401 = vsub.f32 %v2323, %v2369
        %v2402 = vsub.f32 %v2328, %v2376
        %v2403 = vsub.f32 %v2331, %v2383
        %v2404 = vsub.f32 %v2336, %v2390
        %v2405 = vsub.f32 %v2339, %v2397
        %v2406 = vmul.f32 %v2398, 1.442695
        %v2407 = vpow.pop %v2406
        %v2408 = vmul.f32 %v2399, 1.442695
        %v2409 = vpow.pop %v2408
        %v2410 = vmul.f32 %v2400, 1.442695
        %v2411 = vpow.pop %v2410
        %v2412 = vmul.f32 %v2401, 1.442695
        %v2413 = vpow.pop %v2412
        %v2414 = vmul.f32 %v2402, 1.442695
        %v2415 = vpow.pop %v2414
        %v2416 = vmul.f32 %v2403, 1.442695
        %v2417 = vpow.pop %v2416
        %v2418 = vmul.f32 %v2404, 1.442695
        %v2419 = vpow.pop %v2418
        %v2420 = vmul.f32 %v2405, 1.442695
        %v2421 = vpow.pop %v2420
        %v2422 = vsel %vm1187, %v2407, 0.0
        %v2423 = vrot.slane %v2422, 4
        %v2424 = vadd.f32 %v2422, %v2423
        %v2425 = vrot.slane %v2424, 2
        %v2426 = vadd.f32 %v2424, %v2425
        %v2427 = vrot.slane %v2426, 1
        %v2428 = vadd.f32 %v2426, %v2427
        %v2429 = vsel %vm1187, %v2409, 0.0
        %v2430 = vrot.slane %v2429, 4
        %v2431 = vadd.f32 %v2429, %v2430
        %v2432 = vrot.slane %v2431, 2
        %v2433 = vadd.f32 %v2431, %v2432
        %v2434 = vrot.slane %v2433, 1
        %v2435 = vadd.f32 %v2433, %v2434
        %v2436 = vsel %vm1187, %v2411, 0.0
        %v2437 = vrot.slane %v2436, 4
        %v2438 = vadd.f32 %v2436, %v2437
        %v2439 = vrot.slane %v2438, 2
        %v2440 = vadd.f32 %v2438, %v2439
        %v2441 = vrot.slane %v2440, 1
        %v2442 = vadd.f32 %v2440, %v2441
        %v2443 = vsel %vm1187, %v2413, 0.0
        %v2444 = vrot.slane %v2443, 4
        %v2445 = vadd.f32 %v2443, %v2444
        %v2446 = vrot.slane %v2445, 2
        %v2447 = vadd.f32 %v2445, %v2446
        %v2448 = vrot.slane %v2447, 1
        %v2449 = vadd.f32 %v2447, %v2448
        %v2450 = vsel %vm1187, %v2415, 0.0
        %v2451 = vrot.slane %v2450, 4
        %v2452 = vadd.f32 %v2450, %v2451
        %v2453 = vrot.slane %v2452, 2
        %v2454 = vadd.f32 %v2452, %v2453
        %v2455 = vrot.slane %v2454, 1
        %v2456 = vadd.f32 %v2454, %v2455
        %v2457 = vsel %vm1187, %v2417, 0.0
        %v2458 = vrot.slane %v2457, 4
        %v2459 = vadd.f32 %v2457, %v2458
        %v2460 = vrot.slane %v2459, 2
        %v2461 = vadd.f32 %v2459, %v2460
        %v2462 = vrot.slane %v2461, 1
        %v2463 = vadd.f32 %v2461, %v2462
        %v2464 = vsel %vm1187, %v2419, 0.0
        %v2465 = vrot.slane %v2464, 4
        %v2466 = vadd.f32 %v2464, %v2465
        %v2467 = vrot.slane %v2466, 2
        %v2468 = vadd.f32 %v2466, %v2467
        %v2469 = vrot.slane %v2468, 1
        %v2470 = vadd.f32 %v2468, %v2469
        %v2471 = vsel %vm1187, %v2421, 0.0
        %v2472 = vrot.slane %v2471, 4
        %v2473 = vadd.f32 %v2471, %v2472
        %v2474 = vrot.slane %v2473, 2
        %v2475 = vadd.f32 %v2473, %v2474
        %v2476 = vrot.slane %v2475, 1
        %v2477 = vadd.f32 %v2475, %v2476
        %v2478 = vrcp.pop %v2428
        %v2479 = vmul.f32 %v2407, %v2478
        %v2480 = vrcp.pop %v2435
        %v2481 = vmul.f32 %v2409, %v2480
        %v2482 = vrcp.pop %v2442
        %v2483 = vmul.f32 %v2411, %v2482
        %v2484 = vrcp.pop %v2449
        %v2485 = vmul.f32 %v2413, %v2484
        %v2486 = vrcp.pop %v2456
        %v2487 = vmul.f32 %v2415, %v2486
        %v2488 = vrcp.pop %v2463
        %v2489 = vmul.f32 %v2417, %v2488
        %v2490 = vrcp.pop %v2470
        %v2491 = vmul.f32 %v2419, %v2490
        %v2492 = vrcp.pop %v2477
        %v2493 = vmul.f32 %v2421, %v2492
        %v2494 = vpack.c.bf16 %v2481, %v2479
        %v2495 = vpack.c.bf16 %v2485, %v2483
        %v2496 = vpack.c.bf16 %v2489, %v2487
        %v2497 = vpack.c.bf16 %v2493, %v2491
        %v2499 = vsel %vm1187, %v2494, 0
        %v2502 = vsel %vm1187, %v2495, 0
        %v2505 = vsel %vm1187, %v2496, 0
        %v2508 = vsel %vm1187, %v2497, 0
        %2510 = vmatprep.subr.bf16.mxu0 0
        %2511 = vmatpush1.bf16.msra.mxu0 %v1457
        %2512 = vmatprep.subr.bf16.mxu0 0
        %2513 = vmatpush1.bf16.msra.mxu0 0
        %2514 = vmatprep.subr.bf16.mxu0 0
        %2515 = vmatpush1.bf16.msra.mxu0 0
        %2516 = vmatprep.subr.bf16.mxu0 0
        %2517 = vmatpush1.bf16.msra.mxu0 0
        %2518 = vmatprep.subr.bf16.mxu0 0
        %2519 = vmatpush1.bf16.msra.mxu0 0
        %2520 = vmatprep.subr.bf16.mxu0 0
        %2521 = vmatpush1.bf16.msra.mxu0 0
        %2522 = vmatprep.subr.bf16.mxu0 0
        %2523 = vmatpush1.bf16.msra.mxu0 0
        %2524 = vmatprep.subr.bf16.mxu0 0
        %2525 = vmatpush1.bf16.msra.mxu0 0
        %2526 = vmatprep.subr.bf16.mxu0 0
        %2527 = vmatpush1.bf16.msra.mxu0 0
        %2528 = vmatprep.subr.bf16.mxu0 0
        %2529 = vmatpush1.bf16.msra.mxu0 0
        %2530 = vmatprep.subr.bf16.mxu0 0
        %2531 = vmatpush1.bf16.msra.mxu0 0
        %2532 = vmatprep.subr.bf16.mxu0 0
        %2533 = vmatpush1.bf16.msra.mxu0 0
        %2534 = vmatprep.subr.bf16.mxu0 0
        %2535 = vmatpush1.bf16.msra.mxu0 0
        %2536 = vmatprep.subr.bf16.mxu0 0
        %2537 = vmatpush1.bf16.msra.mxu0 0
        %2538 = vmatprep.subr.bf16.mxu0 0
        %2539 = vmatpush1.bf16.msra.mxu0 0
        %2540 = vmatprep.subr.bf16.mxu0 0
        %2541 = vmatpush1.bf16.msra.mxu0 0
        %2542 = vmatprep.mubr.bf16.mxu0 0
        %2543 = vmatmul.mubr.bf16.gmra.mrb[0].mxu0 %v2499
        %v2544 = vpop.f32.mrb[0].mxu0
        %v2545 = vadd.f32 0.0, %v2544
        %v2546 = vpop.f32.mrb[0].mxu0
        %v2547 = vpop.f32.mrb[0].mxu0
        %v2548 = vadd.f32 0.0, %v2547
        %v2549 = vpop.f32.mrb[0].mxu0
        %2550 = vmatprep.mubr.bf16.mxu0 0
        %2551 = vmatmul.mubr.bf16.gmra.mrb[0].mxu0 %v2502
        %v2552 = vpop.f32.mrb[0].mxu0
        %v2553 = vadd.f32 0.0, %v2552
        %v2554 = vpop.f32.mrb[0].mxu0
        %v2555 = vpop.f32.mrb[0].mxu0
        %v2556 = vadd.f32 0.0, %v2555
        %v2557 = vpop.f32.mrb[0].mxu0
        %2558 = vmatprep.mubr.bf16.mxu0 0
        %2559 = vmatmul.mubr.bf16.gmra.mrb[0].mxu0 %v2505
        %v2560 = vpop.f32.mrb[0].mxu0
        %v2561 = vadd.f32 0.0, %v2560
        %v2562 = vpop.f32.mrb[0].mxu0
        %v2563 = vpop.f32.mrb[0].mxu0
        %v2564 = vadd.f32 0.0, %v2563
        %v2565 = vpop.f32.mrb[0].mxu0
        %2566 = vmatprep.mubr.bf16.mxu0 0
        %2567 = vmatmul.mubr.bf16.gmra.mrb[0].mxu0 %v2508
        %v2568 = vpop.f32.mrb[0].mxu0
        %v2569 = vadd.f32 0.0, %v2568
        %v2570 = vpop.f32.mrb[0].mxu0
        %v2571 = vpop.f32.mrb[0].mxu0
        %v2572 = vadd.f32 0.0, %v2571
        %v2573 = vpop.f32.mrb[0].mxu0
        %2574 = vdwg.mxu0
        %v2575 = vmul.f32 %v2545, %v2158
        %v2576 = vmul.f32 %v2548, %v2158
        %v2577 = vmul.f32 %v2553, %v2158
        %v2578 = vmul.f32 %v2556, %v2158
        %v2579 = vmul.f32 %v2561, %v2158
        %v2580 = vmul.f32 %v2564, %v2158
        %v2581 = vmul.f32 %v2569, %v2158
        %v2582 = vmul.f32 %v2572, %v2158
        %v2583 = vsel %vm847, %v2575, 0.0
        %v2584 = vrot.slane %v2583, 4
        %v2585 = vadd.f32 %v2583, %v2584
        %v2586 = vrot.slane %v2585, 2
        %v2587 = vadd.f32 %v2585, %v2586
        %v2588 = vrot.slane %v2587, 1
        %v2589 = vadd.f32 %v2587, %v2588
        %v2590 = vsel %vm847, %v2576, 0.0
        %v2591 = vrot.slane %v2590, 4
        %v2592 = vadd.f32 %v2590, %v2591
        %v2593 = vrot.slane %v2592, 2
        %v2594 = vadd.f32 %v2592, %v2593
        %v2595 = vrot.slane %v2594, 1
        %v2596 = vadd.f32 %v2594, %v2595
        %v2597 = vsel %vm847, %v2577, 0.0
        %v2598 = vrot.slane %v2597, 4
        %v2599 = vadd.f32 %v2597, %v2598
        %v2600 = vrot.slane %v2599, 2
        %v2601 = vadd.f32 %v2599, %v2600
        %v2602 = vrot.slane %v2601, 1
        %v2603 = vadd.f32 %v2601, %v2602
        %v2604 = vsel %vm847, %v2578, 0.0
        %v2605 = vrot.slane %v2604, 4
        %v2606 = vadd.f32 %v2604, %v2605
        %v2607 = vrot.slane %v2606, 2
        %v2608 = vadd.f32 %v2606, %v2607
        %v2609 = vrot.slane %v2608, 1
        %v2610 = vadd.f32 %v2608, %v2609
        %v2611 = vsel %vm847, %v2579, 0.0
        %v2612 = vrot.slane %v2611, 4
        %v2613 = vadd.f32 %v2611, %v2612
        %v2614 = vrot.slane %v2613, 2
        %v2615 = vadd.f32 %v2613, %v2614
        %v2616 = vrot.slane %v2615, 1
        %v2617 = vadd.f32 %v2615, %v2616
        %v2618 = vsel %vm847, %v2580, 0.0
        %v2619 = vrot.slane %v2618, 4
        %v2620 = vadd.f32 %v2618, %v2619
        %v2621 = vrot.slane %v2620, 2
        %v2622 = vadd.f32 %v2620, %v2621
        %v2623 = vrot.slane %v2622, 1
        %v2624 = vadd.f32 %v2622, %v2623
        %v2625 = vsel %vm847, %v2581, 0.0
        %v2626 = vrot.slane %v2625, 4
        %v2627 = vadd.f32 %v2625, %v2626
        %v2628 = vrot.slane %v2627, 2
        %v2629 = vadd.f32 %v2627, %v2628
        %v2630 = vrot.slane %v2629, 1
        %v2631 = vadd.f32 %v2629, %v2630
        %v2632 = vsel %vm847, %v2582, 0.0
        %v2633 = vrot.slane %v2632, 4
        %v2634 = vadd.f32 %v2632, %v2633
        %v2635 = vrot.slane %v2634, 2
        %v2636 = vadd.f32 %v2634, %v2635
        %v2637 = vrot.slane %v2636, 1
        %v2638 = vadd.f32 %v2636, %v2637
        %s2639 = scalar_lea.vmem %s10, 8
        %v2640 = vld [vmem:[%s2639] sm:$0xf]
        %v2641 = vld [vmem:[%s2639 + $0x4] sm:$0xf]
        %s2642 = scalar_lea.vmem %s11, 1
        %v2643 = vld [vmem:[%s2642] sm:$0x1]
        %v2644 = vpack.c.bf16 %v2589, %v2589
        %v2645 = vpack.c.bf16 %v2596, %v2596
        %v2646 = vpack.c.bf16 %v2603, %v2603
        %v2647 = vpack.c.bf16 %v2610, %v2610
        %v2648 = vpack.c.bf16 %v2617, %v2617
        %v2649 = vpack.c.bf16 %v2624, %v2624
        %v2650 = vpack.c.bf16 %v2631, %v2631
        %v2651 = vpack.c.bf16 %v2638, %v2638
        %v2653 = vlaneseq
        %v2654 = vshrl.u32 %v2653, 7
        %v2655 = vsub.s32 0, %v2654
        %v2656 = vrot.slane %v2643, %v2655
        %v2666 = vunpack.c.l.b16 %v2644
        %v2667 = vunpack.c.l.b16 %v2645
        %v2668 = vunpack.c.l.b16 %v2646
        %v2669 = vunpack.c.l.b16 %v2647
        %v2670 = vunpack.c.l.b16 %v2648
        %v2671 = vunpack.c.l.b16 %v2649
        %v2672 = vunpack.c.l.b16 %v2650
        %v2673 = vunpack.c.l.b16 %v2651
        %v2674 = vsel %vm1423, %v2667, %v2666
        %v2675 = vsel %vm1425, %v2668, %v2674
        %v2676 = vsel %vm1427, %v2669, %v2675
        %v2677 = vsel %vm1429, %v2670, %v2676
        %v2678 = vsel %vm1431, %v2671, %v2677
        %v2679 = vsel %vm1433, %v2672, %v2678
        %v2680 = vsel %vm1435, %v2673, %v2679
        %v2681 = vpack.c.b16 %v2680, %v2680
        %v2684 = vunpack.c.l.b16 %v2640
        %v2685 = vunpack.c.l.b16 %v2641
        %v2686 = vpack.c.b16 %v2685, %v2684
        %v2689 = vsel %vm847, %v2681, 0
        %2691 = vmatprep.subr.bf16.mxu0 0
        %2692 = vmatpush1.bf16.msra.mxu0 %v2686
        %2693 = vmatprep.subr.bf16.mxu0 0
        %2694 = vmatpush1.bf16.msra.mxu0 0
        %2695 = vmatprep.subr.bf16.mxu0 0
        %2696 = vmatpush1.bf16.msra.mxu0 0
        %2697 = vmatprep.subr.bf16.mxu0 0
        %2698 = vmatpush1.bf16.msra.mxu0 0
        %2699 = vmatprep.subr.bf16.mxu0 0
        %2700 = vmatpush1.bf16.msra.mxu0 0
        %2701 = vmatprep.subr.bf16.mxu0 0
        %2702 = vmatpush1.bf16.msra.mxu0 0
        %2703 = vmatprep.subr.bf16.mxu0 0
        %2704 = vmatpush1.bf16.msra.mxu0 0
        %2705 = vmatprep.subr.bf16.mxu0 0
        %2706 = vmatpush1.bf16.msra.mxu0 0
        %2707 = vmatprep.subr.bf16.mxu0 0
        %2708 = vmatpush1.bf16.msra.mxu0 0
        %2709 = vmatprep.subr.bf16.mxu0 0
        %2710 = vmatpush1.bf16.msra.mxu0 0
        %2711 = vmatprep.subr.bf16.mxu0 0
        %2712 = vmatpush1.bf16.msra.mxu0 0
        %2713 = vmatprep.subr.bf16.mxu0 0
        %2714 = vmatpush1.bf16.msra.mxu0 0
        %2715 = vmatprep.subr.bf16.mxu0 0
        %2716 = vmatpush1.bf16.msra.mxu0 0
        %2717 = vmatprep.subr.bf16.mxu0 0
        %2718 = vmatpush1.bf16.msra.mxu0 0
        %2719 = vmatprep.subr.bf16.mxu0 0
        %2720 = vmatpush1.bf16.msra.mxu0 0
        %2721 = vmatprep.subr.bf16.mxu0 0
        %2722 = vmatpush1.bf16.msra.mxu0 0
        %2723 = vmatprep.mubr.bf16.mxu0 0
        %2724 = vmatmul.mubr.bf16.gmra.mrb[0].mxu0 %v2689
        %v2725 = vpop.f32.mrb[0].mxu0
        %v2726 = vadd.f32 %v2656, %v2725
        %v2727 = vpop.f32.mrb[0].mxu0
        %v2728 = vpop.f32.mrb[0].mxu0
        %v2729 = vpop.f32.mrb[0].mxu0
        %2730 = vdwg.mxu0
        %v2731 = vadd.f32 %v1986, %v2726
        %s2732 = scalar_lea.vmem %s16, 1
        %v2733 = vld [vmem:[%s2732] sm:$0x1]
        %s2734 = scalar_lea.vmem %s17, 1
        %v2735 = vld [vmem:[%s2734] sm:$0x1]
        %v2736 = vsel %vm847, %v2731, 0.0
        %2737 = vadd.xlane.f32.xlu0 %v2736
        %v2738 = vpop.xlane.xlu0 %2737
        %v2739 = vmul.f32 %v2738, %v1684
        %v2740 = vsub.f32 %v2731, %v2739
        %v2741 = vmul.f32 %v2740, %v2740
        %v2742 = vsel %vm847, %v2741, 0.0
        %2743 = vadd.xlane.f32.xlu0 %v2742
        %v2744 = vpop.xlane.xlu0 %2743
        %v2745 = vmul.f32 %v2744, %v1684
        %v2746 = vadd.f32 %v2745, 1e-05
        %v2747 = vrsqrt.pop %v2746
        %v2748 = vmul.f32 %v2740, %v2747
        %v2750 = vlaneseq
        %v2751 = vshrl.u32 %v2750, 7
        %v2752 = vsub.s32 0, %v2751
        %v2753 = vrot.slane %v2733, %v2752
        %v2755 = vmul.f32 %v2748, %v2753
        %v2757 = vlaneseq
        %v2758 = vshrl.u32 %v2757, 7
        %v2759 = vsub.s32 0, %v2758
        %v2760 = vrot.slane %v2735, %v2759
        %v2762 = vadd.f32 %v2755, %v2760
        %s2763 = scalar_lea.vmem %s12, 16
        %v2764 = vld [vmem:[%s2763] sm:$0xff]
        %v2765 = vld [vmem:[%s2763 + $0x8] sm:$0xff]
        %s2766 = scalar_lea.vmem %s13, 2
        %v2767 = vld [vmem:[%s2766] sm:$0x3]
        %v2768 = vpack.c.bf16 %v2762, %v2762
        %v2770 = vlaneseq
        %v2771 = vshrl.u32 %v2770, 7
        %v2772 = vsub.s32 0, %v2771
        %v2773 = vrot.slane %v2767, %v2772
        %v2774 = vlaneseq
        %v2775 = vshrl.u32 %v2774, 7
        %v2776 = vsub.s32 1, %v2775
        %v2777 = vrot.slane %v2767, %v2776
        %v2782 = vunpack.c.l.b16 %v2764
        %v2783 = vunpack.c.h.b16 %v2764
        %v2784 = vunpack.c.l.b16 %v2765
        %v2785 = vunpack.c.h.b16 %v2765
        %v2786 = vpack.c.b16 %v2784, %v2782
        %v2787 = vpack.c.b16 %v2785, %v2783
        %v2791 = vsel %vm847, %v2768, 0
        %2793 = vmatprep.subr.bf16.mxu0 %v2787
        %2794 = vmatpush1.bf16.msra.mxu0 %v2786
        %2795 = vmatprep.subr.bf16.mxu0 0
        %2796 = vmatpush1.bf16.msra.mxu0 0
        %2797 = vmatprep.subr.bf16.mxu0 0
        %2798 = vmatpush1.bf16.msra.mxu0 0
        %2799 = vmatprep.subr.bf16.mxu0 0
        %2800 = vmatpush1.bf16.msra.mxu0 0
        %2801 = vmatprep.subr.bf16.mxu0 0
        %2802 = vmatpush1.bf16.msra.mxu0 0
        %2803 = vmatprep.subr.bf16.mxu0 0
        %2804 = vmatpush1.bf16.msra.mxu0 0
        %2805 = vmatprep.subr.bf16.mxu0 0
        %2806 = vmatpush1.bf16.msra.mxu0 0
        %2807 = vmatprep.subr.bf16.mxu0 0
        %2808 = vmatpush1.bf16.msra.mxu0 0
        %2809 = vmatprep.subr.bf16.mxu0 0
        %2810 = vmatpush1.bf16.msra.mxu0 0
        %2811 = vmatprep.subr.bf16.mxu0 0
        %2812 = vmatpush1.bf16.msra.mxu0 0
        %2813 = vmatprep.subr.bf16.mxu0 0
        %2814 = vmatpush1.bf16.msra.mxu0 0
        %2815 = vmatprep.subr.bf16.mxu0 0
        %2816 = vmatpush1.bf16.msra.mxu0 0
        %2817 = vmatprep.subr.bf16.mxu0 0
        %2818 = vmatpush1.bf16.msra.mxu0 0
        %2819 = vmatprep.subr.bf16.mxu0 0
        %2820 = vmatpush1.bf16.msra.mxu0 0
        %2821 = vmatprep.subr.bf16.mxu0 0
        %2822 = vmatpush1.bf16.msra.mxu0 0
        %2823 = vmatprep.subr.bf16.mxu0 0
        %2824 = vmatpush1.bf16.msra.mxu0 0
        %2825 = vmatprep.mubr.bf16.mxu0 0
        %2826 = vmatmul.mubr.bf16.gmra.mrb[0].mxu0 %v2791
        %v2827 = vpop.f32.mrb[0].mxu0
        %v2828 = vadd.f32 %v2773, %v2827
        %v2829 = vpop.f32.mrb[0].mxu0
        %v2830 = vadd.f32 %v2777, %v2829
        %v2831 = vpop.f32.mrb[0].mxu0
        %v2832 = vpop.f32.mrb[0].mxu0
        %2833 = vdwg.mxu0
        %v2834 = vmax.f32 %v2828, 0.0
        %v2835 = vmax.f32 %v2830, 0.0
        %s2836 = scalar_lea.vmem %s14, 128
        %v2837 = vld [vmem:[%s2836] sm:$0xf]
        %v2838 = vld [vmem:[%s2836 + $0x4] sm:$0xf]
        %v2839 = vld [vmem:[%s2836 + $0x8] sm:$0xf]
        %v2840 = vld [vmem:[%s2836 + $0xc] sm:$0xf]
        %v2841 = vld [vmem:[%s2836 + $0x10] sm:$0xf]
        %v2842 = vld [vmem:[%s2836 + $0x14] sm:$0xf]
        %v2843 = vld [vmem:[%s2836 + $0x18] sm:$0xf]
        %v2844 = vld [vmem:[%s2836 + $0x1c] sm:$0xf]
        %v2845 = vld [vmem:[%s2836 + $0x20] sm:$0xf]
        %v2846 = vld [vmem:[%s2836 + $0x24] sm:$0xf]
        %v2847 = vld [vmem:[%s2836 + $0x28] sm:$0xf]
        %v2848 = vld [vmem:[%s2836 + $0x2c] sm:$0xf]
        %v2849 = vld [vmem:[%s2836 + $0x30] sm:$0xf]
        %v2850 = vld [vmem:[%s2836 + $0x34] sm:$0xf]
        %v2851 = vld [vmem:[%s2836 + $0x38] sm:$0xf]
        %v2852 = vld [vmem:[%s2836 + $0x3c] sm:$0xf]
        %v2853 = vld [vmem:[%s2836 + $0x40] sm:$0xf]
        %v2854 = vld [vmem:[%s2836 + $0x44] sm:$0xf]
        %v2855 = vld [vmem:[%s2836 + $0x48] sm:$0xf]
        %v2856 = vld [vmem:[%s2836 + $0x4c] sm:$0xf]
        %v2857 = vld [vmem:[%s2836 + $0x50] sm:$0xf]
        %v2858 = vld [vmem:[%s2836 + $0x54] sm:$0xf]
        %v2859 = vld [vmem:[%s2836 + $0x58] sm:$0xf]
        %v2860 = vld [vmem:[%s2836 + $0x5c] sm:$0xf]
        %v2861 = vld [vmem:[%s2836 + $0x60] sm:$0xf]
        %v2862 = vld [vmem:[%s2836 + $0x64] sm:$0xf]
        %v2863 = vld [vmem:[%s2836 + $0x68] sm:$0xf]
        %v2864 = vld [vmem:[%s2836 + $0x6c] sm:$0xf]
        %v2865 = vld [vmem:[%s2836 + $0x70] sm:$0xf]
        %v2866 = vld [vmem:[%s2836 + $0x74] sm:$0xf]
        %v2867 = vld [vmem:[%s2836 + $0x78] sm:$0xf]
        %v2868 = vld [vmem:[%s2836 + $0x7c] sm:$0xf]
        %s2869 = scalar_lea.vmem %s15, 1
        %v2870 = vld [vmem:[%s2869] sm:$0x1]
        %v2871 = vpack.c.bf16 %v2834, %v2834
        %v2872 = vpack.c.bf16 %v2835, %v2835
        %v2874 = vlaneseq
        %v2875 = vshrl.u32 %v2874, 7
        %v2876 = vsub.s32 0, %v2875
        %v2877 = vrot.slane %v2870, %v2876
        %v2911 = vunpack.c.l.b16 %v2837
        %v2912 = vunpack.c.l.b16 %v2838
        %v2913 = vunpack.c.l.b16 %v2839
        %v2914 = vunpack.c.l.b16 %v2840
        %v2915 = vunpack.c.l.b16 %v2841
        %v2916 = vunpack.c.l.b16 %v2842
        %v2917 = vunpack.c.l.b16 %v2843
        %v2918 = vunpack.c.l.b16 %v2844
        %v2919 = vunpack.c.l.b16 %v2845
        %v2920 = vunpack.c.l.b16 %v2846
        %v2921 = vunpack.c.l.b16 %v2847
        %v2922 = vunpack.c.l.b16 %v2848
        %v2923 = vunpack.c.l.b16 %v2849
        %v2924 = vunpack.c.l.b16 %v2850
        %v2925 = vunpack.c.l.b16 %v2851
        %v2926 = vunpack.c.l.b16 %v2852
        %v2927 = vunpack.c.l.b16 %v2853
        %v2928 = vunpack.c.l.b16 %v2854
        %v2929 = vunpack.c.l.b16 %v2855
        %v2930 = vunpack.c.l.b16 %v2856
        %v2931 = vunpack.c.l.b16 %v2857
        %v2932 = vunpack.c.l.b16 %v2858
        %v2933 = vunpack.c.l.b16 %v2859
        %v2934 = vunpack.c.l.b16 %v2860
        %v2935 = vunpack.c.l.b16 %v2861
        %v2936 = vunpack.c.l.b16 %v2862
        %v2937 = vunpack.c.l.b16 %v2863
        %v2938 = vunpack.c.l.b16 %v2864
        %v2939 = vunpack.c.l.b16 %v2865
        %v2940 = vunpack.c.l.b16 %v2866
        %v2941 = vunpack.c.l.b16 %v2867
        %v2942 = vunpack.c.l.b16 %v2868
        %v2943 = vpack.c.b16 %v2912, %v2911
        %v2944 = vpack.c.b16 %v2914, %v2913
        %v2945 = vpack.c.b16 %v2916, %v2915
        %v2946 = vpack.c.b16 %v2918, %v2917
        %v2947 = vpack.c.b16 %v2920, %v2919
        %v2948 = vpack.c.b16 %v2922, %v2921
        %v2949 = vpack.c.b16 %v2924, %v2923
        %v2950 = vpack.c.b16 %v2926, %v2925
        %v2951 = vpack.c.b16 %v2928, %v2927
        %v2952 = vpack.c.b16 %v2930, %v2929
        %v2953 = vpack.c.b16 %v2932, %v2931
        %v2954 = vpack.c.b16 %v2934, %v2933
        %v2955 = vpack.c.b16 %v2936, %v2935
        %v2956 = vpack.c.b16 %v2938, %v2937
        %v2957 = vpack.c.b16 %v2940, %v2939
        %v2958 = vpack.c.b16 %v2942, %v2941
        %2975 = vmatprep.subr.bf16.mxu0 0
        %2976 = vmatpush1.bf16.msra.mxu0 %v2943
        %2977 = vmatprep.subr.bf16.mxu0 0
        %2978 = vmatpush1.bf16.msra.mxu0 %v2944
        %2979 = vmatprep.subr.bf16.mxu0 0
        %2980 = vmatpush1.bf16.msra.mxu0 %v2945
        %2981 = vmatprep.subr.bf16.mxu0 0
        %2982 = vmatpush1.bf16.msra.mxu0 %v2946
        %2983 = vmatprep.subr.bf16.mxu0 0
        %2984 = vmatpush1.bf16.msra.mxu0 %v2947
        %2985 = vmatprep.subr.bf16.mxu0 0
        %2986 = vmatpush1.bf16.msra.mxu0 %v2948
        %2987 = vmatprep.subr.bf16.mxu0 0
        %2988 = vmatpush1.bf16.msra.mxu0 %v2949
        %2989 = vmatprep.subr.bf16.mxu0 0
        %2990 = vmatpush1.bf16.msra.mxu0 %v2950
        %2991 = vmatprep.subr.bf16.mxu0 0
        %2992 = vmatpush1.bf16.msra.mxu0 %v2951
        %2993 = vmatprep.subr.bf16.mxu0 0
        %2994 = vmatpush1.bf16.msra.mxu0 %v2952
        %2995 = vmatprep.subr.bf16.mxu0 0
        %2996 = vmatpush1.bf16.msra.mxu0 %v2953
        %2997 = vmatprep.subr.bf16.mxu0 0
        %2998 = vmatpush1.bf16.msra.mxu0 %v2954
        %2999 = vmatprep.subr.bf16.mxu0 0
        %3000 = vmatpush1.bf16.msra.mxu0 %v2955
        %3001 = vmatprep.subr.bf16.mxu0 0
        %3002 = vmatpush1.bf16.msra.mxu0 %v2956
        %3003 = vmatprep.subr.bf16.mxu0 0
        %3004 = vmatpush1.bf16.msra.mxu0 %v2957
        %3005 = vmatprep.subr.bf16.mxu0 0
        %3006 = vmatpush1.bf16.msra.mxu0 %v2958
        %3007 = vmatprep.mubr.bf16.mxu0 %v2872
        %3008 = vmatmul.mubr.bf16.gmra.mrb[0].mxu0 %v2871
        %v3009 = vpop.f32.mrb[0].mxu0
        %v3010 = vadd.f32 %v2877, %v3009
        %v3011 = vpop.f32.mrb[0].mxu0
        %v3012 = vpop.f32.mrb[0].mxu0
        %v3013 = vpop.f32.mrb[0].mxu0
        %3014 = vdwg.mxu0
        %v3015 = vadd.f32 %v2762, %v3010
        %s3016 = scalar_lea.vmem %s18, 1
        %v3017 = vld [vmem:[%s3016] sm:$0x1]
        %s3018 = scalar_lea.vmem %s19, 1
        %v3019 = vld [vmem:[%s3018] sm:$0x1]
        %v3020 = vsel %vm847, %v3015, 0.0
        %3021 = vadd.xlane.f32.xlu0 %v3020
        %v3022 = vpop.xlane.xlu0 %3021
        %v3023 = vmul.f32 %v3022, %v1684
        %v3024 = vsub.f32 %v3015, %v3023
        %v3025 = vmul.f32 %v3024, %v3024
        %v3026 = vsel %vm847, %v3025, 0.0
        %3027 = vadd.xlane.f32.xlu0 %v3026
        %v3028 = vpop.xlane.xlu0 %3027
        %v3029 = vmul.f32 %v3028, %v1684
        %v3030 = vadd.f32 %v3029, 1e-05
        %v3031 = vrsqrt.pop %v3030
        %v3032 = vmul.f32 %v3024, %v3031
        %v3034 = vlaneseq
        %v3035 = vshrl.u32 %v3034, 7
        %v3036 = vsub.s32 0, %v3035
        %v3037 = vrot.slane %v3017, %v3036
        %v3039 = vmul.f32 %v3032, %v3037
        %v3041 = vlaneseq
        %v3042 = vshrl.u32 %v3041, 7
        %v3043 = vsub.s32 0, %v3042
        %v3044 = vrot.slane %v3019, %v3043
        %v3046 = vadd.f32 %v3039, %v3044
        %s3047 = scalar_lea.vmem %s4, 16
        %v3048 = vld [vmem:[%s3047] sm:$0xf]
        %v3049 = vld [vmem:[%s3047 + $0x4] sm:$0xf]
        %s3050 = scalar_lea.vmem %s5, 2
        %v3051 = vld [vmem:[%s3050] sm:$0x1]
        %v3052 = vpack.c.bf16 %v3046, %v3046
        %v3054 = vlaneseq
        %v3055 = vshrl.u32 %v3054, 7
        %v3056 = vsub.s32 0, %v3055
        %v3057 = vrot.slane %v3051, %v3056
        %v3061 = vunpack.c.l.b16 %v3048
        %v3062 = vunpack.c.l.b16 %v3049
        %v3063 = vpack.c.b16 %v3062, %v3061
        %v3066 = vsel %vm847, %v3052, 0
        %3068 = vmatprep.subr.bf16.mxu0 0
        %3069 = vmatpush1.bf16.msra.mxu0 %v3063
        %3070 = vmatprep.subr.bf16.mxu0 0
        %3071 = vmatpush1.bf16.msra.mxu0 0
        %3072 = vmatprep.subr.bf16.mxu0 0
        %3073 = vmatpush1.bf16.msra.mxu0 0
        %3074 = vmatprep.subr.bf16.mxu0 0
        %3075 = vmatpush1.bf16.msra.mxu0 0
        %3076 = vmatprep.subr.bf16.mxu0 0
        %3077 = vmatpush1.bf16.msra.mxu0 0
        %3078 = vmatprep.subr.bf16.mxu0 0
        %3079 = vmatpush1.bf16.msra.mxu0 0
        %3080 = vmatprep.subr.bf16.mxu0 0
        %3081 = vmatpush1.bf16.msra.mxu0 0
        %3082 = vmatprep.subr.bf16.mxu0 0
        %3083 = vmatpush1.bf16.msra.mxu0 0
        %3084 = vmatprep.subr.bf16.mxu0 0
        %3085 = vmatpush1.bf16.msra.mxu0 0
        %3086 = vmatprep.subr.bf16.mxu0 0
        %3087 = vmatpush1.bf16.msra.mxu0 0
        %3088 = vmatprep.subr.bf16.mxu0 0
        %3089 = vmatpush1.bf16.msra.mxu0 0
        %3090 = vmatprep.subr.bf16.mxu0 0
        %3091 = vmatpush1.bf16.msra.mxu0 0
        %3092 = vmatprep.subr.bf16.mxu0 0
        %3093 = vmatpush1.bf16.msra.mxu0 0
        %3094 = vmatprep.subr.bf16.mxu0 0
        %3095 = vmatpush1.bf16.msra.mxu0 0
        %3096 = vmatprep.subr.bf16.mxu0 0
        %3097 = vmatpush1.bf16.msra.mxu0 0
        %3098 = vmatprep.subr.bf16.mxu0 0
        %3099 = vmatpush1.bf16.msra.mxu0 0
        %3100 = vmatprep.mubr.bf16.mxu0 0
        %3101 = vmatmul.mubr.bf16.gmra.mrb[0].mxu0 %v3066
        %v3102 = vpop.f32.mrb[0].mxu0
        %v3103 = vadd.f32 %v3057, %v3102
        %v3104 = vpop.f32.mrb[0].mxu0
        %v3105 = vpop.f32.mrb[0].mxu0
        %v3106 = vpop.f32.mrb[0].mxu0
        %3107 = vdwg.mxu0
        %v3108 = vmul.f32 %v3103, 0.70710677
        %s3109 = scalar_lea.vmem %s6, 16
        %v3110 = vld [vmem:[%s3109] sm:$0xf]
        %v3111 = vld [vmem:[%s3109 + $0x4] sm:$0xf]
        %s3112 = scalar_lea.vmem %s7, 2
        %v3113 = vld [vmem:[%s3112] sm:$0x1]
        %v3115 = vlaneseq
        %v3116 = vshrl.u32 %v3115, 7
        %v3117 = vsub.s32 0, %v3116
        %v3118 = vrot.slane %v3113, %v3117
        %v3122 = vunpack.c.l.b16 %v3110
        %v3123 = vunpack.c.l.b16 %v3111
        %v3124 = vpack.c.b16 %v3123, %v3122
        %3126 = vmatprep.subr.bf16.mxu0 0
        %3127 = vmatpush1.bf16.msra.mxu0 %v3124
        %3128 = vmatprep.subr.bf16.mxu0 0
        %3129 = vmatpush1.bf16.msra.mxu0 0
        %3130 = vmatprep.subr.bf16.mxu0 0
        %3131 = vmatpush1.bf16.msra.mxu0 0
        %3132 = vmatprep.subr.bf16.mxu0 0
        %3133 = vmatpush1.bf16.msra.mxu0 0
        %3134 = vmatprep.subr.bf16.mxu0 0
        %3135 = vmatpush1.bf16.msra.mxu0 0
        %3136 = vmatprep.subr.bf16.mxu0 0
        %3137 = vmatpush1.bf16.msra.mxu0 0
        %3138 = vmatprep.subr.bf16.mxu0 0
        %3139 = vmatpush1.bf16.msra.mxu0 0
        %3140 = vmatprep.subr.bf16.mxu0 0
        %3141 = vmatpush1.bf16.msra.mxu0 0
        %3142 = vmatprep.subr.bf16.mxu0 0
        %3143 = vmatpush1.bf16.msra.mxu0 0
        %3144 = vmatprep.subr.bf16.mxu0 0
        %3145 = vmatpush1.bf16.msra.mxu0 0
        %3146 = vmatprep.subr.bf16.mxu0 0
        %3147 = vmatpush1.bf16.msra.mxu0 0
        %3148 = vmatprep.subr.bf16.mxu0 0
        %3149 = vmatpush1.bf16.msra.mxu0 0
        %3150 = vmatprep.subr.bf16.mxu0 0
        %3151 = vmatpush1.bf16.msra.mxu0 0
        %3152 = vmatprep.subr.bf16.mxu0 0
        %3153 = vmatpush1.bf16.msra.mxu0 0
        %3154 = vmatprep.subr.bf16.mxu0 0
        %3155 = vmatpush1.bf16.msra.mxu0 0
        %3156 = vmatprep.subr.bf16.mxu0 0
        %3157 = vmatpush1.bf16.msra.mxu0 0
        %3158 = vmatprep.mubr.bf16.mxu0 0
        %3159 = vmatmul.mubr.bf16.gmra.mrb[0].mxu0 %v3066
        %v3160 = vpop.f32.mrb[0].mxu0
        %v3161 = vadd.f32 %v3118, %v3160
        %v3162 = vpop.f32.mrb[0].mxu0
        %v3163 = vpop.f32.mrb[0].mxu0
        %v3164 = vpop.f32.mrb[0].mxu0
        %3165 = vdwg.mxu0
        %s3166 = scalar_lea.vmem %s8, 16
        %v3167 = vld [vmem:[%s3166] sm:$0xf]
        %v3168 = vld [vmem:[%s3166 + $0x4] sm:$0xf]
        %s3169 = scalar_lea.vmem %s9, 2
        %v3170 = vld [vmem:[%s3169] sm:$0x1]
        %v3172 = vlaneseq
        %v3173 = vshrl.u32 %v3172, 7
        %v3174 = vsub.s32 0, %v3173
        %v3175 = vrot.slane %v3170, %v3174
        %v3179 = vunpack.c.l.b16 %v3167
        %v3180 = vunpack.c.l.b16 %v3168
        %v3181 = vpack.c.b16 %v3180, %v3179
        %3183 = vmatprep.subr.bf16.mxu0 0
        %3184 = vmatpush1.bf16.msra.mxu0 %v3181
        %3185 = vmatprep.subr.bf16.mxu0 0
        %3186 = vmatpush1.bf16.msra.mxu0 0
        %3187 = vmatprep.subr.bf16.mxu0 0
        %3188 = vmatpush1.bf16.msra.mxu0 0
        %3189 = vmatprep.subr.bf16.mxu0 0
        %3190 = vmatpush1.bf16.msra.mxu0 0
        %3191 = vmatprep.subr.bf16.mxu0 0
        %3192 = vmatpush1.bf16.msra.mxu0 0
        %3193 = vmatprep.subr.bf16.mxu0 0
        %3194 = vmatpush1.bf16.msra.mxu0 0
        %3195 = vmatprep.subr.bf16.mxu0 0
        %3196 = vmatpush1.bf16.msra.mxu0 0
        %3197 = vmatprep.subr.bf16.mxu0 0
        %3198 = vmatpush1.bf16.msra.mxu0 0
        %3199 = vmatprep.subr.bf16.mxu0 0
        %3200 = vmatpush1.bf16.msra.mxu0 0
        %3201 = vmatprep.subr.bf16.mxu0 0
        %3202 = vmatpush1.bf16.msra.mxu0 0
        %3203 = vmatprep.subr.bf16.mxu0 0
        %3204 = vmatpush1.bf16.msra.mxu0 0
        %3205 = vmatprep.subr.bf16.mxu0 0
        %3206 = vmatpush1.bf16.msra.mxu0 0
        %3207 = vmatprep.subr.bf16.mxu0 0
        %3208 = vmatpush1.bf16.msra.mxu0 0
        %3209 = vmatprep.subr.bf16.mxu0 0
        %3210 = vmatpush1.bf16.msra.mxu0 0
        %3211 = vmatprep.subr.bf16.mxu0 0
        %3212 = vmatpush1.bf16.msra.mxu0 0
        %3213 = vmatprep.subr.bf16.mxu0 0
        %3214 = vmatpush1.bf16.msra.mxu0 0
        %3215 = vmatprep.mubr.bf16.mxu0 0
        %3216 = vmatmul.mubr.bf16.gmra.mrb[0].mxu0 %v3066
        %v3217 = vpop.f32.mrb[0].mxu0
        %v3218 = vadd.f32 %v3175, %v3217
        %v3219 = vpop.f32.mrb[0].mxu0
        %v3220 = vpop.f32.mrb[0].mxu0
        %v3221 = vpop.f32.mrb[0].mxu0
        %3222 = vdwg.mxu0
        %v3224 = vcombine.high %v3108, %v3108
        %v3226 = vunpack.c.l.s4 1966171168
        %v3227 = vunpack.c.0.s8 %v3226
        %v3228 = vlaneseq
        %v3229 = vshrl.u32 %v3228, 7
        %v3230 = vsub.s32 %v3227, %v3229
        %v3231 = vrot.slane %v3108, %v3230
        %v3233 = vunpack.c.l.s4 1966171168
        %v3234 = vunpack.c.0.s8 %v3233
        %v3235 = vlaneseq
        %v3236 = vshrl.u32 %v3235, 7
        %v3237 = vsub.s32 %v3234, %v3236
        %v3238 = vrot.slane %v3224, %v3237
        %v3239 = vcombine.high %v3231, %v3231
        %v3240 = vcombine.high %v3238, %v3238
        %v3242 = vunpack.c.l.s4 1966171168
        %v3243 = vunpack.c.0.s8 %v3242
        %v3244 = vlaneseq
        %v3245 = vshrl.u32 %v3244, 7
        %v3246 = vsub.s32 %v3243, %v3245
        %v3247 = vrot.slane %v3231, %v3246
        %v3249 = vunpack.c.l.s4 1966171168
        %v3250 = vunpack.c.0.s8 %v3249
        %v3251 = vlaneseq
        %v3252 = vshrl.u32 %v3251, 7
        %v3253 = vsub.s32 %v3250, %v3252
        %v3254 = vrot.slane %v3238, %v3253
        %v3256 = vunpack.c.l.s4 1966171168
        %v3257 = vunpack.c.0.s8 %v3256
        %v3258 = vlaneseq
        %v3259 = vshrl.u32 %v3258, 7
        %v3260 = vsub.s32 %v3257, %v3259
        %v3261 = vrot.slane %v3239, %v3260
        %v3263 = vunpack.c.l.s4 1966171168
        %v3264 = vunpack.c.0.s8 %v3263
        %v3265 = vlaneseq
        %v3266 = vshrl.u32 %v3265, 7
        %v3267 = vsub.s32 %v3264, %v3266
        %v3268 = vrot.slane %v3240, %v3267
        %v3269 = vcombine.high %v3247, %v3247
        %v3270 = vcombine.high %v3254, %v3254
        %v3271 = vcombine.high %v3261, %v3261
        %v3272 = vcombine.high %v3268, %v3268
        %v3273 = vlaneseq
        %v3274 = vshrl.u32 %v3273, 7
        %v3275 = vsub.s32 0, %v3274
        %v3276 = vrot.slane %v3247, %v3275
        %v3277 = vlaneseq
        %v3278 = vshrl.u32 %v3277, 7
        %v3279 = vsub.s32 0, %v3278
        %v3280 = vrot.slane %v3261, %v3279
        %v3281 = vlaneseq
        %v3282 = vshrl.u32 %v3281, 7
        %v3283 = vsub.s32 0, %v3282
        %v3284 = vrot.slane %v3269, %v3283
        %v3285 = vlaneseq
        %v3286 = vshrl.u32 %v3285, 7
        %v3287 = vsub.s32 0, %v3286
        %v3288 = vrot.slane %v3271, %v3287
        %v3289 = vlaneseq
        %v3290 = vshrl.u32 %v3289, 7
        %v3291 = vsub.s32 0, %v3290
        %v3292 = vrot.slane %v3254, %v3291
        %v3293 = vlaneseq
        %v3294 = vshrl.u32 %v3293, 7
        %v3295 = vsub.s32 0, %v3294
        %v3296 = vrot.slane %v3268, %v3295
        %v3297 = vlaneseq
        %v3298 = vshrl.u32 %v3297, 7
        %v3299 = vsub.s32 0, %v3298
        %v3300 = vrot.slane %v3270, %v3299
        %v3301 = vlaneseq
        %v3302 = vshrl.u32 %v3301, 7
        %v3303 = vsub.s32 0, %v3302
        %v3304 = vrot.slane %v3272, %v3303
        %v3313 = vmul.f32 %v3276, %v3161
        %v3314 = vmul.f32 %v3280, %v3161
        %v3315 = vmul.f32 %v3284, %v3161
        %v3316 = vmul.f32 %v3288, %v3161
        %v3317 = vmul.f32 %v3292, %v3161
        %v3318 = vmul.f32 %v3296, %v3161
        %v3319 = vmul.f32 %v3300, %v3161
        %v3320 = vmul.f32 %v3304, %v3161
        %v3321 = vpack.c.bf16 %v3314, %v3313
        %v3322 = vpack.c.bf16 %v3316, %v3315
        %v3323 = vpack.c.bf16 %v3318, %v3317
        %v3324 = vpack.c.bf16 %v3320, %v3319
        %v3326 = vsel %vm847, %v3321, 0
        %v3329 = vsel %vm847, %v3322, 0
        %v3332 = vsel %vm847, %v3323, 0
        %v3335 = vsel %vm847, %v3324, 0
        %3337 = vmatprep.subr.bf16.mxu0 0
        %3338 = vmatpush1.bf16.msra.mxu0 %v1108
        %3339 = vmatprep.subr.bf16.mxu0 0
        %3340 = vmatpush1.bf16.msra.mxu0 0
        %3341 = vmatprep.subr.bf16.mxu0 0
        %3342 = vmatpush1.bf16.msra.mxu0 0
        %3343 = vmatprep.subr.bf16.mxu0 0
        %3344 = vmatpush1.bf16.msra.mxu0 0
        %3345 = vmatprep.subr.bf16.mxu0 0
        %3346 = vmatpush1.bf16.msra.mxu0 0
        %3347 = vmatprep.subr.bf16.mxu0 0
        %3348 = vmatpush1.bf16.msra.mxu0 0
        %3349 = vmatprep.subr.bf16.mxu0 0
        %3350 = vmatpush1.bf16.msra.mxu0 0
        %3351 = vmatprep.subr.bf16.mxu0 0
        %3352 = vmatpush1.bf16.msra.mxu0 0
        %3353 = vmatprep.subr.bf16.mxu0 0
        %3354 = vmatpush1.bf16.msra.mxu0 0
        %3355 = vmatprep.subr.bf16.mxu0 0
        %3356 = vmatpush1.bf16.msra.mxu0 0
        %3357 = vmatprep.subr.bf16.mxu0 0
        %3358 = vmatpush1.bf16.msra.mxu0 0
        %3359 = vmatprep.subr.bf16.mxu0 0
        %3360 = vmatpush1.bf16.msra.mxu0 0
        %3361 = vmatprep.subr.bf16.mxu0 0
        %3362 = vmatpush1.bf16.msra.mxu0 0
        %3363 = vmatprep.subr.bf16.mxu0 0
        %3364 = vmatpush1.bf16.msra.mxu0 0
        %3365 = vmatprep.subr.bf16.mxu0 0
        %3366 = vmatpush1.bf16.msra.mxu0 0
        %3367 = vmatprep.subr.bf16.mxu0 0
        %3368 = vmatpush1.bf16.msra.mxu0 0
        %3369 = vmatprep.mubr.bf16.mxu0 0
        %3370 = vmatmul.mubr.bf16.gmra.mrb[0].mxu0 %v3326
        %v3371 = vpop.f32.mrb[0].mxu0
        %v3372 = vadd.f32 0.0, %v3371
        %v3373 = vpop.f32.mrb[0].mxu0
        %v3374 = vpop.f32.mrb[0].mxu0
        %v3375 = vadd.f32 0.0, %v3374
        %v3376 = vpop.f32.mrb[0].mxu0
        %3377 = vmatprep.mubr.bf16.mxu0 0
        %3378 = vmatmul.mubr.bf16.gmra.mrb[0].mxu0 %v3329
        %v3379 = vpop.f32.mrb[0].mxu0
        %v3380 = vadd.f32 0.0, %v3379
        %v3381 = vpop.f32.mrb[0].mxu0
        %v3382 = vpop.f32.mrb[0].mxu0
        %v3383 = vadd.f32 0.0, %v3382
        %v3384 = vpop.f32.mrb[0].mxu0
        %3385 = vmatprep.mubr.bf16.mxu0 0
        %3386 = vmatmul.mubr.bf16.gmra.mrb[0].mxu0 %v3332
        %v3387 = vpop.f32.mrb[0].mxu0
        %v3388 = vadd.f32 0.0, %v3387
        %v3389 = vpop.f32.mrb[0].mxu0
        %v3390 = vpop.f32.mrb[0].mxu0
        %v3391 = vadd.f32 0.0, %v3390
        %v3392 = vpop.f32.mrb[0].mxu0
        %3393 = vmatprep.mubr.bf16.mxu0 0
        %3394 = vmatmul.mubr.bf16.gmra.mrb[0].mxu0 %v3335
        %v3395 = vpop.f32.mrb[0].mxu0
        %v3396 = vadd.f32 0.0, %v3395
        %v3397 = vpop.f32.mrb[0].mxu0
        %v3398 = vpop.f32.mrb[0].mxu0
        %v3399 = vadd.f32 0.0, %v3398
        %v3400 = vpop.f32.mrb[0].mxu0
        %3401 = vdwg.mxu0
        %v3402 = vsel %vm1187, %v3372, -inf
        %v3403 = vrot.slane %v3402, 4
        %v3404 = vmax.f32 %v3402, %v3403
        %v3405 = vrot.slane %v3404, 2
        %v3406 = vmax.f32 %v3404, %v3405
        %v3407 = vrot.slane %v3406, 1
        %v3408 = vmax.f32 %v3406, %v3407
        %v3409 = vsel %vm1187, %v3375, -inf
        %v3410 = vrot.slane %v3409, 4
        %v3411 = vmax.f32 %v3409, %v3410
        %v3412 = vrot.slane %v3411, 2
        %v3413 = vmax.f32 %v3411, %v3412
        %v3414 = vrot.slane %v3413, 1
        %v3415 = vmax.f32 %v3413, %v3414
        %v3416 = vsel %vm1187, %v3380, -inf
        %v3417 = vrot.slane %v3416, 4
        %v3418 = vmax.f32 %v3416, %v3417
        %v3419 = vrot.slane %v3418, 2
        %v3420 = vmax.f32 %v3418, %v3419
        %v3421 = vrot.slane %v3420, 1
        %v3422 = vmax.f32 %v3420, %v3421
        %v3423 = vsel %vm1187, %v3383, -inf
        %v3424 = vrot.slane %v3423, 4
        %v3425 = vmax.f32 %v3423, %v3424
        %v3426 = vrot.slane %v3425, 2
        %v3427 = vmax.f32 %v3425, %v3426
        %v3428 = vrot.slane %v3427, 1
        %v3429 = vmax.f32 %v3427, %v3428
        %v3430 = vsel %vm1187, %v3388, -inf
        %v3431 = vrot.slane %v3430, 4
        %v3432 = vmax.f32 %v3430, %v3431
        %v3433 = vrot.slane %v3432, 2
        %v3434 = vmax.f32 %v3432, %v3433
        %v3435 = vrot.slane %v3434, 1
        %v3436 = vmax.f32 %v3434, %v3435
        %v3437 = vsel %vm1187, %v3391, -inf
        %v3438 = vrot.slane %v3437, 4
        %v3439 = vmax.f32 %v3437, %v3438
        %v3440 = vrot.slane %v3439, 2
        %v3441 = vmax.f32 %v3439, %v3440
        %v3442 = vrot.slane %v3441, 1
        %v3443 = vmax.f32 %v3441, %v3442
        %v3444 = vsel %vm1187, %v3396, -inf
        %v3445 = vrot.slane %v3444, 4
        %v3446 = vmax.f32 %v3444, %v3445
        %v3447 = vrot.slane %v3446, 2
        %v3448 = vmax.f32 %v3446, %v3447
        %v3449 = vrot.slane %v3448, 1
        %v3450 = vmax.f32 %v3448, %v3449
        %v3451 = vsel %vm1187, %v3399, -inf
        %v3452 = vrot.slane %v3451, 4
        %v3453 = vmax.f32 %v3451, %v3452
        %v3454 = vrot.slane %v3453, 2
        %v3455 = vmax.f32 %v3453, %v3454
        %v3456 = vrot.slane %v3455, 1
        %v3457 = vmax.f32 %v3455, %v3456
        %v3458 = vsub.f32 %v3372, %v3408
        %v3459 = vsub.f32 %v3375, %v3415
        %v3460 = vsub.f32 %v3380, %v3422
        %v3461 = vsub.f32 %v3383, %v3429
        %v3462 = vsub.f32 %v3388, %v3436
        %v3463 = vsub.f32 %v3391, %v3443
        %v3464 = vsub.f32 %v3396, %v3450
        %v3465 = vsub.f32 %v3399, %v3457
        %v3466 = vmul.f32 %v3458, 1.442695
        %v3467 = vpow.pop %v3466
        %v3468 = vmul.f32 %v3459, 1.442695
        %v3469 = vpow.pop %v3468
        %v3470 = vmul.f32 %v3460, 1.442695
        %v3471 = vpow.pop %v3470
        %v3472 = vmul.f32 %v3461, 1.442695
        %v3473 = vpow.pop %v3472
        %v3474 = vmul.f32 %v3462, 1.442695
        %v3475 = vpow.pop %v3474
        %v3476 = vmul.f32 %v3463, 1.442695
        %v3477 = vpow.pop %v3476
        %v3478 = vmul.f32 %v3464, 1.442695
        %v3479 = vpow.pop %v3478
        %v3480 = vmul.f32 %v3465, 1.442695
        %v3481 = vpow.pop %v3480
        %v3482 = vsel %vm1187, %v3467, 0.0
        %v3483 = vrot.slane %v3482, 4
        %v3484 = vadd.f32 %v3482, %v3483
        %v3485 = vrot.slane %v3484, 2
        %v3486 = vadd.f32 %v3484, %v3485
        %v3487 = vrot.slane %v3486, 1
        %v3488 = vadd.f32 %v3486, %v3487
        %v3489 = vsel %vm1187, %v3469, 0.0
        %v3490 = vrot.slane %v3489, 4
        %v3491 = vadd.f32 %v3489, %v3490
        %v3492 = vrot.slane %v3491, 2
        %v3493 = vadd.f32 %v3491, %v3492
        %v3494 = vrot.slane %v3493, 1
        %v3495 = vadd.f32 %v3493, %v3494
        %v3496 = vsel %vm1187, %v3471, 0.0
        %v3497 = vrot.slane %v3496, 4
        %v3498 = vadd.f32 %v3496, %v3497
        %v3499 = vrot.slane %v3498, 2
        %v3500 = vadd.f32 %v3498, %v3499
        %v3501 = vrot.slane %v3500, 1
        %v3502 = vadd.f32 %v3500, %v3501
        %v3503 = vsel %vm1187, %v3473, 0.0
        %v3504 = vrot.slane %v3503, 4
        %v3505 = vadd.f32 %v3503, %v3504
        %v3506 = vrot.slane %v3505, 2
        %v3507 = vadd.f32 %v3505, %v3506
        %v3508 = vrot.slane %v3507, 1
        %v3509 = vadd.f32 %v3507, %v3508
        %v3510 = vsel %vm1187, %v3475, 0.0
        %v3511 = vrot.slane %v3510, 4
        %v3512 = vadd.f32 %v3510, %v3511
        %v3513 = vrot.slane %v3512, 2
        %v3514 = vadd.f32 %v3512, %v3513
        %v3515 = vrot.slane %v3514, 1
        %v3516 = vadd.f32 %v3514, %v3515
        %v3517 = vsel %vm1187, %v3477, 0.0
        %v3518 = vrot.slane %v3517, 4
        %v3519 = vadd.f32 %v3517, %v3518
        %v3520 = vrot.slane %v3519, 2
        %v3521 = vadd.f32 %v3519, %v3520
        %v3522 = vrot.slane %v3521, 1
        %v3523 = vadd.f32 %v3521, %v3522
        %v3524 = vsel %vm1187, %v3479, 0.0
        %v3525 = vrot.slane %v3524, 4
        %v3526 = vadd.f32 %v3524, %v3525
        %v3527 = vrot.slane %v3526, 2
        %v3528 = vadd.f32 %v3526, %v3527
        %v3529 = vrot.slane %v3528, 1
        %v3530 = vadd.f32 %v3528, %v3529
        %v3531 = vsel %vm1187, %v3481, 0.0
        %v3532 = vrot.slane %v3531, 4
        %v3533 = vadd.f32 %v3531, %v3532
        %v3534 = vrot.slane %v3533, 2
        %v3535 = vadd.f32 %v3533, %v3534
        %v3536 = vrot.slane %v3535, 1
        %v3537 = vadd.f32 %v3535, %v3536
        %v3538 = vrcp.pop %v3488
        %v3539 = vmul.f32 %v3467, %v3538
        %v3540 = vrcp.pop %v3495
        %v3541 = vmul.f32 %v3469, %v3540
        %v3542 = vrcp.pop %v3502
        %v3543 = vmul.f32 %v3471, %v3542
        %v3544 = vrcp.pop %v3509
        %v3545 = vmul.f32 %v3473, %v3544
        %v3546 = vrcp.pop %v3516
        %v3547 = vmul.f32 %v3475, %v3546
        %v3548 = vrcp.pop %v3523
        %v3549 = vmul.f32 %v3477, %v3548
        %v3550 = vrcp.pop %v3530
        %v3551 = vmul.f32 %v3479, %v3550
        %v3552 = vrcp.pop %v3537
        %v3553 = vmul.f32 %v3481, %v3552
        %v3554 = vpack.c.bf16 %v3541, %v3539
        %v3555 = vpack.c.bf16 %v3545, %v3543
        %v3556 = vpack.c.bf16 %v3549, %v3547
        %v3557 = vpack.c.bf16 %v3553, %v3551
        %v3559 = vsel %vm1187, %v3554, 0
        %v3562 = vsel %vm1187, %v3555, 0
        %v3565 = vsel %vm1187, %v3556, 0
        %v3568 = vsel %vm1187, %v3557, 0
        %3570 = vmatprep.subr.bf16.mxu0 0
        %3571 = vmatpush1.bf16.msra.mxu0 %v1457
        %3572 = vmatprep.subr.bf16.mxu0 0
        %3573 = vmatpush1.bf16.msra.mxu0 0
        %3574 = vmatprep.subr.bf16.mxu0 0
        %3575 = vmatpush1.bf16.msra.mxu0 0
        %3576 = vmatprep.subr.bf16.mxu0 0
        %3577 = vmatpush1.bf16.msra.mxu0 0
        %3578 = vmatprep.subr.bf16.mxu0 0
        %3579 = vmatpush1.bf16.msra.mxu0 0
        %3580 = vmatprep.subr.bf16.mxu0 0
        %3581 = vmatpush1.bf16.msra.mxu0 0
        %3582 = vmatprep.subr.bf16.mxu0 0
        %3583 = vmatpush1.bf16.msra.mxu0 0
        %3584 = vmatprep.subr.bf16.mxu0 0
        %3585 = vmatpush1.bf16.msra.mxu0 0
        %3586 = vmatprep.subr.bf16.mxu0 0
        %3587 = vmatpush1.bf16.msra.mxu0 0
        %3588 = vmatprep.subr.bf16.mxu0 0
        %3589 = vmatpush1.bf16.msra.mxu0 0
        %3590 = vmatprep.subr.bf16.mxu0 0
        %3591 = vmatpush1.bf16.msra.mxu0 0
        %3592 = vmatprep.subr.bf16.mxu0 0
        %3593 = vmatpush1.bf16.msra.mxu0 0
        %3594 = vmatprep.subr.bf16.mxu0 0
        %3595 = vmatpush1.bf16.msra.mxu0 0
        %3596 = vmatprep.subr.bf16.mxu0 0
        %3597 = vmatpush1.bf16.msra.mxu0 0
        %3598 = vmatprep.subr.bf16.mxu0 0
        %3599 = vmatpush1.bf16.msra.mxu0 0
        %3600 = vmatprep.subr.bf16.mxu0 0
        %3601 = vmatpush1.bf16.msra.mxu0 0
        %3602 = vmatprep.mubr.bf16.mxu0 0
        %3603 = vmatmul.mubr.bf16.gmra.mrb[0].mxu0 %v3559
        %v3604 = vpop.f32.mrb[0].mxu0
        %v3605 = vadd.f32 0.0, %v3604
        %v3606 = vpop.f32.mrb[0].mxu0
        %v3607 = vpop.f32.mrb[0].mxu0
        %v3608 = vadd.f32 0.0, %v3607
        %v3609 = vpop.f32.mrb[0].mxu0
        %3610 = vmatprep.mubr.bf16.mxu0 0
        %3611 = vmatmul.mubr.bf16.gmra.mrb[0].mxu0 %v3562
        %v3612 = vpop.f32.mrb[0].mxu0
        %v3613 = vadd.f32 0.0, %v3612
        %v3614 = vpop.f32.mrb[0].mxu0
        %v3615 = vpop.f32.mrb[0].mxu0
        %v3616 = vadd.f32 0.0, %v3615
        %v3617 = vpop.f32.mrb[0].mxu0
        %3618 = vmatprep.mubr.bf16.mxu0 0
        %3619 = vmatmul.mubr.bf16.gmra.mrb[0].mxu0 %v3565
        %v3620 = vpop.f32.mrb[0].mxu0
        %v3621 = vadd.f32 0.0, %v3620
        %v3622 = vpop.f32.mrb[0].mxu0
        %v3623 = vpop.f32.mrb[0].mxu0
        %v3624 = vadd.f32 0.0, %v3623
        %v3625 = vpop.f32.mrb[0].mxu0
        %3626 = vmatprep.mubr.bf16.mxu0 0
        %3627 = vmatmul.mubr.bf16.gmra.mrb[0].mxu0 %v3568
        %v3628 = vpop.f32.mrb[0].mxu0
        %v3629 = vadd.f32 0.0, %v3628
        %v3630 = vpop.f32.mrb[0].mxu0
        %v3631 = vpop.f32.mrb[0].mxu0
        %v3632 = vadd.f32 0.0, %v3631
        %v3633 = vpop.f32.mrb[0].mxu0
        %3634 = vdwg.mxu0
        %v3635 = vmul.f32 %v3605, %v3218
        %v3636 = vmul.f32 %v3608, %v3218
        %v3637 = vmul.f32 %v3613, %v3218
        %v3638 = vmul.f32 %v3616, %v3218
        %v3639 = vmul.f32 %v3621, %v3218
        %v3640 = vmul.f32 %v3624, %v3218
        %v3641 = vmul.f32 %v3629, %v3218
        %v3642 = vmul.f32 %v3632, %v3218
        %v3643 = vsel %vm847, %v3635, 0.0
        %v3644 = vrot.slane %v3643, 4
        %v3645 = vadd.f32 %v3643, %v3644
        %v3646 = vrot.slane %v3645, 2
        %v3647 = vadd.f32 %v3645, %v3646
        %v3648 = vrot.slane %v3647, 1
        %v3649 = vadd.f32 %v3647, %v3648
        %v3650 = vsel %vm847, %v3636, 0.0
        %v3651 = vrot.slane %v3650, 4
        %v3652 = vadd.f32 %v3650, %v3651
        %v3653 = vrot.slane %v3652, 2
        %v3654 = vadd.f32 %v3652, %v3653
        %v3655 = vrot.slane %v3654, 1
        %v3656 = vadd.f32 %v3654, %v3655
        %v3657 = vsel %vm847, %v3637, 0.0
        %v3658 = vrot.slane %v3657, 4
        %v3659 = vadd.f32 %v3657, %v3658
        %v3660 = vrot.slane %v3659, 2
        %v3661 = vadd.f32 %v3659, %v3660
        %v3662 = vrot.slane %v3661, 1
        %v3663 = vadd.f32 %v3661, %v3662
        %v3664 = vsel %vm847, %v3638, 0.0
        %v3665 = vrot.slane %v3664, 4
        %v3666 = vadd.f32 %v3664, %v3665
        %v3667 = vrot.slane %v3666, 2
        %v3668 = vadd.f32 %v3666, %v3667
        %v3669 = vrot.slane %v3668, 1
        %v3670 = vadd.f32 %v3668, %v3669
        %v3671 = vsel %vm847, %v3639, 0.0
        %v3672 = vrot.slane %v3671, 4
        %v3673 = vadd.f32 %v3671, %v3672
        %v3674 = vrot.slane %v3673, 2
        %v3675 = vadd.f32 %v3673, %v3674
        %v3676 = vrot.slane %v3675, 1
        %v3677 = vadd.f32 %v3675, %v3676
        %v3678 = vsel %vm847, %v3640, 0.0
        %v3679 = vrot.slane %v3678, 4
        %v3680 = vadd.f32 %v3678, %v3679
        %v3681 = vrot.slane %v3680, 2
        %v3682 = vadd.f32 %v3680, %v3681
        %v3683 = vrot.slane %v3682, 1
        %v3684 = vadd.f32 %v3682, %v3683
        %v3685 = vsel %vm847, %v3641, 0.0
        %v3686 = vrot.slane %v3685, 4
        %v3687 = vadd.f32 %v3685, %v3686
        %v3688 = vrot.slane %v3687, 2
        %v3689 = vadd.f32 %v3687, %v3688
        %v3690 = vrot.slane %v3689, 1
        %v3691 = vadd.f32 %v3689, %v3690
        %v3692 = vsel %vm847, %v3642, 0.0
        %v3693 = vrot.slane %v3692, 4
        %v3694 = vadd.f32 %v3692, %v3693
        %v3695 = vrot.slane %v3694, 2
        %v3696 = vadd.f32 %v3694, %v3695
        %v3697 = vrot.slane %v3696, 1
        %v3698 = vadd.f32 %v3696, %v3697
        %s3699 = scalar_lea.vmem %s10, 16
        %v3700 = vld [vmem:[%s3699] sm:$0xf]
        %v3701 = vld [vmem:[%s3699 + $0x4] sm:$0xf]
        %s3702 = scalar_lea.vmem %s11, 2
        %v3703 = vld [vmem:[%s3702] sm:$0x1]
        %v3704 = vpack.c.bf16 %v3649, %v3649
        %v3705 = vpack.c.bf16 %v3656, %v3656
        %v3706 = vpack.c.bf16 %v3663, %v3663
        %v3707 = vpack.c.bf16 %v3670, %v3670
        %v3708 = vpack.c.bf16 %v3677, %v3677
        %v3709 = vpack.c.bf16 %v3684, %v3684
        %v3710 = vpack.c.bf16 %v3691, %v3691
        %v3711 = vpack.c.bf16 %v3698, %v3698
        %v3713 = vlaneseq
        %v3714 = vshrl.u32 %v3713, 7
        %v3715 = vsub.s32 0, %v3714
        %v3716 = vrot.slane %v3703, %v3715
        %v3726 = vunpack.c.l.b16 %v3704
        %v3727 = vunpack.c.l.b16 %v3705
        %v3728 = vunpack.c.l.b16 %v3706
        %v3729 = vunpack.c.l.b16 %v3707
        %v3730 = vunpack.c.l.b16 %v3708
        %v3731 = vunpack.c.l.b16 %v3709
        %v3732 = vunpack.c.l.b16 %v3710
        %v3733 = vunpack.c.l.b16 %v3711
        %v3734 = vsel %vm1423, %v3727, %v3726
        %v3735 = vsel %vm1425, %v3728, %v3734
        %v3736 = vsel %vm1427, %v3729, %v3735
        %v3737 = vsel %vm1429, %v3730, %v3736
        %v3738 = vsel %vm1431, %v3731, %v3737
        %v3739 = vsel %vm1433, %v3732, %v3738
        %v3740 = vsel %vm1435, %v3733, %v3739
        %v3741 = vpack.c.b16 %v3740, %v3740
        %v3744 = vunpack.c.l.b16 %v3700
        %v3745 = vunpack.c.l.b16 %v3701
        %v3746 = vpack.c.b16 %v3745, %v3744
        %v3749 = vsel %vm847, %v3741, 0
        %3751 = vmatprep.subr.bf16.mxu0 0
        %3752 = vmatpush1.bf16.msra.mxu0 %v3746
        %3753 = vmatprep.subr.bf16.mxu0 0
        %3754 = vmatpush1.bf16.msra.mxu0 0
        %3755 = vmatprep.subr.bf16.mxu0 0
        %3756 = vmatpush1.bf16.msra.mxu0 0
        %3757 = vmatprep.subr.bf16.mxu0 0
        %3758 = vmatpush1.bf16.msra.mxu0 0
        %3759 = vmatprep.subr.bf16.mxu0 0
        %3760 = vmatpush1.bf16.msra.mxu0 0
        %3761 = vmatprep.subr.bf16.mxu0 0
        %3762 = vmatpush1.bf16.msra.mxu0 0
        %3763 = vmatprep.subr.bf16.mxu0 0
        %3764 = vmatpush1.bf16.msra.mxu0 0
        %3765 = vmatprep.subr.bf16.mxu0 0
        %3766 = vmatpush1.bf16.msra.mxu0 0
        %3767 = vmatprep.subr.bf16.mxu0 0
        %3768 = vmatpush1.bf16.msra.mxu0 0
        %3769 = vmatprep.subr.bf16.mxu0 0
        %3770 = vmatpush1.bf16.msra.mxu0 0
        %3771 = vmatprep.subr.bf16.mxu0 0
        %3772 = vmatpush1.bf16.msra.mxu0 0
        %3773 = vmatprep.subr.bf16.mxu0 0
        %3774 = vmatpush1.bf16.msra.mxu0 0
        %3775 = vmatprep.subr.bf16.mxu0 0
        %3776 = vmatpush1.bf16.msra.mxu0 0
        %3777 = vmatprep.subr.bf16.mxu0 0
        %3778 = vmatpush1.bf16.msra.mxu0 0
        %3779 = vmatprep.subr.bf16.mxu0 0
        %3780 = vmatpush1.bf16.msra.mxu0 0
        %3781 = vmatprep.subr.bf16.mxu0 0
        %3782 = vmatpush1.bf16.msra.mxu0 0
        %3783 = vmatprep.mubr.bf16.mxu0 0
        %3784 = vmatmul.mubr.bf16.gmra.mrb[0].mxu0 %v3749
        %v3785 = vpop.f32.mrb[0].mxu0
        %v3786 = vadd.f32 %v3716, %v3785
        %v3787 = vpop.f32.mrb[0].mxu0
        %v3788 = vpop.f32.mrb[0].mxu0
        %v3789 = vpop.f32.mrb[0].mxu0
        %3790 = vdwg.mxu0
        %v3791 = vadd.f32 %v3046, %v3786
        %s3792 = scalar_lea.vmem %s16, 2
        %v3793 = vld [vmem:[%s3792] sm:$0x1]
        %s3794 = scalar_lea.vmem %s17, 2
        %v3795 = vld [vmem:[%s3794] sm:$0x1]
        %v3796 = vsel %vm847, %v3791, 0.0
        %3797 = vadd.xlane.f32.xlu0 %v3796
        %v3798 = vpop.xlane.xlu0 %3797
        %v3799 = vmul.f32 %v3798, %v1684
        %v3800 = vsub.f32 %v3791, %v3799
        %v3801 = vmul.f32 %v3800, %v3800
        %v3802 = vsel %vm847, %v3801, 0.0
        %3803 = vadd.xlane.f32.xlu0 %v3802
        %v3804 = vpop.xlane.xlu0 %3803
        %v3805 = vmul.f32 %v3804, %v1684
        %v3806 = vadd.f32 %v3805, 1e-05
        %v3807 = vrsqrt.pop %v3806
        %v3808 = vmul.f32 %v3800, %v3807
        %v3810 = vlaneseq
        %v3811 = vshrl.u32 %v3810, 7
        %v3812 = vsub.s32 0, %v3811
        %v3813 = vrot.slane %v3793, %v3812
        %v3815 = vmul.f32 %v3808, %v3813
        %v3817 = vlaneseq
        %v3818 = vshrl.u32 %v3817, 7
        %v3819 = vsub.s32 0, %v3818
        %v3820 = vrot.slane %v3795, %v3819
        %v3822 = vadd.f32 %v3815, %v3820
        %s3823 = scalar_lea.vmem %s12, 32
        %v3824 = vld [vmem:[%s3823] sm:$0xff]
        %v3825 = vld [vmem:[%s3823 + $0x8] sm:$0xff]
        %s3826 = scalar_lea.vmem %s13, 4
        %v3827 = vld [vmem:[%s3826] sm:$0x3]
        %v3828 = vpack.c.bf16 %v3822, %v3822
        %v3830 = vlaneseq
        %v3831 = vshrl.u32 %v3830, 7
        %v3832 = vsub.s32 0, %v3831
        %v3833 = vrot.slane %v3827, %v3832
        %v3834 = vlaneseq
        %v3835 = vshrl.u32 %v3834, 7
        %v3836 = vsub.s32 1, %v3835
        %v3837 = vrot.slane %v3827, %v3836
        %v3842 = vunpack.c.l.b16 %v3824
        %v3843 = vunpack.c.h.b16 %v3824
        %v3844 = vunpack.c.l.b16 %v3825
        %v3845 = vunpack.c.h.b16 %v3825
        %v3846 = vpack.c.b16 %v3844, %v3842
        %v3847 = vpack.c.b16 %v3845, %v3843
        %v3851 = vsel %vm847, %v3828, 0
        %3853 = vmatprep.subr.bf16.mxu0 %v3847
        %3854 = vmatpush1.bf16.msra.mxu0 %v3846
        %3855 = vmatprep.subr.bf16.mxu0 0
        %3856 = vmatpush1.bf16.msra.mxu0 0
        %3857 = vmatprep.subr.bf16.mxu0 0
        %3858 = vmatpush1.bf16.msra.mxu0 0
        %3859 = vmatprep.subr.bf16.mxu0 0
        %3860 = vmatpush1.bf16.msra.mxu0 0
        %3861 = vmatprep.subr.bf16.mxu0 0
        %3862 = vmatpush1.bf16.msra.mxu0 0
        %3863 = vmatprep.subr.bf16.mxu0 0
        %3864 = vmatpush1.bf16.msra.mxu0 0
        %3865 = vmatprep.subr.bf16.mxu0 0
        %3866 = vmatpush1.bf16.msra.mxu0 0
        %3867 = vmatprep.subr.bf16.mxu0 0
        %3868 = vmatpush1.bf16.msra.mxu0 0
        %3869 = vmatprep.subr.bf16.mxu0 0
        %3870 = vmatpush1.bf16.msra.mxu0 0
        %3871 = vmatprep.subr.bf16.mxu0 0
        %3872 = vmatpush1.bf16.msra.mxu0 0
        %3873 = vmatprep.subr.bf16.mxu0 0
        %3874 = vmatpush1.bf16.msra.mxu0 0
        %3875 = vmatprep.subr.bf16.mxu0 0
        %3876 = vmatpush1.bf16.msra.mxu0 0
        %3877 = vmatprep.subr.bf16.mxu0 0
        %3878 = vmatpush1.bf16.msra.mxu0 0
        %3879 = vmatprep.subr.bf16.mxu0 0
        %3880 = vmatpush1.bf16.msra.mxu0 0
        %3881 = vmatprep.subr.bf16.mxu0 0
        %3882 = vmatpush1.bf16.msra.mxu0 0
        %3883 = vmatprep.subr.bf16.mxu0 0
        %3884 = vmatpush1.bf16.msra.mxu0 0
        %3885 = vmatprep.mubr.bf16.mxu0 0
        %3886 = vmatmul.mubr.bf16.gmra.mrb[0].mxu0 %v3851
        %v3887 = vpop.f32.mrb[0].mxu0
        %v3888 = vadd.f32 %v3833, %v3887
        %v3889 = vpop.f32.mrb[0].mxu0
        %v3890 = vadd.f32 %v3837, %v3889
        %v3891 = vpop.f32.mrb[0].mxu0
        %v3892 = vpop.f32.mrb[0].mxu0
        %3893 = vdwg.mxu0
        %v3894 = vmax.f32 %v3888, 0.0
        %v3895 = vmax.f32 %v3890, 0.0
        %s3896 = scalar_lea.vmem %s14, 256
        %v3897 = vld [vmem:[%s3896] sm:$0xf]
        %v3898 = vld [vmem:[%s3896 + $0x4] sm:$0xf]
        %v3899 = vld [vmem:[%s3896 + $0x8] sm:$0xf]
        %v3900 = vld [vmem:[%s3896 + $0xc] sm:$0xf]
        %v3901 = vld [vmem:[%s3896 + $0x10] sm:$0xf]
        %v3902 = vld [vmem:[%s3896 + $0x14] sm:$0xf]
        %v3903 = vld [vmem:[%s3896 + $0x18] sm:$0xf]
        %v3904 = vld [vmem:[%s3896 + $0x1c] sm:$0xf]
        %v3905 = vld [vmem:[%s3896 + $0x20] sm:$0xf]
        %v3906 = vld [vmem:[%s3896 + $0x24] sm:$0xf]
        %v3907 = vld [vmem:[%s3896 + $0x28] sm:$0xf]
        %v3908 = vld [vmem:[%s3896 + $0x2c] sm:$0xf]
        %v3909 = vld [vmem:[%s3896 + $0x30] sm:$0xf]
        %v3910 = vld [vmem:[%s3896 + $0x34] sm:$0xf]
        %v3911 = vld [vmem:[%s3896 + $0x38] sm:$0xf]
        %v3912 = vld [vmem:[%s3896 + $0x3c] sm:$0xf]
        %v3913 = vld [vmem:[%s3896 + $0x40] sm:$0xf]
        %v3914 = vld [vmem:[%s3896 + $0x44] sm:$0xf]
        %v3915 = vld [vmem:[%s3896 + $0x48] sm:$0xf]
        %v3916 = vld [vmem:[%s3896 + $0x4c] sm:$0xf]
        %v3917 = vld [vmem:[%s3896 + $0x50] sm:$0xf]
        %v3918 = vld [vmem:[%s3896 + $0x54] sm:$0xf]
        %v3919 = vld [vmem:[%s3896 + $0x58] sm:$0xf]
        %v3920 = vld [vmem:[%s3896 + $0x5c] sm:$0xf]
        %v3921 = vld [vmem:[%s3896 + $0x60] sm:$0xf]
        %v3922 = vld [vmem:[%s3896 + $0x64] sm:$0xf]
        %v3923 = vld [vmem:[%s3896 + $0x68] sm:$0xf]
        %v3924 = vld [vmem:[%s3896 + $0x6c] sm:$0xf]
        %v3925 = vld [vmem:[%s3896 + $0x70] sm:$0xf]
        %v3926 = vld [vmem:[%s3896 + $0x74] sm:$0xf]
        %v3927 = vld [vmem:[%s3896 + $0x78] sm:$0xf]
        %v3928 = vld [vmem:[%s3896 + $0x7c] sm:$0xf]
        %s3929 = scalar_lea.vmem %s15, 2
        %v3930 = vld [vmem:[%s3929] sm:$0x1]
        %v3931 = vpack.c.bf16 %v3894, %v3894
        %v3932 = vpack.c.bf16 %v3895, %v3895
        %v3934 = vlaneseq
        %v3935 = vshrl.u32 %v3934, 7
        %v3936 = vsub.s32 0, %v3935
        %v3937 = vrot.slane %v3930, %v3936
        %v3971 = vunpack.c.l.b16 %v3897
        %v3972 = vunpack.c.l.b16 %v3898
        %v3973 = vunpack.c.l.b16 %v3899
        %v3974 = vunpack.c.l.b16 %v3900
        %v3975 = vunpack.c.l.b16 %v3901
        %v3976 = vunpack.c.l.b16 %v3902
        %v3977 = vunpack.c.l.b16 %v3903
        %v3978 = vunpack.c.l.b16 %v3904
        %v3979 = vunpack.c.l.b16 %v3905
        %v3980 = vunpack.c.l.b16 %v3906
        %v3981 = vunpack.c.l.b16 %v3907
        %v3982 = vunpack.c.l.b16 %v3908
        %v3983 = vunpack.c.l.b16 %v3909
        %v3984 = vunpack.c.l.b16 %v3910
        %v3985 = vunpack.c.l.b16 %v3911
        %v3986 = vunpack.c.l.b16 %v3912
        %v3987 = vunpack.c.l.b16 %v3913
        %v3988 = vunpack.c.l.b16 %v3914
        %v3989 = vunpack.c.l.b16 %v3915
        %v3990 = vunpack.c.l.b16 %v3916
        %v3991 = vunpack.c.l.b16 %v3917
        %v3992 = vunpack.c.l.b16 %v3918
        %v3993 = vunpack.c.l.b16 %v3919
        %v3994 = vunpack.c.l.b16 %v3920
        %v3995 = vunpack.c.l.b16 %v3921
        %v3996 = vunpack.c.l.b16 %v3922
        %v3997 = vunpack.c.l.b16 %v3923
        %v3998 = vunpack.c.l.b16 %v3924
        %v3999 = vunpack.c.l.b16 %v3925
        %v4000 = vunpack.c.l.b16 %v3926
        %v4001 = vunpack.c.l.b16 %v3927
        %v4002 = vunpack.c.l.b16 %v3928
        %v4003 = vpack.c.b16 %v3972, %v3971
        %v4004 = vpack.c.b16 %v3974, %v3973
        %v4005 = vpack.c.b16 %v3976, %v3975
        %v4006 = vpack.c.b16 %v3978, %v3977
        %v4007 = vpack.c.b16 %v3980, %v3979
        %v4008 = vpack.c.b16 %v3982, %v3981
        %v4009 = vpack.c.b16 %v3984, %v3983
        %v4010 = vpack.c.b16 %v3986, %v3985
        %v4011 = vpack.c.b16 %v3988, %v3987
        %v4012 = vpack.c.b16 %v3990, %v3989
        %v4013 = vpack.c.b16 %v3992, %v3991
        %v4014 = vpack.c.b16 %v3994, %v3993
        %v4015 = vpack.c.b16 %v3996, %v3995
        %v4016 = vpack.c.b16 %v3998, %v3997
        %v4017 = vpack.c.b16 %v4000, %v3999
        %v4018 = vpack.c.b16 %v4002, %v4001
        %4035 = vmatprep.subr.bf16.mxu0 0
        %4036 = vmatpush1.bf16.msra.mxu0 %v4003
        %4037 = vmatprep.subr.bf16.mxu0 0
        %4038 = vmatpush1.bf16.msra.mxu0 %v4004
        %4039 = vmatprep.subr.bf16.mxu0 0
        %4040 = vmatpush1.bf16.msra.mxu0 %v4005
        %4041 = vmatprep.subr.bf16.mxu0 0
        %4042 = vmatpush1.bf16.msra.mxu0 %v4006
        %4043 = vmatprep.subr.bf16.mxu0 0
        %4044 = vmatpush1.bf16.msra.mxu0 %v4007
        %4045 = vmatprep.subr.bf16.mxu0 0
        %4046 = vmatpush1.bf16.msra.mxu0 %v4008
        %4047 = vmatprep.subr.bf16.mxu0 0
        %4048 = vmatpush1.bf16.msra.mxu0 %v4009
        %4049 = vmatprep.subr.bf16.mxu0 0
        %4050 = vmatpush1.bf16.msra.mxu0 %v4010
        %4051 = vmatprep.subr.bf16.mxu0 0
        %4052 = vmatpush1.bf16.msra.mxu0 %v4011
        %4053 = vmatprep.subr.bf16.mxu0 0
        %4054 = vmatpush1.bf16.msra.mxu0 %v4012
        %4055 = vmatprep.subr.bf16.mxu0 0
        %4056 = vmatpush1.bf16.msra.mxu0 %v4013
        %4057 = vmatprep.subr.bf16.mxu0 0
        %4058 = vmatpush1.bf16.msra.mxu0 %v4014
        %4059 = vmatprep.subr.bf16.mxu0 0
        %4060 = vmatpush1.bf16.msra.mxu0 %v4015
        %4061 = vmatprep.subr.bf16.mxu0 0
        %4062 = vmatpush1.bf16.msra.mxu0 %v4016
        %4063 = vmatprep.subr.bf16.mxu0 0
        %4064 = vmatpush1.bf16.msra.mxu0 %v4017
        %4065 = vmatprep.subr.bf16.mxu0 0
        %4066 = vmatpush1.bf16.msra.mxu0 %v4018
        %4067 = vmatprep.mubr.bf16.mxu0 %v3932
        %4068 = vmatmul.mubr.bf16.gmra.mrb[0].mxu0 %v3931
        %v4069 = vpop.f32.mrb[0].mxu0
        %v4070 = vadd.f32 %v3937, %v4069
        %v4071 = vpop.f32.mrb[0].mxu0
        %v4072 = vpop.f32.mrb[0].mxu0
        %v4073 = vpop.f32.mrb[0].mxu0
        %4074 = vdwg.mxu0
        %v4075 = vadd.f32 %v3822, %v4070
        %s4076 = scalar_lea.vmem %s18, 2
        %v4077 = vld [vmem:[%s4076] sm:$0x1]
        %s4078 = scalar_lea.vmem %s19, 2
        %v4079 = vld [vmem:[%s4078] sm:$0x1]
        %v4080 = vsel %vm847, %v4075, 0.0
        %4081 = vadd.xlane.f32.xlu0 %v4080
        %v4082 = vpop.xlane.xlu0 %4081
        %v4083 = vmul.f32 %v4082, %v1684
        %v4084 = vsub.f32 %v4075, %v4083
        %v4085 = vmul.f32 %v4084, %v4084
        %v4086 = vsel %vm847, %v4085, 0.0
        %4087 = vadd.xlane.f32.xlu0 %v4086
        %v4088 = vpop.xlane.xlu0 %4087
        %v4089 = vmul.f32 %v4088, %v1684
        %v4090 = vadd.f32 %v4089, 1e-05
        %v4091 = vrsqrt.pop %v4090
        %v4092 = vmul.f32 %v4084, %v4091
        %v4094 = vlaneseq
        %v4095 = vshrl.u32 %v4094, 7
        %v4096 = vsub.s32 0, %v4095
        %v4097 = vrot.slane %v4077, %v4096
        %v4099 = vmul.f32 %v4092, %v4097
        %v4101 = vlaneseq
        %v4102 = vshrl.u32 %v4101, 7
        %v4103 = vsub.s32 0, %v4102
        %v4104 = vrot.slane %v4079, %v4103
        %v4106 = vadd.f32 %v4099, %v4104
        %s4107 = scalar_lea.vmem %s4, 24
        %v4108 = vld [vmem:[%s4107] sm:$0xf]
        %v4109 = vld [vmem:[%s4107 + $0x4] sm:$0xf]
        %s4110 = scalar_lea.vmem %s5, 3
        %v4111 = vld [vmem:[%s4110] sm:$0x1]
        %v4112 = vpack.c.bf16 %v4106, %v4106
        %v4114 = vlaneseq
        %v4115 = vshrl.u32 %v4114, 7
        %v4116 = vsub.s32 0, %v4115
        %v4117 = vrot.slane %v4111, %v4116
        %v4121 = vunpack.c.l.b16 %v4108
        %v4122 = vunpack.c.l.b16 %v4109
        %v4123 = vpack.c.b16 %v4122, %v4121
        %v4126 = vsel %vm847, %v4112, 0
        %4128 = vmatprep.subr.bf16.mxu0 0
        %4129 = vmatpush1.bf16.msra.mxu0 %v4123
        %4130 = vmatprep.subr.bf16.mxu0 0
        %4131 = vmatpush1.bf16.msra.mxu0 0
        %4132 = vmatprep.subr.bf16.mxu0 0
        %4133 = vmatpush1.bf16.msra.mxu0 0
        %4134 = vmatprep.subr.bf16.mxu0 0
        %4135 = vmatpush1.bf16.msra.mxu0 0
        %4136 = vmatprep.subr.bf16.mxu0 0
        %4137 = vmatpush1.bf16.msra.mxu0 0
        %4138 = vmatprep.subr.bf16.mxu0 0
        %4139 = vmatpush1.bf16.msra.mxu0 0
        %4140 = vmatprep.subr.bf16.mxu0 0
        %4141 = vmatpush1.bf16.msra.mxu0 0
        %4142 = vmatprep.subr.bf16.mxu0 0
        %4143 = vmatpush1.bf16.msra.mxu0 0
        %4144 = vmatprep.subr.bf16.mxu0 0
        %4145 = vmatpush1.bf16.msra.mxu0 0
        %4146 = vmatprep.subr.bf16.mxu0 0
        %4147 = vmatpush1.bf16.msra.mxu0 0
        %4148 = vmatprep.subr.bf16.mxu0 0
        %4149 = vmatpush1.bf16.msra.mxu0 0
        %4150 = vmatprep.subr.bf16.mxu0 0
        %4151 = vmatpush1.bf16.msra.mxu0 0
        %4152 = vmatprep.subr.bf16.mxu0 0
        %4153 = vmatpush1.bf16.msra.mxu0 0
        %4154 = vmatprep.subr.bf16.mxu0 0
        %4155 = vmatpush1.bf16.msra.mxu0 0
        %4156 = vmatprep.subr.bf16.mxu0 0
        %4157 = vmatpush1.bf16.msra.mxu0 0
        %4158 = vmatprep.subr.bf16.mxu0 0
        %4159 = vmatpush1.bf16.msra.mxu0 0
        %4160 = vmatprep.mubr.bf16.mxu0 0
        %4161 = vmatmul.mubr.bf16.gmra.mrb[0].mxu0 %v4126
        %v4162 = vpop.f32.mrb[0].mxu0
        %v4163 = vadd.f32 %v4117, %v4162
        %v4164 = vpop.f32.mrb[0].mxu0
        %v4165 = vpop.f32.mrb[0].mxu0
        %v4166 = vpop.f32.mrb[0].mxu0
        %4167 = vdwg.mxu0
        %v4168 = vmul.f32 %v4163, 0.70710677
        %s4169 = scalar_lea.vmem %s6, 24
        %v4170 = vld [vmem:[%s4169] sm:$0xf]
        %v4171 = vld [vmem:[%s4169 + $0x4] sm:$0xf]
        %s4172 = scalar_lea.vmem %s7, 3
        %v4173 = vld [vmem:[%s4172] sm:$0x1]
        %v4175 = vlaneseq
        %v4176 = vshrl.u32 %v4175, 7
        %v4177 = vsub.s32 0, %v4176
        %v4178 = vrot.slane %v4173, %v4177
        %v4182 = vunpack.c.l.b16 %v4170
        %v4183 = vunpack.c.l.b16 %v4171
        %v4184 = vpack.c.b16 %v4183, %v4182
        %4186 = vmatprep.subr.bf16.mxu0 0
        %4187 = vmatpush1.bf16.msra.mxu0 %v4184
        %4188 = vmatprep.subr.bf16.mxu0 0
        %4189 = vmatpush1.bf16.msra.mxu0 0
        %4190 = vmatprep.subr.bf16.mxu0 0
        %4191 = vmatpush1.bf16.msra.mxu0 0
        %4192 = vmatprep.subr.bf16.mxu0 0
        %4193 = vmatpush1.bf16.msra.mxu0 0
        %4194 = vmatprep.subr.bf16.mxu0 0
        %4195 = vmatpush1.bf16.msra.mxu0 0
        %4196 = vmatprep.subr.bf16.mxu0 0
        %4197 = vmatpush1.bf16.msra.mxu0 0
        %4198 = vmatprep.subr.bf16.mxu0 0
        %4199 = vmatpush1.bf16.msra.mxu0 0
        %4200 = vmatprep.subr.bf16.mxu0 0
        %4201 = vmatpush1.bf16.msra.mxu0 0
        %4202 = vmatprep.subr.bf16.mxu0 0
        %4203 = vmatpush1.bf16.msra.mxu0 0
        %4204 = vmatprep.subr.bf16.mxu0 0
        %4205 = vmatpush1.bf16.msra.mxu0 0
        %4206 = vmatprep.subr.bf16.mxu0 0
        %4207 = vmatpush1.bf16.msra.mxu0 0
        %4208 = vmatprep.subr.bf16.mxu0 0
        %4209 = vmatpush1.bf16.msra.mxu0 0
        %4210 = vmatprep.subr.bf16.mxu0 0
        %4211 = vmatpush1.bf16.msra.mxu0 0
        %4212 = vmatprep.subr.bf16.mxu0 0
        %4213 = vmatpush1.bf16.msra.mxu0 0
        %4214 = vmatprep.subr.bf16.mxu0 0
        %4215 = vmatpush1.bf16.msra.mxu0 0
        %4216 = vmatprep.subr.bf16.mxu0 0
        %4217 = vmatpush1.bf16.msra.mxu0 0
        %4218 = vmatprep.mubr.bf16.mxu0 0
        %4219 = vmatmul.mubr.bf16.gmra.mrb[0].mxu0 %v4126
        %v4220 = vpop.f32.mrb[0].mxu0
        %v4221 = vadd.f32 %v4178, %v4220
        %v4222 = vpop.f32.mrb[0].mxu0
        %v4223 = vpop.f32.mrb[0].mxu0
        %v4224 = vpop.f32.mrb[0].mxu0
        %4225 = vdwg.mxu0
        %s4226 = scalar_lea.vmem %s8, 24
        %v4227 = vld [vmem:[%s4226] sm:$0xf]
        %v4228 = vld [vmem:[%s4226 + $0x4] sm:$0xf]
        %s4229 = scalar_lea.vmem %s9, 3
        %v4230 = vld [vmem:[%s4229] sm:$0x1]
        %v4232 = vlaneseq
        %v4233 = vshrl.u32 %v4232, 7
        %v4234 = vsub.s32 0, %v4233
        %v4235 = vrot.slane %v4230, %v4234
        %v4239 = vunpack.c.l.b16 %v4227
        %v4240 = vunpack.c.l.b16 %v4228
        %v4241 = vpack.c.b16 %v4240, %v4239
        %4243 = vmatprep.subr.bf16.mxu0 0
        %4244 = vmatpush1.bf16.msra.mxu0 %v4241
        %4245 = vmatprep.subr.bf16.mxu0 0
        %4246 = vmatpush1.bf16.msra.mxu0 0
        %4247 = vmatprep.subr.bf16.mxu0 0
        %4248 = vmatpush1.bf16.msra.mxu0 0
        %4249 = vmatprep.subr.bf16.mxu0 0
        %4250 = vmatpush1.bf16.msra.mxu0 0
        %4251 = vmatprep.subr.bf16.mxu0 0
        %4252 = vmatpush1.bf16.msra.mxu0 0
        %4253 = vmatprep.subr.bf16.mxu0 0
        %4254 = vmatpush1.bf16.msra.mxu0 0
        %4255 = vmatprep.subr.bf16.mxu0 0
        %4256 = vmatpush1.bf16.msra.mxu0 0
        %4257 = vmatprep.subr.bf16.mxu0 0
        %4258 = vmatpush1.bf16.msra.mxu0 0
        %4259 = vmatprep.subr.bf16.mxu0 0
        %4260 = vmatpush1.bf16.msra.mxu0 0
        %4261 = vmatprep.subr.bf16.mxu0 0
        %4262 = vmatpush1.bf16.msra.mxu0 0
        %4263 = vmatprep.subr.bf16.mxu0 0
        %4264 = vmatpush1.bf16.msra.mxu0 0
        %4265 = vmatprep.subr.bf16.mxu0 0
        %4266 = vmatpush1.bf16.msra.mxu0 0
        %4267 = vmatprep.subr.bf16.mxu0 0
        %4268 = vmatpush1.bf16.msra.mxu0 0
        %4269 = vmatprep.subr.bf16.mxu0 0
        %4270 = vmatpush1.bf16.msra.mxu0 0
        %4271 = vmatprep.subr.bf16.mxu0 0
        %4272 = vmatpush1.bf16.msra.mxu0 0
        %4273 = vmatprep.subr.bf16.mxu0 0
        %4274 = vmatpush1.bf16.msra.mxu0 0
        %4275 = vmatprep.mubr.bf16.mxu0 0
        %4276 = vmatmul.mubr.bf16.gmra.mrb[0].mxu0 %v4126
        %v4277 = vpop.f32.mrb[0].mxu0
        %v4278 = vadd.f32 %v4235, %v4277
        %v4279 = vpop.f32.mrb[0].mxu0
        %v4280 = vpop.f32.mrb[0].mxu0
        %v4281 = vpop.f32.mrb[0].mxu0
        %4282 = vdwg.mxu0
        %v4284 = vcombine.high %v4168, %v4168
        %v4286 = vunpack.c.l.s4 1966171168
        %v4287 = vunpack.c.0.s8 %v4286
        %v4288 = vlaneseq
        %v4289 = vshrl.u32 %v4288, 7
        %v4290 = vsub.s32 %v4287, %v4289
        %v4291 = vrot.slane %v4168, %v4290
        %v4293 = vunpack.c.l.s4 1966171168
        %v4294 = vunpack.c.0.s8 %v4293
        %v4295 = vlaneseq
        %v4296 = vshrl.u32 %v4295, 7
        %v4297 = vsub.s32 %v4294, %v4296
        %v4298 = vrot.slane %v4284, %v4297
        %v4299 = vcombine.high %v4291, %v4291
        %v4300 = vcombine.high %v4298, %v4298
        %v4302 = vunpack.c.l.s4 1966171168
        %v4303 = vunpack.c.0.s8 %v4302
        %v4304 = vlaneseq
        %v4305 = vshrl.u32 %v4304, 7
        %v4306 = vsub.s32 %v4303, %v4305
        %v4307 = vrot.slane %v4291, %v4306
        %v4309 = vunpack.c.l.s4 1966171168
        %v4310 = vunpack.c.0.s8 %v4309
        %v4311 = vlaneseq
        %v4312 = vshrl.u32 %v4311, 7
        %v4313 = vsub.s32 %v4310, %v4312
        %v4314 = vrot.slane %v4298, %v4313
        %v4316 = vunpack.c.l.s4 1966171168
        %v4317 = vunpack.c.0.s8 %v4316
        %v4318 = vlaneseq
        %v4319 = vshrl.u32 %v4318, 7
        %v4320 = vsub.s32 %v4317, %v4319
        %v4321 = vrot.slane %v4299, %v4320
        %v4323 = vunpack.c.l.s4 1966171168
        %v4324 = vunpack.c.0.s8 %v4323
        %v4325 = vlaneseq
        %v4326 = vshrl.u32 %v4325, 7
        %v4327 = vsub.s32 %v4324, %v4326
        %v4328 = vrot.slane %v4300, %v4327
        %v4329 = vcombine.high %v4307, %v4307
        %v4330 = vcombine.high %v4314, %v4314
        %v4331 = vcombine.high %v4321, %v4321
        %v4332 = vcombine.high %v4328, %v4328
        %v4333 = vlaneseq
        %v4334 = vshrl.u32 %v4333, 7
        %v4335 = vsub.s32 0, %v4334
        %v4336 = vrot.slane %v4307, %v4335
        %v4337 = vlaneseq
        %v4338 = vshrl.u32 %v4337, 7
        %v4339 = vsub.s32 0, %v4338
        %v4340 = vrot.slane %v4321, %v4339
        %v4341 = vlaneseq
        %v4342 = vshrl.u32 %v4341, 7
        %v4343 = vsub.s32 0, %v4342
        %v4344 = vrot.slane %v4329, %v4343
        %v4345 = vlaneseq
        %v4346 = vshrl.u32 %v4345, 7
        %v4347 = vsub.s32 0, %v4346
        %v4348 = vrot.slane %v4331, %v4347
        %v4349 = vlaneseq
        %v4350 = vshrl.u32 %v4349, 7
        %v4351 = vsub.s32 0, %v4350
        %v4352 = vrot.slane %v4314, %v4351
        %v4353 = vlaneseq
        %v4354 = vshrl.u32 %v4353, 7
        %v4355 = vsub.s32 0, %v4354
        %v4356 = vrot.slane %v4328, %v4355
        %v4357 = vlaneseq
        %v4358 = vshrl.u32 %v4357, 7
        %v4359 = vsub.s32 0, %v4358
        %v4360 = vrot.slane %v4330, %v4359
        %v4361 = vlaneseq
        %v4362 = vshrl.u32 %v4361, 7
        %v4363 = vsub.s32 0, %v4362
        %v4364 = vrot.slane %v4332, %v4363
        %v4373 = vmul.f32 %v4336, %v4221
        %v4374 = vmul.f32 %v4340, %v4221
        %v4375 = vmul.f32 %v4344, %v4221
        %v4376 = vmul.f32 %v4348, %v4221
        %v4377 = vmul.f32 %v4352, %v4221
        %v4378 = vmul.f32 %v4356, %v4221
        %v4379 = vmul.f32 %v4360, %v4221
        %v4380 = vmul.f32 %v4364, %v4221
        %v4381 = vpack.c.bf16 %v4374, %v4373
        %v4382 = vpack.c.bf16 %v4376, %v4375
        %v4383 = vpack.c.bf16 %v4378, %v4377
        %v4384 = vpack.c.bf16 %v4380, %v4379
        %v4386 = vsel %vm847, %v4381, 0
        %v4389 = vsel %vm847, %v4382, 0
        %v4392 = vsel %vm847, %v4383, 0
        %v4395 = vsel %vm847, %v4384, 0
        %4397 = vmatprep.subr.bf16.mxu0 0
        %4398 = vmatpush1.bf16.msra.mxu0 %v1108
        %4399 = vmatprep.subr.bf16.mxu0 0
        %4400 = vmatpush1.bf16.msra.mxu0 0
        %4401 = vmatprep.subr.bf16.mxu0 0
        %4402 = vmatpush1.bf16.msra.mxu0 0
        %4403 = vmatprep.subr.bf16.mxu0 0
        %4404 = vmatpush1.bf16.msra.mxu0 0
        %4405 = vmatprep.subr.bf16.mxu0 0
        %4406 = vmatpush1.bf16.msra.mxu0 0
        %4407 = vmatprep.subr.bf16.mxu0 0
        %4408 = vmatpush1.bf16.msra.mxu0 0
        %4409 = vmatprep.subr.bf16.mxu0 0
        %4410 = vmatpush1.bf16.msra.mxu0 0
        %4411 = vmatprep.subr.bf16.mxu0 0
        %4412 = vmatpush1.bf16.msra.mxu0 0
        %4413 = vmatprep.subr.bf16.mxu0 0
        %4414 = vmatpush1.bf16.msra.mxu0 0
        %4415 = vmatprep.subr.bf16.mxu0 0
        %4416 = vmatpush1.bf16.msra.mxu0 0
        %4417 = vmatprep.subr.bf16.mxu0 0
        %4418 = vmatpush1.bf16.msra.mxu0 0
        %4419 = vmatprep.subr.bf16.mxu0 0
        %4420 = vmatpush1.bf16.msra.mxu0 0
        %4421 = vmatprep.subr.bf16.mxu0 0
        %4422 = vmatpush1.bf16.msra.mxu0 0
        %4423 = vmatprep.subr.bf16.mxu0 0
        %4424 = vmatpush1.bf16.msra.mxu0 0
        %4425 = vmatprep.subr.bf16.mxu0 0
        %4426 = vmatpush1.bf16.msra.mxu0 0
        %4427 = vmatprep.subr.bf16.mxu0 0
        %4428 = vmatpush1.bf16.msra.mxu0 0
        %4429 = vmatprep.mubr.bf16.mxu0 0
        %4430 = vmatmul.mubr.bf16.gmra.mrb[0].mxu0 %v4386
        %v4431 = vpop.f32.mrb[0].mxu0
        %v4432 = vadd.f32 0.0, %v4431
        %v4433 = vpop.f32.mrb[0].mxu0
        %v4434 = vpop.f32.mrb[0].mxu0
        %v4435 = vadd.f32 0.0, %v4434
        %v4436 = vpop.f32.mrb[0].mxu0
        %4437 = vmatprep.mubr.bf16.mxu0 0
        %4438 = vmatmul.mubr.bf16.gmra.mrb[0].mxu0 %v4389
        %v4439 = vpop.f32.mrb[0].mxu0
        %v4440 = vadd.f32 0.0, %v4439
        %v4441 = vpop.f32.mrb[0].mxu0
        %v4442 = vpop.f32.mrb[0].mxu0
        %v4443 = vadd.f32 0.0, %v4442
        %v4444 = vpop.f32.mrb[0].mxu0
        %4445 = vmatprep.mubr.bf16.mxu0 0
        %4446 = vmatmul.mubr.bf16.gmra.mrb[0].mxu0 %v4392
        %v4447 = vpop.f32.mrb[0].mxu0
        %v4448 = vadd.f32 0.0, %v4447
        %v4449 = vpop.f32.mrb[0].mxu0
        %v4450 = vpop.f32.mrb[0].mxu0
        %v4451 = vadd.f32 0.0, %v4450
        %v4452 = vpop.f32.mrb[0].mxu0
        %4453 = vmatprep.mubr.bf16.mxu0 0
        %4454 = vmatmul.mubr.bf16.gmra.mrb[0].mxu0 %v4395
        %v4455 = vpop.f32.mrb[0].mxu0
        %v4456 = vadd.f32 0.0, %v4455
        %v4457 = vpop.f32.mrb[0].mxu0
        %v4458 = vpop.f32.mrb[0].mxu0
        %v4459 = vadd.f32 0.0, %v4458
        %v4460 = vpop.f32.mrb[0].mxu0
        %4461 = vdwg.mxu0
        %v4462 = vsel %vm1187, %v4432, -inf
        %v4463 = vrot.slane %v4462, 4
        %v4464 = vmax.f32 %v4462, %v4463
        %v4465 = vrot.slane %v4464, 2
        %v4466 = vmax.f32 %v4464, %v4465
        %v4467 = vrot.slane %v4466, 1
        %v4468 = vmax.f32 %v4466, %v4467
        %v4469 = vsel %vm1187, %v4435, -inf
        %v4470 = vrot.slane %v4469, 4
        %v4471 = vmax.f32 %v4469, %v4470
        %v4472 = vrot.slane %v4471, 2
        %v4473 = vmax.f32 %v4471, %v4472
        %v4474 = vrot.slane %v4473, 1
        %v4475 = vmax.f32 %v4473, %v4474
        %v4476 = vsel %vm1187, %v4440, -inf
        %v4477 = vrot.slane %v4476, 4
        %v4478 = vmax.f32 %v4476, %v4477
        %v4479 = vrot.slane %v4478, 2
        %v4480 = vmax.f32 %v4478, %v4479
        %v4481 = vrot.slane %v4480, 1
        %v4482 = vmax.f32 %v4480, %v4481
        %v4483 = vsel %vm1187, %v4443, -inf
        %v4484 = vrot.slane %v4483, 4
        %v4485 = vmax.f32 %v4483, %v4484
        %v4486 = vrot.slane %v4485, 2
        %v4487 = vmax.f32 %v4485, %v4486
        %v4488 = vrot.slane %v4487, 1
        %v4489 = vmax.f32 %v4487, %v4488
        %v4490 = vsel %vm1187, %v4448, -inf
        %v4491 = vrot.slane %v4490, 4
        %v4492 = vmax.f32 %v4490, %v4491
        %v4493 = vrot.slane %v4492, 2
        %v4494 = vmax.f32 %v4492, %v4493
        %v4495 = vrot.slane %v4494, 1
        %v4496 = vmax.f32 %v4494, %v4495
        %v4497 = vsel %vm1187, %v4451, -inf
        %v4498 = vrot.slane %v4497, 4
        %v4499 = vmax.f32 %v4497, %v4498
        %v4500 = vrot.slane %v4499, 2
        %v4501 = vmax.f32 %v4499, %v4500
        %v4502 = vrot.slane %v4501, 1
        %v4503 = vmax.f32 %v4501, %v4502
        %v4504 = vsel %vm1187, %v4456, -inf
        %v4505 = vrot.slane %v4504, 4
        %v4506 = vmax.f32 %v4504, %v4505
        %v4507 = vrot.slane %v4506, 2
        %v4508 = vmax.f32 %v4506, %v4507
        %v4509 = vrot.slane %v4508, 1
        %v4510 = vmax.f32 %v4508, %v4509
        %v4511 = vsel %vm1187, %v4459, -inf
        %v4512 = vrot.slane %v4511, 4
        %v4513 = vmax.f32 %v4511, %v4512
        %v4514 = vrot.slane %v4513, 2
        %v4515 = vmax.f32 %v4513, %v4514
        %v4516 = vrot.slane %v4515, 1
        %v4517 = vmax.f32 %v4515, %v4516
        %v4518 = vsub.f32 %v4432, %v4468
        %v4519 = vsub.f32 %v4435, %v4475
        %v4520 = vsub.f32 %v4440, %v4482
        %v4521 = vsub.f32 %v4443, %v4489
        %v4522 = vsub.f32 %v4448, %v4496
        %v4523 = vsub.f32 %v4451, %v4503
        %v4524 = vsub.f32 %v4456, %v4510
        %v4525 = vsub.f32 %v4459, %v4517
        %v4526 = vmul.f32 %v4518, 1.442695
        %v4527 = vpow.pop %v4526
        %v4528 = vmul.f32 %v4519, 1.442695
        %v4529 = vpow.pop %v4528
        %v4530 = vmul.f32 %v4520, 1.442695
        %v4531 = vpow.pop %v4530
        %v4532 = vmul.f32 %v4521, 1.442695
        %v4533 = vpow.pop %v4532
        %v4534 = vmul.f32 %v4522, 1.442695
        %v4535 = vpow.pop %v4534
        %v4536 = vmul.f32 %v4523, 1.442695
        %v4537 = vpow.pop %v4536
        %v4538 = vmul.f32 %v4524, 1.442695
        %v4539 = vpow.pop %v4538
        %v4540 = vmul.f32 %v4525, 1.442695
        %v4541 = vpow.pop %v4540
        %v4542 = vsel %vm1187, %v4527, 0.0
        %v4543 = vrot.slane %v4542, 4
        %v4544 = vadd.f32 %v4542, %v4543
        %v4545 = vrot.slane %v4544, 2
        %v4546 = vadd.f32 %v4544, %v4545
        %v4547 = vrot.slane %v4546, 1
        %v4548 = vadd.f32 %v4546, %v4547
        %v4549 = vsel %vm1187, %v4529, 0.0
        %v4550 = vrot.slane %v4549, 4
        %v4551 = vadd.f32 %v4549, %v4550
        %v4552 = vrot.slane %v4551, 2
        %v4553 = vadd.f32 %v4551, %v4552
        %v4554 = vrot.slane %v4553, 1
        %v4555 = vadd.f32 %v4553, %v4554
        %v4556 = vsel %vm1187, %v4531, 0.0
        %v4557 = vrot.slane %v4556, 4
        %v4558 = vadd.f32 %v4556, %v4557
        %v4559 = vrot.slane %v4558, 2
        %v4560 = vadd.f32 %v4558, %v4559
        %v4561 = vrot.slane %v4560, 1
        %v4562 = vadd.f32 %v4560, %v4561
        %v4563 = vsel %vm1187, %v4533, 0.0
        %v4564 = vrot.slane %v4563, 4
        %v4565 = vadd.f32 %v4563, %v4564
        %v4566 = vrot.slane %v4565, 2
        %v4567 = vadd.f32 %v4565, %v4566
        %v4568 = vrot.slane %v4567, 1
        %v4569 = vadd.f32 %v4567, %v4568
        %v4570 = vsel %vm1187, %v4535, 0.0
        %v4571 = vrot.slane %v4570, 4
        %v4572 = vadd.f32 %v4570, %v4571
        %v4573 = vrot.slane %v4572, 2
        %v4574 = vadd.f32 %v4572, %v4573
        %v4575 = vrot.slane %v4574, 1
        %v4576 = vadd.f32 %v4574, %v4575
        %v4577 = vsel %vm1187, %v4537, 0.0
        %v4578 = vrot.slane %v4577, 4
        %v4579 = vadd.f32 %v4577, %v4578
        %v4580 = vrot.slane %v4579, 2
        %v4581 = vadd.f32 %v4579, %v4580
        %v4582 = vrot.slane %v4581, 1
        %v4583 = vadd.f32 %v4581, %v4582
        %v4584 = vsel %vm1187, %v4539, 0.0
        %v4585 = vrot.slane %v4584, 4
        %v4586 = vadd.f32 %v4584, %v4585
        %v4587 = vrot.slane %v4586, 2
        %v4588 = vadd.f32 %v4586, %v4587
        %v4589 = vrot.slane %v4588, 1
        %v4590 = vadd.f32 %v4588, %v4589
        %v4591 = vsel %vm1187, %v4541, 0.0
        %v4592 = vrot.slane %v4591, 4
        %v4593 = vadd.f32 %v4591, %v4592
        %v4594 = vrot.slane %v4593, 2
        %v4595 = vadd.f32 %v4593, %v4594
        %v4596 = vrot.slane %v4595, 1
        %v4597 = vadd.f32 %v4595, %v4596
        %v4598 = vrcp.pop %v4548
        %v4599 = vmul.f32 %v4527, %v4598
        %v4600 = vrcp.pop %v4555
        %v4601 = vmul.f32 %v4529, %v4600
        %v4602 = vrcp.pop %v4562
        %v4603 = vmul.f32 %v4531, %v4602
        %v4604 = vrcp.pop %v4569
        %v4605 = vmul.f32 %v4533, %v4604
        %v4606 = vrcp.pop %v4576
        %v4607 = vmul.f32 %v4535, %v4606
        %v4608 = vrcp.pop %v4583
        %v4609 = vmul.f32 %v4537, %v4608
        %v4610 = vrcp.pop %v4590
        %v4611 = vmul.f32 %v4539, %v4610
        %v4612 = vrcp.pop %v4597
        %v4613 = vmul.f32 %v4541, %v4612
        %v4614 = vpack.c.bf16 %v4601, %v4599
        %v4615 = vpack.c.bf16 %v4605, %v4603
        %v4616 = vpack.c.bf16 %v4609, %v4607
        %v4617 = vpack.c.bf16 %v4613, %v4611
        %v4619 = vsel %vm1187, %v4614, 0
        %v4622 = vsel %vm1187, %v4615, 0
        %v4625 = vsel %vm1187, %v4616, 0
        %v4628 = vsel %vm1187, %v4617, 0
        %4630 = vmatprep.subr.bf16.mxu0 0
        %4631 = vmatpush1.bf16.msra.mxu0 %v1457
        %4632 = vmatprep.subr.bf16.mxu0 0
        %4633 = vmatpush1.bf16.msra.mxu0 0
        %4634 = vmatprep.subr.bf16.mxu0 0
        %4635 = vmatpush1.bf16.msra.mxu0 0
        %4636 = vmatprep.subr.bf16.mxu0 0
        %4637 = vmatpush1.bf16.msra.mxu0 0
        %4638 = vmatprep.subr.bf16.mxu0 0
        %4639 = vmatpush1.bf16.msra.mxu0 0
        %4640 = vmatprep.subr.bf16.mxu0 0
        %4641 = vmatpush1.bf16.msra.mxu0 0
        %4642 = vmatprep.subr.bf16.mxu0 0
        %4643 = vmatpush1.bf16.msra.mxu0 0
        %4644 = vmatprep.subr.bf16.mxu0 0
        %4645 = vmatpush1.bf16.msra.mxu0 0
        %4646 = vmatprep.subr.bf16.mxu0 0
        %4647 = vmatpush1.bf16.msra.mxu0 0
        %4648 = vmatprep.subr.bf16.mxu0 0
        %4649 = vmatpush1.bf16.msra.mxu0 0
        %4650 = vmatprep.subr.bf16.mxu0 0
        %4651 = vmatpush1.bf16.msra.mxu0 0
        %4652 = vmatprep.subr.bf16.mxu0 0
        %4653 = vmatpush1.bf16.msra.mxu0 0
        %4654 = vmatprep.subr.bf16.mxu0 0
        %4655 = vmatpush1.bf16.msra.mxu0 0
        %4656 = vmatprep.subr.bf16.mxu0 0
        %4657 = vmatpush1.bf16.msra.mxu0 0
        %4658 = vmatprep.subr.bf16.mxu0 0
        %4659 = vmatpush1.bf16.msra.mxu0 0
        %4660 = vmatprep.subr.bf16.mxu0 0
        %4661 = vmatpush1.bf16.msra.mxu0 0
        %4662 = vmatprep.mubr.bf16.mxu0 0
        %4663 = vmatmul.mubr.bf16.gmra.mrb[0].mxu0 %v4619
        %v4664 = vpop.f32.mrb[0].mxu0
        %v4665 = vadd.f32 0.0, %v4664
        %v4666 = vpop.f32.mrb[0].mxu0
        %v4667 = vpop.f32.mrb[0].mxu0
        %v4668 = vadd.f32 0.0, %v4667
        %v4669 = vpop.f32.mrb[0].mxu0
        %4670 = vmatprep.mubr.bf16.mxu0 0
        %4671 = vmatmul.mubr.bf16.gmra.mrb[0].mxu0 %v4622
        %v4672 = vpop.f32.mrb[0].mxu0
        %v4673 = vadd.f32 0.0, %v4672
        %v4674 = vpop.f32.mrb[0].mxu0
        %v4675 = vpop.f32.mrb[0].mxu0
        %v4676 = vadd.f32 0.0, %v4675
        %v4677 = vpop.f32.mrb[0].mxu0
        %4678 = vmatprep.mubr.bf16.mxu0 0
        %4679 = vmatmul.mubr.bf16.gmra.mrb[0].mxu0 %v4625
        %v4680 = vpop.f32.mrb[0].mxu0
        %v4681 = vadd.f32 0.0, %v4680
        %v4682 = vpop.f32.mrb[0].mxu0
        %v4683 = vpop.f32.mrb[0].mxu0
        %v4684 = vadd.f32 0.0, %v4683
        %v4685 = vpop.f32.mrb[0].mxu0
        %4686 = vmatprep.mubr.bf16.mxu0 0
        %4687 = vmatmul.mubr.bf16.gmra.mrb[0].mxu0 %v4628
        %v4688 = vpop.f32.mrb[0].mxu0
        %v4689 = vadd.f32 0.0, %v4688
        %v4690 = vpop.f32.mrb[0].mxu0
        %v4691 = vpop.f32.mrb[0].mxu0
        %v4692 = vadd.f32 0.0, %v4691
        %v4693 = vpop.f32.mrb[0].mxu0
        %4694 = vdwg.mxu0
        %v4695 = vmul.f32 %v4665, %v4278
        %v4696 = vmul.f32 %v4668, %v4278
        %v4697 = vmul.f32 %v4673, %v4278
        %v4698 = vmul.f32 %v4676, %v4278
        %v4699 = vmul.f32 %v4681, %v4278
        %v4700 = vmul.f32 %v4684, %v4278
        %v4701 = vmul.f32 %v4689, %v4278
        %v4702 = vmul.f32 %v4692, %v4278
        %v4703 = vsel %vm847, %v4695, 0.0
        %v4704 = vrot.slane %v4703, 4
        %v4705 = vadd.f32 %v4703, %v4704
        %v4706 = vrot.slane %v4705, 2
        %v4707 = vadd.f32 %v4705, %v4706
        %v4708 = vrot.slane %v4707, 1
        %v4709 = vadd.f32 %v4707, %v4708
        %v4710 = vsel %vm847, %v4696, 0.0
        %v4711 = vrot.slane %v4710, 4
        %v4712 = vadd.f32 %v4710, %v4711
        %v4713 = vrot.slane %v4712, 2
        %v4714 = vadd.f32 %v4712, %v4713
        %v4715 = vrot.slane %v4714, 1
        %v4716 = vadd.f32 %v4714, %v4715
        %v4717 = vsel %vm847, %v4697, 0.0
        %v4718 = vrot.slane %v4717, 4
        %v4719 = vadd.f32 %v4717, %v4718
        %v4720 = vrot.slane %v4719, 2
        %v4721 = vadd.f32 %v4719, %v4720
        %v4722 = vrot.slane %v4721, 1
        %v4723 = vadd.f32 %v4721, %v4722
        %v4724 = vsel %vm847, %v4698, 0.0
        %v4725 = vrot.slane %v4724, 4
        %v4726 = vadd.f32 %v4724, %v4725
        %v4727 = vrot.slane %v4726, 2
        %v4728 = vadd.f32 %v4726, %v4727
        %v4729 = vrot.slane %v4728, 1
        %v4730 = vadd.f32 %v4728, %v4729
        %v4731 = vsel %vm847, %v4699, 0.0
        %v4732 = vrot.slane %v4731, 4
        %v4733 = vadd.f32 %v4731, %v4732
        %v4734 = vrot.slane %v4733, 2
        %v4735 = vadd.f32 %v4733, %v4734
        %v4736 = vrot.slane %v4735, 1
        %v4737 = vadd.f32 %v4735, %v4736
        %v4738 = vsel %vm847, %v4700, 0.0
        %v4739 = vrot.slane %v4738, 4
        %v4740 = vadd.f32 %v4738, %v4739
        %v4741 = vrot.slane %v4740, 2
        %v4742 = vadd.f32 %v4740, %v4741
        %v4743 = vrot.slane %v4742, 1
        %v4744 = vadd.f32 %v4742, %v4743
        %v4745 = vsel %vm847, %v4701, 0.0
        %v4746 = vrot.slane %v4745, 4
        %v4747 = vadd.f32 %v4745, %v4746
        %v4748 = vrot.slane %v4747, 2
        %v4749 = vadd.f32 %v4747, %v4748
        %v4750 = vrot.slane %v4749, 1
        %v4751 = vadd.f32 %v4749, %v4750
        %v4752 = vsel %vm847, %v4702, 0.0
        %v4753 = vrot.slane %v4752, 4
        %v4754 = vadd.f32 %v4752, %v4753
        %v4755 = vrot.slane %v4754, 2
        %v4756 = vadd.f32 %v4754, %v4755
        %v4757 = vrot.slane %v4756, 1
        %v4758 = vadd.f32 %v4756, %v4757
        %s4759 = scalar_lea.vmem %s10, 24
        %v4760 = vld [vmem:[%s4759] sm:$0xf]
        %v4761 = vld [vmem:[%s4759 + $0x4] sm:$0xf]
        %s4762 = scalar_lea.vmem %s11, 3
        %v4763 = vld [vmem:[%s4762] sm:$0x1]
        %v4764 = vpack.c.bf16 %v4709, %v4709
        %v4765 = vpack.c.bf16 %v4716, %v4716
        %v4766 = vpack.c.bf16 %v4723, %v4723
        %v4767 = vpack.c.bf16 %v4730, %v4730
        %v4768 = vpack.c.bf16 %v4737, %v4737
        %v4769 = vpack.c.bf16 %v4744, %v4744
        %v4770 = vpack.c.bf16 %v4751, %v4751
        %v4771 = vpack.c.bf16 %v4758, %v4758
        %v4773 = vlaneseq
        %v4774 = vshrl.u32 %v4773, 7
        %v4775 = vsub.s32 0, %v4774
        %v4776 = vrot.slane %v4763, %v4775
        %v4786 = vunpack.c.l.b16 %v4764
        %v4787 = vunpack.c.l.b16 %v4765
        %v4788 = vunpack.c.l.b16 %v4766
        %v4789 = vunpack.c.l.b16 %v4767
        %v4790 = vunpack.c.l.b16 %v4768
        %v4791 = vunpack.c.l.b16 %v4769
        %v4792 = vunpack.c.l.b16 %v4770
        %v4793 = vunpack.c.l.b16 %v4771
        %v4794 = vsel %vm1423, %v4787, %v4786
        %v4795 = vsel %vm1425, %v4788, %v4794
        %v4796 = vsel %vm1427, %v4789, %v4795
        %v4797 = vsel %vm1429, %v4790, %v4796
        %v4798 = vsel %vm1431, %v4791, %v4797
        %v4799 = vsel %vm1433, %v4792, %v4798
        %v4800 = vsel %vm1435, %v4793, %v4799
        %v4801 = vpack.c.b16 %v4800, %v4800
        %v4804 = vunpack.c.l.b16 %v4760
        %v4805 = vunpack.c.l.b16 %v4761
        %v4806 = vpack.c.b16 %v4805, %v4804
        %v4809 = vsel %vm847, %v4801, 0
        %4811 = vmatprep.subr.bf16.mxu0 0
        %4812 = vmatpush1.bf16.msra.mxu0 %v4806
        %4813 = vmatprep.subr.bf16.mxu0 0
        %4814 = vmatpush1.bf16.msra.mxu0 0
        %4815 = vmatprep.subr.bf16.mxu0 0
        %4816 = vmatpush1.bf16.msra.mxu0 0
        %4817 = vmatprep.subr.bf16.mxu0 0
        %4818 = vmatpush1.bf16.msra.mxu0 0
        %4819 = vmatprep.subr.bf16.mxu0 0
        %4820 = vmatpush1.bf16.msra.mxu0 0
        %4821 = vmatprep.subr.bf16.mxu0 0
        %4822 = vmatpush1.bf16.msra.mxu0 0
        %4823 = vmatprep.subr.bf16.mxu0 0
        %4824 = vmatpush1.bf16.msra.mxu0 0
        %4825 = vmatprep.subr.bf16.mxu0 0
        %4826 = vmatpush1.bf16.msra.mxu0 0
        %4827 = vmatprep.subr.bf16.mxu0 0
        %4828 = vmatpush1.bf16.msra.mxu0 0
        %4829 = vmatprep.subr.bf16.mxu0 0
        %4830 = vmatpush1.bf16.msra.mxu0 0
        %4831 = vmatprep.subr.bf16.mxu0 0
        %4832 = vmatpush1.bf16.msra.mxu0 0
        %4833 = vmatprep.subr.bf16.mxu0 0
        %4834 = vmatpush1.bf16.msra.mxu0 0
        %4835 = vmatprep.subr.bf16.mxu0 0
        %4836 = vmatpush1.bf16.msra.mxu0 0
        %4837 = vmatprep.subr.bf16.mxu0 0
        %4838 = vmatpush1.bf16.msra.mxu0 0
        %4839 = vmatprep.subr.bf16.mxu0 0
        %4840 = vmatpush1.bf16.msra.mxu0 0
        %4841 = vmatprep.subr.bf16.mxu0 0
        %4842 = vmatpush1.bf16.msra.mxu0 0
        %4843 = vmatprep.mubr.bf16.mxu0 0
        %4844 = vmatmul.mubr.bf16.gmra.mrb[0].mxu0 %v4809
        %v4845 = vpop.f32.mrb[0].mxu0
        %v4846 = vadd.f32 %v4776, %v4845
        %v4847 = vpop.f32.mrb[0].mxu0
        %v4848 = vpop.f32.mrb[0].mxu0
        %v4849 = vpop.f32.mrb[0].mxu0
        %4850 = vdwg.mxu0
        %v4851 = vadd.f32 %v4106, %v4846
        %s4852 = scalar_lea.vmem %s16, 3
        %v4853 = vld [vmem:[%s4852] sm:$0x1]
        %s4854 = scalar_lea.vmem %s17, 3
        %v4855 = vld [vmem:[%s4854] sm:$0x1]
        %v4856 = vsel %vm847, %v4851, 0.0
        %4857 = vadd.xlane.f32.xlu0 %v4856
        %v4858 = vpop.xlane.xlu0 %4857
        %v4859 = vmul.f32 %v4858, %v1684
        %v4860 = vsub.f32 %v4851, %v4859
        %v4861 = vmul.f32 %v4860, %v4860
        %v4862 = vsel %vm847, %v4861, 0.0
        %4863 = vadd.xlane.f32.xlu0 %v4862
        %v4864 = vpop.xlane.xlu0 %4863
        %v4865 = vmul.f32 %v4864, %v1684
        %v4866 = vadd.f32 %v4865, 1e-05
        %v4867 = vrsqrt.pop %v4866
        %v4868 = vmul.f32 %v4860, %v4867
        %v4870 = vlaneseq
        %v4871 = vshrl.u32 %v4870, 7
        %v4872 = vsub.s32 0, %v4871
        %v4873 = vrot.slane %v4853, %v4872
        %v4875 = vmul.f32 %v4868, %v4873
        %v4877 = vlaneseq
        %v4878 = vshrl.u32 %v4877, 7
        %v4879 = vsub.s32 0, %v4878
        %v4880 = vrot.slane %v4855, %v4879
        %v4882 = vadd.f32 %v4875, %v4880
        %s4883 = scalar_lea.vmem %s12, 48
        %v4884 = vld [vmem:[%s4883] sm:$0xff]
        %v4885 = vld [vmem:[%s4883 + $0x8] sm:$0xff]
        %s4886 = scalar_lea.vmem %s13, 6
        %v4887 = vld [vmem:[%s4886] sm:$0x3]
        %v4888 = vpack.c.bf16 %v4882, %v4882
        %v4890 = vlaneseq
        %v4891 = vshrl.u32 %v4890, 7
        %v4892 = vsub.s32 0, %v4891
        %v4893 = vrot.slane %v4887, %v4892
        %v4894 = vlaneseq
        %v4895 = vshrl.u32 %v4894, 7
        %v4896 = vsub.s32 1, %v4895
        %v4897 = vrot.slane %v4887, %v4896
        %v4902 = vunpack.c.l.b16 %v4884
        %v4903 = vunpack.c.h.b16 %v4884
        %v4904 = vunpack.c.l.b16 %v4885
        %v4905 = vunpack.c.h.b16 %v4885
        %v4906 = vpack.c.b16 %v4904, %v4902
        %v4907 = vpack.c.b16 %v4905, %v4903
        %v4911 = vsel %vm847, %v4888, 0
        %4913 = vmatprep.subr.bf16.mxu0 %v4907
        %4914 = vmatpush1.bf16.msra.mxu0 %v4906
        %4915 = vmatprep.subr.bf16.mxu0 0
        %4916 = vmatpush1.bf16.msra.mxu0 0
        %4917 = vmatprep.subr.bf16.mxu0 0
        %4918 = vmatpush1.bf16.msra.mxu0 0
        %4919 = vmatprep.subr.bf16.mxu0 0
        %4920 = vmatpush1.bf16.msra.mxu0 0
        %4921 = vmatprep.subr.bf16.mxu0 0
        %4922 = vmatpush1.bf16.msra.mxu0 0
        %4923 = vmatprep.subr.bf16.mxu0 0
        %4924 = vmatpush1.bf16.msra.mxu0 0
        %4925 = vmatprep.subr.bf16.mxu0 0
        %4926 = vmatpush1.bf16.msra.mxu0 0
        %4927 = vmatprep.subr.bf16.mxu0 0
        %4928 = vmatpush1.bf16.msra.mxu0 0
        %4929 = vmatprep.subr.bf16.mxu0 0
        %4930 = vmatpush1.bf16.msra.mxu0 0
        %4931 = vmatprep.subr.bf16.mxu0 0
        %4932 = vmatpush1.bf16.msra.mxu0 0
        %4933 = vmatprep.subr.bf16.mxu0 0
        %4934 = vmatpush1.bf16.msra.mxu0 0
        %4935 = vmatprep.subr.bf16.mxu0 0
        %4936 = vmatpush1.bf16.msra.mxu0 0
        %4937 = vmatprep.subr.bf16.mxu0 0
        %4938 = vmatpush1.bf16.msra.mxu0 0
        %4939 = vmatprep.subr.bf16.mxu0 0
        %4940 = vmatpush1.bf16.msra.mxu0 0
        %4941 = vmatprep.subr.bf16.mxu0 0
        %4942 = vmatpush1.bf16.msra.mxu0 0
        %4943 = vmatprep.subr.bf16.mxu0 0
        %4944 = vmatpush1.bf16.msra.mxu0 0
        %4945 = vmatprep.mubr.bf16.mxu0 0
        %4946 = vmatmul.mubr.bf16.gmra.mrb[0].mxu0 %v4911
        %v4947 = vpop.f32.mrb[0].mxu0
        %v4948 = vadd.f32 %v4893, %v4947
        %v4949 = vpop.f32.mrb[0].mxu0
        %v4950 = vadd.f32 %v4897, %v4949
        %v4951 = vpop.f32.mrb[0].mxu0
        %v4952 = vpop.f32.mrb[0].mxu0
        %4953 = vdwg.mxu0
        %v4954 = vmax.f32 %v4948, 0.0
        %v4955 = vmax.f32 %v4950, 0.0
        %s4956 = scalar_lea.vmem %s14, 384
        %v4957 = vld [vmem:[%s4956] sm:$0xf]
        %v4958 = vld [vmem:[%s4956 + $0x4] sm:$0xf]
        %v4959 = vld [vmem:[%s4956 + $0x8] sm:$0xf]
        %v4960 = vld [vmem:[%s4956 + $0xc] sm:$0xf]
        %v4961 = vld [vmem:[%s4956 + $0x10] sm:$0xf]
        %v4962 = vld [vmem:[%s4956 + $0x14] sm:$0xf]
        %v4963 = vld [vmem:[%s4956 + $0x18] sm:$0xf]
        %v4964 = vld [vmem:[%s4956 + $0x1c] sm:$0xf]
        %v4965 = vld [vmem:[%s4956 + $0x20] sm:$0xf]
        %v4966 = vld [vmem:[%s4956 + $0x24] sm:$0xf]
        %v4967 = vld [vmem:[%s4956 + $0x28] sm:$0xf]
        %v4968 = vld [vmem:[%s4956 + $0x2c] sm:$0xf]
        %v4969 = vld [vmem:[%s4956 + $0x30] sm:$0xf]
        %v4970 = vld [vmem:[%s4956 + $0x34] sm:$0xf]
        %v4971 = vld [vmem:[%s4956 + $0x38] sm:$0xf]
        %v4972 = vld [vmem:[%s4956 + $0x3c] sm:$0xf]
        %v4973 = vld [vmem:[%s4956 + $0x40] sm:$0xf]
        %v4974 = vld [vmem:[%s4956 + $0x44] sm:$0xf]
        %v4975 = vld [vmem:[%s4956 + $0x48] sm:$0xf]
        %v4976 = vld [vmem:[%s4956 + $0x4c] sm:$0xf]
        %v4977 = vld [vmem:[%s4956 + $0x50] sm:$0xf]
        %v4978 = vld [vmem:[%s4956 + $0x54] sm:$0xf]
        %v4979 = vld [vmem:[%s4956 + $0x58] sm:$0xf]
        %v4980 = vld [vmem:[%s4956 + $0x5c] sm:$0xf]
        %v4981 = vld [vmem:[%s4956 + $0x60] sm:$0xf]
        %v4982 = vld [vmem:[%s4956 + $0x64] sm:$0xf]
        %v4983 = vld [vmem:[%s4956 + $0x68] sm:$0xf]
        %v4984 = vld [vmem:[%s4956 + $0x6c] sm:$0xf]
        %v4985 = vld [vmem:[%s4956 + $0x70] sm:$0xf]
        %v4986 = vld [vmem:[%s4956 + $0x74] sm:$0xf]
        %v4987 = vld [vmem:[%s4956 + $0x78] sm:$0xf]
        %v4988 = vld [vmem:[%s4956 + $0x7c] sm:$0xf]
        %s4989 = scalar_lea.vmem %s15, 3
        %v4990 = vld [vmem:[%s4989] sm:$0x1]
        %v4991 = vpack.c.bf16 %v4954, %v4954
        %v4992 = vpack.c.bf16 %v4955, %v4955
        %v4994 = vlaneseq
        %v4995 = vshrl.u32 %v4994, 7
        %v4996 = vsub.s32 0, %v4995
        %v4997 = vrot.slane %v4990, %v4996
        %v5031 = vunpack.c.l.b16 %v4957
        %v5032 = vunpack.c.l.b16 %v4958
        %v5033 = vunpack.c.l.b16 %v4959
        %v5034 = vunpack.c.l.b16 %v4960
        %v5035 = vunpack.c.l.b16 %v4961
        %v5036 = vunpack.c.l.b16 %v4962
        %v5037 = vunpack.c.l.b16 %v4963
        %v5038 = vunpack.c.l.b16 %v4964
        %v5039 = vunpack.c.l.b16 %v4965
        %v5040 = vunpack.c.l.b16 %v4966
        %v5041 = vunpack.c.l.b16 %v4967
        %v5042 = vunpack.c.l.b16 %v4968
        %v5043 = vunpack.c.l.b16 %v4969
        %v5044 = vunpack.c.l.b16 %v4970
        %v5045 = vunpack.c.l.b16 %v4971
        %v5046 = vunpack.c.l.b16 %v4972
        %v5047 = vunpack.c.l.b16 %v4973
        %v5048 = vunpack.c.l.b16 %v4974
        %v5049 = vunpack.c.l.b16 %v4975
        %v5050 = vunpack.c.l.b16 %v4976
        %v5051 = vunpack.c.l.b16 %v4977
        %v5052 = vunpack.c.l.b16 %v4978
        %v5053 = vunpack.c.l.b16 %v4979
        %v5054 = vunpack.c.l.b16 %v4980
        %v5055 = vunpack.c.l.b16 %v4981
        %v5056 = vunpack.c.l.b16 %v4982
        %v5057 = vunpack.c.l.b16 %v4983
        %v5058 = vunpack.c.l.b16 %v4984
        %v5059 = vunpack.c.l.b16 %v4985
        %v5060 = vunpack.c.l.b16 %v4986
        %v5061 = vunpack.c.l.b16 %v4987
        %v5062 = vunpack.c.l.b16 %v4988
        %v5063 = vpack.c.b16 %v5032, %v5031
        %v5064 = vpack.c.b16 %v5034, %v5033
        %v5065 = vpack.c.b16 %v5036, %v5035
        %v5066 = vpack.c.b16 %v5038, %v5037
        %v5067 = vpack.c.b16 %v5040, %v5039
        %v5068 = vpack.c.b16 %v5042, %v5041
        %v5069 = vpack.c.b16 %v5044, %v5043
        %v5070 = vpack.c.b16 %v5046, %v5045
        %v5071 = vpack.c.b16 %v5048, %v5047
        %v5072 = vpack.c.b16 %v5050, %v5049
        %v5073 = vpack.c.b16 %v5052, %v5051
        %v5074 = vpack.c.b16 %v5054, %v5053
        %v5075 = vpack.c.b16 %v5056, %v5055
        %v5076 = vpack.c.b16 %v5058, %v5057
        %v5077 = vpack.c.b16 %v5060, %v5059
        %v5078 = vpack.c.b16 %v5062, %v5061
        %5095 = vmatprep.subr.bf16.mxu0 0
        %5096 = vmatpush1.bf16.msra.mxu0 %v5063
        %5097 = vmatprep.subr.bf16.mxu0 0
        %5098 = vmatpush1.bf16.msra.mxu0 %v5064
        %5099 = vmatprep.subr.bf16.mxu0 0
        %5100 = vmatpush1.bf16.msra.mxu0 %v5065
        %5101 = vmatprep.subr.bf16.mxu0 0
        %5102 = vmatpush1.bf16.msra.mxu0 %v5066
        %5103 = vmatprep.subr.bf16.mxu0 0
        %5104 = vmatpush1.bf16.msra.mxu0 %v5067
        %5105 = vmatprep.subr.bf16.mxu0 0
        %5106 = vmatpush1.bf16.msra.mxu0 %v5068
        %5107 = vmatprep.subr.bf16.mxu0 0
        %5108 = vmatpush1.bf16.msra.mxu0 %v5069
        %5109 = vmatprep.subr.bf16.mxu0 0
        %5110 = vmatpush1.bf16.msra.mxu0 %v5070
        %5111 = vmatprep.subr.bf16.mxu0 0
        %5112 = vmatpush1.bf16.msra.mxu0 %v5071
        %5113 = vmatprep.subr.bf16.mxu0 0
        %5114 = vmatpush1.bf16.msra.mxu0 %v5072
        %5115 = vmatprep.subr.bf16.mxu0 0
        %5116 = vmatpush1.bf16.msra.mxu0 %v5073
        %5117 = vmatprep.subr.bf16.mxu0 0
        %5118 = vmatpush1.bf16.msra.mxu0 %v5074
        %5119 = vmatprep.subr.bf16.mxu0 0
        %5120 = vmatpush1.bf16.msra.mxu0 %v5075
        %5121 = vmatprep.subr.bf16.mxu0 0
        %5122 = vmatpush1.bf16.msra.mxu0 %v5076
        %5123 = vmatprep.subr.bf16.mxu0 0
        %5124 = vmatpush1.bf16.msra.mxu0 %v5077
        %5125 = vmatprep.subr.bf16.mxu0 0
        %5126 = vmatpush1.bf16.msra.mxu0 %v5078
        %5127 = vmatprep.mubr.bf16.mxu0 %v4992
        %5128 = vmatmul.mubr.bf16.gmra.mrb[0].mxu0 %v4991
        %v5129 = vpop.f32.mrb[0].mxu0
        %v5130 = vadd.f32 %v4997, %v5129
        %v5131 = vpop.f32.mrb[0].mxu0
        %v5132 = vpop.f32.mrb[0].mxu0
        %v5133 = vpop.f32.mrb[0].mxu0
        %5134 = vdwg.mxu0
        %v5135 = vadd.f32 %v4882, %v5130
        %s5136 = scalar_lea.vmem %s18, 3
        %v5137 = vld [vmem:[%s5136] sm:$0x1]
        %s5138 = scalar_lea.vmem %s19, 3
        %v5139 = vld [vmem:[%s5138] sm:$0x1]
        %v5140 = vsel %vm847, %v5135, 0.0
        %5141 = vadd.xlane.f32.xlu0 %v5140
        %v5142 = vpop.xlane.xlu0 %5141
        %v5143 = vmul.f32 %v5142, %v1684
        %v5144 = vsub.f32 %v5135, %v5143
        %v5145 = vmul.f32 %v5144, %v5144
        %v5146 = vsel %vm847, %v5145, 0.0
        %5147 = vadd.xlane.f32.xlu0 %v5146
        %v5148 = vpop.xlane.xlu0 %5147
        %v5149 = vmul.f32 %v5148, %v1684
        %v5150 = vadd.f32 %v5149, 1e-05
        %v5151 = vrsqrt.pop %v5150
        %v5152 = vmul.f32 %v5144, %v5151
        %v5154 = vlaneseq
        %v5155 = vshrl.u32 %v5154, 7
        %v5156 = vsub.s32 0, %v5155
        %v5157 = vrot.slane %v5137, %v5156
        %v5159 = vmul.f32 %v5152, %v5157
        %v5161 = vlaneseq
        %v5162 = vshrl.u32 %v5161, 7
        %v5163 = vsub.s32 0, %v5162
        %v5164 = vrot.slane %v5139, %v5163
        %v5166 = vadd.f32 %v5159, %v5164
        %v5167 = vsel %vm847, %v5166, 0.0
        %v5168 = vrot.slane %v5167, 4
        %v5169 = vadd.f32 %v5167, %v5168
        %v5170 = vrot.slane %v5169, 2
        %v5171 = vadd.f32 %v5169, %v5170
        %v5172 = vrot.slane %v5171, 1
        %v5173 = vadd.f32 %v5171, %v5172
        %v5174 = vmul.f32 %v5173, %v1364
        %v5175 = vld [vmem:[%s20] sm:$0xf]
        %v5176 = vld [vmem:[%s20 + $0x4] sm:$0xf]
        %v5177 = vld [vmem:[%s21] sm:$0x1]
        %v5178 = vpack.c.bf16 %v5174, %v5174
        %v5181 = vunpack.c.l.b16 %v5175
        %v5182 = vunpack.c.l.b16 %v5176
        %v5183 = vpack.c.b16 %v5182, %v5181
        %v5186 = vsel %vm847, %v5178, 0
        %5188 = vmatprep.subr.bf16.mxu0 0
        %5189 = vmatpush1.bf16.msra.mxu0 %v5183
        %5190 = vmatprep.subr.bf16.mxu0 0
        %5191 = vmatpush1.bf16.msra.mxu0 0
        %5192 = vmatprep.subr.bf16.mxu0 0
        %5193 = vmatpush1.bf16.msra.mxu0 0
        %5194 = vmatprep.subr.bf16.mxu0 0
        %5195 = vmatpush1.bf16.msra.mxu0 0
        %5196 = vmatprep.subr.bf16.mxu0 0
        %5197 = vmatpush1.bf16.msra.mxu0 0
        %5198 = vmatprep.subr.bf16.mxu0 0
        %5199 = vmatpush1.bf16.msra.mxu0 0
        %5200 = vmatprep.subr.bf16.mxu0 0
        %5201 = vmatpush1.bf16.msra.mxu0 0
        %5202 = vmatprep.subr.bf16.mxu0 0
        %5203 = vmatpush1.bf16.msra.mxu0 0
        %5204 = vmatprep.subr.bf16.mxu0 0
        %5205 = vmatpush1.bf16.msra.mxu0 0
        %5206 = vmatprep.subr.bf16.mxu0 0
        %5207 = vmatpush1.bf16.msra.mxu0 0
        %5208 = vmatprep.subr.bf16.mxu0 0
        %5209 = vmatpush1.bf16.msra.mxu0 0
        %5210 = vmatprep.subr.bf16.mxu0 0
        %5211 = vmatpush1.bf16.msra.mxu0 0
        %5212 = vmatprep.subr.bf16.mxu0 0
        %5213 = vmatpush1.bf16.msra.mxu0 0
        %5214 = vmatprep.subr.bf16.mxu0 0
        %5215 = vmatpush1.bf16.msra.mxu0 0
        %5216 = vmatprep.subr.bf16.mxu0 0
        %5217 = vmatpush1.bf16.msra.mxu0 0
        %5218 = vmatprep.subr.bf16.mxu0 0
        %5219 = vmatpush1.bf16.msra.mxu0 0
        %5220 = vmatprep.mubr.bf16.mxu0 0
        %5221 = vmatmul.mubr.bf16.gmra.mrb[0].mxu0 %v5186
        %v5222 = vpop.f32.mrb[0].mxu0
        %v5223 = vadd.f32 %v5177, %v5222
        %v5224 = vpop.f32.mrb[0].mxu0
        %v5225 = vpop.f32.mrb[0].mxu0
        %v5226 = vpop.f32.mrb[0].mxu0
        %5227 = vdwg.mxu0
        %v5228 = vld [vmem:[%s22] sm:$0x1]
        %v5229 = vld [vmem:[%s23] sm:$0x1]
        %vm5230 = vcmask 1040384
        %v5231 = vsel %vm5230, %v5223, 0.0
        %5232 = vadd.xlane.f32.xlu0 %v5231
        %v5233 = vpop.xlane.xlu0 %5232
        %v5234 = vrcp.pop 128.0
        %v5235 = vmul.f32 %v5233, %v5234
        %v5236 = vsub.f32 %v5223, %v5235
        %v5237 = vmul.f32 %v5236, %v5236
        %v5238 = vsel %vm5230, %v5237, 0.0
        %5239 = vadd.xlane.f32.xlu0 %v5238
        %v5240 = vpop.xlane.xlu0 %5239
        %v5241 = vmul.f32 %v5240, %v5234
        %v5242 = vadd.f32 %v5241, 1e-05
        %v5243 = vrsqrt.pop %v5242
        %v5244 = vmul.f32 %v5236, %v5243
        %v5245 = vmul.f32 %v5244, %v5228
        %v5246 = vadd.f32 %v5245, %v5229
        %v5247 = vld [vmem:[%s24] sm:$0xf]
        %v5248 = vld [vmem:[%s24 + $0x4] sm:$0xf]
        %v5249 = vld [vmem:[%s24 + $0x8] sm:$0xf]
        %v5250 = vld [vmem:[%s24 + $0xc] sm:$0xf]
        %v5251 = vld [vmem:[%s24 + $0x10] sm:$0xf]
        %v5252 = vld [vmem:[%s24 + $0x14] sm:$0xf]
        %v5253 = vld [vmem:[%s24 + $0x18] sm:$0xf]
        %v5254 = vld [vmem:[%s24 + $0x1c] sm:$0xf]
        %v5255 = vld [vmem:[%s24 + $0x20] sm:$0xf]
        %v5256 = vld [vmem:[%s24 + $0x24] sm:$0xf]
        %v5257 = vld [vmem:[%s24 + $0x28] sm:$0xf]
        %v5258 = vld [vmem:[%s24 + $0x2c] sm:$0xf]
        %v5259 = vld [vmem:[%s24 + $0x30] sm:$0xf]
        %v5260 = vld [vmem:[%s24 + $0x34] sm:$0xf]
        %v5261 = vld [vmem:[%s24 + $0x38] sm:$0xf]
        %v5262 = vld [vmem:[%s24 + $0x3c] sm:$0xf]
        %v5263 = vld [vmem:[%s25] sm:$0x1]
        %v5264 = vpack.c.bf16 %v5246, %v5246
        %v5281 = vunpack.c.l.b16 %v5247
        %v5282 = vunpack.c.l.b16 %v5248
        %v5283 = vunpack.c.l.b16 %v5249
        %v5284 = vunpack.c.l.b16 %v5250
        %v5285 = vunpack.c.l.b16 %v5251
        %v5286 = vunpack.c.l.b16 %v5252
        %v5287 = vunpack.c.l.b16 %v5253
        %v5288 = vunpack.c.l.b16 %v5254
        %v5289 = vunpack.c.l.b16 %v5255
        %v5290 = vunpack.c.l.b16 %v5256
        %v5291 = vunpack.c.l.b16 %v5257
        %v5292 = vunpack.c.l.b16 %v5258
        %v5293 = vunpack.c.l.b16 %v5259
        %v5294 = vunpack.c.l.b16 %v5260
        %v5295 = vunpack.c.l.b16 %v5261
        %v5296 = vunpack.c.l.b16 %v5262
        %v5297 = vpack.c.b16 %v5282, %v5281
        %v5298 = vpack.c.b16 %v5284, %v5283
        %v5299 = vpack.c.b16 %v5286, %v5285
        %v5300 = vpack.c.b16 %v5288, %v5287
        %v5301 = vpack.c.b16 %v5290, %v5289
        %v5302 = vpack.c.b16 %v5292, %v5291
        %v5303 = vpack.c.b16 %v5294, %v5293
        %v5304 = vpack.c.b16 %v5296, %v5295
        %5313 = vmatprep.subr.bf16.mxu0 0
        %5314 = vmatpush1.bf16.msra.mxu0 %v5297
        %5315 = vmatprep.subr.bf16.mxu0 0
        %5316 = vmatpush1.bf16.msra.mxu0 %v5298
        %5317 = vmatprep.subr.bf16.mxu0 0
        %5318 = vmatpush1.bf16.msra.mxu0 %v5299
        %5319 = vmatprep.subr.bf16.mxu0 0
        %5320 = vmatpush1.bf16.msra.mxu0 %v5300
        %5321 = vmatprep.subr.bf16.mxu0 0
        %5322 = vmatpush1.bf16.msra.mxu0 %v5301
        %5323 = vmatprep.subr.bf16.mxu0 0
        %5324 = vmatpush1.bf16.msra.mxu0 %v5302
        %5325 = vmatprep.subr.bf16.mxu0 0
        %5326 = vmatpush1.bf16.msra.mxu0 %v5303
        %5327 = vmatprep.subr.bf16.mxu0 0
        %5328 = vmatpush1.bf16.msra.mxu0 %v5304
        %5329 = vmatprep.subr.bf16.mxu0 0
        %5330 = vmatpush1.bf16.msra.mxu0 0
        %5331 = vmatprep.subr.bf16.mxu0 0
        %5332 = vmatpush1.bf16.msra.mxu0 0
        %5333 = vmatprep.subr.bf16.mxu0 0
        %5334 = vmatpush1.bf16.msra.mxu0 0
        %5335 = vmatprep.subr.bf16.mxu0 0
        %5336 = vmatpush1.bf16.msra.mxu0 0
        %5337 = vmatprep.subr.bf16.mxu0 0
        %5338 = vmatpush1.bf16.msra.mxu0 0
        %5339 = vmatprep.subr.bf16.mxu0 0
        %5340 = vmatpush1.bf16.msra.mxu0 0
        %5341 = vmatprep.subr.bf16.mxu0 0
        %5342 = vmatpush1.bf16.msra.mxu0 0
        %5343 = vmatprep.subr.bf16.mxu0 0
        %5344 = vmatpush1.bf16.msra.mxu0 0
        %5345 = vmatprep.mubr.bf16.mxu0 0
        %5346 = vmatmul.mubr.bf16.gmra.mrb[0].mxu0 %v5264
        %v5347 = vpop.f32.mrb[0].mxu0
        %v5348 = vadd.f32 %v5263, %v5347
        %v5349 = vpop.f32.mrb[0].mxu0
        %v5350 = vpop.f32.mrb[0].mxu0
        %v5351 = vpop.f32.mrb[0].mxu0
        %5352 = vdwg.mxu0
        %5353 = vst [vmem:[%s812] sm:$0x1] %v5348
        %s5354 = sand.u32 %s604, 1
        %s5355 = scalar_lea.sflag [#allocation3], %s5354
        %s5356 = sand.u32 %s604, 1
        %s5357 = scalar_lea.vmem [#allocation2], %s5356
        %s5358 = sand.u32 %s630, 1
        %s5359 = scalar_lea.sflag [#allocation5], %s5358
        %s5360 = sand.u32 %s630, 1
        %s5361 = smul.addr %s5360, 8
        %s5362 = scalar_lea.vmem [#allocation4], %s5361
        // Predicated region
        $region125: #{tpu_custom_call.1} parent=123 // pred_check
          %p5363 = pneg %p614
        $region126: #{tpu_custom_call.1} parent=123 // pred_check_branch
          %5365 = sbr.rel (%p5363) target = $region128
        $region127: #{tpu_custom_call.1} parent=123 // pred_region
          %s5367 = ssub.s32 16, 16
          %5368 = vsyncadd %s5355, %s5367
          %s5369 = smul.addr %s45, 16
          %s5370 = scalar_lea.hbm %s26, %s5369
          %s5372 = sshll.u32 %s5357, 4
          %s5373 = int_to_ptr.vmem [resolvable:$true] %s5372
          %5375 = dma.vmem_to_hbm [thread:$0]  %s5373, 16, %s5370, %s5355
        $region128: #{tpu_custom_call.1} parent=123 // pred_fallthru
          _
        // Predicated region
        $region129: #{tpu_custom_call.1} parent=123 // pred_check
          %p5376 = pneg %p640
        $region130: #{tpu_custom_call.1} parent=123 // pred_check_branch
          %5378 = sbr.rel (%p5376) target = $region132
        $region131: #{tpu_custom_call.1} parent=123 // pred_region
          %s5380 = ssub.s32 128, 128
          %5381 = vsyncadd %s5359, %s5380
          %s5382 = smul.addr %s45, 128
          %s5383 = scalar_lea.hbm %s27, %s5382
          %s5385 = sshll.u32 %s5362, 4
          %s5386 = int_to_ptr.vmem [resolvable:$true] %s5385
          %5388 = dma.vmem_to_hbm [thread:$0]  %s5386, 128, %s5383, %s5359
        $region132: #{tpu_custom_call.1} parent=123 // pred_fallthru
          _
      $region124: #{tpu_custom_call.1} parent=5 // pred_fallthru
        _
      %p5389 = scmp.le.s32.totalorder 2, %s40
      // Predicated region
      $region133: #{tpu_custom_call.1} parent=5 // pred_check
        %p5390 = pneg %p5389
      $region134: #{tpu_custom_call.1} parent=5 // pred_check_branch
        %5392 = sbr.rel (%p5390) target = $region136
      $region135: #{tpu_custom_call.1} parent=5 // pred_region
        %s5393 = ssub.s32 %s40, 2
        // Predicated region
        $region137: #{tpu_custom_call.1} parent=135 // pred_check
          %p5394 = pneg %p620
        $region138: #{tpu_custom_call.1} parent=135 // pred_check_branch
          %5396 = sbr.rel (%p5394) target = $region140
        $region139: #{tpu_custom_call.1} parent=135 // pred_region
          %s5397 = sand.u32 %s605, 1
          %s5398 = scalar_lea.sflag [#allocation3], %s5397
          %s5399 = sand.u32 %s605, 1
          %s5400 = scalar_lea.vmem [#allocation2], %s5399
          %5401 = dma.done %s5398, 16
        $region140: #{tpu_custom_call.1} parent=135 // pred_fallthru
          _
        // Predicated region
        $region141: #{tpu_custom_call.1} parent=135 // pred_check
          %p5402 = pneg %p646
        $region142: #{tpu_custom_call.1} parent=135 // pred_check_branch
          %5404 = sbr.rel (%p5402) target = $region144
        $region143: #{tpu_custom_call.1} parent=135 // pred_region
          %s5405 = sand.u32 %s631, 1
          %s5406 = scalar_lea.sflag [#allocation5], %s5405
          %s5407 = sand.u32 %s631, 1
          %s5408 = smul.addr %s5407, 8
          %s5409 = scalar_lea.vmem [#allocation4], %s5408
          %5410 = dma.done %s5406, 128
        $region144: #{tpu_custom_call.1} parent=135 // pred_fallthru
          _
      $region136: #{tpu_custom_call.1} parent=5 // pred_fallthru
        _
    $region6: #{tpu_custom_call.1} parent=1 // loop_footer
      %s44 = sadd.s32 1, %s40
    $region7: #{tpu_custom_call.1} parent=1 // loop_footer_branch
      %39 = sbr.rel target = $region3
    $region8: #{tpu_custom_call.1} parent=1 // loop_exit
      _
    %5411 = vsyncpa [#allocation3], 1
    %s5412 = scalar_lea.sflag [#allocation3], 1
    %5413 = vsyncpa %s5412, 1
    %5414 = vsyncpa [#allocation5], 1
    %s5415 = scalar_lea.sflag [#allocation5], 1
    %5416 = vsyncpa %s5415, 1

</llo_original>
